<compile_context>
chip_gen: v5e
topology: v5e:2x2
jax: 0.10.0
libtpu: 0.0.40
codegen_flags: <defaults>
</compile_context>

<pallas_src>
import functools

import jax
import jax.numpy as jnp
from jax import lax
from jax.experimental import pallas as pl
from jax.experimental.pallas import tpu as pltpu


def _round_up(v, m):
    return ((v + m - 1) // m) * m


# ------------------------------ fused kernel ------------------------------- #

def _gcn_res_fused_kernel(nclass,
                          x_ref, adj_ref,
                          w1_ref, b1_ref,
                          w2_hbm, b2_ref,
                          w3_hbm, b3_ref,
                          w4_ref, b4_ref,
                          w5_ref, b5_ref,
                          out_ref,
                          wbuf, sem):
    hidden = w1_ref.shape[1]
    k_slab = wbuf.shape[1]
    nbuf = wbuf.shape[0]          # 3: two slabs in flight + one being consumed
    nslab = hidden // k_slab
    total = 2 * nslab             # slabs [0, nslab) -> w2, [nslab, 2*nslab) -> w3

    def issue(g, slot):
        src = w2_hbm if g < nslab else w3_hbm
        k = g % nslab
        pltpu.make_async_copy(
            src.at[pl.ds(k * k_slab, k_slab), :],
            wbuf.at[slot], sem.at[slot]).start()

    def wait(slot):
        pltpu.make_async_copy(
            w2_hbm.at[pl.ds(0, k_slab), :],       # shape-only descriptor
            wbuf.at[slot], sem.at[slot]).wait()

    # Prime two weight slabs so their DMA hides under layer-1 compute.
    issue(0, 0 % nbuf)
    issue(1, 1 % nbuf)

    adj = adj_ref[...]                                    # bf16 [N, N]

    def aggregate(t_f32, b_ref):
        # adj @ t + b, ReLU.  MXU operands bf16, accumulation f32.
        z = jnp.dot(adj, t_f32.astype(jnp.bfloat16),
                    preferred_element_type=jnp.float32) + b_ref[...]
        return jnp.maximum(z, 0.0)

    # ---- layer 1: gc1 (resident 32x1024 weight) --------------------------
    t1 = jnp.dot(x_ref[...], w1_ref[...], preferred_element_type=jnp.float32)
    h1 = aggregate(t1, b1_ref)

    # ---- layers 2 & 3: gc2 / gc3 with K-slab streamed 1024x1024 weights --
    def streamed_layer(h_f32, base, b_ref):
        h_bf = h_f32.astype(jnp.bfloat16)
        acc = jnp.zeros((h_f32.shape[0], hidden), jnp.float32)
        for s in range(nslab):                    # static unroll (nslab = 4)
            g = base + s
            slot = g % nbuf
            nxt = g + 2
            if nxt < total:                       # keep two slabs in flight
                issue(nxt, nxt % nbuf)            # target slot consumed last iter
            wait(slot)
            acc = acc + jnp.dot(
                h_bf[:, s * k_slab:(s + 1) * k_slab], wbuf[slot],
                preferred_element_type=jnp.float32)
        return aggregate(acc, b_ref)

    h2 = streamed_layer(h1, 0, b2_ref)                # relu(gc2(x))
    h3 = streamed_layer(h2 + h1, nslab, b3_ref)       # x += id1 ; relu(gc3(x))

    # ---- layer 4: gc4 (resident, output padded 64 -> 128) ----------------
    t4 = jnp.dot((h3 + h2).astype(jnp.bfloat16), w4_ref[...],   # x += id2
                 preferred_element_type=jnp.float32)
    h4 = aggregate(t4, b4_ref)                        # [N, 128]; pad lanes == 0

    # ---- layer 5: gc5 (resident, padded to 128x128) ----------------------
    t5 = jnp.dot(h4.astype(jnp.bfloat16), w5_ref[...],
                 preferred_element_type=jnp.float32)
    z5 = aggregate(t5, b5_ref)                        # relu(gc5); pad lanes == 0

    # ---- log_softmax over the real classes (finite values everywhere) ----
    col = lax.broadcasted_iota(jnp.int32, z5.shape, 1)
    valid = col < nclass
    zm = jnp.where(valid, z5, jnp.float32(-1e30))
    m = jnp.max(zm, axis=-1, keepdims=True)
    e = jnp.where(valid, jnp.exp(z5 - m), 0.0)
    lse = jnp.log(jnp.sum(e, axis=-1, keepdims=True)) + m
    out_ref[...] = jnp.where(valid, z5 - lse, 0.0)


# -------------------------------- wrapper ---------------------------------- #

def prepare_params(params):
    """One-time parameter prep: lane-dense padding, bias reshape, bf16 cast."""
    (w1, b1), (w2, b2), (w3, b3), (w4, b4), (w5, b5) = params
    bf = jnp.bfloat16
    f4 = w4.shape[1]
    nclass = w5.shape[1]
    f4p = _round_up(f4, 128)
    cpad = _round_up(nclass, 128)
    prepared = {
        "w1": w1.astype(bf), "b1": b1.reshape(1, -1),
        "w2": w2.astype(bf), "b2": b2.reshape(1, -1),
        "w3": w3.astype(bf), "b3": b3.reshape(1, -1),
        "w4": jnp.pad(w4, ((0, 0), (0, f4p - f4))).astype(bf),
        "b4": jnp.pad(b4, (0, f4p - f4)).reshape(1, -1),
        "w5": jnp.pad(w5, ((0, f4p - f4), (0, cpad - nclass))).astype(bf),
        "b5": jnp.pad(b5, (0, cpad - nclass)).reshape(1, -1),
    }
    return prepared, nclass


@functools.partial(jax.jit, static_argnames=("nclass", "k_slab"))
def gcn_res_forward(x, adj, prepared, *, nclass, k_slab=256):
    """Full GCN_res forward (relu layers, residuals, log_softmax) in one call."""
    n = x.shape[0]
    p = prepared
    hidden = p["w1"].shape[1]
    f4p = p["w4"].shape[1]
    c_pad = p["w5"].shape[1]
    assert hidden % k_slab == 0 and hidden // k_slab >= 2

    ins = [x.astype(jnp.bfloat16), adj.astype(jnp.bfloat16),
           p["w1"], p["b1"], p["w2"], p["b2"], p["w3"], p["b3"],
           p["w4"], p["b4"], p["w5"], p["b5"]]
    streamed_idx = (4, 6)                      # w2, w3: manual HBM -> VMEM slabs

    def vmem_full(a):
        nd = a.ndim
        return pl.BlockSpec(a.shape, lambda i: (0,) * nd)

    in_specs = [pl.BlockSpec(memory_space=pl.ANY) if i in streamed_idx
                else vmem_full(a) for i, a in enumerate(ins)]

    # Advisory cost: both matmuls per layer + softmax transcendentals.
    layer_dims = [(x.shape[1], hidden), (hidden, hidden), (hidden, hidden),
                  (hidden, f4p), (f4p, c_pad)]
    flops = sum(2 * n * fi * fo + 2 * n * n * fo for fi, fo in layer_dims)
    bytes_accessed = sum(int(a.size) * a.dtype.itemsize for a in ins) + n * c_pad * 4
    cost = pl.CostEstimate(flops=flops, transcendentals=n * (c_pad + 1),
                           bytes_accessed=bytes_accessed)

    nbuf = 3                                   # weight-slab buffers (triple)
    out = pl.pallas_call(
        functools.partial(_gcn_res_fused_kernel, nclass),
        out_shape=jax.ShapeDtypeStruct((n, c_pad), jnp.float32),
        grid_spec=pltpu.PrefetchScalarGridSpec(
            num_scalar_prefetch=0,
            grid=(1,),
            in_specs=in_specs,
            out_specs=pl.BlockSpec((n, c_pad), lambda i: (0, 0)),
            scratch_shapes=[
                pltpu.VMEM((nbuf, k_slab, hidden), jnp.bfloat16),
                pltpu.SemaphoreType.DMA((nbuf,)),
            ]),
        compiler_params=pltpu.CompilerParams(
            dimension_semantics=("arbitrary",),
            vmem_limit_bytes=20 * 1024 * 1024,   # ~5 MB live; ample headroom
        ),
        cost_estimate=cost,
    )(*ins)
    return out[:, :nclass]


# ------------------------------- references -------------------------------- #

def gcn_res_reference(x, adj, params, *, bf16_matmul):
    """Pure-JAX reference.  bf16_matmul=True mirrors the kernel's MXU precision."""
    cast = (lambda v: v.astype(jnp.bfloat16)) if bf16_matmul else (lambda v: v)
    adj_c = cast(adj)

    def layer(h, w, b):
        t = jnp.dot(cast(h), cast(w), preferred_element_type=jnp.float32)
        z = jnp.dot(adj_c, cast(t), preferred_element_type=jnp.float32) + b
        return jnp.maximum(z, 0.0)

    (w1, b1), (w2, b2), (w3, b3), (w4, b4), (w5, b5) = params
    h = layer(x, w1, b1)
    id1 = h
    h = layer(h, w2, b2)
    id2 = h
    h = h + id1
    h = layer(h, w3, b3)
    h = h + id2
    h = layer(h, w4, b4)
    h = layer(h, w5, b5)           # trailing ReLU before log_softmax, as in PyTorch
    return jax.nn.log_softmax(h, axis=1)


def init_params(key, nfeat, nclass):
    dims = [(nfeat, 1024), (1024, 1024), (1024, 1024), (1024, 64), (64, nclass)]
    params = []
    for (fin, fout) in dims:
        key, kw, kb = jax.random.split(key, 3)
        bound = 1.0 / jnp.sqrt(fout)   # matches GraphConvolution.reset_parameters
        w = jax.random.uniform(kw, (fin, fout), jnp.float32, -bound, bound)
        b = jax.random.uniform(kb, (fout,), jnp.float32, -bound, bound)
        params.append((w, b))
    return params


# ---------------------------------- main ----------------------------------- #

if __name__ == "__main__":
    N, NFEAT, NCLASS = 64, 32, 8

    key = jax.random.PRNGKey(0)
    key, kx, ka = jax.random.split(key, 3)

    x = jax.random.normal(kx, (N, NFEAT), jnp.float32)

    # Symmetric normalized adjacency (dense, deterministic).
    a = jax.random.uniform(ka, (N, N), jnp.float32)
    a = (a + a.T) * 0.5 + jnp.eye(N, dtype=jnp.float32)
    deg = jnp.sum(a, axis=1, keepdims=True)
    adj = a / jnp.sqrt(deg) / jnp.sqrt(deg.T)

    params = init_params(key, NFEAT, NCLASS)

    prepared, nclass = prepare_params(params)            # one-time, out of hot path
    out = gcn_res_forward(x, adj, prepared, nclass=nclass)
    out = jax.block_until_ready(out)
    assert out.shape == (N, NCLASS)

    # Hard check vs. a reference using the same bf16-operand / f32-accum matmuls.
    ref_bf = gcn_res_reference(x, adj, params, bf16_matmul=True)
    assert jnp.allclose(out, ref_bf, rtol=1e-3, atol=1e-3), \
        "mismatch vs. bf16-matched JAX reference"

    # Loose sanity check vs. the pure-f32 reference (bf16 MXU operands only
    # perturb the log-probs at the few-1e-3 level for these scales).
    ref_f32 = gcn_res_reference(x, adj, params, bf16_matmul=False)
    assert jnp.allclose(out, ref_f32, rtol=5e-2, atol=5e-2), \
        "mismatch vs. f32 JAX reference"

    print("KERNEL_OK")
</pallas_src>

<mosaic_0001>
module attributes {stable_mosaic.version = 11 : i64} {
  func.func @_gcn_res_fused_kernel(%arg0: i32, %arg1: memref<64x32xbf16, #tpu.memory_space<vmem>>, %arg2: memref<64x64xbf16, #tpu.memory_space<vmem>>, %arg3: memref<32x1024xbf16, #tpu.memory_space<vmem>>, %arg4: memref<1x1024xf32, #tpu.memory_space<vmem>>, %arg5: memref<1024x1024xbf16, #tpu.memory_space<any>>, %arg6: memref<1x1024xf32, #tpu.memory_space<vmem>>, %arg7: memref<1024x1024xbf16, #tpu.memory_space<any>>, %arg8: memref<1x1024xf32, #tpu.memory_space<vmem>>, %arg9: memref<1024x128xbf16, #tpu.memory_space<vmem>>, %arg10: memref<1x128xf32, #tpu.memory_space<vmem>>, %arg11: memref<128x128xbf16, #tpu.memory_space<vmem>>, %arg12: memref<1x128xf32, #tpu.memory_space<vmem>>, %arg13: memref<64x128xf32, #tpu.memory_space<vmem>>, %arg14: memref<3x256x1024xbf16, #tpu.memory_space<vmem>>, %arg15: memref<3x!tpu.dma_semaphore, #tpu.memory_space<semaphore_mem>>) attributes {dimension_semantics = [#tpu.dimension_semantics<arbitrary>], iteration_bounds = array<i64: 1>, scalar_prefetch = 0 : i64, scratch_operands = 2 : i64, tpu.core_type = #tpu.core_type<tc>, window_params = [{pipeline_mode = #tpu.pipeline_mode<synchronous>, transform_indices = @transform_0, window_bounds = array<i64: 64, 32>}, {pipeline_mode = #tpu.pipeline_mode<synchronous>, transform_indices = @transform_1, window_bounds = array<i64: 64, 64>}, {pipeline_mode = #tpu.pipeline_mode<synchronous>, transform_indices = @transform_2, window_bounds = array<i64: 32, 1024>}, {pipeline_mode = #tpu.pipeline_mode<synchronous>, transform_indices = @transform_3, window_bounds = array<i64: 1, 1024>}, {}, {pipeline_mode = #tpu.pipeline_mode<synchronous>, transform_indices = @transform_5, window_bounds = array<i64: 1, 1024>}, {}, {pipeline_mode = #tpu.pipeline_mode<synchronous>, transform_indices = @transform_7, window_bounds = array<i64: 1, 1024>}, {pipeline_mode = #tpu.pipeline_mode<synchronous>, transform_indices = @transform_8, window_bounds = array<i64: 1024, 128>}, {pipeline_mode = #tpu.pipeline_mode<synchronous>, transform_indices = @transform_9, window_bounds = array<i64: 1, 128>}, {pipeline_mode = #tpu.pipeline_mode<synchronous>, transform_indices = @transform_10, window_bounds = array<i64: 128, 128>}, {pipeline_mode = #tpu.pipeline_mode<synchronous>, transform_indices = @transform_11, window_bounds = array<i64: 1, 128>}, {pipeline_mode = #tpu.pipeline_mode<synchronous>, transform_indices = @transform_12, window_bounds = array<i64: 64, 128>}]} {
    %c0_i32 = arith.constant 0 : i32
    %c0_i32_0 = arith.constant 0 : i32
    %c0_i32_1 = arith.constant 0 : i32
    %c0_i32_2 = arith.constant 0 : i32
    %0 = tpu.memref_slice %arg5[%c0_i32_1, %c0_i32_2] : memref<1024x1024xbf16, #tpu.memory_space<any>> -> memref<256x1024xbf16, #tpu.memory_space<any>>
    %c0_i32_3 = arith.constant 0 : i32
    %c0_i32_4 = arith.constant 0 : i32
    %1 = tpu.memref_slice %arg14[%c0_i32, %c0_i32_3, %c0_i32_4] : memref<3x256x1024xbf16, #tpu.memory_space<vmem>> -> memref<1x256x1024xbf16, #tpu.memory_space<vmem>>
    %2 = tpu.memref_squeeze %1 : memref<1x256x1024xbf16, #tpu.memory_space<vmem>> -> memref<256x1024xbf16, #tpu.memory_space<vmem>>
    %3 = tpu.memref_slice %arg15[%c0_i32_0] : memref<3x!tpu.dma_semaphore, #tpu.memory_space<semaphore_mem>> -> memref<1x!tpu.dma_semaphore, #tpu.memory_space<semaphore_mem>>
    %4 = tpu.memref_squeeze %3 : memref<1x!tpu.dma_semaphore, #tpu.memory_space<semaphore_mem>> -> memref<!tpu.dma_semaphore, #tpu.memory_space<semaphore_mem>>
    tpu.enqueue_dma source(%0 : memref<256x1024xbf16, #tpu.memory_space<any>>) target(%2 : memref<256x1024xbf16, #tpu.memory_space<vmem>>) target_semaphore(%4 : memref<!tpu.dma_semaphore, #tpu.memory_space<semaphore_mem>>)
    %c1_i32 = arith.constant 1 : i32
    %c1_i32_5 = arith.constant 1 : i32
    %c256_i32 = arith.constant 256 : i32
    %c0_i32_6 = arith.constant 0 : i32
    %5 = tpu.memref_slice %arg5[%c256_i32, %c0_i32_6] : memref<1024x1024xbf16, #tpu.memory_space<any>> -> memref<256x1024xbf16, #tpu.memory_space<any>>
    %c0_i32_7 = arith.constant 0 : i32
    %c0_i32_8 = arith.constant 0 : i32
    %6 = tpu.memref_slice %arg14[%c1_i32, %c0_i32_7, %c0_i32_8] : memref<3x256x1024xbf16, #tpu.memory_space<vmem>> -> memref<1x256x1024xbf16, #tpu.memory_space<vmem>>
    %7 = tpu.memref_squeeze %6 : memref<1x256x1024xbf16, #tpu.memory_space<vmem>> -> memref<256x1024xbf16, #tpu.memory_space<vmem>>
    %8 = tpu.memref_slice %arg15[%c1_i32_5] : memref<3x!tpu.dma_semaphore, #tpu.memory_space<semaphore_mem>> -> memref<1x!tpu.dma_semaphore, #tpu.memory_space<semaphore_mem>>
    %9 = tpu.memref_squeeze %8 : memref<1x!tpu.dma_semaphore, #tpu.memory_space<semaphore_mem>> -> memref<!tpu.dma_semaphore, #tpu.memory_space<semaphore_mem>>
    tpu.enqueue_dma source(%5 : memref<256x1024xbf16, #tpu.memory_space<any>>) target(%7 : memref<256x1024xbf16, #tpu.memory_space<vmem>>) target_semaphore(%9 : memref<!tpu.dma_semaphore, #tpu.memory_space<semaphore_mem>>)
    %c0 = arith.constant 0 : index
    %c0_9 = arith.constant 0 : index
    %10 = vector.load %arg2[%c0, %c0_9] : memref<64x64xbf16, #tpu.memory_space<vmem>>, vector<64x64xbf16>
    %c0_10 = arith.constant 0 : index
    %c0_11 = arith.constant 0 : index
    %11 = vector.load %arg1[%c0_10, %c0_11] : memref<64x32xbf16, #tpu.memory_space<vmem>>, vector<64x32xbf16>
    %c0_12 = arith.constant 0 : index
    %c0_13 = arith.constant 0 : index
    %12 = vector.load %arg3[%c0_12, %c0_13] : memref<32x1024xbf16, #tpu.memory_space<vmem>>, vector<32x1024xbf16>
    %cst = arith.constant dense<0.000000e+00> : vector<64x1024xf32>
    %13 = tpu.matmul %11, %12, %cst {dimension_numbers = #tpu.dot_dimension_numbers<[1], [0], [0], [1], [0, 0, 1, 1], [], []>} : vector<64x32xbf16>, vector<32x1024xbf16>, vector<64x1024xf32> -> vector<64x1024xf32>
    %14 = arith.truncf %13 : vector<64x1024xf32> to vector<64x1024xbf16>
    %cst_14 = arith.constant dense<0.000000e+00> : vector<64x1024xf32>
    %15 = tpu.matmul %10, %14, %cst_14 {dimension_numbers = #tpu.dot_dimension_numbers<[1], [0], [0], [1], [0, 0, 1, 1], [], []>} : vector<64x64xbf16>, vector<64x1024xbf16>, vector<64x1024xf32> -> vector<64x1024xf32>
    %c0_15 = arith.constant 0 : index
    %c0_16 = arith.constant 0 : index
    %16 = vector.load %arg4[%c0_15, %c0_16] : memref<1x1024xf32, #tpu.memory_space<vmem>>, vector<1x1024xf32>
    %17 = vector.broadcast %16 : vector<1x1024xf32> to vector<64x1024xf32>
    %18 = arith.addf %15, %17 : vector<64x1024xf32>
    %cst_17 = arith.constant 0.000000e+00 : f32
    %19 = vector.broadcast %cst_17 : f32 to vector<64x1024xf32>
    %20 = arith.maximumf %18, %19 : vector<64x1024xf32>
    %21 = arith.truncf %20 : vector<64x1024xf32> to vector<64x1024xbf16>
    %cst_18 = arith.constant 0.000000e+00 : f32
    %22 = vector.broadcast %cst_18 : f32 to vector<64x1024xf32>
    %c2_i32 = arith.constant 2 : i32
    %c2_i32_19 = arith.constant 2 : i32
    %c512_i32 = arith.constant 512 : i32
    %c0_i32_20 = arith.constant 0 : i32
    %23 = tpu.memref_slice %arg5[%c512_i32, %c0_i32_20] : memref<1024x1024xbf16, #tpu.memory_space<any>> -> memref<256x1024xbf16, #tpu.memory_space<any>>
    %c0_i32_21 = arith.constant 0 : i32
    %c0_i32_22 = arith.constant 0 : i32
    %24 = tpu.memref_slice %arg14[%c2_i32, %c0_i32_21, %c0_i32_22] : memref<3x256x1024xbf16, #tpu.memory_space<vmem>> -> memref<1x256x1024xbf16, #tpu.memory_space<vmem>>
    %25 = tpu.memref_squeeze %24 : memref<1x256x1024xbf16, #tpu.memory_space<vmem>> -> memref<256x1024xbf16, #tpu.memory_space<vmem>>
    %26 = tpu.memref_slice %arg15[%c2_i32_19] : memref<3x!tpu.dma_semaphore, #tpu.memory_space<semaphore_mem>> -> memref<1x!tpu.dma_semaphore, #tpu.memory_space<semaphore_mem>>
    %27 = tpu.memref_squeeze %26 : memref<1x!tpu.dma_semaphore, #tpu.memory_space<semaphore_mem>> -> memref<!tpu.dma_semaphore, #tpu.memory_space<semaphore_mem>>
    tpu.enqueue_dma source(%23 : memref<256x1024xbf16, #tpu.memory_space<any>>) target(%25 : memref<256x1024xbf16, #tpu.memory_space<vmem>>) target_semaphore(%27 : memref<!tpu.dma_semaphore, #tpu.memory_space<semaphore_mem>>)
    %c0_i32_23 = arith.constant 0 : i32
    %c0_i32_24 = arith.constant 0 : i32
    %c0_i32_25 = arith.constant 0 : i32
    %c0_i32_26 = arith.constant 0 : i32
    %28 = tpu.memref_slice %arg5[%c0_i32_25, %c0_i32_26] : memref<1024x1024xbf16, #tpu.memory_space<any>> -> memref<256x1024xbf16, #tpu.memory_space<any>>
    %c0_i32_27 = arith.constant 0 : i32
    %c0_i32_28 = arith.constant 0 : i32
    %29 = tpu.memref_slice %arg14[%c0_i32_23, %c0_i32_27, %c0_i32_28] : memref<3x256x1024xbf16, #tpu.memory_space<vmem>> -> memref<1x256x1024xbf16, #tpu.memory_space<vmem>>
    %30 = tpu.memref_squeeze %29 : memref<1x256x1024xbf16, #tpu.memory_space<vmem>> -> memref<256x1024xbf16, #tpu.memory_space<vmem>>
    %31 = tpu.memref_slice %arg15[%c0_i32_24] : memref<3x!tpu.dma_semaphore, #tpu.memory_space<semaphore_mem>> -> memref<1x!tpu.dma_semaphore, #tpu.memory_space<semaphore_mem>>
    %32 = tpu.memref_squeeze %31 : memref<1x!tpu.dma_semaphore, #tpu.memory_space<semaphore_mem>> -> memref<!tpu.dma_semaphore, #tpu.memory_space<semaphore_mem>>
    tpu.wait_dma2 semaphore(%32 : memref<!tpu.dma_semaphore, #tpu.memory_space<semaphore_mem>>) src(%28 : memref<256x1024xbf16, #tpu.memory_space<any>>) dst(%30 : memref<256x1024xbf16, #tpu.memory_space<vmem>>)
    %33 = vector.extract_strided_slice %21 {offsets = [0, 0], sizes = [64, 256], strides = [1, 1]} : vector<64x1024xbf16> to vector<64x256xbf16>
    %c0_29 = arith.constant 0 : index
    %c0_30 = arith.constant 0 : index
    %c0_31 = arith.constant 0 : index
    %34 = vector.load %arg14[%c0_29, %c0_30, %c0_31] : memref<3x256x1024xbf16, #tpu.memory_space<vmem>>, vector<1x256x1024xbf16>
    %35 = vector.shape_cast %34 : vector<1x256x1024xbf16> to vector<256x1024xbf16>
    %cst_32 = arith.constant dense<0.000000e+00> : vector<64x1024xf32>
    %36 = tpu.matmul %33, %35, %cst_32 {dimension_numbers = #tpu.dot_dimension_numbers<[1], [0], [0], [1], [0, 0, 1, 1], [], []>} : vector<64x256xbf16>, vector<256x1024xbf16>, vector<64x1024xf32> -> vector<64x1024xf32>
    %37 = arith.addf %22, %36 : vector<64x1024xf32>
    %c0_i32_33 = arith.constant 0 : i32
    %c0_i32_34 = arith.constant 0 : i32
    %c768_i32 = arith.constant 768 : i32
    %c0_i32_35 = arith.constant 0 : i32
    %38 = tpu.memref_slice %arg5[%c768_i32, %c0_i32_35] : memref<1024x1024xbf16, #tpu.memory_space<any>> -> memref<256x1024xbf16, #tpu.memory_space<any>>
    %c0_i32_36 = arith.constant 0 : i32
    %c0_i32_37 = arith.constant 0 : i32
    %39 = tpu.memref_slice %arg14[%c0_i32_33, %c0_i32_36, %c0_i32_37] : memref<3x256x1024xbf16, #tpu.memory_space<vmem>> -> memref<1x256x1024xbf16, #tpu.memory_space<vmem>>
    %40 = tpu.memref_squeeze %39 : memref<1x256x1024xbf16, #tpu.memory_space<vmem>> -> memref<256x1024xbf16, #tpu.memory_space<vmem>>
    %41 = tpu.memref_slice %arg15[%c0_i32_34] : memref<3x!tpu.dma_semaphore, #tpu.memory_space<semaphore_mem>> -> memref<1x!tpu.dma_semaphore, #tpu.memory_space<semaphore_mem>>
    %42 = tpu.memref_squeeze %41 : memref<1x!tpu.dma_semaphore, #tpu.memory_space<semaphore_mem>> -> memref<!tpu.dma_semaphore, #tpu.memory_space<semaphore_mem>>
    tpu.enqueue_dma source(%38 : memref<256x1024xbf16, #tpu.memory_space<any>>) target(%40 : memref<256x1024xbf16, #tpu.memory_space<vmem>>) target_semaphore(%42 : memref<!tpu.dma_semaphore, #tpu.memory_space<semaphore_mem>>)
    %c1_i32_38 = arith.constant 1 : i32
    %c1_i32_39 = arith.constant 1 : i32
    %c0_i32_40 = arith.constant 0 : i32
    %c0_i32_41 = arith.constant 0 : i32
    %43 = tpu.memref_slice %arg5[%c0_i32_40, %c0_i32_41] : memref<1024x1024xbf16, #tpu.memory_space<any>> -> memref<256x1024xbf16, #tpu.memory_space<any>>
    %c0_i32_42 = arith.constant 0 : i32
    %c0_i32_43 = arith.constant 0 : i32
    %44 = tpu.memref_slice %arg14[%c1_i32_38, %c0_i32_42, %c0_i32_43] : memref<3x256x1024xbf16, #tpu.memory_space<vmem>> -> memref<1x256x1024xbf16, #tpu.memory_space<vmem>>
    %45 = tpu.memref_squeeze %44 : memref<1x256x1024xbf16, #tpu.memory_space<vmem>> -> memref<256x1024xbf16, #tpu.memory_space<vmem>>
    %46 = tpu.memref_slice %arg15[%c1_i32_39] : memref<3x!tpu.dma_semaphore, #tpu.memory_space<semaphore_mem>> -> memref<1x!tpu.dma_semaphore, #tpu.memory_space<semaphore_mem>>
    %47 = tpu.memref_squeeze %46 : memref<1x!tpu.dma_semaphore, #tpu.memory_space<semaphore_mem>> -> memref<!tpu.dma_semaphore, #tpu.memory_space<semaphore_mem>>
    tpu.wait_dma2 semaphore(%47 : memref<!tpu.dma_semaphore, #tpu.memory_space<semaphore_mem>>) src(%43 : memref<256x1024xbf16, #tpu.memory_space<any>>) dst(%45 : memref<256x1024xbf16, #tpu.memory_space<vmem>>)
    %48 = vector.extract_strided_slice %21 {offsets = [0, 256], sizes = [64, 256], strides = [1, 1]} : vector<64x1024xbf16> to vector<64x256xbf16>
    %c1 = arith.constant 1 : index
    %c0_44 = arith.constant 0 : index
    %c0_45 = arith.constant 0 : index
    %49 = vector.load %arg14[%c1, %c0_44, %c0_45] : memref<3x256x1024xbf16, #tpu.memory_space<vmem>>, vector<1x256x1024xbf16>
    %50 = vector.shape_cast %49 : vector<1x256x1024xbf16> to vector<256x1024xbf16>
    %cst_46 = arith.constant dense<0.000000e+00> : vector<64x1024xf32>
    %51 = tpu.matmul %48, %50, %cst_46 {dimension_numbers = #tpu.dot_dimension_numbers<[1], [0], [0], [1], [0, 0, 1, 1], [], []>} : vector<64x256xbf16>, vector<256x1024xbf16>, vector<64x1024xf32> -> vector<64x1024xf32>
    %52 = arith.addf %37, %51 : vector<64x1024xf32>
    %c1_i32_47 = arith.constant 1 : i32
    %c1_i32_48 = arith.constant 1 : i32
    %c0_i32_49 = arith.constant 0 : i32
    %c0_i32_50 = arith.constant 0 : i32
    %53 = tpu.memref_slice %arg7[%c0_i32_49, %c0_i32_50] : memref<1024x1024xbf16, #tpu.memory_space<any>> -> memref<256x1024xbf16, #tpu.memory_space<any>>
    %c0_i32_51 = arith.constant 0 : i32
    %c0_i32_52 = arith.constant 0 : i32
    %54 = tpu.memref_slice %arg14[%c1_i32_47, %c0_i32_51, %c0_i32_52] : memref<3x256x1024xbf16, #tpu.memory_space<vmem>> -> memref<1x256x1024xbf16, #tpu.memory_space<vmem>>
    %55 = tpu.memref_squeeze %54 : memref<1x256x1024xbf16, #tpu.memory_space<vmem>> -> memref<256x1024xbf16, #tpu.memory_space<vmem>>
    %56 = tpu.memref_slice %arg15[%c1_i32_48] : memref<3x!tpu.dma_semaphore, #tpu.memory_space<semaphore_mem>> -> memref<1x!tpu.dma_semaphore, #tpu.memory_space<semaphore_mem>>
    %57 = tpu.memref_squeeze %56 : memref<1x!tpu.dma_semaphore, #tpu.memory_space<semaphore_mem>> -> memref<!tpu.dma_semaphore, #tpu.memory_space<semaphore_mem>>
    tpu.enqueue_dma source(%53 : memref<256x1024xbf16, #tpu.memory_space<any>>) target(%55 : memref<256x1024xbf16, #tpu.memory_space<vmem>>) target_semaphore(%57 : memref<!tpu.dma_semaphore, #tpu.memory_space<semaphore_mem>>)
    %c2_i32_53 = arith.constant 2 : i32
    %c2_i32_54 = arith.constant 2 : i32
    %c0_i32_55 = arith.constant 0 : i32
    %c0_i32_56 = arith.constant 0 : i32
    %58 = tpu.memref_slice %arg5[%c0_i32_55, %c0_i32_56] : memref<1024x1024xbf16, #tpu.memory_space<any>> -> memref<256x1024xbf16, #tpu.memory_space<any>>
    %c0_i32_57 = arith.constant 0 : i32
    %c0_i32_58 = arith.constant 0 : i32
    %59 = tpu.memref_slice %arg14[%c2_i32_53, %c0_i32_57, %c0_i32_58] : memref<3x256x1024xbf16, #tpu.memory_space<vmem>> -> memref<1x256x1024xbf16, #tpu.memory_space<vmem>>
    %60 = tpu.memref_squeeze %59 : memref<1x256x1024xbf16, #tpu.memory_space<vmem>> -> memref<256x1024xbf16, #tpu.memory_space<vmem>>
    %61 = tpu.memref_slice %arg15[%c2_i32_54] : memref<3x!tpu.dma_semaphore, #tpu.memory_space<semaphore_mem>> -> memref<1x!tpu.dma_semaphore, #tpu.memory_space<semaphore_mem>>
    %62 = tpu.memref_squeeze %61 : memref<1x!tpu.dma_semaphore, #tpu.memory_space<semaphore_mem>> -> memref<!tpu.dma_semaphore, #tpu.memory_space<semaphore_mem>>
    tpu.wait_dma2 semaphore(%62 : memref<!tpu.dma_semaphore, #tpu.memory_space<semaphore_mem>>) src(%58 : memref<256x1024xbf16, #tpu.memory_space<any>>) dst(%60 : memref<256x1024xbf16, #tpu.memory_space<vmem>>)
    %63 = vector.extract_strided_slice %21 {offsets = [0, 512], sizes = [64, 256], strides = [1, 1]} : vector<64x1024xbf16> to vector<64x256xbf16>
    %c2 = arith.constant 2 : index
    %c0_59 = arith.constant 0 : index
    %c0_60 = arith.constant 0 : index
    %64 = vector.load %arg14[%c2, %c0_59, %c0_60] : memref<3x256x1024xbf16, #tpu.memory_space<vmem>>, vector<1x256x1024xbf16>
    %65 = vector.shape_cast %64 : vector<1x256x1024xbf16> to vector<256x1024xbf16>
    %cst_61 = arith.constant dense<0.000000e+00> : vector<64x1024xf32>
    %66 = tpu.matmul %63, %65, %cst_61 {dimension_numbers = #tpu.dot_dimension_numbers<[1], [0], [0], [1], [0, 0, 1, 1], [], []>} : vector<64x256xbf16>, vector<256x1024xbf16>, vector<64x1024xf32> -> vector<64x1024xf32>
    %67 = arith.addf %52, %66 : vector<64x1024xf32>
    %c2_i32_62 = arith.constant 2 : i32
    %c2_i32_63 = arith.constant 2 : i32
    %c256_i32_64 = arith.constant 256 : i32
    %c0_i32_65 = arith.constant 0 : i32
    %68 = tpu.memref_slice %arg7[%c256_i32_64, %c0_i32_65] : memref<1024x1024xbf16, #tpu.memory_space<any>> -> memref<256x1024xbf16, #tpu.memory_space<any>>
    %c0_i32_66 = arith.constant 0 : i32
    %c0_i32_67 = arith.constant 0 : i32
    %69 = tpu.memref_slice %arg14[%c2_i32_62, %c0_i32_66, %c0_i32_67] : memref<3x256x1024xbf16, #tpu.memory_space<vmem>> -> memref<1x256x1024xbf16, #tpu.memory_space<vmem>>
    %70 = tpu.memref_squeeze %69 : memref<1x256x1024xbf16, #tpu.memory_space<vmem>> -> memref<256x1024xbf16, #tpu.memory_space<vmem>>
    %71 = tpu.memref_slice %arg15[%c2_i32_63] : memref<3x!tpu.dma_semaphore, #tpu.memory_space<semaphore_mem>> -> memref<1x!tpu.dma_semaphore, #tpu.memory_space<semaphore_mem>>
    %72 = tpu.memref_squeeze %71 : memref<1x!tpu.dma_semaphore, #tpu.memory_space<semaphore_mem>> -> memref<!tpu.dma_semaphore, #tpu.memory_space<semaphore_mem>>
    tpu.enqueue_dma source(%68 : memref<256x1024xbf16, #tpu.memory_space<any>>) target(%70 : memref<256x1024xbf16, #tpu.memory_space<vmem>>) target_semaphore(%72 : memref<!tpu.dma_semaphore, #tpu.memory_space<semaphore_mem>>)
    %c0_i32_68 = arith.constant 0 : i32
    %c0_i32_69 = arith.constant 0 : i32
    %c0_i32_70 = arith.constant 0 : i32
    %c0_i32_71 = arith.constant 0 : i32
    %73 = tpu.memref_slice %arg5[%c0_i32_70, %c0_i32_71] : memref<1024x1024xbf16, #tpu.memory_space<any>> -> memref<256x1024xbf16, #tpu.memory_space<any>>
    %c0_i32_72 = arith.constant 0 : i32
    %c0_i32_73 = arith.constant 0 : i32
    %74 = tpu.memref_slice %arg14[%c0_i32_68, %c0_i32_72, %c0_i32_73] : memref<3x256x1024xbf16, #tpu.memory_space<vmem>> -> memref<1x256x1024xbf16, #tpu.memory_space<vmem>>
    %75 = tpu.memref_squeeze %74 : memref<1x256x1024xbf16, #tpu.memory_space<vmem>> -> memref<256x1024xbf16, #tpu.memory_space<vmem>>
    %76 = tpu.memref_slice %arg15[%c0_i32_69] : memref<3x!tpu.dma_semaphore, #tpu.memory_space<semaphore_mem>> -> memref<1x!tpu.dma_semaphore, #tpu.memory_space<semaphore_mem>>
    %77 = tpu.memref_squeeze %76 : memref<1x!tpu.dma_semaphore, #tpu.memory_space<semaphore_mem>> -> memref<!tpu.dma_semaphore, #tpu.memory_space<semaphore_mem>>
    tpu.wait_dma2 semaphore(%77 : memref<!tpu.dma_semaphore, #tpu.memory_space<semaphore_mem>>) src(%73 : memref<256x1024xbf16, #tpu.memory_space<any>>) dst(%75 : memref<256x1024xbf16, #tpu.memory_space<vmem>>)
    %78 = vector.extract_strided_slice %21 {offsets = [0, 768], sizes = [64, 256], strides = [1, 1]} : vector<64x1024xbf16> to vector<64x256xbf16>
    %c0_74 = arith.constant 0 : index
    %c0_75 = arith.constant 0 : index
    %c0_76 = arith.constant 0 : index
    %79 = vector.load %arg14[%c0_74, %c0_75, %c0_76] : memref<3x256x1024xbf16, #tpu.memory_space<vmem>>, vector<1x256x1024xbf16>
    %80 = vector.shape_cast %79 : vector<1x256x1024xbf16> to vector<256x1024xbf16>
    %cst_77 = arith.constant dense<0.000000e+00> : vector<64x1024xf32>
    %81 = tpu.matmul %78, %80, %cst_77 {dimension_numbers = #tpu.dot_dimension_numbers<[1], [0], [0], [1], [0, 0, 1, 1], [], []>} : vector<64x256xbf16>, vector<256x1024xbf16>, vector<64x1024xf32> -> vector<64x1024xf32>
    %82 = arith.addf %67, %81 : vector<64x1024xf32>
    %83 = arith.truncf %82 : vector<64x1024xf32> to vector<64x1024xbf16>
    %cst_78 = arith.constant dense<0.000000e+00> : vector<64x1024xf32>
    %84 = tpu.matmul %10, %83, %cst_78 {dimension_numbers = #tpu.dot_dimension_numbers<[1], [0], [0], [1], [0, 0, 1, 1], [], []>} : vector<64x64xbf16>, vector<64x1024xbf16>, vector<64x1024xf32> -> vector<64x1024xf32>
    %c0_79 = arith.constant 0 : index
    %c0_80 = arith.constant 0 : index
    %85 = vector.load %arg6[%c0_79, %c0_80] : memref<1x1024xf32, #tpu.memory_space<vmem>>, vector<1x1024xf32>
    %86 = vector.broadcast %85 : vector<1x1024xf32> to vector<64x1024xf32>
    %87 = arith.addf %84, %86 : vector<64x1024xf32>
    %cst_81 = arith.constant 0.000000e+00 : f32
    %88 = vector.broadcast %cst_81 : f32 to vector<64x1024xf32>
    %89 = arith.maximumf %87, %88 : vector<64x1024xf32>
    %90 = arith.addf %89, %20 : vector<64x1024xf32>
    %91 = arith.truncf %90 : vector<64x1024xf32> to vector<64x1024xbf16>
    %cst_82 = arith.constant 0.000000e+00 : f32
    %92 = vector.broadcast %cst_82 : f32 to vector<64x1024xf32>
    %c0_i32_83 = arith.constant 0 : i32
    %c0_i32_84 = arith.constant 0 : i32
    %c512_i32_85 = arith.constant 512 : i32
    %c0_i32_86 = arith.constant 0 : i32
    %93 = tpu.memref_slice %arg7[%c512_i32_85, %c0_i32_86] : memref<1024x1024xbf16, #tpu.memory_space<any>> -> memref<256x1024xbf16, #tpu.memory_space<any>>
    %c0_i32_87 = arith.constant 0 : i32
    %c0_i32_88 = arith.constant 0 : i32
    %94 = tpu.memref_slice %arg14[%c0_i32_83, %c0_i32_87, %c0_i32_88] : memref<3x256x1024xbf16, #tpu.memory_space<vmem>> -> memref<1x256x1024xbf16, #tpu.memory_space<vmem>>
    %95 = tpu.memref_squeeze %94 : memref<1x256x1024xbf16, #tpu.memory_space<vmem>> -> memref<256x1024xbf16, #tpu.memory_space<vmem>>
    %96 = tpu.memref_slice %arg15[%c0_i32_84] : memref<3x!tpu.dma_semaphore, #tpu.memory_space<semaphore_mem>> -> memref<1x!tpu.dma_semaphore, #tpu.memory_space<semaphore_mem>>
    %97 = tpu.memref_squeeze %96 : memref<1x!tpu.dma_semaphore, #tpu.memory_space<semaphore_mem>> -> memref<!tpu.dma_semaphore, #tpu.memory_space<semaphore_mem>>
    tpu.enqueue_dma source(%93 : memref<256x1024xbf16, #tpu.memory_space<any>>) target(%95 : memref<256x1024xbf16, #tpu.memory_space<vmem>>) target_semaphore(%97 : memref<!tpu.dma_semaphore, #tpu.memory_space<semaphore_mem>>)
    %c1_i32_89 = arith.constant 1 : i32
    %c1_i32_90 = arith.constant 1 : i32
    %c0_i32_91 = arith.constant 0 : i32
    %c0_i32_92 = arith.constant 0 : i32
    %98 = tpu.memref_slice %arg5[%c0_i32_91, %c0_i32_92] : memref<1024x1024xbf16, #tpu.memory_space<any>> -> memref<256x1024xbf16, #tpu.memory_space<any>>
    %c0_i32_93 = arith.constant 0 : i32
    %c0_i32_94 = arith.constant 0 : i32
    %99 = tpu.memref_slice %arg14[%c1_i32_89, %c0_i32_93, %c0_i32_94] : memref<3x256x1024xbf16, #tpu.memory_space<vmem>> -> memref<1x256x1024xbf16, #tpu.memory_space<vmem>>
    %100 = tpu.memref_squeeze %99 : memref<1x256x1024xbf16, #tpu.memory_space<vmem>> -> memref<256x1024xbf16, #tpu.memory_space<vmem>>
    %101 = tpu.memref_slice %arg15[%c1_i32_90] : memref<3x!tpu.dma_semaphore, #tpu.memory_space<semaphore_mem>> -> memref<1x!tpu.dma_semaphore, #tpu.memory_space<semaphore_mem>>
    %102 = tpu.memref_squeeze %101 : memref<1x!tpu.dma_semaphore, #tpu.memory_space<semaphore_mem>> -> memref<!tpu.dma_semaphore, #tpu.memory_space<semaphore_mem>>
    tpu.wait_dma2 semaphore(%102 : memref<!tpu.dma_semaphore, #tpu.memory_space<semaphore_mem>>) src(%98 : memref<256x1024xbf16, #tpu.memory_space<any>>) dst(%100 : memref<256x1024xbf16, #tpu.memory_space<vmem>>)
    %103 = vector.extract_strided_slice %91 {offsets = [0, 0], sizes = [64, 256], strides = [1, 1]} : vector<64x1024xbf16> to vector<64x256xbf16>
    %c1_95 = arith.constant 1 : index
    %c0_96 = arith.constant 0 : index
    %c0_97 = arith.constant 0 : index
    %104 = vector.load %arg14[%c1_95, %c0_96, %c0_97] : memref<3x256x1024xbf16, #tpu.memory_space<vmem>>, vector<1x256x1024xbf16>
    %105 = vector.shape_cast %104 : vector<1x256x1024xbf16> to vector<256x1024xbf16>
    %cst_98 = arith.constant dense<0.000000e+00> : vector<64x1024xf32>
    %106 = tpu.matmul %103, %105, %cst_98 {dimension_numbers = #tpu.dot_dimension_numbers<[1], [0], [0], [1], [0, 0, 1, 1], [], []>} : vector<64x256xbf16>, vector<256x1024xbf16>, vector<64x1024xf32> -> vector<64x1024xf32>
    %107 = arith.addf %92, %106 : vector<64x1024xf32>
    %c1_i32_99 = arith.constant 1 : i32
    %c1_i32_100 = arith.constant 1 : i32
    %c768_i32_101 = arith.constant 768 : i32
    %c0_i32_102 = arith.constant 0 : i32
    %108 = tpu.memref_slice %arg7[%c768_i32_101, %c0_i32_102] : memref<1024x1024xbf16, #tpu.memory_space<any>> -> memref<256x1024xbf16, #tpu.memory_space<any>>
    %c0_i32_103 = arith.constant 0 : i32
    %c0_i32_104 = arith.constant 0 : i32
    %109 = tpu.memref_slice %arg14[%c1_i32_99, %c0_i32_103, %c0_i32_104] : memref<3x256x1024xbf16, #tpu.memory_space<vmem>> -> memref<1x256x1024xbf16, #tpu.memory_space<vmem>>
    %110 = tpu.memref_squeeze %109 : memref<1x256x1024xbf16, #tpu.memory_space<vmem>> -> memref<256x1024xbf16, #tpu.memory_space<vmem>>
    %111 = tpu.memref_slice %arg15[%c1_i32_100] : memref<3x!tpu.dma_semaphore, #tpu.memory_space<semaphore_mem>> -> memref<1x!tpu.dma_semaphore, #tpu.memory_space<semaphore_mem>>
    %112 = tpu.memref_squeeze %111 : memref<1x!tpu.dma_semaphore, #tpu.memory_space<semaphore_mem>> -> memref<!tpu.dma_semaphore, #tpu.memory_space<semaphore_mem>>
    tpu.enqueue_dma source(%108 : memref<256x1024xbf16, #tpu.memory_space<any>>) target(%110 : memref<256x1024xbf16, #tpu.memory_space<vmem>>) target_semaphore(%112 : memref<!tpu.dma_semaphore, #tpu.memory_space<semaphore_mem>>)
    %c2_i32_105 = arith.constant 2 : i32
    %c2_i32_106 = arith.constant 2 : i32
    %c0_i32_107 = arith.constant 0 : i32
    %c0_i32_108 = arith.constant 0 : i32
    %113 = tpu.memref_slice %arg5[%c0_i32_107, %c0_i32_108] : memref<1024x1024xbf16, #tpu.memory_space<any>> -> memref<256x1024xbf16, #tpu.memory_space<any>>
    %c0_i32_109 = arith.constant 0 : i32
    %c0_i32_110 = arith.constant 0 : i32
    %114 = tpu.memref_slice %arg14[%c2_i32_105, %c0_i32_109, %c0_i32_110] : memref<3x256x1024xbf16, #tpu.memory_space<vmem>> -> memref<1x256x1024xbf16, #tpu.memory_space<vmem>>
    %115 = tpu.memref_squeeze %114 : memref<1x256x1024xbf16, #tpu.memory_space<vmem>> -> memref<256x1024xbf16, #tpu.memory_space<vmem>>
    %116 = tpu.memref_slice %arg15[%c2_i32_106] : memref<3x!tpu.dma_semaphore, #tpu.memory_space<semaphore_mem>> -> memref<1x!tpu.dma_semaphore, #tpu.memory_space<semaphore_mem>>
    %117 = tpu.memref_squeeze %116 : memref<1x!tpu.dma_semaphore, #tpu.memory_space<semaphore_mem>> -> memref<!tpu.dma_semaphore, #tpu.memory_space<semaphore_mem>>
    tpu.wait_dma2 semaphore(%117 : memref<!tpu.dma_semaphore, #tpu.memory_space<semaphore_mem>>) src(%113 : memref<256x1024xbf16, #tpu.memory_space<any>>) dst(%115 : memref<256x1024xbf16, #tpu.memory_space<vmem>>)
    %118 = vector.extract_strided_slice %91 {offsets = [0, 256], sizes = [64, 256], strides = [1, 1]} : vector<64x1024xbf16> to vector<64x256xbf16>
    %c2_111 = arith.constant 2 : index
    %c0_112 = arith.constant 0 : index
    %c0_113 = arith.constant 0 : index
    %119 = vector.load %arg14[%c2_111, %c0_112, %c0_113] : memref<3x256x1024xbf16, #tpu.memory_space<vmem>>, vector<1x256x1024xbf16>
    %120 = vector.shape_cast %119 : vector<1x256x1024xbf16> to vector<256x1024xbf16>
    %cst_114 = arith.constant dense<0.000000e+00> : vector<64x1024xf32>
    %121 = tpu.matmul %118, %120, %cst_114 {dimension_numbers = #tpu.dot_dimension_numbers<[1], [0], [0], [1], [0, 0, 1, 1], [], []>} : vector<64x256xbf16>, vector<256x1024xbf16>, vector<64x1024xf32> -> vector<64x1024xf32>
    %122 = arith.addf %107, %121 : vector<64x1024xf32>
    %c0_i32_115 = arith.constant 0 : i32
    %c0_i32_116 = arith.constant 0 : i32
    %c0_i32_117 = arith.constant 0 : i32
    %c0_i32_118 = arith.constant 0 : i32
    %123 = tpu.memref_slice %arg5[%c0_i32_117, %c0_i32_118] : memref<1024x1024xbf16, #tpu.memory_space<any>> -> memref<256x1024xbf16, #tpu.memory_space<any>>
    %c0_i32_119 = arith.constant 0 : i32
    %c0_i32_120 = arith.constant 0 : i32
    %124 = tpu.memref_slice %arg14[%c0_i32_115, %c0_i32_119, %c0_i32_120] : memref<3x256x1024xbf16, #tpu.memory_space<vmem>> -> memref<1x256x1024xbf16, #tpu.memory_space<vmem>>
    %125 = tpu.memref_squeeze %124 : memref<1x256x1024xbf16, #tpu.memory_space<vmem>> -> memref<256x1024xbf16, #tpu.memory_space<vmem>>
    %126 = tpu.memref_slice %arg15[%c0_i32_116] : memref<3x!tpu.dma_semaphore, #tpu.memory_space<semaphore_mem>> -> memref<1x!tpu.dma_semaphore, #tpu.memory_space<semaphore_mem>>
    %127 = tpu.memref_squeeze %126 : memref<1x!tpu.dma_semaphore, #tpu.memory_space<semaphore_mem>> -> memref<!tpu.dma_semaphore, #tpu.memory_space<semaphore_mem>>
    tpu.wait_dma2 semaphore(%127 : memref<!tpu.dma_semaphore, #tpu.memory_space<semaphore_mem>>) src(%123 : memref<256x1024xbf16, #tpu.memory_space<any>>) dst(%125 : memref<256x1024xbf16, #tpu.memory_space<vmem>>)
    %128 = vector.extract_strided_slice %91 {offsets = [0, 512], sizes = [64, 256], strides = [1, 1]} : vector<64x1024xbf16> to vector<64x256xbf16>
    %c0_121 = arith.constant 0 : index
    %c0_122 = arith.constant 0 : index
    %c0_123 = arith.constant 0 : index
    %129 = vector.load %arg14[%c0_121, %c0_122, %c0_123] : memref<3x256x1024xbf16, #tpu.memory_space<vmem>>, vector<1x256x1024xbf16>
    %130 = vector.shape_cast %129 : vector<1x256x1024xbf16> to vector<256x1024xbf16>
    %cst_124 = arith.constant dense<0.000000e+00> : vector<64x1024xf32>
    %131 = tpu.matmul %128, %130, %cst_124 {dimension_numbers = #tpu.dot_dimension_numbers<[1], [0], [0], [1], [0, 0, 1, 1], [], []>} : vector<64x256xbf16>, vector<256x1024xbf16>, vector<64x1024xf32> -> vector<64x1024xf32>
    %132 = arith.addf %122, %131 : vector<64x1024xf32>
    %c1_i32_125 = arith.constant 1 : i32
    %c1_i32_126 = arith.constant 1 : i32
    %c0_i32_127 = arith.constant 0 : i32
    %c0_i32_128 = arith.constant 0 : i32
    %133 = tpu.memref_slice %arg5[%c0_i32_127, %c0_i32_128] : memref<1024x1024xbf16, #tpu.memory_space<any>> -> memref<256x1024xbf16, #tpu.memory_space<any>>
    %c0_i32_129 = arith.constant 0 : i32
    %c0_i32_130 = arith.constant 0 : i32
    %134 = tpu.memref_slice %arg14[%c1_i32_125, %c0_i32_129, %c0_i32_130] : memref<3x256x1024xbf16, #tpu.memory_space<vmem>> -> memref<1x256x1024xbf16, #tpu.memory_space<vmem>>
    %135 = tpu.memref_squeeze %134 : memref<1x256x1024xbf16, #tpu.memory_space<vmem>> -> memref<256x1024xbf16, #tpu.memory_space<vmem>>
    %136 = tpu.memref_slice %arg15[%c1_i32_126] : memref<3x!tpu.dma_semaphore, #tpu.memory_space<semaphore_mem>> -> memref<1x!tpu.dma_semaphore, #tpu.memory_space<semaphore_mem>>
    %137 = tpu.memref_squeeze %136 : memref<1x!tpu.dma_semaphore, #tpu.memory_space<semaphore_mem>> -> memref<!tpu.dma_semaphore, #tpu.memory_space<semaphore_mem>>
    tpu.wait_dma2 semaphore(%137 : memref<!tpu.dma_semaphore, #tpu.memory_space<semaphore_mem>>) src(%133 : memref<256x1024xbf16, #tpu.memory_space<any>>) dst(%135 : memref<256x1024xbf16, #tpu.memory_space<vmem>>)
    %138 = vector.extract_strided_slice %91 {offsets = [0, 768], sizes = [64, 256], strides = [1, 1]} : vector<64x1024xbf16> to vector<64x256xbf16>
    %c1_131 = arith.constant 1 : index
    %c0_132 = arith.constant 0 : index
    %c0_133 = arith.constant 0 : index
    %139 = vector.load %arg14[%c1_131, %c0_132, %c0_133] : memref<3x256x1024xbf16, #tpu.memory_space<vmem>>, vector<1x256x1024xbf16>
    %140 = vector.shape_cast %139 : vector<1x256x1024xbf16> to vector<256x1024xbf16>
    %cst_134 = arith.constant dense<0.000000e+00> : vector<64x1024xf32>
    %141 = tpu.matmul %138, %140, %cst_134 {dimension_numbers = #tpu.dot_dimension_numbers<[1], [0], [0], [1], [0, 0, 1, 1], [], []>} : vector<64x256xbf16>, vector<256x1024xbf16>, vector<64x1024xf32> -> vector<64x1024xf32>
    %142 = arith.addf %132, %141 : vector<64x1024xf32>
    %143 = arith.truncf %142 : vector<64x1024xf32> to vector<64x1024xbf16>
    %cst_135 = arith.constant dense<0.000000e+00> : vector<64x1024xf32>
    %144 = tpu.matmul %10, %143, %cst_135 {dimension_numbers = #tpu.dot_dimension_numbers<[1], [0], [0], [1], [0, 0, 1, 1], [], []>} : vector<64x64xbf16>, vector<64x1024xbf16>, vector<64x1024xf32> -> vector<64x1024xf32>
    %c0_136 = arith.constant 0 : index
    %c0_137 = arith.constant 0 : index
    %145 = vector.load %arg8[%c0_136, %c0_137] : memref<1x1024xf32, #tpu.memory_space<vmem>>, vector<1x1024xf32>
    %146 = vector.broadcast %145 : vector<1x1024xf32> to vector<64x1024xf32>
    %147 = arith.addf %144, %146 : vector<64x1024xf32>
    %cst_138 = arith.constant 0.000000e+00 : f32
    %148 = vector.broadcast %cst_138 : f32 to vector<64x1024xf32>
    %149 = arith.maximumf %147, %148 : vector<64x1024xf32>
    %150 = arith.addf %149, %89 : vector<64x1024xf32>
    %151 = arith.truncf %150 : vector<64x1024xf32> to vector<64x1024xbf16>
    %c0_139 = arith.constant 0 : index
    %c0_140 = arith.constant 0 : index
    %152 = vector.load %arg9[%c0_139, %c0_140] : memref<1024x128xbf16, #tpu.memory_space<vmem>>, vector<1024x128xbf16>
    %cst_141 = arith.constant dense<0.000000e+00> : vector<64x128xf32>
    %153 = tpu.matmul %151, %152, %cst_141 {dimension_numbers = #tpu.dot_dimension_numbers<[1], [0], [0], [1], [0, 0, 1, 1], [], []>} : vector<64x1024xbf16>, vector<1024x128xbf16>, vector<64x128xf32> -> vector<64x128xf32>
    %154 = arith.truncf %153 : vector<64x128xf32> to vector<64x128xbf16>
    %cst_142 = arith.constant dense<0.000000e+00> : vector<64x128xf32>
    %155 = tpu.matmul %10, %154, %cst_142 {dimension_numbers = #tpu.dot_dimension_numbers<[1], [0], [0], [1], [0, 0, 1, 1], [], []>} : vector<64x64xbf16>, vector<64x128xbf16>, vector<64x128xf32> -> vector<64x128xf32>
    %c0_143 = arith.constant 0 : index
    %c0_144 = arith.constant 0 : index
    %156 = vector.load %arg10[%c0_143, %c0_144] : memref<1x128xf32, #tpu.memory_space<vmem>>, vector<1x128xf32>
    %157 = vector.broadcast %156 : vector<1x128xf32> to vector<64x128xf32>
    %158 = arith.addf %155, %157 : vector<64x128xf32>
    %cst_145 = arith.constant 0.000000e+00 : f32
    %159 = vector.broadcast %cst_145 : f32 to vector<64x128xf32>
    %160 = arith.maximumf %158, %159 : vector<64x128xf32>
    %161 = arith.truncf %160 : vector<64x128xf32> to vector<64x128xbf16>
    %c0_146 = arith.constant 0 : index
    %c0_147 = arith.constant 0 : index
    %162 = vector.load %arg11[%c0_146, %c0_147] : memref<128x128xbf16, #tpu.memory_space<vmem>>, vector<128x128xbf16>
    %cst_148 = arith.constant dense<0.000000e+00> : vector<64x128xf32>
    %163 = tpu.matmul %161, %162, %cst_148 {dimension_numbers = #tpu.dot_dimension_numbers<[1], [0], [0], [1], [0, 0, 1, 1], [], []>} : vector<64x128xbf16>, vector<128x128xbf16>, vector<64x128xf32> -> vector<64x128xf32>
    %164 = arith.truncf %163 : vector<64x128xf32> to vector<64x128xbf16>
    %cst_149 = arith.constant dense<0.000000e+00> : vector<64x128xf32>
    %165 = tpu.matmul %10, %164, %cst_149 {dimension_numbers = #tpu.dot_dimension_numbers<[1], [0], [0], [1], [0, 0, 1, 1], [], []>} : vector<64x64xbf16>, vector<64x128xbf16>, vector<64x128xf32> -> vector<64x128xf32>
    %c0_150 = arith.constant 0 : index
    %c0_151 = arith.constant 0 : index
    %166 = vector.load %arg12[%c0_150, %c0_151] : memref<1x128xf32, #tpu.memory_space<vmem>>, vector<1x128xf32>
    %167 = vector.broadcast %166 : vector<1x128xf32> to vector<64x128xf32>
    %168 = arith.addf %165, %167 : vector<64x128xf32>
    %cst_152 = arith.constant 0.000000e+00 : f32
    %169 = vector.broadcast %cst_152 : f32 to vector<64x128xf32>
    %170 = arith.maximumf %168, %169 : vector<64x128xf32>
    %171 = tpu.iota {dimensions = array<i32: 1>} : vector<64x128xi32>
    %c8_i32 = arith.constant 8 : i32
    %172 = vector.broadcast %c8_i32 : i32 to vector<64x128xi32>
    %173 = arith.cmpi slt, %171, %172 : vector<64x128xi32>
    %cst_153 = arith.constant -1.000000e+30 : f32
    %174 = vector.broadcast %cst_153 : f32 to vector<64x128xf32>
    %175 = arith.select %173, %170, %174 : vector<64x128xi1>, vector<64x128xf32>
    %cst_154 = arith.constant dense<0xFF800000> : vector<64xf32>
    %176 = vector.multi_reduction <maximumf>, %175, %cst_154 [1] : vector<64x128xf32> to vector<64xf32>
    %177 = vector.shape_cast %176 : vector<64xf32> to vector<64x1xf32>
    %178 = vector.broadcast %177 : vector<64x1xf32> to vector<64x128xf32>
    %179 = arith.subf %170, %178 : vector<64x128xf32>
    %180 = math.exp %179 : vector<64x128xf32>
    %cst_155 = arith.constant 0.000000e+00 : f32
    %181 = vector.broadcast %cst_155 : f32 to vector<64x128xf32>
    %182 = arith.select %173, %180, %181 : vector<64x128xi1>, vector<64x128xf32>
    %cst_156 = arith.constant dense<0.000000e+00> : vector<64xf32>
    %183 = vector.multi_reduction <add>, %182, %cst_156 [1] : vector<64x128xf32> to vector<64xf32>
    %184 = vector.shape_cast %183 : vector<64xf32> to vector<64x1xf32>
    %185 = math.log %184 : vector<64x1xf32>
    %186 = arith.addf %185, %177 : vector<64x1xf32>
    %187 = vector.broadcast %186 : vector<64x1xf32> to vector<64x128xf32>
    %188 = arith.subf %170, %187 : vector<64x128xf32>
    %cst_157 = arith.constant 0.000000e+00 : f32
    %189 = vector.broadcast %cst_157 : f32 to vector<64x128xf32>
    %190 = arith.select %173, %188, %189 : vector<64x128xi1>, vector<64x128xf32>
    %c0_158 = arith.constant 0 : index
    %c0_159 = arith.constant 0 : index
    %191 = vector.load %arg13[%c0_158, %c0_159] : memref<64x128xf32, #tpu.memory_space<vmem>>, vector<64x128xf32>
    tpu.vector_store %arg13[%c0_158, %c0_159], %190 {strides = array<i32>} : memref<64x128xf32, #tpu.memory_space<vmem>>, vector<64x128xf32>,
    return
  }
  func.func @transform_0(%arg0: i32) -> (i32, i32) {
    %c0_i32 = arith.constant 0 : i32
    %c0_i32_0 = arith.constant 0 : i32
    %c0_i32_1 = arith.constant 0 : i32
    return %c0_i32, %c0_i32_0 : i32, i32
  }
  func.func @transform_1(%arg0: i32) -> (i32, i32) {
    %c0_i32 = arith.constant 0 : i32
    %c0_i32_0 = arith.constant 0 : i32
    %c0_i32_1 = arith.constant 0 : i32
    return %c0_i32, %c0_i32_0 : i32, i32
  }
  func.func @transform_2(%arg0: i32) -> (i32, i32) {
    %c0_i32 = arith.constant 0 : i32
    %c0_i32_0 = arith.constant 0 : i32
    %c0_i32_1 = arith.constant 0 : i32
    return %c0_i32, %c0_i32_0 : i32, i32
  }
  func.func @transform_3(%arg0: i32) -> (i32, i32) {
    %c0_i32 = arith.constant 0 : i32
    %c0_i32_0 = arith.constant 0 : i32
    %c0_i32_1 = arith.constant 0 : i32
    return %c0_i32, %c0_i32_0 : i32, i32
  }
  func.func @transform_5(%arg0: i32) -> (i32, i32) {
    %c0_i32 = arith.constant 0 : i32
    %c0_i32_0 = arith.constant 0 : i32
    %c0_i32_1 = arith.constant 0 : i32
    return %c0_i32, %c0_i32_0 : i32, i32
  }
  func.func @transform_7(%arg0: i32) -> (i32, i32) {
    %c0_i32 = arith.constant 0 : i32
    %c0_i32_0 = arith.constant 0 : i32
    %c0_i32_1 = arith.constant 0 : i32
    return %c0_i32, %c0_i32_0 : i32, i32
  }
  func.func @transform_8(%arg0: i32) -> (i32, i32) {
    %c0_i32 = arith.constant 0 : i32
    %c0_i32_0 = arith.constant 0 : i32
    %c0_i32_1 = arith.constant 0 : i32
    return %c0_i32, %c0_i32_0 : i32, i32
  }
  func.func @transform_9(%arg0: i32) -> (i32, i32) {
    %c0_i32 = arith.constant 0 : i32
    %c0_i32_0 = arith.constant 0 : i32
    %c0_i32_1 = arith.constant 0 : i32
    return %c0_i32, %c0_i32_0 : i32, i32
  }
  func.func @transform_10(%arg0: i32) -> (i32, i32) {
    %c0_i32 = arith.constant 0 : i32
    %c0_i32_0 = arith.constant 0 : i32
    %c0_i32_1 = arith.constant 0 : i32
    return %c0_i32, %c0_i32_0 : i32, i32
  }
  func.func @transform_11(%arg0: i32) -> (i32, i32) {
    %c0_i32 = arith.constant 0 : i32
    %c0_i32_0 = arith.constant 0 : i32
    %c0_i32_1 = arith.constant 0 : i32
    return %c0_i32, %c0_i32_0 : i32, i32
  }
  func.func @transform_12(%arg0: i32) -> (i32, i32) {
    %c0_i32 = arith.constant 0 : i32
    %c0_i32_0 = arith.constant 0 : i32
    %c0_i32_1 = arith.constant 0 : i32
    return %c0_i32, %c0_i32_0 : i32, i32
  }
}

</mosaic_0001>

<llo_original>
// kernel: gcn_res_forward.1
$region0: #{gcn_res_forward.1}
  #allocation0 [shape = 'u32[]', space=smem, size = 0x4, offset = 0x4, fixed_abs, tag = 'smem constant byte address 0x4 - core index']
  #allocation1 [shape = 'u32[72,128]{1,0:T(1,128)}', space=vmem, size = 0x9000, scoped, tag = 'internal scratch']
  #allocation2 [shape = 'bf16[3,256,1024]{2,1,0:T(8,128)(2,1)}', space=vmem, size = 0x180000, scoped, tag = 'scratch operand']
  #allocation3 [shape = 's32[3]{0}', space=sflag, size = 0xc, scoped, tag = 'scratch operand']
  #allocation17 [shape = 's32[]', space=sflag, size = 0x4, offset = 0, fixed_abs, tag = 'sflag constant byte address 0x0 - dummy sync flag']
  #allocation18 [shape = 's32[]', space=sflag, size = 0x4, offset = 0, fixed_abs, tag = 'sflag constant byte address 0x0 - dummy sync flag']
  #allocation19 [shape = 'u32[]', space=smem, size = 0x4, offset = 0x44, fixed_abs, tag = 'smem constant byte address 0x44 - assertion arg 0']
  #allocation20 [shape = 'u32[]', space=smem, size = 0x4, offset = 0x48, fixed_abs, tag = 'smem constant byte address 0x48 - assertion arg 1']
  #allocation21 [shape = 's32[]', space=sflag, size = 0x4, offset = 0, fixed_abs, tag = 'sflag constant byte address 0x0 - dummy sync flag']
  #allocation22 [shape = 's32[]', space=sflag, size = 0x4, offset = 0, fixed_abs, tag = 'sflag constant byte address 0x0 - dummy sync flag']
  #allocation23 [shape = 's32[]', space=sflag, size = 0x4, offset = 0, fixed_abs, tag = 'sflag constant byte address 0x0 - dummy sync flag']
  #allocation24 [shape = 's32[]', space=sflag, size = 0x4, offset = 0, fixed_abs, tag = 'sflag constant byte address 0x0 - dummy sync flag']
  #allocation25 [shape = 's32[]', space=sflag, size = 0x4, offset = 0, fixed_abs, tag = 'sflag constant byte address 0x0 - dummy sync flag']
  #allocation26 [shape = 's32[]', space=sflag, size = 0x4, offset = 0, fixed_abs, tag = 'sflag constant byte address 0x0 - dummy sync flag']
  #allocation27 [shape = 's32[]', space=sflag, size = 0x4, offset = 0, fixed_abs, tag = 'sflag constant byte address 0x0 - dummy sync flag']
  #allocation28 [shape = 's32[]', space=sflag, size = 0x4, offset = 0, fixed_abs, tag = 'sflag constant byte address 0x0 - dummy sync flag']
  #allocation29 [shape = 's32[]', space=sflag, size = 0x4, offset = 0, fixed_abs, tag = 'sflag constant byte address 0x0 - dummy sync flag']
  #allocation30 [shape = 's32[]', space=sflag, size = 0x4, offset = 0, fixed_abs, tag = 'sflag constant byte address 0x0 - dummy sync flag']
  #allocation31 [shape = 's32[]', space=sflag, size = 0x4, offset = 0, fixed_abs, tag = 'sflag constant byte address 0x0 - dummy sync flag']
  #allocation32 [shape = 's32[]', space=sflag, size = 0x4, offset = 0, fixed_abs, tag = 'sflag constant byte address 0x0 - dummy sync flag']
  #allocation33 [shape = 's32[]', space=sflag, size = 0x4, offset = 0, fixed_abs, tag = 'sflag constant byte address 0x0 - dummy sync flag']
  #allocation34 [shape = 's32[]', space=sflag, size = 0x4, offset = 0, fixed_abs, tag = 'sflag constant byte address 0x0 - dummy sync flag']
  %s0 = inlined_call_operand.vmem [shape: bf16[64,32], index: 0, kind: input, shape index: {}]
  %s1 = inlined_call_operand.vmem [shape: bf16[64,64], index: 1, kind: input, shape index: {}]
  %s2 = inlined_call_operand.hbm [shape: bf16[32,1024], index: 2, kind: input, shape index: {}]
  %s3 = inlined_call_operand.hbm [shape: f32[1,1024], index: 3, kind: input, shape index: {}]
  %s4 = inlined_call_operand.hbm [shape: bf16[1024,1024], index: 4, kind: input, shape index: {}]
  %s5 = inlined_call_operand.hbm [shape: f32[1,1024], index: 5, kind: input, shape index: {}]
  %s6 = inlined_call_operand.hbm [shape: bf16[1024,1024], index: 6, kind: input, shape index: {}]
  %s7 = inlined_call_operand.hbm [shape: f32[1,1024], index: 7, kind: input, shape index: {}]
  %s8 = inlined_call_operand.hbm [shape: bf16[1024,128], index: 8, kind: input, shape index: {}]
  %s9 = inlined_call_operand.hbm [shape: f32[1,128], index: 9, kind: input, shape index: {}]
  %s10 = inlined_call_operand.hbm [shape: bf16[128,128], index: 10, kind: input, shape index: {}]
  %s11 = inlined_call_operand.hbm [shape: f32[1,128], index: 11, kind: input, shape index: {}]
  %s12 = inlined_call_operand.vmem [shape: f32[64,128], index: 12, kind: output, shape index: {}]
  %s13 = sld [smem:[#allocation0]]
  $region114: #{gcn_res_forward.1} parent=0
    _
  %s15 = ssub.s32 1, %s13
  %s16 = scalar_select 0, %s15, %s13
  $region1: #{gcn_res_forward.1} parent=0
    #allocation4 [shape = 'u8[65536]{0}', space=vmem, size = 0x10000, scoped, tag = 'input window, operand 2, single buffered']
    #allocation5 [shape = 's32[1]{0}', space=sflag, size = 0x4, scoped, tag = 'scoped memory for gcn_res_forward.1']
    #allocation6 [shape = 'u8[4096]{0}', space=vmem, size = 0x1000, scoped, tag = 'input window, operand 3, single buffered']
    #allocation7 [shape = 's32[1]{0}', space=sflag, size = 0x4, scoped, tag = 'scoped memory for gcn_res_forward.1']
    #allocation8 [shape = 'u8[4096]{0}', space=vmem, size = 0x1000, scoped, tag = 'input window, operand 5, single buffered']
    #allocation9 [shape = 'u8[4096]{0}', space=vmem, size = 0x1000, scoped, tag = 'input window, operand 7, single buffered']
    #allocation10 [shape = 's32[1]{0}', space=sflag, size = 0x4, scoped, tag = 'scoped memory for gcn_res_forward.1']
    #allocation11 [shape = 'u8[262144]{0}', space=vmem, size = 0x40000, scoped, tag = 'input window, operand 8, single buffered']
    #allocation12 [shape = 'u8[512]{0}', space=vmem, size = 0x400, scoped, tag = 'input window, operand 9, single buffered']
    #allocation13 [shape = 's32[1]{0}', space=sflag, size = 0x4, scoped, tag = 'scoped memory for gcn_res_forward.1']
    #allocation14 [shape = 'u8[32768]{0}', space=vmem, size = 0x8000, scoped, tag = 'input window, operand 10, single buffered']
    #allocation15 [shape = 'u8[512]{0}', space=vmem, size = 0x400, scoped, tag = 'input window, operand 11, single buffered']
    #allocation16 [shape = 's32[1]{0}', space=sflag, size = 0x4, scoped, tag = 'scoped memory for gcn_res_forward.1']
    %17 = vsyncpa [#allocation5], 0
    %18 = vsyncpa [#allocation7], 0
    %19 = vsyncpa [#allocation10], 0
    %20 = vsyncpa [#allocation13], 0
    %21 = vsyncpa [#allocation16], 0
    // Predicated region
    $region2: #{gcn_res_forward.1} parent=1 // pred_check
      _
    $region3: #{gcn_res_forward.1} parent=1 // pred_check_branch
      %23 = sbr.rel (0) target = $region5
    $region4: #{gcn_res_forward.1} parent=1 // pred_region
      _
    $region5: #{gcn_res_forward.1} parent=1 // pred_fallthru
      _
    // Predicated region
    $region6: #{gcn_res_forward.1} parent=1 // pred_check
      _
    $region7: #{gcn_res_forward.1} parent=1 // pred_check_branch
      %25 = sbr.rel (0) target = $region9
    $region8: #{gcn_res_forward.1} parent=1 // pred_region
      _
    $region9: #{gcn_res_forward.1} parent=1 // pred_fallthru
      _
    // Predicated region
    $region10: #{gcn_res_forward.1} parent=1 // pred_check
      _
    $region11: #{gcn_res_forward.1} parent=1 // pred_check_branch
      %27 = sbr.rel (0) target = $region13
    $region12: #{gcn_res_forward.1} parent=1 // pred_region
      %29 = vsyncadd [#allocation5], 0
      %s30 = sshll.u32 %s2, 4
      %s31 = int_to_ptr.hbm [resolvable:$true] %s30
      %s32 = sshll.u32 [#allocation4], 4
      %s33 = int_to_ptr.vmem [resolvable:$true] %s32
      %38 = dma.hbm_to_vmem [thread:$0]  %s31, 2048, %s33, [#allocation5], 512, 512, 32
    $region13: #{gcn_res_forward.1} parent=1 // pred_fallthru
      _
    // Predicated region
    $region14: #{gcn_res_forward.1} parent=1 // pred_check
      _
    $region15: #{gcn_res_forward.1} parent=1 // pred_check_branch
      %40 = sbr.rel (0) target = $region17
    $region16: #{gcn_res_forward.1} parent=1 // pred_region
      %42 = vsyncadd [#allocation7], 0
      %s44 = sshll.u32 %s3, 4
      %s45 = int_to_ptr.hbm [resolvable:$true] %s44
      %s46 = sshll.u32 [#allocation6], 4
      %s47 = int_to_ptr.vmem [resolvable:$true] %s46
      %49 = dma.hbm_to_vmem [thread:$0]  %s45, 128, %s47, [#allocation7]
    $region17: #{gcn_res_forward.1} parent=1 // pred_fallthru
      _
    // Predicated region
    $region18: #{gcn_res_forward.1} parent=1 // pred_check
      _
    $region19: #{gcn_res_forward.1} parent=1 // pred_check_branch
      %51 = sbr.rel (0) target = $region21
    $region20: #{gcn_res_forward.1} parent=1 // pred_region
      %53 = vsyncadd [#allocation7], 0
      %s55 = sshll.u32 %s5, 4
      %s56 = int_to_ptr.hbm [resolvable:$true] %s55
      %s57 = sshll.u32 [#allocation8], 4
      %s58 = int_to_ptr.vmem [resolvable:$true] %s57
      %60 = dma.hbm_to_vmem [thread:$0]  %s56, 128, %s58, [#allocation7]
    $region21: #{gcn_res_forward.1} parent=1 // pred_fallthru
      _
    // Predicated region
    $region22: #{gcn_res_forward.1} parent=1 // pred_check
      _
    $region23: #{gcn_res_forward.1} parent=1 // pred_check_branch
      %62 = sbr.rel (0) target = $region25
    $region24: #{gcn_res_forward.1} parent=1 // pred_region
      %64 = vsyncadd [#allocation10], 0
      %s66 = sshll.u32 %s7, 4
      %s67 = int_to_ptr.hbm [resolvable:$true] %s66
      %s68 = sshll.u32 [#allocation9], 4
      %s69 = int_to_ptr.vmem [resolvable:$true] %s68
      %71 = dma.hbm_to_vmem [thread:$0]  %s67, 128, %s69, [#allocation10]
    $region25: #{gcn_res_forward.1} parent=1 // pred_fallthru
      _
    // Predicated region
    $region26: #{gcn_res_forward.1} parent=1 // pred_check
      _
    $region27: #{gcn_res_forward.1} parent=1 // pred_check_branch
      %73 = sbr.rel (0) target = $region29
    $region28: #{gcn_res_forward.1} parent=1 // pred_region
      %75 = vsyncadd [#allocation10], 0
      %s76 = sshll.u32 %s8, 4
      %s77 = int_to_ptr.hbm [resolvable:$true] %s76
      %s78 = sshll.u32 [#allocation11], 4
      %s79 = int_to_ptr.vmem [resolvable:$true] %s78
      %84 = dma.hbm_to_vmem [thread:$0]  %s77, 8192, %s79, [#allocation10], 64, 64, 4
    $region29: #{gcn_res_forward.1} parent=1 // pred_fallthru
      _
    // Predicated region
    $region30: #{gcn_res_forward.1} parent=1 // pred_check
      _
    $region31: #{gcn_res_forward.1} parent=1 // pred_check_branch
      %86 = sbr.rel (0) target = $region33
    $region32: #{gcn_res_forward.1} parent=1 // pred_region
      %88 = vsyncadd [#allocation13], 0
      %s90 = sshll.u32 %s9, 4
      %s91 = int_to_ptr.hbm [resolvable:$true] %s90
      %s92 = sshll.u32 [#allocation12], 4
      %s93 = int_to_ptr.vmem [resolvable:$true] %s92
      %95 = dma.hbm_to_vmem [thread:$0]  %s91, 16, %s93, [#allocation13]
    $region33: #{gcn_res_forward.1} parent=1 // pred_fallthru
      _
    // Predicated region
    $region34: #{gcn_res_forward.1} parent=1 // pred_check
      _
    $region35: #{gcn_res_forward.1} parent=1 // pred_check_branch
      %97 = sbr.rel (0) target = $region37
    $region36: #{gcn_res_forward.1} parent=1 // pred_region
      %99 = vsyncadd [#allocation13], 0
      %s100 = sshll.u32 %s10, 4
      %s101 = int_to_ptr.hbm [resolvable:$true] %s100
      %s102 = sshll.u32 [#allocation14], 4
      %s103 = int_to_ptr.vmem [resolvable:$true] %s102
      %108 = dma.hbm_to_vmem [thread:$0]  %s101, 1024, %s103, [#allocation13], 64, 64, 4
    $region37: #{gcn_res_forward.1} parent=1 // pred_fallthru
      _
    // Predicated region
    $region38: #{gcn_res_forward.1} parent=1 // pred_check
      _
    $region39: #{gcn_res_forward.1} parent=1 // pred_check_branch
      %110 = sbr.rel (0) target = $region41
    $region40: #{gcn_res_forward.1} parent=1 // pred_region
      %112 = vsyncadd [#allocation16], 0
      %s114 = sshll.u32 %s11, 4
      %s115 = int_to_ptr.hbm [resolvable:$true] %s114
      %s116 = sshll.u32 [#allocation15], 4
      %s117 = int_to_ptr.vmem [resolvable:$true] %s116
      %119 = dma.hbm_to_vmem [thread:$0]  %s115, 16, %s117, [#allocation16]
    $region41: #{gcn_res_forward.1} parent=1 // pred_fallthru
      _
    // Predicated region
    $region42: #{gcn_res_forward.1} parent=1 // pred_check
      _
    $region43: #{gcn_res_forward.1} parent=1 // pred_check_branch
      %121 = sbr.rel (0) target = $region45
    $region44: #{gcn_res_forward.1} parent=1 // pred_region
      %123 = dma.done [#allocation5], 2048
    $region45: #{gcn_res_forward.1} parent=1 // pred_fallthru
      _
    // Predicated region
    $region46: #{gcn_res_forward.1} parent=1 // pred_check
      _
    $region47: #{gcn_res_forward.1} parent=1 // pred_check_branch
      %125 = sbr.rel (0) target = $region49
    $region48: #{gcn_res_forward.1} parent=1 // pred_region
      %127 = dma.done [#allocation7], 128
    $region49: #{gcn_res_forward.1} parent=1 // pred_fallthru
      _
    // Predicated region
    $region50: #{gcn_res_forward.1} parent=1 // pred_check
      _
    $region51: #{gcn_res_forward.1} parent=1 // pred_check_branch
      %129 = sbr.rel (0) target = $region53
    $region52: #{gcn_res_forward.1} parent=1 // pred_region
      %131 = dma.done [#allocation7], 128
    $region53: #{gcn_res_forward.1} parent=1 // pred_fallthru
      _
    // Predicated region
    $region54: #{gcn_res_forward.1} parent=1 // pred_check
      _
    $region55: #{gcn_res_forward.1} parent=1 // pred_check_branch
      %133 = sbr.rel (0) target = $region57
    $region56: #{gcn_res_forward.1} parent=1 // pred_region
      %135 = dma.done [#allocation10], 128
    $region57: #{gcn_res_forward.1} parent=1 // pred_fallthru
      _
    // Predicated region
    $region58: #{gcn_res_forward.1} parent=1 // pred_check
      _
    $region59: #{gcn_res_forward.1} parent=1 // pred_check_branch
      %137 = sbr.rel (0) target = $region61
    $region60: #{gcn_res_forward.1} parent=1 // pred_region
      %139 = dma.done [#allocation10], 8192
    $region61: #{gcn_res_forward.1} parent=1 // pred_fallthru
      _
    // Predicated region
    $region62: #{gcn_res_forward.1} parent=1 // pred_check
      _
    $region63: #{gcn_res_forward.1} parent=1 // pred_check_branch
      %141 = sbr.rel (0) target = $region65
    $region64: #{gcn_res_forward.1} parent=1 // pred_region
      %143 = dma.done [#allocation13], 16
    $region65: #{gcn_res_forward.1} parent=1 // pred_fallthru
      _
    // Predicated region
    $region66: #{gcn_res_forward.1} parent=1 // pred_check
      _
    $region67: #{gcn_res_forward.1} parent=1 // pred_check_branch
      %145 = sbr.rel (0) target = $region69
    $region68: #{gcn_res_forward.1} parent=1 // pred_region
      %147 = dma.done [#allocation13], 1024
    $region69: #{gcn_res_forward.1} parent=1 // pred_fallthru
      _
    // Predicated region
    $region70: #{gcn_res_forward.1} parent=1 // pred_check
      _
    $region71: #{gcn_res_forward.1} parent=1 // pred_check_branch
      %149 = sbr.rel (0) target = $region73
    $region72: #{gcn_res_forward.1} parent=1 // pred_region
      %151 = dma.done [#allocation16], 16
    $region73: #{gcn_res_forward.1} parent=1 // pred_fallthru
      _
    // Predicated region
    $region74: #{gcn_res_forward.1} parent=1 // pred_check
      _
    $region75: #{gcn_res_forward.1} parent=1 // pred_check_branch
      %154 = sbr.rel target = $region77
    $region76: #{gcn_res_forward.1} parent=1 // pred_region
      %155 = sst [smem:[#allocation19]] [#allocation18]
      %156 = sst [smem:[#allocation20]] [#allocation17]
    $region77: #{gcn_res_forward.1} parent=1 // pred_fallthru
      _
    %158 = shalt.err (0)
    %s160 = sshll.u32 %s4, 4
    %s161 = int_to_ptr.hbm [resolvable:$true] %s160
    %s162 = sshll.u32 [#allocation2], 4
    %s163 = int_to_ptr.vmem [resolvable:$true] %s162
    %165 = dma.hbm_to_vmem [thread:$0]  %s161, 16384, %s163, [#allocation3]
    %s166 = scalar_lea.hbm %s4, 1024
    %s167 = scalar_lea.vmem [#allocation2], 1024
    %s168 = scalar_lea.sflag [#allocation3], 1
    // Predicated region
    $region78: #{gcn_res_forward.1} parent=1 // pred_check
      _
    $region79: #{gcn_res_forward.1} parent=1 // pred_check_branch
      %170 = sbr.rel target = $region81
    $region80: #{gcn_res_forward.1} parent=1 // pred_region
      %171 = sst [smem:[#allocation19]] [#allocation22]
      %172 = sst [smem:[#allocation20]] [#allocation21]
    $region81: #{gcn_res_forward.1} parent=1 // pred_fallthru
      _
    %174 = shalt.err (0)
    %s176 = sshll.u32 %s166, 4
    %s177 = int_to_ptr.hbm [resolvable:$true] %s176
    %s178 = sshll.u32 %s167, 4
    %s179 = int_to_ptr.vmem [resolvable:$true] %s178
    %181 = dma.hbm_to_vmem [thread:$0]  %s177, 16384, %s179, %s168
    %v182 = vld [vmem:[%s1] sm:$0xf]
    %v183 = vld [vmem:[%s1 + $0x4] sm:$0xf]
    %v184 = vld [vmem:[%s1 + $0x8] sm:$0xf]
    %v185 = vld [vmem:[%s1 + $0xc] sm:$0xf]
    %v186 = vld [vmem:[%s1 + $0x10] sm:$0xf]
    %v187 = vld [vmem:[%s1 + $0x14] sm:$0xf]
    %v188 = vld [vmem:[%s1 + $0x18] sm:$0xf]
    %v189 = vld [vmem:[%s1 + $0x1c] sm:$0xf]
    %v190 = vld [vmem:[%s0] sm:$0xf]
    %v191 = vld [vmem:[%s0 + $0x4] sm:$0xf]
    %v192 = vld [vmem:[%s0 + $0x8] sm:$0xf]
    %v193 = vld [vmem:[%s0 + $0xc] sm:$0xf]
    %v194 = vld [vmem:[%s0 + $0x10] sm:$0xf]
    %v195 = vld [vmem:[%s0 + $0x14] sm:$0xf]
    %v196 = vld [vmem:[%s0 + $0x18] sm:$0xf]
    %v197 = vld [vmem:[%s0 + $0x1c] sm:$0xf]
    %v198 = vld [vmem:[#allocation4] sm:$0xff]
    %v199 = vld [vmem:[#allocation4 + $0x8] sm:$0xff]
    %v200 = vld [vmem:[#allocation4 + $0x10] sm:$0xff]
    %v201 = vld [vmem:[#allocation4 + $0x18] sm:$0xff]
    %v202 = vld [vmem:[#allocation4 + $0x20] sm:$0xff]
    %v203 = vld [vmem:[#allocation4 + $0x28] sm:$0xff]
    %v204 = vld [vmem:[#allocation4 + $0x30] sm:$0xff]
    %v205 = vld [vmem:[#allocation4 + $0x38] sm:$0xff]
    %v206 = vld [vmem:[#allocation4 + $0x40] sm:$0xff]
    %v207 = vld [vmem:[#allocation4 + $0x48] sm:$0xff]
    %v208 = vld [vmem:[#allocation4 + $0x50] sm:$0xff]
    %v209 = vld [vmem:[#allocation4 + $0x58] sm:$0xff]
    %v210 = vld [vmem:[#allocation4 + $0x60] sm:$0xff]
    %v211 = vld [vmem:[#allocation4 + $0x68] sm:$0xff]
    %v212 = vld [vmem:[#allocation4 + $0x70] sm:$0xff]
    %v213 = vld [vmem:[#allocation4 + $0x78] sm:$0xff]
    %v222 = vunpack.c.l.b16 %v190
    %v223 = vunpack.c.l.b16 %v191
    %v224 = vunpack.c.l.b16 %v192
    %v225 = vunpack.c.l.b16 %v193
    %v226 = vunpack.c.l.b16 %v194
    %v227 = vunpack.c.l.b16 %v195
    %v228 = vunpack.c.l.b16 %v196
    %v229 = vunpack.c.l.b16 %v197
    %v230 = vpack.c.b16 %v223, %v222
    %v231 = vpack.c.b16 %v225, %v224
    %v232 = vpack.c.b16 %v227, %v226
    %v233 = vpack.c.b16 %v229, %v228
    %v250 = vunpack.c.l.b16 %v198
    %v251 = vunpack.c.h.b16 %v198
    %v252 = vunpack.c.l.b16 %v199
    %v253 = vunpack.c.h.b16 %v199
    %v254 = vunpack.c.l.b16 %v200
    %v255 = vunpack.c.h.b16 %v200
    %v256 = vunpack.c.l.b16 %v201
    %v257 = vunpack.c.h.b16 %v201
    %v258 = vunpack.c.l.b16 %v202
    %v259 = vunpack.c.h.b16 %v202
    %v260 = vunpack.c.l.b16 %v203
    %v261 = vunpack.c.h.b16 %v203
    %v262 = vunpack.c.l.b16 %v204
    %v263 = vunpack.c.h.b16 %v204
    %v264 = vunpack.c.l.b16 %v205
    %v265 = vunpack.c.h.b16 %v205
    %v266 = vunpack.c.l.b16 %v206
    %v267 = vunpack.c.h.b16 %v206
    %v268 = vunpack.c.l.b16 %v207
    %v269 = vunpack.c.h.b16 %v207
    %v270 = vunpack.c.l.b16 %v208
    %v271 = vunpack.c.h.b16 %v208
    %v272 = vunpack.c.l.b16 %v209
    %v273 = vunpack.c.h.b16 %v209
    %v274 = vunpack.c.l.b16 %v210
    %v275 = vunpack.c.h.b16 %v210
    %v276 = vunpack.c.l.b16 %v211
    %v277 = vunpack.c.h.b16 %v211
    %v278 = vunpack.c.l.b16 %v212
    %v279 = vunpack.c.h.b16 %v212
    %v280 = vunpack.c.l.b16 %v213
    %v281 = vunpack.c.h.b16 %v213
    %v282 = vpack.c.b16 %v258, %v250
    %v283 = vpack.c.b16 %v259, %v251
    %v284 = vpack.c.b16 %v260, %v252
    %v285 = vpack.c.b16 %v261, %v253
    %v286 = vpack.c.b16 %v262, %v254
    %v287 = vpack.c.b16 %v263, %v255
    %v288 = vpack.c.b16 %v264, %v256
    %v289 = vpack.c.b16 %v265, %v257
    %v290 = vpack.c.b16 %v274, %v266
    %v291 = vpack.c.b16 %v275, %v267
    %v292 = vpack.c.b16 %v276, %v268
    %v293 = vpack.c.b16 %v277, %v269
    %v294 = vpack.c.b16 %v278, %v270
    %v295 = vpack.c.b16 %v279, %v271
    %v296 = vpack.c.b16 %v280, %v272
    %v297 = vpack.c.b16 %v281, %v273
    %vm314 = vcmask 261120
    %v316 = vsel %vm314, %v230, 0
    %v319 = vsel %vm314, %v231, 0
    %v322 = vsel %vm314, %v232, 0
    %v325 = vsel %vm314, %v233, 0
    %327 = vmatpush.bf16.msra.mxu0 0
    %328 = vmatpush.bf16.msra.mxu0 0
    %329 = vmatpush.bf16.msra.mxu0 0
    %330 = vmatpush.bf16.msra.mxu0 0
    %331 = vmatpush.bf16.msra.mxu0 0
    %332 = vmatpush.bf16.msra.mxu0 0
    %333 = vmatpush.bf16.msra.mxu0 %v290
    %334 = vmatpush.bf16.msra.mxu0 %v282
    %335 = vmatmul.bf16.gmra.mxu0 %v316
    %v336 = vpop.f32.mrf.mxu0
    %v337 = vadd.f32 0.0, %v336
    %v338 = vpop.f32.mrf.mxu0
    %v339 = vadd.f32 0.0, %v338
    %340 = vmatmul.bf16.gmra.mxu0 %v319
    %v341 = vpop.f32.mrf.mxu0
    %v342 = vadd.f32 0.0, %v341
    %v343 = vpop.f32.mrf.mxu0
    %v344 = vadd.f32 0.0, %v343
    %345 = vmatmul.bf16.gmra.mxu0 %v322
    %v346 = vpop.f32.mrf.mxu0
    %v347 = vadd.f32 0.0, %v346
    %v348 = vpop.f32.mrf.mxu0
    %v349 = vadd.f32 0.0, %v348
    %350 = vmatmul.bf16.gmra.mxu0 %v325
    %v351 = vpop.f32.mrf.mxu0
    %v352 = vadd.f32 0.0, %v351
    %v353 = vpop.f32.mrf.mxu0
    %v354 = vadd.f32 0.0, %v353
    %355 = vdwg.mxu0
    %356 = vmatpush.bf16.msra.mxu0 0
    %357 = vmatpush.bf16.msra.mxu0 0
    %358 = vmatpush.bf16.msra.mxu0 0
    %359 = vmatpush.bf16.msra.mxu0 0
    %360 = vmatpush.bf16.msra.mxu0 0
    %361 = vmatpush.bf16.msra.mxu0 0
    %362 = vmatpush.bf16.msra.mxu0 %v291
    %363 = vmatpush.bf16.msra.mxu0 %v283
    %364 = vmatmul.bf16.gmra.mxu0 %v316
    %v365 = vpop.f32.mrf.mxu0
    %v366 = vadd.f32 0.0, %v365
    %v367 = vpop.f32.mrf.mxu0
    %v368 = vadd.f32 0.0, %v367
    %369 = vmatmul.bf16.gmra.mxu0 %v319
    %v370 = vpop.f32.mrf.mxu0
    %v371 = vadd.f32 0.0, %v370
    %v372 = vpop.f32.mrf.mxu0
    %v373 = vadd.f32 0.0, %v372
    %374 = vmatmul.bf16.gmra.mxu0 %v322
    %v375 = vpop.f32.mrf.mxu0
    %v376 = vadd.f32 0.0, %v375
    %v377 = vpop.f32.mrf.mxu0
    %v378 = vadd.f32 0.0, %v377
    %379 = vmatmul.bf16.gmra.mxu0 %v325
    %v380 = vpop.f32.mrf.mxu0
    %v381 = vadd.f32 0.0, %v380
    %v382 = vpop.f32.mrf.mxu0
    %v383 = vadd.f32 0.0, %v382
    %384 = vdwg.mxu0
    %385 = vmatpush.bf16.msra.mxu0 0
    %386 = vmatpush.bf16.msra.mxu0 0
    %387 = vmatpush.bf16.msra.mxu0 0
    %388 = vmatpush.bf16.msra.mxu0 0
    %389 = vmatpush.bf16.msra.mxu0 0
    %390 = vmatpush.bf16.msra.mxu0 0
    %391 = vmatpush.bf16.msra.mxu0 %v292
    %392 = vmatpush.bf16.msra.mxu0 %v284
    %393 = vmatmul.bf16.gmra.mxu0 %v316
    %v394 = vpop.f32.mrf.mxu0
    %v395 = vadd.f32 0.0, %v394
    %v396 = vpop.f32.mrf.mxu0
    %v397 = vadd.f32 0.0, %v396
    %398 = vmatmul.bf16.gmra.mxu0 %v319
    %v399 = vpop.f32.mrf.mxu0
    %v400 = vadd.f32 0.0, %v399
    %v401 = vpop.f32.mrf.mxu0
    %v402 = vadd.f32 0.0, %v401
    %403 = vmatmul.bf16.gmra.mxu0 %v322
    %v404 = vpop.f32.mrf.mxu0
    %v405 = vadd.f32 0.0, %v404
    %v406 = vpop.f32.mrf.mxu0
    %v407 = vadd.f32 0.0, %v406
    %408 = vmatmul.bf16.gmra.mxu0 %v325
    %v409 = vpop.f32.mrf.mxu0
    %v410 = vadd.f32 0.0, %v409
    %v411 = vpop.f32.mrf.mxu0
    %v412 = vadd.f32 0.0, %v411
    %413 = vdwg.mxu0
    %414 = vmatpush.bf16.msra.mxu0 0
    %415 = vmatpush.bf16.msra.mxu0 0
    %416 = vmatpush.bf16.msra.mxu0 0
    %417 = vmatpush.bf16.msra.mxu0 0
    %418 = vmatpush.bf16.msra.mxu0 0
    %419 = vmatpush.bf16.msra.mxu0 0
    %420 = vmatpush.bf16.msra.mxu0 %v293
    %421 = vmatpush.bf16.msra.mxu0 %v285
    %422 = vmatmul.bf16.gmra.mxu0 %v316
    %v423 = vpop.f32.mrf.mxu0
    %v424 = vadd.f32 0.0, %v423
    %v425 = vpop.f32.mrf.mxu0
    %v426 = vadd.f32 0.0, %v425
    %427 = vmatmul.bf16.gmra.mxu0 %v319
    %v428 = vpop.f32.mrf.mxu0
    %v429 = vadd.f32 0.0, %v428
    %v430 = vpop.f32.mrf.mxu0
    %v431 = vadd.f32 0.0, %v430
    %432 = vmatmul.bf16.gmra.mxu0 %v322
    %v433 = vpop.f32.mrf.mxu0
    %v434 = vadd.f32 0.0, %v433
    %v435 = vpop.f32.mrf.mxu0
    %v436 = vadd.f32 0.0, %v435
    %437 = vmatmul.bf16.gmra.mxu0 %v325
    %v438 = vpop.f32.mrf.mxu0
    %v439 = vadd.f32 0.0, %v438
    %v440 = vpop.f32.mrf.mxu0
    %v441 = vadd.f32 0.0, %v440
    %442 = vdwg.mxu0
    %443 = vmatpush.bf16.msra.mxu0 0
    %444 = vmatpush.bf16.msra.mxu0 0
    %445 = vmatpush.bf16.msra.mxu0 0
    %446 = vmatpush.bf16.msra.mxu0 0
    %447 = vmatpush.bf16.msra.mxu0 0
    %448 = vmatpush.bf16.msra.mxu0 0
    %449 = vmatpush.bf16.msra.mxu0 %v294
    %450 = vmatpush.bf16.msra.mxu0 %v286
    %451 = vmatmul.bf16.gmra.mxu0 %v316
    %v452 = vpop.f32.mrf.mxu0
    %v453 = vadd.f32 0.0, %v452
    %v454 = vpop.f32.mrf.mxu0
    %v455 = vadd.f32 0.0, %v454
    %456 = vmatmul.bf16.gmra.mxu0 %v319
    %v457 = vpop.f32.mrf.mxu0
    %v458 = vadd.f32 0.0, %v457
    %v459 = vpop.f32.mrf.mxu0
    %v460 = vadd.f32 0.0, %v459
    %461 = vmatmul.bf16.gmra.mxu0 %v322
    %v462 = vpop.f32.mrf.mxu0
    %v463 = vadd.f32 0.0, %v462
    %v464 = vpop.f32.mrf.mxu0
    %v465 = vadd.f32 0.0, %v464
    %466 = vmatmul.bf16.gmra.mxu0 %v325
    %v467 = vpop.f32.mrf.mxu0
    %v468 = vadd.f32 0.0, %v467
    %v469 = vpop.f32.mrf.mxu0
    %v470 = vadd.f32 0.0, %v469
    %471 = vdwg.mxu0
    %472 = vmatpush.bf16.msra.mxu0 0
    %473 = vmatpush.bf16.msra.mxu0 0
    %474 = vmatpush.bf16.msra.mxu0 0
    %475 = vmatpush.bf16.msra.mxu0 0
    %476 = vmatpush.bf16.msra.mxu0 0
    %477 = vmatpush.bf16.msra.mxu0 0
    %478 = vmatpush.bf16.msra.mxu0 %v295
    %479 = vmatpush.bf16.msra.mxu0 %v287
    %480 = vmatmul.bf16.gmra.mxu0 %v316
    %v481 = vpop.f32.mrf.mxu0
    %v482 = vadd.f32 0.0, %v481
    %v483 = vpop.f32.mrf.mxu0
    %v484 = vadd.f32 0.0, %v483
    %485 = vmatmul.bf16.gmra.mxu0 %v319
    %v486 = vpop.f32.mrf.mxu0
    %v487 = vadd.f32 0.0, %v486
    %v488 = vpop.f32.mrf.mxu0
    %v489 = vadd.f32 0.0, %v488
    %490 = vmatmul.bf16.gmra.mxu0 %v322
    %v491 = vpop.f32.mrf.mxu0
    %v492 = vadd.f32 0.0, %v491
    %v493 = vpop.f32.mrf.mxu0
    %v494 = vadd.f32 0.0, %v493
    %495 = vmatmul.bf16.gmra.mxu0 %v325
    %v496 = vpop.f32.mrf.mxu0
    %v497 = vadd.f32 0.0, %v496
    %v498 = vpop.f32.mrf.mxu0
    %v499 = vadd.f32 0.0, %v498
    %500 = vdwg.mxu0
    %501 = vmatpush.bf16.msra.mxu0 0
    %502 = vmatpush.bf16.msra.mxu0 0
    %503 = vmatpush.bf16.msra.mxu0 0
    %504 = vmatpush.bf16.msra.mxu0 0
    %505 = vmatpush.bf16.msra.mxu0 0
    %506 = vmatpush.bf16.msra.mxu0 0
    %507 = vmatpush.bf16.msra.mxu0 %v296
    %508 = vmatpush.bf16.msra.mxu0 %v288
    %509 = vmatmul.bf16.gmra.mxu0 %v316
    %v510 = vpop.f32.mrf.mxu0
    %v511 = vadd.f32 0.0, %v510
    %v512 = vpop.f32.mrf.mxu0
    %v513 = vadd.f32 0.0, %v512
    %514 = vmatmul.bf16.gmra.mxu0 %v319
    %v515 = vpop.f32.mrf.mxu0
    %v516 = vadd.f32 0.0, %v515
    %v517 = vpop.f32.mrf.mxu0
    %v518 = vadd.f32 0.0, %v517
    %519 = vmatmul.bf16.gmra.mxu0 %v322
    %v520 = vpop.f32.mrf.mxu0
    %v521 = vadd.f32 0.0, %v520
    %v522 = vpop.f32.mrf.mxu0
    %v523 = vadd.f32 0.0, %v522
    %524 = vmatmul.bf16.gmra.mxu0 %v325
    %v525 = vpop.f32.mrf.mxu0
    %v526 = vadd.f32 0.0, %v525
    %v527 = vpop.f32.mrf.mxu0
    %v528 = vadd.f32 0.0, %v527
    %529 = vdwg.mxu0
    %530 = vmatpush.bf16.msra.mxu0 0
    %531 = vmatpush.bf16.msra.mxu0 0
    %532 = vmatpush.bf16.msra.mxu0 0
    %533 = vmatpush.bf16.msra.mxu0 0
    %534 = vmatpush.bf16.msra.mxu0 0
    %535 = vmatpush.bf16.msra.mxu0 0
    %536 = vmatpush.bf16.msra.mxu0 %v297
    %537 = vmatpush.bf16.msra.mxu0 %v289
    %538 = vmatmul.bf16.gmra.mxu0 %v316
    %v539 = vpop.f32.mrf.mxu0
    %v540 = vadd.f32 0.0, %v539
    %v541 = vpop.f32.mrf.mxu0
    %v542 = vadd.f32 0.0, %v541
    %543 = vmatmul.bf16.gmra.mxu0 %v319
    %v544 = vpop.f32.mrf.mxu0
    %v545 = vadd.f32 0.0, %v544
    %v546 = vpop.f32.mrf.mxu0
    %v547 = vadd.f32 0.0, %v546
    %548 = vmatmul.bf16.gmra.mxu0 %v322
    %v549 = vpop.f32.mrf.mxu0
    %v550 = vadd.f32 0.0, %v549
    %v551 = vpop.f32.mrf.mxu0
    %v552 = vadd.f32 0.0, %v551
    %553 = vmatmul.bf16.gmra.mxu0 %v325
    %v554 = vpop.f32.mrf.mxu0
    %v555 = vadd.f32 0.0, %v554
    %v556 = vpop.f32.mrf.mxu0
    %v557 = vadd.f32 0.0, %v556
    %558 = vdwg.mxu0
    %v559 = vpack.c.bf16 %v339, %v337
    %v560 = vpack.c.bf16 %v368, %v366
    %v561 = vpack.c.bf16 %v397, %v395
    %v562 = vpack.c.bf16 %v426, %v424
    %v563 = vpack.c.bf16 %v455, %v453
    %v564 = vpack.c.bf16 %v484, %v482
    %v565 = vpack.c.bf16 %v513, %v511
    %v566 = vpack.c.bf16 %v542, %v540
    %v567 = vpack.c.bf16 %v344, %v342
    %v568 = vpack.c.bf16 %v373, %v371
    %v569 = vpack.c.bf16 %v402, %v400
    %v570 = vpack.c.bf16 %v431, %v429
    %v571 = vpack.c.bf16 %v460, %v458
    %v572 = vpack.c.bf16 %v489, %v487
    %v573 = vpack.c.bf16 %v518, %v516
    %v574 = vpack.c.bf16 %v547, %v545
    %v575 = vpack.c.bf16 %v349, %v347
    %v576 = vpack.c.bf16 %v378, %v376
    %v577 = vpack.c.bf16 %v407, %v405
    %v578 = vpack.c.bf16 %v436, %v434
    %v579 = vpack.c.bf16 %v465, %v463
    %v580 = vpack.c.bf16 %v494, %v492
    %v581 = vpack.c.bf16 %v523, %v521
    %v582 = vpack.c.bf16 %v552, %v550
    %v583 = vpack.c.bf16 %v354, %v352
    %v584 = vpack.c.bf16 %v383, %v381
    %v585 = vpack.c.bf16 %v412, %v410
    %v586 = vpack.c.bf16 %v441, %v439
    %v587 = vpack.c.bf16 %v470, %v468
    %v588 = vpack.c.bf16 %v499, %v497
    %v589 = vpack.c.bf16 %v528, %v526
    %v590 = vpack.c.bf16 %v557, %v555
    %v591 = vld [vmem:[#allocation6] sm:$0xff]
    %v593 = vperm.slane %v591, 0
    %v594 = vperm.slane %v591, 1
    %v595 = vperm.slane %v591, 2
    %v596 = vperm.slane %v591, 3
    %v597 = vperm.slane %v591, 4
    %v598 = vperm.slane %v591, 5
    %v599 = vperm.slane %v591, 6
    %v600 = vperm.slane %v591, 7
    %v617 = vunpack.c.l.b16 %v182
    %v618 = vunpack.c.l.b16 %v183
    %v619 = vunpack.c.l.b16 %v184
    %v620 = vunpack.c.l.b16 %v185
    %v621 = vunpack.c.l.b16 %v186
    %v622 = vunpack.c.l.b16 %v187
    %v623 = vunpack.c.l.b16 %v188
    %v624 = vunpack.c.l.b16 %v189
    %v625 = vpack.c.b16 %v618, %v617
    %v626 = vpack.c.b16 %v620, %v619
    %v627 = vpack.c.b16 %v622, %v621
    %v628 = vpack.c.b16 %v624, %v623
    %vm629 = vcmask 523264
    %v631 = vsel %vm629, %v625, 0
    %v634 = vsel %vm629, %v626, 0
    %v637 = vsel %vm629, %v627, 0
    %v640 = vsel %vm629, %v628, 0
    %642 = vmatpush.bf16.msra.mxu0 0
    %643 = vmatpush.bf16.msra.mxu0 0
    %644 = vmatpush.bf16.msra.mxu0 0
    %645 = vmatpush.bf16.msra.mxu0 0
    %646 = vmatpush.bf16.msra.mxu0 %v583
    %647 = vmatpush.bf16.msra.mxu0 %v575
    %648 = vmatpush.bf16.msra.mxu0 %v567
    %649 = vmatpush.bf16.msra.mxu0 %v559
    %650 = vmatmul.bf16.gmra.mxu0 %v631
    %v651 = vpop.f32.mrf.mxu0
    %v652 = vadd.f32 %v593, %v651
    %v653 = vpop.f32.mrf.mxu0
    %v654 = vadd.f32 %v593, %v653
    %655 = vmatmul.bf16.gmra.mxu0 %v634
    %v656 = vpop.f32.mrf.mxu0
    %v657 = vadd.f32 %v593, %v656
    %v658 = vpop.f32.mrf.mxu0
    %v659 = vadd.f32 %v593, %v658
    %660 = vmatmul.bf16.gmra.mxu0 %v637
    %v661 = vpop.f32.mrf.mxu0
    %v662 = vadd.f32 %v593, %v661
    %v663 = vpop.f32.mrf.mxu0
    %v664 = vadd.f32 %v593, %v663
    %665 = vmatmul.bf16.gmra.mxu0 %v640
    %v666 = vpop.f32.mrf.mxu0
    %v667 = vadd.f32 %v593, %v666
    %v668 = vpop.f32.mrf.mxu0
    %v669 = vadd.f32 %v593, %v668
    %670 = vdwg.mxu0
    %671 = vmatpush.bf16.msra.mxu0 0
    %672 = vmatpush.bf16.msra.mxu0 0
    %673 = vmatpush.bf16.msra.mxu0 0
    %674 = vmatpush.bf16.msra.mxu0 0
    %675 = vmatpush.bf16.msra.mxu0 %v584
    %676 = vmatpush.bf16.msra.mxu0 %v576
    %677 = vmatpush.bf16.msra.mxu0 %v568
    %678 = vmatpush.bf16.msra.mxu0 %v560
    %679 = vmatmul.bf16.gmra.mxu0 %v631
    %v680 = vpop.f32.mrf.mxu0
    %v681 = vadd.f32 %v594, %v680
    %v682 = vpop.f32.mrf.mxu0
    %v683 = vadd.f32 %v594, %v682
    %684 = vmatmul.bf16.gmra.mxu0 %v634
    %v685 = vpop.f32.mrf.mxu0
    %v686 = vadd.f32 %v594, %v685
    %v687 = vpop.f32.mrf.mxu0
    %v688 = vadd.f32 %v594, %v687
    %689 = vmatmul.bf16.gmra.mxu0 %v637
    %v690 = vpop.f32.mrf.mxu0
    %v691 = vadd.f32 %v594, %v690
    %v692 = vpop.f32.mrf.mxu0
    %v693 = vadd.f32 %v594, %v692
    %694 = vmatmul.bf16.gmra.mxu0 %v640
    %v695 = vpop.f32.mrf.mxu0
    %v696 = vadd.f32 %v594, %v695
    %v697 = vpop.f32.mrf.mxu0
    %v698 = vadd.f32 %v594, %v697
    %699 = vdwg.mxu0
    %700 = vmatpush.bf16.msra.mxu0 0
    %701 = vmatpush.bf16.msra.mxu0 0
    %702 = vmatpush.bf16.msra.mxu0 0
    %703 = vmatpush.bf16.msra.mxu0 0
    %704 = vmatpush.bf16.msra.mxu0 %v585
    %705 = vmatpush.bf16.msra.mxu0 %v577
    %706 = vmatpush.bf16.msra.mxu0 %v569
    %707 = vmatpush.bf16.msra.mxu0 %v561
    %708 = vmatmul.bf16.gmra.mxu0 %v631
    %v709 = vpop.f32.mrf.mxu0
    %v710 = vadd.f32 %v595, %v709
    %v711 = vpop.f32.mrf.mxu0
    %v712 = vadd.f32 %v595, %v711
    %713 = vmatmul.bf16.gmra.mxu0 %v634
    %v714 = vpop.f32.mrf.mxu0
    %v715 = vadd.f32 %v595, %v714
    %v716 = vpop.f32.mrf.mxu0
    %v717 = vadd.f32 %v595, %v716
    %718 = vmatmul.bf16.gmra.mxu0 %v637
    %v719 = vpop.f32.mrf.mxu0
    %v720 = vadd.f32 %v595, %v719
    %v721 = vpop.f32.mrf.mxu0
    %v722 = vadd.f32 %v595, %v721
    %723 = vmatmul.bf16.gmra.mxu0 %v640
    %v724 = vpop.f32.mrf.mxu0
    %v725 = vadd.f32 %v595, %v724
    %v726 = vpop.f32.mrf.mxu0
    %v727 = vadd.f32 %v595, %v726
    %728 = vdwg.mxu0
    %729 = vmatpush.bf16.msra.mxu0 0
    %730 = vmatpush.bf16.msra.mxu0 0
    %731 = vmatpush.bf16.msra.mxu0 0
    %732 = vmatpush.bf16.msra.mxu0 0
    %733 = vmatpush.bf16.msra.mxu0 %v586
    %734 = vmatpush.bf16.msra.mxu0 %v578
    %735 = vmatpush.bf16.msra.mxu0 %v570
    %736 = vmatpush.bf16.msra.mxu0 %v562
    %737 = vmatmul.bf16.gmra.mxu0 %v631
    %v738 = vpop.f32.mrf.mxu0
    %v739 = vadd.f32 %v596, %v738
    %v740 = vpop.f32.mrf.mxu0
    %v741 = vadd.f32 %v596, %v740
    %742 = vmatmul.bf16.gmra.mxu0 %v634
    %v743 = vpop.f32.mrf.mxu0
    %v744 = vadd.f32 %v596, %v743
    %v745 = vpop.f32.mrf.mxu0
    %v746 = vadd.f32 %v596, %v745
    %747 = vmatmul.bf16.gmra.mxu0 %v637
    %v748 = vpop.f32.mrf.mxu0
    %v749 = vadd.f32 %v596, %v748
    %v750 = vpop.f32.mrf.mxu0
    %v751 = vadd.f32 %v596, %v750
    %752 = vmatmul.bf16.gmra.mxu0 %v640
    %v753 = vpop.f32.mrf.mxu0
    %v754 = vadd.f32 %v596, %v753
    %v755 = vpop.f32.mrf.mxu0
    %v756 = vadd.f32 %v596, %v755
    %757 = vdwg.mxu0
    %758 = vmatpush.bf16.msra.mxu0 0
    %759 = vmatpush.bf16.msra.mxu0 0
    %760 = vmatpush.bf16.msra.mxu0 0
    %761 = vmatpush.bf16.msra.mxu0 0
    %762 = vmatpush.bf16.msra.mxu0 %v587
    %763 = vmatpush.bf16.msra.mxu0 %v579
    %764 = vmatpush.bf16.msra.mxu0 %v571
    %765 = vmatpush.bf16.msra.mxu0 %v563
    %766 = vmatmul.bf16.gmra.mxu0 %v631
    %v767 = vpop.f32.mrf.mxu0
    %v768 = vadd.f32 %v597, %v767
    %v769 = vpop.f32.mrf.mxu0
    %v770 = vadd.f32 %v597, %v769
    %771 = vmatmul.bf16.gmra.mxu0 %v634
    %v772 = vpop.f32.mrf.mxu0
    %v773 = vadd.f32 %v597, %v772
    %v774 = vpop.f32.mrf.mxu0
    %v775 = vadd.f32 %v597, %v774
    %776 = vmatmul.bf16.gmra.mxu0 %v637
    %v777 = vpop.f32.mrf.mxu0
    %v778 = vadd.f32 %v597, %v777
    %v779 = vpop.f32.mrf.mxu0
    %v780 = vadd.f32 %v597, %v779
    %781 = vmatmul.bf16.gmra.mxu0 %v640
    %v782 = vpop.f32.mrf.mxu0
    %v783 = vadd.f32 %v597, %v782
    %v784 = vpop.f32.mrf.mxu0
    %v785 = vadd.f32 %v597, %v784
    %786 = vdwg.mxu0
    %787 = vmatpush.bf16.msra.mxu0 0
    %788 = vmatpush.bf16.msra.mxu0 0
    %789 = vmatpush.bf16.msra.mxu0 0
    %790 = vmatpush.bf16.msra.mxu0 0
    %791 = vmatpush.bf16.msra.mxu0 %v588
    %792 = vmatpush.bf16.msra.mxu0 %v580
    %793 = vmatpush.bf16.msra.mxu0 %v572
    %794 = vmatpush.bf16.msra.mxu0 %v564
    %795 = vmatmul.bf16.gmra.mxu0 %v631
    %v796 = vpop.f32.mrf.mxu0
    %v797 = vadd.f32 %v598, %v796
    %v798 = vpop.f32.mrf.mxu0
    %v799 = vadd.f32 %v598, %v798
    %800 = vmatmul.bf16.gmra.mxu0 %v634
    %v801 = vpop.f32.mrf.mxu0
    %v802 = vadd.f32 %v598, %v801
    %v803 = vpop.f32.mrf.mxu0
    %v804 = vadd.f32 %v598, %v803
    %805 = vmatmul.bf16.gmra.mxu0 %v637
    %v806 = vpop.f32.mrf.mxu0
    %v807 = vadd.f32 %v598, %v806
    %v808 = vpop.f32.mrf.mxu0
    %v809 = vadd.f32 %v598, %v808
    %810 = vmatmul.bf16.gmra.mxu0 %v640
    %v811 = vpop.f32.mrf.mxu0
    %v812 = vadd.f32 %v598, %v811
    %v813 = vpop.f32.mrf.mxu0
    %v814 = vadd.f32 %v598, %v813
    %815 = vdwg.mxu0
    %816 = vmatpush.bf16.msra.mxu0 0
    %817 = vmatpush.bf16.msra.mxu0 0
    %818 = vmatpush.bf16.msra.mxu0 0
    %819 = vmatpush.bf16.msra.mxu0 0
    %820 = vmatpush.bf16.msra.mxu0 %v589
    %821 = vmatpush.bf16.msra.mxu0 %v581
    %822 = vmatpush.bf16.msra.mxu0 %v573
    %823 = vmatpush.bf16.msra.mxu0 %v565
    %824 = vmatmul.bf16.gmra.mxu0 %v631
    %v825 = vpop.f32.mrf.mxu0
    %v826 = vadd.f32 %v599, %v825
    %v827 = vpop.f32.mrf.mxu0
    %v828 = vadd.f32 %v599, %v827
    %829 = vmatmul.bf16.gmra.mxu0 %v634
    %v830 = vpop.f32.mrf.mxu0
    %v831 = vadd.f32 %v599, %v830
    %v832 = vpop.f32.mrf.mxu0
    %v833 = vadd.f32 %v599, %v832
    %834 = vmatmul.bf16.gmra.mxu0 %v637
    %v835 = vpop.f32.mrf.mxu0
    %v836 = vadd.f32 %v599, %v835
    %v837 = vpop.f32.mrf.mxu0
    %v838 = vadd.f32 %v599, %v837
    %839 = vmatmul.bf16.gmra.mxu0 %v640
    %v840 = vpop.f32.mrf.mxu0
    %v841 = vadd.f32 %v599, %v840
    %v842 = vpop.f32.mrf.mxu0
    %v843 = vadd.f32 %v599, %v842
    %844 = vdwg.mxu0
    %845 = vmatpush.bf16.msra.mxu0 0
    %846 = vmatpush.bf16.msra.mxu0 0
    %847 = vmatpush.bf16.msra.mxu0 0
    %848 = vmatpush.bf16.msra.mxu0 0
    %849 = vmatpush.bf16.msra.mxu0 %v590
    %850 = vmatpush.bf16.msra.mxu0 %v582
    %851 = vmatpush.bf16.msra.mxu0 %v574
    %852 = vmatpush.bf16.msra.mxu0 %v566
    %853 = vmatmul.bf16.gmra.mxu0 %v631
    %v854 = vpop.f32.mrf.mxu0
    %v855 = vadd.f32 %v600, %v854
    %v856 = vpop.f32.mrf.mxu0
    %v857 = vadd.f32 %v600, %v856
    %858 = vmatmul.bf16.gmra.mxu0 %v634
    %v859 = vpop.f32.mrf.mxu0
    %v860 = vadd.f32 %v600, %v859
    %v861 = vpop.f32.mrf.mxu0
    %v862 = vadd.f32 %v600, %v861
    %863 = vmatmul.bf16.gmra.mxu0 %v637
    %v864 = vpop.f32.mrf.mxu0
    %v865 = vadd.f32 %v600, %v864
    %v866 = vpop.f32.mrf.mxu0
    %v867 = vadd.f32 %v600, %v866
    %868 = vmatmul.bf16.gmra.mxu0 %v640
    %v869 = vpop.f32.mrf.mxu0
    %v870 = vadd.f32 %v600, %v869
    %v871 = vpop.f32.mrf.mxu0
    %v872 = vadd.f32 %v600, %v871
    %873 = vdwg.mxu0
    %v874 = vmax.f32 %v652, 0.0
    %v875 = vmax.f32 %v681, 0.0
    %v876 = vmax.f32 %v710, 0.0
    %v877 = vmax.f32 %v739, 0.0
    %v878 = vmax.f32 %v768, 0.0
    %v879 = vmax.f32 %v797, 0.0
    %v880 = vmax.f32 %v826, 0.0
    %v881 = vmax.f32 %v855, 0.0
    %v882 = vmax.f32 %v654, 0.0
    %v883 = vmax.f32 %v683, 0.0
    %v884 = vmax.f32 %v712, 0.0
    %v885 = vmax.f32 %v741, 0.0
    %v886 = vmax.f32 %v770, 0.0
    %v887 = vmax.f32 %v799, 0.0
    %v888 = vmax.f32 %v828, 0.0
    %v889 = vmax.f32 %v857, 0.0
    %v890 = vmax.f32 %v657, 0.0
    %v891 = vmax.f32 %v686, 0.0
    %v892 = vmax.f32 %v715, 0.0
    %v893 = vmax.f32 %v744, 0.0
    %v894 = vmax.f32 %v773, 0.0
    %v895 = vmax.f32 %v802, 0.0
    %v896 = vmax.f32 %v831, 0.0
    %v897 = vmax.f32 %v860, 0.0
    %v898 = vmax.f32 %v659, 0.0
    %v899 = vmax.f32 %v688, 0.0
    %v900 = vmax.f32 %v717, 0.0
    %v901 = vmax.f32 %v746, 0.0
    %v902 = vmax.f32 %v775, 0.0
    %v903 = vmax.f32 %v804, 0.0
    %v904 = vmax.f32 %v833, 0.0
    %v905 = vmax.f32 %v862, 0.0
    %v906 = vmax.f32 %v662, 0.0
    %v907 = vmax.f32 %v691, 0.0
    %v908 = vmax.f32 %v720, 0.0
    %v909 = vmax.f32 %v749, 0.0
    %v910 = vmax.f32 %v778, 0.0
    %v911 = vmax.f32 %v807, 0.0
    %v912 = vmax.f32 %v836, 0.0
    %v913 = vmax.f32 %v865, 0.0
    %v914 = vmax.f32 %v664, 0.0
    %v915 = vmax.f32 %v693, 0.0
    %v916 = vmax.f32 %v722, 0.0
    %v917 = vmax.f32 %v751, 0.0
    %v918 = vmax.f32 %v780, 0.0
    %v919 = vmax.f32 %v809, 0.0
    %v920 = vmax.f32 %v838, 0.0
    %v921 = vmax.f32 %v867, 0.0
    %v922 = vmax.f32 %v667, 0.0
    %v923 = vmax.f32 %v696, 0.0
    %v924 = vmax.f32 %v725, 0.0
    %v925 = vmax.f32 %v754, 0.0
    %v926 = vmax.f32 %v783, 0.0
    %v927 = vmax.f32 %v812, 0.0
    %v928 = vmax.f32 %v841, 0.0
    %v929 = vmax.f32 %v870, 0.0
    %v930 = vmax.f32 %v669, 0.0
    %v931 = vmax.f32 %v698, 0.0
    %v932 = vmax.f32 %v727, 0.0
    %v933 = vmax.f32 %v756, 0.0
    %v934 = vmax.f32 %v785, 0.0
    %v935 = vmax.f32 %v814, 0.0
    %v936 = vmax.f32 %v843, 0.0
    %v937 = vmax.f32 %v872, 0.0
    %v938 = vpack.c.bf16 %v875, %v874
    %v939 = vpack.c.bf16 %v877, %v876
    %v940 = vpack.c.bf16 %v879, %v878
    %v941 = vpack.c.bf16 %v881, %v880
    %v942 = vpack.c.bf16 %v883, %v882
    %v943 = vpack.c.bf16 %v885, %v884
    %v944 = vpack.c.bf16 %v887, %v886
    %v945 = vpack.c.bf16 %v889, %v888
    %v946 = vpack.c.bf16 %v891, %v890
    %v947 = vpack.c.bf16 %v893, %v892
    %v948 = vpack.c.bf16 %v895, %v894
    %v949 = vpack.c.bf16 %v897, %v896
    %v950 = vpack.c.bf16 %v899, %v898
    %v951 = vpack.c.bf16 %v901, %v900
    %v952 = vpack.c.bf16 %v903, %v902
    %v953 = vpack.c.bf16 %v905, %v904
    %v954 = vpack.c.bf16 %v907, %v906
    %v955 = vpack.c.bf16 %v909, %v908
    %v956 = vpack.c.bf16 %v911, %v910
    %v957 = vpack.c.bf16 %v913, %v912
    %v958 = vpack.c.bf16 %v915, %v914
    %v959 = vpack.c.bf16 %v917, %v916
    %v960 = vpack.c.bf16 %v919, %v918
    %v961 = vpack.c.bf16 %v921, %v920
    %v962 = vpack.c.bf16 %v923, %v922
    %v963 = vpack.c.bf16 %v925, %v924
    %v964 = vpack.c.bf16 %v927, %v926
    %v965 = vpack.c.bf16 %v929, %v928
    %v966 = vpack.c.bf16 %v931, %v930
    %v967 = vpack.c.bf16 %v933, %v932
    %v968 = vpack.c.bf16 %v935, %v934
    %v969 = vpack.c.bf16 %v937, %v936
    %s970 = scalar_lea.hbm %s4, 2048
    %s971 = scalar_lea.vmem [#allocation2], 2048
    %s972 = scalar_lea.sflag [#allocation3], 2
    // Predicated region
    $region82: #{gcn_res_forward.1} parent=1 // pred_check
      _
    $region83: #{gcn_res_forward.1} parent=1 // pred_check_branch
      %974 = sbr.rel target = $region85
    $region84: #{gcn_res_forward.1} parent=1 // pred_region
      %975 = sst [smem:[#allocation19]] [#allocation24]
      %976 = sst [smem:[#allocation20]] [#allocation23]
    $region85: #{gcn_res_forward.1} parent=1 // pred_fallthru
      _
    %978 = shalt.err (0)
    %s980 = sshll.u32 %s970, 4
    %s981 = int_to_ptr.hbm [resolvable:$true] %s980
    %s982 = sshll.u32 %s971, 4
    %s983 = int_to_ptr.vmem [resolvable:$true] %s982
    %985 = dma.hbm_to_vmem [thread:$0]  %s981, 16384, %s983, %s972
    %s986 = smul.u32 4, 32
    %s987 = smul.u32 %s986, 8
    %s988 = sshll.u32 %s987, 4
    %989 = dma.done [#allocation3], %s988
    %v990 = vld [vmem:[#allocation2] sm:$0xff]
    %v991 = vld [vmem:[#allocation2 + $0x8] sm:$0xff]
    %v992 = vld [vmem:[#allocation2 + $0x10] sm:$0xff]
    %v993 = vld [vmem:[#allocation2 + $0x18] sm:$0xff]
    %v994 = vld [vmem:[#allocation2 + $0x20] sm:$0xff]
    %v995 = vld [vmem:[#allocation2 + $0x28] sm:$0xff]
    %v996 = vld [vmem:[#allocation2 + $0x30] sm:$0xff]
    %v997 = vld [vmem:[#allocation2 + $0x38] sm:$0xff]
    %v998 = vld [vmem:[#allocation2 + $0x40] sm:$0xff]
    %v999 = vld [vmem:[#allocation2 + $0x48] sm:$0xff]
    %v1000 = vld [vmem:[#allocation2 + $0x50] sm:$0xff]
    %v1001 = vld [vmem:[#allocation2 + $0x58] sm:$0xff]
    %v1002 = vld [vmem:[#allocation2 + $0x60] sm:$0xff]
    %v1003 = vld [vmem:[#allocation2 + $0x68] sm:$0xff]
    %v1004 = vld [vmem:[#allocation2 + $0x70] sm:$0xff]
    %v1005 = vld [vmem:[#allocation2 + $0x78] sm:$0xff]
    %v1006 = vld [vmem:[#allocation2 + $0x80] sm:$0xff]
    %v1007 = vld [vmem:[#allocation2 + $0x88] sm:$0xff]
    %v1008 = vld [vmem:[#allocation2 + $0x90] sm:$0xff]
    %v1009 = vld [vmem:[#allocation2 + $0x98] sm:$0xff]
    %v1010 = vld [vmem:[#allocation2 + $0xa0] sm:$0xff]
    %v1011 = vld [vmem:[#allocation2 + $0xa8] sm:$0xff]
    %v1012 = vld [vmem:[#allocation2 + $0xb0] sm:$0xff]
    %v1013 = vld [vmem:[#allocation2 + $0xb8] sm:$0xff]
    %v1014 = vld [vmem:[#allocation2 + $0xc0] sm:$0xff]
    %v1015 = vld [vmem:[#allocation2 + $0xc8] sm:$0xff]
    %v1016 = vld [vmem:[#allocation2 + $0xd0] sm:$0xff]
    %v1017 = vld [vmem:[#allocation2 + $0xd8] sm:$0xff]
    %v1018 = vld [vmem:[#allocation2 + $0xe0] sm:$0xff]
    %v1019 = vld [vmem:[#allocation2 + $0xe8] sm:$0xff]
    %v1020 = vld [vmem:[#allocation2 + $0xf0] sm:$0xff]
    %v1021 = vld [vmem:[#allocation2 + $0xf8] sm:$0xff]
    %v1022 = vld [vmem:[#allocation2 + $0x100] sm:$0xff]
    %v1023 = vld [vmem:[#allocation2 + $0x108] sm:$0xff]
    %v1024 = vld [vmem:[#allocation2 + $0x110] sm:$0xff]
    %v1025 = vld [vmem:[#allocation2 + $0x118] sm:$0xff]
    %v1026 = vld [vmem:[#allocation2 + $0x120] sm:$0xff]
    %v1027 = vld [vmem:[#allocation2 + $0x128] sm:$0xff]
    %v1028 = vld [vmem:[#allocation2 + $0x130] sm:$0xff]
    %v1029 = vld [vmem:[#allocation2 + $0x138] sm:$0xff]
    %v1030 = vld [vmem:[#allocation2 + $0x140] sm:$0xff]
    %v1031 = vld [vmem:[#allocation2 + $0x148] sm:$0xff]
    %v1032 = vld [vmem:[#allocation2 + $0x150] sm:$0xff]
    %v1033 = vld [vmem:[#allocation2 + $0x158] sm:$0xff]
    %v1034 = vld [vmem:[#allocation2 + $0x160] sm:$0xff]
    %v1035 = vld [vmem:[#allocation2 + $0x168] sm:$0xff]
    %v1036 = vld [vmem:[#allocation2 + $0x170] sm:$0xff]
    %v1037 = vld [vmem:[#allocation2 + $0x178] sm:$0xff]
    %v1038 = vld [vmem:[#allocation2 + $0x180] sm:$0xff]
    %v1039 = vld [vmem:[#allocation2 + $0x188] sm:$0xff]
    %v1040 = vld [vmem:[#allocation2 + $0x190] sm:$0xff]
    %v1041 = vld [vmem:[#allocation2 + $0x198] sm:$0xff]
    %v1042 = vld [vmem:[#allocation2 + $0x1a0] sm:$0xff]
    %v1043 = vld [vmem:[#allocation2 + $0x1a8] sm:$0xff]
    %v1044 = vld [vmem:[#allocation2 + $0x1b0] sm:$0xff]
    %v1045 = vld [vmem:[#allocation2 + $0x1b8] sm:$0xff]
    %v1046 = vld [vmem:[#allocation2 + $0x1c0] sm:$0xff]
    %v1047 = vld [vmem:[#allocation2 + $0x1c8] sm:$0xff]
    %v1048 = vld [vmem:[#allocation2 + $0x1d0] sm:$0xff]
    %v1049 = vld [vmem:[#allocation2 + $0x1d8] sm:$0xff]
    %v1050 = vld [vmem:[#allocation2 + $0x1e0] sm:$0xff]
    %v1051 = vld [vmem:[#allocation2 + $0x1e8] sm:$0xff]
    %v1052 = vld [vmem:[#allocation2 + $0x1f0] sm:$0xff]
    %v1053 = vld [vmem:[#allocation2 + $0x1f8] sm:$0xff]
    %v1054 = vld [vmem:[#allocation2 + $0x200] sm:$0xff]
    %v1055 = vld [vmem:[#allocation2 + $0x208] sm:$0xff]
    %v1056 = vld [vmem:[#allocation2 + $0x210] sm:$0xff]
    %v1057 = vld [vmem:[#allocation2 + $0x218] sm:$0xff]
    %v1058 = vld [vmem:[#allocation2 + $0x220] sm:$0xff]
    %v1059 = vld [vmem:[#allocation2 + $0x228] sm:$0xff]
    %v1060 = vld [vmem:[#allocation2 + $0x230] sm:$0xff]
    %v1061 = vld [vmem:[#allocation2 + $0x238] sm:$0xff]
    %v1062 = vld [vmem:[#allocation2 + $0x240] sm:$0xff]
    %v1063 = vld [vmem:[#allocation2 + $0x248] sm:$0xff]
    %v1064 = vld [vmem:[#allocation2 + $0x250] sm:$0xff]
    %v1065 = vld [vmem:[#allocation2 + $0x258] sm:$0xff]
    %v1066 = vld [vmem:[#allocation2 + $0x260] sm:$0xff]
    %v1067 = vld [vmem:[#allocation2 + $0x268] sm:$0xff]
    %v1068 = vld [vmem:[#allocation2 + $0x270] sm:$0xff]
    %v1069 = vld [vmem:[#allocation2 + $0x278] sm:$0xff]
    %v1070 = vld [vmem:[#allocation2 + $0x280] sm:$0xff]
    %v1071 = vld [vmem:[#allocation2 + $0x288] sm:$0xff]
    %v1072 = vld [vmem:[#allocation2 + $0x290] sm:$0xff]
    %v1073 = vld [vmem:[#allocation2 + $0x298] sm:$0xff]
    %v1074 = vld [vmem:[#allocation2 + $0x2a0] sm:$0xff]
    %v1075 = vld [vmem:[#allocation2 + $0x2a8] sm:$0xff]
    %v1076 = vld [vmem:[#allocation2 + $0x2b0] sm:$0xff]
    %v1077 = vld [vmem:[#allocation2 + $0x2b8] sm:$0xff]
    %v1078 = vld [vmem:[#allocation2 + $0x2c0] sm:$0xff]
    %v1079 = vld [vmem:[#allocation2 + $0x2c8] sm:$0xff]
    %v1080 = vld [vmem:[#allocation2 + $0x2d0] sm:$0xff]
    %v1081 = vld [vmem:[#allocation2 + $0x2d8] sm:$0xff]
    %v1082 = vld [vmem:[#allocation2 + $0x2e0] sm:$0xff]
    %v1083 = vld [vmem:[#allocation2 + $0x2e8] sm:$0xff]
    %v1084 = vld [vmem:[#allocation2 + $0x2f0] sm:$0xff]
    %v1085 = vld [vmem:[#allocation2 + $0x2f8] sm:$0xff]
    %v1086 = vld [vmem:[#allocation2 + $0x300] sm:$0xff]
    %v1087 = vld [vmem:[#allocation2 + $0x308] sm:$0xff]
    %v1088 = vld [vmem:[#allocation2 + $0x310] sm:$0xff]
    %v1089 = vld [vmem:[#allocation2 + $0x318] sm:$0xff]
    %v1090 = vld [vmem:[#allocation2 + $0x320] sm:$0xff]
    %v1091 = vld [vmem:[#allocation2 + $0x328] sm:$0xff]
    %v1092 = vld [vmem:[#allocation2 + $0x330] sm:$0xff]
    %v1093 = vld [vmem:[#allocation2 + $0x338] sm:$0xff]
    %v1094 = vld [vmem:[#allocation2 + $0x340] sm:$0xff]
    %v1095 = vld [vmem:[#allocation2 + $0x348] sm:$0xff]
    %v1096 = vld [vmem:[#allocation2 + $0x350] sm:$0xff]
    %v1097 = vld [vmem:[#allocation2 + $0x358] sm:$0xff]
    %v1098 = vld [vmem:[#allocation2 + $0x360] sm:$0xff]
    %v1099 = vld [vmem:[#allocation2 + $0x368] sm:$0xff]
    %v1100 = vld [vmem:[#allocation2 + $0x370] sm:$0xff]
    %v1101 = vld [vmem:[#allocation2 + $0x378] sm:$0xff]
    %v1102 = vld [vmem:[#allocation2 + $0x380] sm:$0xff]
    %v1103 = vld [vmem:[#allocation2 + $0x388] sm:$0xff]
    %v1104 = vld [vmem:[#allocation2 + $0x390] sm:$0xff]
    %v1105 = vld [vmem:[#allocation2 + $0x398] sm:$0xff]
    %v1106 = vld [vmem:[#allocation2 + $0x3a0] sm:$0xff]
    %v1107 = vld [vmem:[#allocation2 + $0x3a8] sm:$0xff]
    %v1108 = vld [vmem:[#allocation2 + $0x3b0] sm:$0xff]
    %v1109 = vld [vmem:[#allocation2 + $0x3b8] sm:$0xff]
    %v1110 = vld [vmem:[#allocation2 + $0x3c0] sm:$0xff]
    %v1111 = vld [vmem:[#allocation2 + $0x3c8] sm:$0xff]
    %v1112 = vld [vmem:[#allocation2 + $0x3d0] sm:$0xff]
    %v1113 = vld [vmem:[#allocation2 + $0x3d8] sm:$0xff]
    %v1114 = vld [vmem:[#allocation2 + $0x3e0] sm:$0xff]
    %v1115 = vld [vmem:[#allocation2 + $0x3e8] sm:$0xff]
    %v1116 = vld [vmem:[#allocation2 + $0x3f0] sm:$0xff]
    %v1117 = vld [vmem:[#allocation2 + $0x3f8] sm:$0xff]
    %s1118 = scalar_lea.hbm %s4, 3072
    // Predicated region
    $region86: #{gcn_res_forward.1} parent=1 // pred_check
      _
    $region87: #{gcn_res_forward.1} parent=1 // pred_check_branch
      %1120 = sbr.rel target = $region89
    $region88: #{gcn_res_forward.1} parent=1 // pred_region
      %1121 = sst [smem:[#allocation19]] [#allocation26]
      %1122 = sst [smem:[#allocation20]] [#allocation25]
    $region89: #{gcn_res_forward.1} parent=1 // pred_fallthru
      _
    %1124 = shalt.err (0)
    %s1126 = sshll.u32 %s1118, 4
    %s1127 = int_to_ptr.hbm [resolvable:$true] %s1126
    %s1128 = sshll.u32 [#allocation2], 4
    %s1129 = int_to_ptr.vmem [resolvable:$true] %s1128
    %1131 = dma.hbm_to_vmem [thread:$0]  %s1127, 16384, %s1129, [#allocation3]
    %s1132 = sshll.u32 %s987, 4
    %1133 = dma.done %s168, %s1132
    %v1134 = vld [vmem:[%s167] sm:$0xff]
    %v1135 = vld [vmem:[%s167 + $0x8] sm:$0xff]
    %v1136 = vld [vmem:[%s167 + $0x10] sm:$0xff]
    %v1137 = vld [vmem:[%s167 + $0x18] sm:$0xff]
    %v1138 = vld [vmem:[%s167 + $0x20] sm:$0xff]
    %v1139 = vld [vmem:[%s167 + $0x28] sm:$0xff]
    %v1140 = vld [vmem:[%s167 + $0x30] sm:$0xff]
    %v1141 = vld [vmem:[%s167 + $0x38] sm:$0xff]
    %v1142 = vld [vmem:[%s167 + $0x40] sm:$0xff]
    %v1143 = vld [vmem:[%s167 + $0x48] sm:$0xff]
    %v1144 = vld [vmem:[%s167 + $0x50] sm:$0xff]
    %v1145 = vld [vmem:[%s167 + $0x58] sm:$0xff]
    %v1146 = vld [vmem:[%s167 + $0x60] sm:$0xff]
    %v1147 = vld [vmem:[%s167 + $0x68] sm:$0xff]
    %v1148 = vld [vmem:[%s167 + $0x70] sm:$0xff]
    %v1149 = vld [vmem:[%s167 + $0x78] sm:$0xff]
    %v1150 = vld [vmem:[%s167 + $0x80] sm:$0xff]
    %v1151 = vld [vmem:[%s167 + $0x88] sm:$0xff]
    %v1152 = vld [vmem:[%s167 + $0x90] sm:$0xff]
    %v1153 = vld [vmem:[%s167 + $0x98] sm:$0xff]
    %v1154 = vld [vmem:[%s167 + $0xa0] sm:$0xff]
    %v1155 = vld [vmem:[%s167 + $0xa8] sm:$0xff]
    %v1156 = vld [vmem:[%s167 + $0xb0] sm:$0xff]
    %v1157 = vld [vmem:[%s167 + $0xb8] sm:$0xff]
    %v1158 = vld [vmem:[%s167 + $0xc0] sm:$0xff]
    %v1159 = vld [vmem:[%s167 + $0xc8] sm:$0xff]
    %v1160 = vld [vmem:[%s167 + $0xd0] sm:$0xff]
    %v1161 = vld [vmem:[%s167 + $0xd8] sm:$0xff]
    %v1162 = vld [vmem:[%s167 + $0xe0] sm:$0xff]
    %v1163 = vld [vmem:[%s167 + $0xe8] sm:$0xff]
    %v1164 = vld [vmem:[%s167 + $0xf0] sm:$0xff]
    %v1165 = vld [vmem:[%s167 + $0xf8] sm:$0xff]
    %v1166 = vld [vmem:[%s167 + $0x100] sm:$0xff]
    %v1167 = vld [vmem:[%s167 + $0x108] sm:$0xff]
    %v1168 = vld [vmem:[%s167 + $0x110] sm:$0xff]
    %v1169 = vld [vmem:[%s167 + $0x118] sm:$0xff]
    %v1170 = vld [vmem:[%s167 + $0x120] sm:$0xff]
    %v1171 = vld [vmem:[%s167 + $0x128] sm:$0xff]
    %v1172 = vld [vmem:[%s167 + $0x130] sm:$0xff]
    %v1173 = vld [vmem:[%s167 + $0x138] sm:$0xff]
    %v1174 = vld [vmem:[%s167 + $0x140] sm:$0xff]
    %v1175 = vld [vmem:[%s167 + $0x148] sm:$0xff]
    %v1176 = vld [vmem:[%s167 + $0x150] sm:$0xff]
    %v1177 = vld [vmem:[%s167 + $0x158] sm:$0xff]
    %v1178 = vld [vmem:[%s167 + $0x160] sm:$0xff]
    %v1179 = vld [vmem:[%s167 + $0x168] sm:$0xff]
    %v1180 = vld [vmem:[%s167 + $0x170] sm:$0xff]
    %v1181 = vld [vmem:[%s167 + $0x178] sm:$0xff]
    %v1182 = vld [vmem:[%s167 + $0x180] sm:$0xff]
    %v1183 = vld [vmem:[%s167 + $0x188] sm:$0xff]
    %v1184 = vld [vmem:[%s167 + $0x190] sm:$0xff]
    %v1185 = vld [vmem:[%s167 + $0x198] sm:$0xff]
    %v1186 = vld [vmem:[%s167 + $0x1a0] sm:$0xff]
    %v1187 = vld [vmem:[%s167 + $0x1a8] sm:$0xff]
    %v1188 = vld [vmem:[%s167 + $0x1b0] sm:$0xff]
    %v1189 = vld [vmem:[%s167 + $0x1b8] sm:$0xff]
    %v1190 = vld [vmem:[%s167 + $0x1c0] sm:$0xff]
    %v1191 = vld [vmem:[%s167 + $0x1c8] sm:$0xff]
    %v1192 = vld [vmem:[%s167 + $0x1d0] sm:$0xff]
    %v1193 = vld [vmem:[%s167 + $0x1d8] sm:$0xff]
    %v1194 = vld [vmem:[%s167 + $0x1e0] sm:$0xff]
    %v1195 = vld [vmem:[%s167 + $0x1e8] sm:$0xff]
    %v1196 = vld [vmem:[%s167 + $0x1f0] sm:$0xff]
    %v1197 = vld [vmem:[%s167 + $0x1f8] sm:$0xff]
    %v1198 = vld [vmem:[%s167 + $0x200] sm:$0xff]
    %v1199 = vld [vmem:[%s167 + $0x208] sm:$0xff]
    %v1200 = vld [vmem:[%s167 + $0x210] sm:$0xff]
    %v1201 = vld [vmem:[%s167 + $0x218] sm:$0xff]
    %v1202 = vld [vmem:[%s167 + $0x220] sm:$0xff]
    %v1203 = vld [vmem:[%s167 + $0x228] sm:$0xff]
    %v1204 = vld [vmem:[%s167 + $0x230] sm:$0xff]
    %v1205 = vld [vmem:[%s167 + $0x238] sm:$0xff]
    %v1206 = vld [vmem:[%s167 + $0x240] sm:$0xff]
    %v1207 = vld [vmem:[%s167 + $0x248] sm:$0xff]
    %v1208 = vld [vmem:[%s167 + $0x250] sm:$0xff]
    %v1209 = vld [vmem:[%s167 + $0x258] sm:$0xff]
    %v1210 = vld [vmem:[%s167 + $0x260] sm:$0xff]
    %v1211 = vld [vmem:[%s167 + $0x268] sm:$0xff]
    %v1212 = vld [vmem:[%s167 + $0x270] sm:$0xff]
    %v1213 = vld [vmem:[%s167 + $0x278] sm:$0xff]
    %v1214 = vld [vmem:[%s167 + $0x280] sm:$0xff]
    %v1215 = vld [vmem:[%s167 + $0x288] sm:$0xff]
    %v1216 = vld [vmem:[%s167 + $0x290] sm:$0xff]
    %v1217 = vld [vmem:[%s167 + $0x298] sm:$0xff]
    %v1218 = vld [vmem:[%s167 + $0x2a0] sm:$0xff]
    %v1219 = vld [vmem:[%s167 + $0x2a8] sm:$0xff]
    %v1220 = vld [vmem:[%s167 + $0x2b0] sm:$0xff]
    %v1221 = vld [vmem:[%s167 + $0x2b8] sm:$0xff]
    %v1222 = vld [vmem:[%s167 + $0x2c0] sm:$0xff]
    %v1223 = vld [vmem:[%s167 + $0x2c8] sm:$0xff]
    %v1224 = vld [vmem:[%s167 + $0x2d0] sm:$0xff]
    %v1225 = vld [vmem:[%s167 + $0x2d8] sm:$0xff]
    %v1226 = vld [vmem:[%s167 + $0x2e0] sm:$0xff]
    %v1227 = vld [vmem:[%s167 + $0x2e8] sm:$0xff]
    %v1228 = vld [vmem:[%s167 + $0x2f0] sm:$0xff]
    %v1229 = vld [vmem:[%s167 + $0x2f8] sm:$0xff]
    %v1230 = vld [vmem:[%s167 + $0x300] sm:$0xff]
    %v1231 = vld [vmem:[%s167 + $0x308] sm:$0xff]
    %v1232 = vld [vmem:[%s167 + $0x310] sm:$0xff]
    %v1233 = vld [vmem:[%s167 + $0x318] sm:$0xff]
    %v1234 = vld [vmem:[%s167 + $0x320] sm:$0xff]
    %v1235 = vld [vmem:[%s167 + $0x328] sm:$0xff]
    %v1236 = vld [vmem:[%s167 + $0x330] sm:$0xff]
    %v1237 = vld [vmem:[%s167 + $0x338] sm:$0xff]
    %v1238 = vld [vmem:[%s167 + $0x340] sm:$0xff]
    %v1239 = vld [vmem:[%s167 + $0x348] sm:$0xff]
    %v1240 = vld [vmem:[%s167 + $0x350] sm:$0xff]
    %v1241 = vld [vmem:[%s167 + $0x358] sm:$0xff]
    %v1242 = vld [vmem:[%s167 + $0x360] sm:$0xff]
    %v1243 = vld [vmem:[%s167 + $0x368] sm:$0xff]
    %v1244 = vld [vmem:[%s167 + $0x370] sm:$0xff]
    %v1245 = vld [vmem:[%s167 + $0x378] sm:$0xff]
    %v1246 = vld [vmem:[%s167 + $0x380] sm:$0xff]
    %v1247 = vld [vmem:[%s167 + $0x388] sm:$0xff]
    %v1248 = vld [vmem:[%s167 + $0x390] sm:$0xff]
    %v1249 = vld [vmem:[%s167 + $0x398] sm:$0xff]
    %v1250 = vld [vmem:[%s167 + $0x3a0] sm:$0xff]
    %v1251 = vld [vmem:[%s167 + $0x3a8] sm:$0xff]
    %v1252 = vld [vmem:[%s167 + $0x3b0] sm:$0xff]
    %v1253 = vld [vmem:[%s167 + $0x3b8] sm:$0xff]
    %v1254 = vld [vmem:[%s167 + $0x3c0] sm:$0xff]
    %v1255 = vld [vmem:[%s167 + $0x3c8] sm:$0xff]
    %v1256 = vld [vmem:[%s167 + $0x3d0] sm:$0xff]
    %v1257 = vld [vmem:[%s167 + $0x3d8] sm:$0xff]
    %v1258 = vld [vmem:[%s167 + $0x3e0] sm:$0xff]
    %v1259 = vld [vmem:[%s167 + $0x3e8] sm:$0xff]
    %v1260 = vld [vmem:[%s167 + $0x3f0] sm:$0xff]
    %v1261 = vld [vmem:[%s167 + $0x3f8] sm:$0xff]
    %v1270 = vunpack.c.l.b16 %v939
    %v1271 = vunpack.c.h.b16 %v939
    %v1272 = vunpack.c.l.b16 %v943
    %v1273 = vunpack.c.h.b16 %v943
    %v1274 = vunpack.c.l.b16 %v947
    %v1275 = vunpack.c.h.b16 %v947
    %v1276 = vunpack.c.l.b16 %v951
    %v1277 = vunpack.c.h.b16 %v951
    %v1278 = vunpack.c.l.b16 %v955
    %v1279 = vunpack.c.h.b16 %v955
    %v1280 = vunpack.c.l.b16 %v959
    %v1281 = vunpack.c.h.b16 %v959
    %v1282 = vunpack.c.l.b16 %v963
    %v1283 = vunpack.c.h.b16 %v963
    %v1284 = vunpack.c.l.b16 %v967
    %v1285 = vunpack.c.h.b16 %v967
    %v1286 = vpack.c.b16 %v1272, %v1270
    %v1287 = vpack.c.b16 %v1273, %v1271
    %v1288 = vpack.c.b16 %v1276, %v1274
    %v1289 = vpack.c.b16 %v1277, %v1275
    %v1290 = vpack.c.b16 %v1280, %v1278
    %v1291 = vpack.c.b16 %v1281, %v1279
    %v1292 = vpack.c.b16 %v1284, %v1282
    %v1293 = vpack.c.b16 %v1285, %v1283
    %v1430 = vunpack.c.l.b16 %v1134
    %v1431 = vunpack.c.h.b16 %v1134
    %v1432 = vunpack.c.l.b16 %v1135
    %v1433 = vunpack.c.h.b16 %v1135
    %v1434 = vunpack.c.l.b16 %v1136
    %v1435 = vunpack.c.h.b16 %v1136
    %v1436 = vunpack.c.l.b16 %v1137
    %v1437 = vunpack.c.h.b16 %v1137
    %v1438 = vunpack.c.l.b16 %v1138
    %v1439 = vunpack.c.h.b16 %v1138
    %v1440 = vunpack.c.l.b16 %v1139
    %v1441 = vunpack.c.h.b16 %v1139
    %v1442 = vunpack.c.l.b16 %v1140
    %v1443 = vunpack.c.h.b16 %v1140
    %v1444 = vunpack.c.l.b16 %v1141
    %v1445 = vunpack.c.h.b16 %v1141
    %v1446 = vunpack.c.l.b16 %v1142
    %v1447 = vunpack.c.h.b16 %v1142
    %v1448 = vunpack.c.l.b16 %v1143
    %v1449 = vunpack.c.h.b16 %v1143
    %v1450 = vunpack.c.l.b16 %v1144
    %v1451 = vunpack.c.h.b16 %v1144
    %v1452 = vunpack.c.l.b16 %v1145
    %v1453 = vunpack.c.h.b16 %v1145
    %v1454 = vunpack.c.l.b16 %v1146
    %v1455 = vunpack.c.h.b16 %v1146
    %v1456 = vunpack.c.l.b16 %v1147
    %v1457 = vunpack.c.h.b16 %v1147
    %v1458 = vunpack.c.l.b16 %v1148
    %v1459 = vunpack.c.h.b16 %v1148
    %v1460 = vunpack.c.l.b16 %v1149
    %v1461 = vunpack.c.h.b16 %v1149
    %v1462 = vunpack.c.l.b16 %v1150
    %v1463 = vunpack.c.h.b16 %v1150
    %v1464 = vunpack.c.l.b16 %v1151
    %v1465 = vunpack.c.h.b16 %v1151
    %v1466 = vunpack.c.l.b16 %v1152
    %v1467 = vunpack.c.h.b16 %v1152
    %v1468 = vunpack.c.l.b16 %v1153
    %v1469 = vunpack.c.h.b16 %v1153
    %v1470 = vunpack.c.l.b16 %v1154
    %v1471 = vunpack.c.h.b16 %v1154
    %v1472 = vunpack.c.l.b16 %v1155
    %v1473 = vunpack.c.h.b16 %v1155
    %v1474 = vunpack.c.l.b16 %v1156
    %v1475 = vunpack.c.h.b16 %v1156
    %v1476 = vunpack.c.l.b16 %v1157
    %v1477 = vunpack.c.h.b16 %v1157
    %v1478 = vunpack.c.l.b16 %v1158
    %v1479 = vunpack.c.h.b16 %v1158
    %v1480 = vunpack.c.l.b16 %v1159
    %v1481 = vunpack.c.h.b16 %v1159
    %v1482 = vunpack.c.l.b16 %v1160
    %v1483 = vunpack.c.h.b16 %v1160
    %v1484 = vunpack.c.l.b16 %v1161
    %v1485 = vunpack.c.h.b16 %v1161
    %v1486 = vunpack.c.l.b16 %v1162
    %v1487 = vunpack.c.h.b16 %v1162
    %v1488 = vunpack.c.l.b16 %v1163
    %v1489 = vunpack.c.h.b16 %v1163
    %v1490 = vunpack.c.l.b16 %v1164
    %v1491 = vunpack.c.h.b16 %v1164
    %v1492 = vunpack.c.l.b16 %v1165
    %v1493 = vunpack.c.h.b16 %v1165
    %v1494 = vunpack.c.l.b16 %v1166
    %v1495 = vunpack.c.h.b16 %v1166
    %v1496 = vunpack.c.l.b16 %v1167
    %v1497 = vunpack.c.h.b16 %v1167
    %v1498 = vunpack.c.l.b16 %v1168
    %v1499 = vunpack.c.h.b16 %v1168
    %v1500 = vunpack.c.l.b16 %v1169
    %v1501 = vunpack.c.h.b16 %v1169
    %v1502 = vunpack.c.l.b16 %v1170
    %v1503 = vunpack.c.h.b16 %v1170
    %v1504 = vunpack.c.l.b16 %v1171
    %v1505 = vunpack.c.h.b16 %v1171
    %v1506 = vunpack.c.l.b16 %v1172
    %v1507 = vunpack.c.h.b16 %v1172
    %v1508 = vunpack.c.l.b16 %v1173
    %v1509 = vunpack.c.h.b16 %v1173
    %v1510 = vunpack.c.l.b16 %v1174
    %v1511 = vunpack.c.h.b16 %v1174
    %v1512 = vunpack.c.l.b16 %v1175
    %v1513 = vunpack.c.h.b16 %v1175
    %v1514 = vunpack.c.l.b16 %v1176
    %v1515 = vunpack.c.h.b16 %v1176
    %v1516 = vunpack.c.l.b16 %v1177
    %v1517 = vunpack.c.h.b16 %v1177
    %v1518 = vunpack.c.l.b16 %v1178
    %v1519 = vunpack.c.h.b16 %v1178
    %v1520 = vunpack.c.l.b16 %v1179
    %v1521 = vunpack.c.h.b16 %v1179
    %v1522 = vunpack.c.l.b16 %v1180
    %v1523 = vunpack.c.h.b16 %v1180
    %v1524 = vunpack.c.l.b16 %v1181
    %v1525 = vunpack.c.h.b16 %v1181
    %v1526 = vunpack.c.l.b16 %v1182
    %v1527 = vunpack.c.h.b16 %v1182
    %v1528 = vunpack.c.l.b16 %v1183
    %v1529 = vunpack.c.h.b16 %v1183
    %v1530 = vunpack.c.l.b16 %v1184
    %v1531 = vunpack.c.h.b16 %v1184
    %v1532 = vunpack.c.l.b16 %v1185
    %v1533 = vunpack.c.h.b16 %v1185
    %v1534 = vunpack.c.l.b16 %v1186
    %v1535 = vunpack.c.h.b16 %v1186
    %v1536 = vunpack.c.l.b16 %v1187
    %v1537 = vunpack.c.h.b16 %v1187
    %v1538 = vunpack.c.l.b16 %v1188
    %v1539 = vunpack.c.h.b16 %v1188
    %v1540 = vunpack.c.l.b16 %v1189
    %v1541 = vunpack.c.h.b16 %v1189
    %v1542 = vunpack.c.l.b16 %v1190
    %v1543 = vunpack.c.h.b16 %v1190
    %v1544 = vunpack.c.l.b16 %v1191
    %v1545 = vunpack.c.h.b16 %v1191
    %v1546 = vunpack.c.l.b16 %v1192
    %v1547 = vunpack.c.h.b16 %v1192
    %v1548 = vunpack.c.l.b16 %v1193
    %v1549 = vunpack.c.h.b16 %v1193
    %v1550 = vunpack.c.l.b16 %v1194
    %v1551 = vunpack.c.h.b16 %v1194
    %v1552 = vunpack.c.l.b16 %v1195
    %v1553 = vunpack.c.h.b16 %v1195
    %v1554 = vunpack.c.l.b16 %v1196
    %v1555 = vunpack.c.h.b16 %v1196
    %v1556 = vunpack.c.l.b16 %v1197
    %v1557 = vunpack.c.h.b16 %v1197
    %v1558 = vunpack.c.l.b16 %v1198
    %v1559 = vunpack.c.h.b16 %v1198
    %v1560 = vunpack.c.l.b16 %v1199
    %v1561 = vunpack.c.h.b16 %v1199
    %v1562 = vunpack.c.l.b16 %v1200
    %v1563 = vunpack.c.h.b16 %v1200
    %v1564 = vunpack.c.l.b16 %v1201
    %v1565 = vunpack.c.h.b16 %v1201
    %v1566 = vunpack.c.l.b16 %v1202
    %v1567 = vunpack.c.h.b16 %v1202
    %v1568 = vunpack.c.l.b16 %v1203
    %v1569 = vunpack.c.h.b16 %v1203
    %v1570 = vunpack.c.l.b16 %v1204
    %v1571 = vunpack.c.h.b16 %v1204
    %v1572 = vunpack.c.l.b16 %v1205
    %v1573 = vunpack.c.h.b16 %v1205
    %v1574 = vunpack.c.l.b16 %v1206
    %v1575 = vunpack.c.h.b16 %v1206
    %v1576 = vunpack.c.l.b16 %v1207
    %v1577 = vunpack.c.h.b16 %v1207
    %v1578 = vunpack.c.l.b16 %v1208
    %v1579 = vunpack.c.h.b16 %v1208
    %v1580 = vunpack.c.l.b16 %v1209
    %v1581 = vunpack.c.h.b16 %v1209
    %v1582 = vunpack.c.l.b16 %v1210
    %v1583 = vunpack.c.h.b16 %v1210
    %v1584 = vunpack.c.l.b16 %v1211
    %v1585 = vunpack.c.h.b16 %v1211
    %v1586 = vunpack.c.l.b16 %v1212
    %v1587 = vunpack.c.h.b16 %v1212
    %v1588 = vunpack.c.l.b16 %v1213
    %v1589 = vunpack.c.h.b16 %v1213
    %v1590 = vunpack.c.l.b16 %v1214
    %v1591 = vunpack.c.h.b16 %v1214
    %v1592 = vunpack.c.l.b16 %v1215
    %v1593 = vunpack.c.h.b16 %v1215
    %v1594 = vunpack.c.l.b16 %v1216
    %v1595 = vunpack.c.h.b16 %v1216
    %v1596 = vunpack.c.l.b16 %v1217
    %v1597 = vunpack.c.h.b16 %v1217
    %v1598 = vunpack.c.l.b16 %v1218
    %v1599 = vunpack.c.h.b16 %v1218
    %v1600 = vunpack.c.l.b16 %v1219
    %v1601 = vunpack.c.h.b16 %v1219
    %v1602 = vunpack.c.l.b16 %v1220
    %v1603 = vunpack.c.h.b16 %v1220
    %v1604 = vunpack.c.l.b16 %v1221
    %v1605 = vunpack.c.h.b16 %v1221
    %v1606 = vunpack.c.l.b16 %v1222
    %v1607 = vunpack.c.h.b16 %v1222
    %v1608 = vunpack.c.l.b16 %v1223
    %v1609 = vunpack.c.h.b16 %v1223
    %v1610 = vunpack.c.l.b16 %v1224
    %v1611 = vunpack.c.h.b16 %v1224
    %v1612 = vunpack.c.l.b16 %v1225
    %v1613 = vunpack.c.h.b16 %v1225
    %v1614 = vunpack.c.l.b16 %v1226
    %v1615 = vunpack.c.h.b16 %v1226
    %v1616 = vunpack.c.l.b16 %v1227
    %v1617 = vunpack.c.h.b16 %v1227
    %v1618 = vunpack.c.l.b16 %v1228
    %v1619 = vunpack.c.h.b16 %v1228
    %v1620 = vunpack.c.l.b16 %v1229
    %v1621 = vunpack.c.h.b16 %v1229
    %v1622 = vunpack.c.l.b16 %v1230
    %v1623 = vunpack.c.h.b16 %v1230
    %v1624 = vunpack.c.l.b16 %v1231
    %v1625 = vunpack.c.h.b16 %v1231
    %v1626 = vunpack.c.l.b16 %v1232
    %v1627 = vunpack.c.h.b16 %v1232
    %v1628 = vunpack.c.l.b16 %v1233
    %v1629 = vunpack.c.h.b16 %v1233
    %v1630 = vunpack.c.l.b16 %v1234
    %v1631 = vunpack.c.h.b16 %v1234
    %v1632 = vunpack.c.l.b16 %v1235
    %v1633 = vunpack.c.h.b16 %v1235
    %v1634 = vunpack.c.l.b16 %v1236
    %v1635 = vunpack.c.h.b16 %v1236
    %v1636 = vunpack.c.l.b16 %v1237
    %v1637 = vunpack.c.h.b16 %v1237
    %v1638 = vunpack.c.l.b16 %v1238
    %v1639 = vunpack.c.h.b16 %v1238
    %v1640 = vunpack.c.l.b16 %v1239
    %v1641 = vunpack.c.h.b16 %v1239
    %v1642 = vunpack.c.l.b16 %v1240
    %v1643 = vunpack.c.h.b16 %v1240
    %v1644 = vunpack.c.l.b16 %v1241
    %v1645 = vunpack.c.h.b16 %v1241
    %v1646 = vunpack.c.l.b16 %v1242
    %v1647 = vunpack.c.h.b16 %v1242
    %v1648 = vunpack.c.l.b16 %v1243
    %v1649 = vunpack.c.h.b16 %v1243
    %v1650 = vunpack.c.l.b16 %v1244
    %v1651 = vunpack.c.h.b16 %v1244
    %v1652 = vunpack.c.l.b16 %v1245
    %v1653 = vunpack.c.h.b16 %v1245
    %v1654 = vunpack.c.l.b16 %v1246
    %v1655 = vunpack.c.h.b16 %v1246
    %v1656 = vunpack.c.l.b16 %v1247
    %v1657 = vunpack.c.h.b16 %v1247
    %v1658 = vunpack.c.l.b16 %v1248
    %v1659 = vunpack.c.h.b16 %v1248
    %v1660 = vunpack.c.l.b16 %v1249
    %v1661 = vunpack.c.h.b16 %v1249
    %v1662 = vunpack.c.l.b16 %v1250
    %v1663 = vunpack.c.h.b16 %v1250
    %v1664 = vunpack.c.l.b16 %v1251
    %v1665 = vunpack.c.h.b16 %v1251
    %v1666 = vunpack.c.l.b16 %v1252
    %v1667 = vunpack.c.h.b16 %v1252
    %v1668 = vunpack.c.l.b16 %v1253
    %v1669 = vunpack.c.h.b16 %v1253
    %v1670 = vunpack.c.l.b16 %v1254
    %v1671 = vunpack.c.h.b16 %v1254
    %v1672 = vunpack.c.l.b16 %v1255
    %v1673 = vunpack.c.h.b16 %v1255
    %v1674 = vunpack.c.l.b16 %v1256
    %v1675 = vunpack.c.h.b16 %v1256
    %v1676 = vunpack.c.l.b16 %v1257
    %v1677 = vunpack.c.h.b16 %v1257
    %v1678 = vunpack.c.l.b16 %v1258
    %v1679 = vunpack.c.h.b16 %v1258
    %v1680 = vunpack.c.l.b16 %v1259
    %v1681 = vunpack.c.h.b16 %v1259
    %v1682 = vunpack.c.l.b16 %v1260
    %v1683 = vunpack.c.h.b16 %v1260
    %v1684 = vunpack.c.l.b16 %v1261
    %v1685 = vunpack.c.h.b16 %v1261
    %v1686 = vpack.c.b16 %v1438, %v1430
    %v1687 = vpack.c.b16 %v1439, %v1431
    %v1688 = vpack.c.b16 %v1440, %v1432
    %v1689 = vpack.c.b16 %v1441, %v1433
    %v1690 = vpack.c.b16 %v1442, %v1434
    %v1691 = vpack.c.b16 %v1443, %v1435
    %v1692 = vpack.c.b16 %v1444, %v1436
    %v1693 = vpack.c.b16 %v1445, %v1437
    %v1694 = vpack.c.b16 %v1454, %v1446
    %v1695 = vpack.c.b16 %v1455, %v1447
    %v1696 = vpack.c.b16 %v1456, %v1448
    %v1697 = vpack.c.b16 %v1457, %v1449
    %v1698 = vpack.c.b16 %v1458, %v1450
    %v1699 = vpack.c.b16 %v1459, %v1451
    %v1700 = vpack.c.b16 %v1460, %v1452
    %v1701 = vpack.c.b16 %v1461, %v1453
    %v1702 = vpack.c.b16 %v1470, %v1462
    %v1703 = vpack.c.b16 %v1471, %v1463
    %v1704 = vpack.c.b16 %v1472, %v1464
    %v1705 = vpack.c.b16 %v1473, %v1465
    %v1706 = vpack.c.b16 %v1474, %v1466
    %v1707 = vpack.c.b16 %v1475, %v1467
    %v1708 = vpack.c.b16 %v1476, %v1468
    %v1709 = vpack.c.b16 %v1477, %v1469
    %v1710 = vpack.c.b16 %v1486, %v1478
    %v1711 = vpack.c.b16 %v1487, %v1479
    %v1712 = vpack.c.b16 %v1488, %v1480
    %v1713 = vpack.c.b16 %v1489, %v1481
    %v1714 = vpack.c.b16 %v1490, %v1482
    %v1715 = vpack.c.b16 %v1491, %v1483
    %v1716 = vpack.c.b16 %v1492, %v1484
    %v1717 = vpack.c.b16 %v1493, %v1485
    %v1718 = vpack.c.b16 %v1502, %v1494
    %v1719 = vpack.c.b16 %v1503, %v1495
    %v1720 = vpack.c.b16 %v1504, %v1496
    %v1721 = vpack.c.b16 %v1505, %v1497
    %v1722 = vpack.c.b16 %v1506, %v1498
    %v1723 = vpack.c.b16 %v1507, %v1499
    %v1724 = vpack.c.b16 %v1508, %v1500
    %v1725 = vpack.c.b16 %v1509, %v1501
    %v1726 = vpack.c.b16 %v1518, %v1510
    %v1727 = vpack.c.b16 %v1519, %v1511
    %v1728 = vpack.c.b16 %v1520, %v1512
    %v1729 = vpack.c.b16 %v1521, %v1513
    %v1730 = vpack.c.b16 %v1522, %v1514
    %v1731 = vpack.c.b16 %v1523, %v1515
    %v1732 = vpack.c.b16 %v1524, %v1516
    %v1733 = vpack.c.b16 %v1525, %v1517
    %v1734 = vpack.c.b16 %v1534, %v1526
    %v1735 = vpack.c.b16 %v1535, %v1527
    %v1736 = vpack.c.b16 %v1536, %v1528
    %v1737 = vpack.c.b16 %v1537, %v1529
    %v1738 = vpack.c.b16 %v1538, %v1530
    %v1739 = vpack.c.b16 %v1539, %v1531
    %v1740 = vpack.c.b16 %v1540, %v1532
    %v1741 = vpack.c.b16 %v1541, %v1533
    %v1742 = vpack.c.b16 %v1550, %v1542
    %v1743 = vpack.c.b16 %v1551, %v1543
    %v1744 = vpack.c.b16 %v1552, %v1544
    %v1745 = vpack.c.b16 %v1553, %v1545
    %v1746 = vpack.c.b16 %v1554, %v1546
    %v1747 = vpack.c.b16 %v1555, %v1547
    %v1748 = vpack.c.b16 %v1556, %v1548
    %v1749 = vpack.c.b16 %v1557, %v1549
    %v1750 = vpack.c.b16 %v1566, %v1558
    %v1751 = vpack.c.b16 %v1567, %v1559
    %v1752 = vpack.c.b16 %v1568, %v1560
    %v1753 = vpack.c.b16 %v1569, %v1561
    %v1754 = vpack.c.b16 %v1570, %v1562
    %v1755 = vpack.c.b16 %v1571, %v1563
    %v1756 = vpack.c.b16 %v1572, %v1564
    %v1757 = vpack.c.b16 %v1573, %v1565
    %v1758 = vpack.c.b16 %v1582, %v1574
    %v1759 = vpack.c.b16 %v1583, %v1575
    %v1760 = vpack.c.b16 %v1584, %v1576
    %v1761 = vpack.c.b16 %v1585, %v1577
    %v1762 = vpack.c.b16 %v1586, %v1578
    %v1763 = vpack.c.b16 %v1587, %v1579
    %v1764 = vpack.c.b16 %v1588, %v1580
    %v1765 = vpack.c.b16 %v1589, %v1581
    %v1766 = vpack.c.b16 %v1598, %v1590
    %v1767 = vpack.c.b16 %v1599, %v1591
    %v1768 = vpack.c.b16 %v1600, %v1592
    %v1769 = vpack.c.b16 %v1601, %v1593
    %v1770 = vpack.c.b16 %v1602, %v1594
    %v1771 = vpack.c.b16 %v1603, %v1595
    %v1772 = vpack.c.b16 %v1604, %v1596
    %v1773 = vpack.c.b16 %v1605, %v1597
    %v1774 = vpack.c.b16 %v1614, %v1606
    %v1775 = vpack.c.b16 %v1615, %v1607
    %v1776 = vpack.c.b16 %v1616, %v1608
    %v1777 = vpack.c.b16 %v1617, %v1609
    %v1778 = vpack.c.b16 %v1618, %v1610
    %v1779 = vpack.c.b16 %v1619, %v1611
    %v1780 = vpack.c.b16 %v1620, %v1612
    %v1781 = vpack.c.b16 %v1621, %v1613
    %v1782 = vpack.c.b16 %v1630, %v1622
    %v1783 = vpack.c.b16 %v1631, %v1623
    %v1784 = vpack.c.b16 %v1632, %v1624
    %v1785 = vpack.c.b16 %v1633, %v1625
    %v1786 = vpack.c.b16 %v1634, %v1626
    %v1787 = vpack.c.b16 %v1635, %v1627
    %v1788 = vpack.c.b16 %v1636, %v1628
    %v1789 = vpack.c.b16 %v1637, %v1629
    %v1790 = vpack.c.b16 %v1646, %v1638
    %v1791 = vpack.c.b16 %v1647, %v1639
    %v1792 = vpack.c.b16 %v1648, %v1640
    %v1793 = vpack.c.b16 %v1649, %v1641
    %v1794 = vpack.c.b16 %v1650, %v1642
    %v1795 = vpack.c.b16 %v1651, %v1643
    %v1796 = vpack.c.b16 %v1652, %v1644
    %v1797 = vpack.c.b16 %v1653, %v1645
    %v1798 = vpack.c.b16 %v1662, %v1654
    %v1799 = vpack.c.b16 %v1663, %v1655
    %v1800 = vpack.c.b16 %v1664, %v1656
    %v1801 = vpack.c.b16 %v1665, %v1657
    %v1802 = vpack.c.b16 %v1666, %v1658
    %v1803 = vpack.c.b16 %v1667, %v1659
    %v1804 = vpack.c.b16 %v1668, %v1660
    %v1805 = vpack.c.b16 %v1669, %v1661
    %v1806 = vpack.c.b16 %v1678, %v1670
    %v1807 = vpack.c.b16 %v1679, %v1671
    %v1808 = vpack.c.b16 %v1680, %v1672
    %v1809 = vpack.c.b16 %v1681, %v1673
    %v1810 = vpack.c.b16 %v1682, %v1674
    %v1811 = vpack.c.b16 %v1683, %v1675
    %v1812 = vpack.c.b16 %v1684, %v1676
    %v1813 = vpack.c.b16 %v1685, %v1677
    %1942 = vmatpush.bf16.msra.mxu0 %v1742
    %1943 = vmatpush.bf16.msra.mxu0 %v1734
    %1944 = vmatpush.bf16.msra.mxu0 %v1726
    %1945 = vmatpush.bf16.msra.mxu0 %v1718
    %1946 = vmatpush.bf16.msra.mxu0 %v1710
    %1947 = vmatpush.bf16.msra.mxu0 %v1702
    %1948 = vmatpush.bf16.msra.mxu0 %v1694
    %1949 = vmatpush.bf16.msra.mxu0 %v1686
    %1950 = vmatmul.bf16.gmra.mxu0 %v1286
    %v1951 = vpop.f32.mrf.mxu0
    %v1952 = vadd.f32 0.0, %v1951
    %v1953 = vpop.f32.mrf.mxu0
    %v1954 = vadd.f32 0.0, %v1953
    %1955 = vmatmul.bf16.gmra.mxu0 %v1288
    %v1956 = vpop.f32.mrf.mxu0
    %v1957 = vadd.f32 0.0, %v1956
    %v1958 = vpop.f32.mrf.mxu0
    %v1959 = vadd.f32 0.0, %v1958
    %1960 = vmatmul.bf16.gmra.mxu0 %v1290
    %v1961 = vpop.f32.mrf.mxu0
    %v1962 = vadd.f32 0.0, %v1961
    %v1963 = vpop.f32.mrf.mxu0
    %v1964 = vadd.f32 0.0, %v1963
    %1965 = vmatmul.bf16.gmra.mxu0 %v1292
    %v1966 = vpop.f32.mrf.mxu0
    %v1967 = vadd.f32 0.0, %v1966
    %v1968 = vpop.f32.mrf.mxu0
    %v1969 = vadd.f32 0.0, %v1968
    %1970 = vdwg.mxu0
    %1971 = vmatpush.bf16.msra.mxu0 %v1806
    %1972 = vmatpush.bf16.msra.mxu0 %v1798
    %1973 = vmatpush.bf16.msra.mxu0 %v1790
    %1974 = vmatpush.bf16.msra.mxu0 %v1782
    %1975 = vmatpush.bf16.msra.mxu0 %v1774
    %1976 = vmatpush.bf16.msra.mxu0 %v1766
    %1977 = vmatpush.bf16.msra.mxu0 %v1758
    %1978 = vmatpush.bf16.msra.mxu0 %v1750
    %1979 = vmatmul.bf16.gmra.mxu0 %v1287
    %v1980 = vpop.f32.mrf.mxu0
    %v1981 = vadd.f32 %v1952, %v1980
    %v1982 = vpop.f32.mrf.mxu0
    %v1983 = vadd.f32 %v1954, %v1982
    %1984 = vmatmul.bf16.gmra.mxu0 %v1289
    %v1985 = vpop.f32.mrf.mxu0
    %v1986 = vadd.f32 %v1957, %v1985
    %v1987 = vpop.f32.mrf.mxu0
    %v1988 = vadd.f32 %v1959, %v1987
    %1989 = vmatmul.bf16.gmra.mxu0 %v1291
    %v1990 = vpop.f32.mrf.mxu0
    %v1991 = vadd.f32 %v1962, %v1990
    %v1992 = vpop.f32.mrf.mxu0
    %v1993 = vadd.f32 %v1964, %v1992
    %1994 = vmatmul.bf16.gmra.mxu0 %v1293
    %v1995 = vpop.f32.mrf.mxu0
    %v1996 = vadd.f32 %v1967, %v1995
    %v1997 = vpop.f32.mrf.mxu0
    %v1998 = vadd.f32 %v1969, %v1997
    %1999 = vdwg.mxu0
    %2000 = vmatpush.bf16.msra.mxu0 %v1743
    %2001 = vmatpush.bf16.msra.mxu0 %v1735
    %2002 = vmatpush.bf16.msra.mxu0 %v1727
    %2003 = vmatpush.bf16.msra.mxu0 %v1719
    %2004 = vmatpush.bf16.msra.mxu0 %v1711
    %2005 = vmatpush.bf16.msra.mxu0 %v1703
    %2006 = vmatpush.bf16.msra.mxu0 %v1695
    %2007 = vmatpush.bf16.msra.mxu0 %v1687
    %2008 = vmatmul.bf16.gmra.mxu0 %v1286
    %v2009 = vpop.f32.mrf.mxu0
    %v2010 = vadd.f32 0.0, %v2009
    %v2011 = vpop.f32.mrf.mxu0
    %v2012 = vadd.f32 0.0, %v2011
    %2013 = vmatmul.bf16.gmra.mxu0 %v1288
    %v2014 = vpop.f32.mrf.mxu0
    %v2015 = vadd.f32 0.0, %v2014
    %v2016 = vpop.f32.mrf.mxu0
    %v2017 = vadd.f32 0.0, %v2016
    %2018 = vmatmul.bf16.gmra.mxu0 %v1290
    %v2019 = vpop.f32.mrf.mxu0
    %v2020 = vadd.f32 0.0, %v2019
    %v2021 = vpop.f32.mrf.mxu0
    %v2022 = vadd.f32 0.0, %v2021
    %2023 = vmatmul.bf16.gmra.mxu0 %v1292
    %v2024 = vpop.f32.mrf.mxu0
    %v2025 = vadd.f32 0.0, %v2024
    %v2026 = vpop.f32.mrf.mxu0
    %v2027 = vadd.f32 0.0, %v2026
    %2028 = vdwg.mxu0
    %2029 = vmatpush.bf16.msra.mxu0 %v1807
    %2030 = vmatpush.bf16.msra.mxu0 %v1799
    %2031 = vmatpush.bf16.msra.mxu0 %v1791
    %2032 = vmatpush.bf16.msra.mxu0 %v1783
    %2033 = vmatpush.bf16.msra.mxu0 %v1775
    %2034 = vmatpush.bf16.msra.mxu0 %v1767
    %2035 = vmatpush.bf16.msra.mxu0 %v1759
    %2036 = vmatpush.bf16.msra.mxu0 %v1751
    %2037 = vmatmul.bf16.gmra.mxu0 %v1287
    %v2038 = vpop.f32.mrf.mxu0
    %v2039 = vadd.f32 %v2010, %v2038
    %v2040 = vpop.f32.mrf.mxu0
    %v2041 = vadd.f32 %v2012, %v2040
    %2042 = vmatmul.bf16.gmra.mxu0 %v1289
    %v2043 = vpop.f32.mrf.mxu0
    %v2044 = vadd.f32 %v2015, %v2043
    %v2045 = vpop.f32.mrf.mxu0
    %v2046 = vadd.f32 %v2017, %v2045
    %2047 = vmatmul.bf16.gmra.mxu0 %v1291
    %v2048 = vpop.f32.mrf.mxu0
    %v2049 = vadd.f32 %v2020, %v2048
    %v2050 = vpop.f32.mrf.mxu0
    %v2051 = vadd.f32 %v2022, %v2050
    %2052 = vmatmul.bf16.gmra.mxu0 %v1293
    %v2053 = vpop.f32.mrf.mxu0
    %v2054 = vadd.f32 %v2025, %v2053
    %v2055 = vpop.f32.mrf.mxu0
    %v2056 = vadd.f32 %v2027, %v2055
    %2057 = vdwg.mxu0
    %2058 = vmatpush.bf16.msra.mxu0 %v1744
    %2059 = vmatpush.bf16.msra.mxu0 %v1736
    %2060 = vmatpush.bf16.msra.mxu0 %v1728
    %2061 = vmatpush.bf16.msra.mxu0 %v1720
    %2062 = vmatpush.bf16.msra.mxu0 %v1712
    %2063 = vmatpush.bf16.msra.mxu0 %v1704
    %2064 = vmatpush.bf16.msra.mxu0 %v1696
    %2065 = vmatpush.bf16.msra.mxu0 %v1688
    %2066 = vmatmul.bf16.gmra.mxu0 %v1286
    %v2067 = vpop.f32.mrf.mxu0
    %v2068 = vadd.f32 0.0, %v2067
    %v2069 = vpop.f32.mrf.mxu0
    %v2070 = vadd.f32 0.0, %v2069
    %2071 = vmatmul.bf16.gmra.mxu0 %v1288
    %v2072 = vpop.f32.mrf.mxu0
    %v2073 = vadd.f32 0.0, %v2072
    %v2074 = vpop.f32.mrf.mxu0
    %v2075 = vadd.f32 0.0, %v2074
    %2076 = vmatmul.bf16.gmra.mxu0 %v1290
    %v2077 = vpop.f32.mrf.mxu0
    %v2078 = vadd.f32 0.0, %v2077
    %v2079 = vpop.f32.mrf.mxu0
    %v2080 = vadd.f32 0.0, %v2079
    %2081 = vmatmul.bf16.gmra.mxu0 %v1292
    %v2082 = vpop.f32.mrf.mxu0
    %v2083 = vadd.f32 0.0, %v2082
    %v2084 = vpop.f32.mrf.mxu0
    %v2085 = vadd.f32 0.0, %v2084
    %2086 = vdwg.mxu0
    %2087 = vmatpush.bf16.msra.mxu0 %v1808
    %2088 = vmatpush.bf16.msra.mxu0 %v1800
    %2089 = vmatpush.bf16.msra.mxu0 %v1792
    %2090 = vmatpush.bf16.msra.mxu0 %v1784
    %2091 = vmatpush.bf16.msra.mxu0 %v1776
    %2092 = vmatpush.bf16.msra.mxu0 %v1768
    %2093 = vmatpush.bf16.msra.mxu0 %v1760
    %2094 = vmatpush.bf16.msra.mxu0 %v1752
    %2095 = vmatmul.bf16.gmra.mxu0 %v1287
    %v2096 = vpop.f32.mrf.mxu0
    %v2097 = vadd.f32 %v2068, %v2096
    %v2098 = vpop.f32.mrf.mxu0
    %v2099 = vadd.f32 %v2070, %v2098
    %2100 = vmatmul.bf16.gmra.mxu0 %v1289
    %v2101 = vpop.f32.mrf.mxu0
    %v2102 = vadd.f32 %v2073, %v2101
    %v2103 = vpop.f32.mrf.mxu0
    %v2104 = vadd.f32 %v2075, %v2103
    %2105 = vmatmul.bf16.gmra.mxu0 %v1291
    %v2106 = vpop.f32.mrf.mxu0
    %v2107 = vadd.f32 %v2078, %v2106
    %v2108 = vpop.f32.mrf.mxu0
    %v2109 = vadd.f32 %v2080, %v2108
    %2110 = vmatmul.bf16.gmra.mxu0 %v1293
    %v2111 = vpop.f32.mrf.mxu0
    %v2112 = vadd.f32 %v2083, %v2111
    %v2113 = vpop.f32.mrf.mxu0
    %v2114 = vadd.f32 %v2085, %v2113
    %2115 = vdwg.mxu0
    %2116 = vmatpush.bf16.msra.mxu0 %v1745
    %2117 = vmatpush.bf16.msra.mxu0 %v1737
    %2118 = vmatpush.bf16.msra.mxu0 %v1729
    %2119 = vmatpush.bf16.msra.mxu0 %v1721
    %2120 = vmatpush.bf16.msra.mxu0 %v1713
    %2121 = vmatpush.bf16.msra.mxu0 %v1705
    %2122 = vmatpush.bf16.msra.mxu0 %v1697
    %2123 = vmatpush.bf16.msra.mxu0 %v1689
    %2124 = vmatmul.bf16.gmra.mxu0 %v1286
    %v2125 = vpop.f32.mrf.mxu0
    %v2126 = vadd.f32 0.0, %v2125
    %v2127 = vpop.f32.mrf.mxu0
    %v2128 = vadd.f32 0.0, %v2127
    %2129 = vmatmul.bf16.gmra.mxu0 %v1288
    %v2130 = vpop.f32.mrf.mxu0
    %v2131 = vadd.f32 0.0, %v2130
    %v2132 = vpop.f32.mrf.mxu0
    %v2133 = vadd.f32 0.0, %v2132
    %2134 = vmatmul.bf16.gmra.mxu0 %v1290
    %v2135 = vpop.f32.mrf.mxu0
    %v2136 = vadd.f32 0.0, %v2135
    %v2137 = vpop.f32.mrf.mxu0
    %v2138 = vadd.f32 0.0, %v2137
    %2139 = vmatmul.bf16.gmra.mxu0 %v1292
    %v2140 = vpop.f32.mrf.mxu0
    %v2141 = vadd.f32 0.0, %v2140
    %v2142 = vpop.f32.mrf.mxu0
    %v2143 = vadd.f32 0.0, %v2142
    %2144 = vdwg.mxu0
    %2145 = vmatpush.bf16.msra.mxu0 %v1809
    %2146 = vmatpush.bf16.msra.mxu0 %v1801
    %2147 = vmatpush.bf16.msra.mxu0 %v1793
    %2148 = vmatpush.bf16.msra.mxu0 %v1785
    %2149 = vmatpush.bf16.msra.mxu0 %v1777
    %2150 = vmatpush.bf16.msra.mxu0 %v1769
    %2151 = vmatpush.bf16.msra.mxu0 %v1761
    %2152 = vmatpush.bf16.msra.mxu0 %v1753
    %2153 = vmatmul.bf16.gmra.mxu0 %v1287
    %v2154 = vpop.f32.mrf.mxu0
    %v2155 = vadd.f32 %v2126, %v2154
    %v2156 = vpop.f32.mrf.mxu0
    %v2157 = vadd.f32 %v2128, %v2156
    %2158 = vmatmul.bf16.gmra.mxu0 %v1289
    %v2159 = vpop.f32.mrf.mxu0
    %v2160 = vadd.f32 %v2131, %v2159
    %v2161 = vpop.f32.mrf.mxu0
    %v2162 = vadd.f32 %v2133, %v2161
    %2163 = vmatmul.bf16.gmra.mxu0 %v1291
    %v2164 = vpop.f32.mrf.mxu0
    %v2165 = vadd.f32 %v2136, %v2164
    %v2166 = vpop.f32.mrf.mxu0
    %v2167 = vadd.f32 %v2138, %v2166
    %2168 = vmatmul.bf16.gmra.mxu0 %v1293
    %v2169 = vpop.f32.mrf.mxu0
    %v2170 = vadd.f32 %v2141, %v2169
    %v2171 = vpop.f32.mrf.mxu0
    %v2172 = vadd.f32 %v2143, %v2171
    %2173 = vdwg.mxu0
    %2174 = vmatpush.bf16.msra.mxu0 %v1746
    %2175 = vmatpush.bf16.msra.mxu0 %v1738
    %2176 = vmatpush.bf16.msra.mxu0 %v1730
    %2177 = vmatpush.bf16.msra.mxu0 %v1722
    %2178 = vmatpush.bf16.msra.mxu0 %v1714
    %2179 = vmatpush.bf16.msra.mxu0 %v1706
    %2180 = vmatpush.bf16.msra.mxu0 %v1698
    %2181 = vmatpush.bf16.msra.mxu0 %v1690
    %2182 = vmatmul.bf16.gmra.mxu0 %v1286
    %v2183 = vpop.f32.mrf.mxu0
    %v2184 = vadd.f32 0.0, %v2183
    %v2185 = vpop.f32.mrf.mxu0
    %v2186 = vadd.f32 0.0, %v2185
    %2187 = vmatmul.bf16.gmra.mxu0 %v1288
    %v2188 = vpop.f32.mrf.mxu0
    %v2189 = vadd.f32 0.0, %v2188
    %v2190 = vpop.f32.mrf.mxu0
    %v2191 = vadd.f32 0.0, %v2190
    %2192 = vmatmul.bf16.gmra.mxu0 %v1290
    %v2193 = vpop.f32.mrf.mxu0
    %v2194 = vadd.f32 0.0, %v2193
    %v2195 = vpop.f32.mrf.mxu0
    %v2196 = vadd.f32 0.0, %v2195
    %2197 = vmatmul.bf16.gmra.mxu0 %v1292
    %v2198 = vpop.f32.mrf.mxu0
    %v2199 = vadd.f32 0.0, %v2198
    %v2200 = vpop.f32.mrf.mxu0
    %v2201 = vadd.f32 0.0, %v2200
    %2202 = vdwg.mxu0
    %2203 = vmatpush.bf16.msra.mxu0 %v1810
    %2204 = vmatpush.bf16.msra.mxu0 %v1802
    %2205 = vmatpush.bf16.msra.mxu0 %v1794
    %2206 = vmatpush.bf16.msra.mxu0 %v1786
    %2207 = vmatpush.bf16.msra.mxu0 %v1778
    %2208 = vmatpush.bf16.msra.mxu0 %v1770
    %2209 = vmatpush.bf16.msra.mxu0 %v1762
    %2210 = vmatpush.bf16.msra.mxu0 %v1754
    %2211 = vmatmul.bf16.gmra.mxu0 %v1287
    %v2212 = vpop.f32.mrf.mxu0
    %v2213 = vadd.f32 %v2184, %v2212
    %v2214 = vpop.f32.mrf.mxu0
    %v2215 = vadd.f32 %v2186, %v2214
    %2216 = vmatmul.bf16.gmra.mxu0 %v1289
    %v2217 = vpop.f32.mrf.mxu0
    %v2218 = vadd.f32 %v2189, %v2217
    %v2219 = vpop.f32.mrf.mxu0
    %v2220 = vadd.f32 %v2191, %v2219
    %2221 = vmatmul.bf16.gmra.mxu0 %v1291
    %v2222 = vpop.f32.mrf.mxu0
    %v2223 = vadd.f32 %v2194, %v2222
    %v2224 = vpop.f32.mrf.mxu0
    %v2225 = vadd.f32 %v2196, %v2224
    %2226 = vmatmul.bf16.gmra.mxu0 %v1293
    %v2227 = vpop.f32.mrf.mxu0
    %v2228 = vadd.f32 %v2199, %v2227
    %v2229 = vpop.f32.mrf.mxu0
    %v2230 = vadd.f32 %v2201, %v2229
    %2231 = vdwg.mxu0
    %2232 = vmatpush.bf16.msra.mxu0 %v1747
    %2233 = vmatpush.bf16.msra.mxu0 %v1739
    %2234 = vmatpush.bf16.msra.mxu0 %v1731
    %2235 = vmatpush.bf16.msra.mxu0 %v1723
    %2236 = vmatpush.bf16.msra.mxu0 %v1715
    %2237 = vmatpush.bf16.msra.mxu0 %v1707
    %2238 = vmatpush.bf16.msra.mxu0 %v1699
    %2239 = vmatpush.bf16.msra.mxu0 %v1691
    %2240 = vmatmul.bf16.gmra.mxu0 %v1286
    %v2241 = vpop.f32.mrf.mxu0
    %v2242 = vadd.f32 0.0, %v2241
    %v2243 = vpop.f32.mrf.mxu0
    %v2244 = vadd.f32 0.0, %v2243
    %2245 = vmatmul.bf16.gmra.mxu0 %v1288
    %v2246 = vpop.f32.mrf.mxu0
    %v2247 = vadd.f32 0.0, %v2246
    %v2248 = vpop.f32.mrf.mxu0
    %v2249 = vadd.f32 0.0, %v2248
    %2250 = vmatmul.bf16.gmra.mxu0 %v1290
    %v2251 = vpop.f32.mrf.mxu0
    %v2252 = vadd.f32 0.0, %v2251
    %v2253 = vpop.f32.mrf.mxu0
    %v2254 = vadd.f32 0.0, %v2253
    %2255 = vmatmul.bf16.gmra.mxu0 %v1292
    %v2256 = vpop.f32.mrf.mxu0
    %v2257 = vadd.f32 0.0, %v2256
    %v2258 = vpop.f32.mrf.mxu0
    %v2259 = vadd.f32 0.0, %v2258
    %2260 = vdwg.mxu0
    %2261 = vmatpush.bf16.msra.mxu0 %v1811
    %2262 = vmatpush.bf16.msra.mxu0 %v1803
    %2263 = vmatpush.bf16.msra.mxu0 %v1795
    %2264 = vmatpush.bf16.msra.mxu0 %v1787
    %2265 = vmatpush.bf16.msra.mxu0 %v1779
    %2266 = vmatpush.bf16.msra.mxu0 %v1771
    %2267 = vmatpush.bf16.msra.mxu0 %v1763
    %2268 = vmatpush.bf16.msra.mxu0 %v1755
    %2269 = vmatmul.bf16.gmra.mxu0 %v1287
    %v2270 = vpop.f32.mrf.mxu0
    %v2271 = vadd.f32 %v2242, %v2270
    %v2272 = vpop.f32.mrf.mxu0
    %v2273 = vadd.f32 %v2244, %v2272
    %2274 = vmatmul.bf16.gmra.mxu0 %v1289
    %v2275 = vpop.f32.mrf.mxu0
    %v2276 = vadd.f32 %v2247, %v2275
    %v2277 = vpop.f32.mrf.mxu0
    %v2278 = vadd.f32 %v2249, %v2277
    %2279 = vmatmul.bf16.gmra.mxu0 %v1291
    %v2280 = vpop.f32.mrf.mxu0
    %v2281 = vadd.f32 %v2252, %v2280
    %v2282 = vpop.f32.mrf.mxu0
    %v2283 = vadd.f32 %v2254, %v2282
    %2284 = vmatmul.bf16.gmra.mxu0 %v1293
    %v2285 = vpop.f32.mrf.mxu0
    %v2286 = vadd.f32 %v2257, %v2285
    %v2287 = vpop.f32.mrf.mxu0
    %v2288 = vadd.f32 %v2259, %v2287
    %2289 = vdwg.mxu0
    %2290 = vmatpush.bf16.msra.mxu0 %v1748
    %2291 = vmatpush.bf16.msra.mxu0 %v1740
    %2292 = vmatpush.bf16.msra.mxu0 %v1732
    %2293 = vmatpush.bf16.msra.mxu0 %v1724
    %2294 = vmatpush.bf16.msra.mxu0 %v1716
    %2295 = vmatpush.bf16.msra.mxu0 %v1708
    %2296 = vmatpush.bf16.msra.mxu0 %v1700
    %2297 = vmatpush.bf16.msra.mxu0 %v1692
    %2298 = vmatmul.bf16.gmra.mxu0 %v1286
    %v2299 = vpop.f32.mrf.mxu0
    %v2300 = vadd.f32 0.0, %v2299
    %v2301 = vpop.f32.mrf.mxu0
    %v2302 = vadd.f32 0.0, %v2301
    %2303 = vmatmul.bf16.gmra.mxu0 %v1288
    %v2304 = vpop.f32.mrf.mxu0
    %v2305 = vadd.f32 0.0, %v2304
    %v2306 = vpop.f32.mrf.mxu0
    %v2307 = vadd.f32 0.0, %v2306
    %2308 = vmatmul.bf16.gmra.mxu0 %v1290
    %v2309 = vpop.f32.mrf.mxu0
    %v2310 = vadd.f32 0.0, %v2309
    %v2311 = vpop.f32.mrf.mxu0
    %v2312 = vadd.f32 0.0, %v2311
    %2313 = vmatmul.bf16.gmra.mxu0 %v1292
    %v2314 = vpop.f32.mrf.mxu0
    %v2315 = vadd.f32 0.0, %v2314
    %v2316 = vpop.f32.mrf.mxu0
    %v2317 = vadd.f32 0.0, %v2316
    %2318 = vdwg.mxu0
    %2319 = vmatpush.bf16.msra.mxu0 %v1812
    %2320 = vmatpush.bf16.msra.mxu0 %v1804
    %2321 = vmatpush.bf16.msra.mxu0 %v1796
    %2322 = vmatpush.bf16.msra.mxu0 %v1788
    %2323 = vmatpush.bf16.msra.mxu0 %v1780
    %2324 = vmatpush.bf16.msra.mxu0 %v1772
    %2325 = vmatpush.bf16.msra.mxu0 %v1764
    %2326 = vmatpush.bf16.msra.mxu0 %v1756
    %2327 = vmatmul.bf16.gmra.mxu0 %v1287
    %v2328 = vpop.f32.mrf.mxu0
    %v2329 = vadd.f32 %v2300, %v2328
    %v2330 = vpop.f32.mrf.mxu0
    %v2331 = vadd.f32 %v2302, %v2330
    %2332 = vmatmul.bf16.gmra.mxu0 %v1289
    %v2333 = vpop.f32.mrf.mxu0
    %v2334 = vadd.f32 %v2305, %v2333
    %v2335 = vpop.f32.mrf.mxu0
    %v2336 = vadd.f32 %v2307, %v2335
    %2337 = vmatmul.bf16.gmra.mxu0 %v1291
    %v2338 = vpop.f32.mrf.mxu0
    %v2339 = vadd.f32 %v2310, %v2338
    %v2340 = vpop.f32.mrf.mxu0
    %v2341 = vadd.f32 %v2312, %v2340
    %2342 = vmatmul.bf16.gmra.mxu0 %v1293
    %v2343 = vpop.f32.mrf.mxu0
    %v2344 = vadd.f32 %v2315, %v2343
    %v2345 = vpop.f32.mrf.mxu0
    %v2346 = vadd.f32 %v2317, %v2345
    %2347 = vdwg.mxu0
    %2348 = vmatpush.bf16.msra.mxu0 %v1749
    %2349 = vmatpush.bf16.msra.mxu0 %v1741
    %2350 = vmatpush.bf16.msra.mxu0 %v1733
    %2351 = vmatpush.bf16.msra.mxu0 %v1725
    %2352 = vmatpush.bf16.msra.mxu0 %v1717
    %2353 = vmatpush.bf16.msra.mxu0 %v1709
    %2354 = vmatpush.bf16.msra.mxu0 %v1701
    %2355 = vmatpush.bf16.msra.mxu0 %v1693
    %2356 = vmatmul.bf16.gmra.mxu0 %v1286
    %v2357 = vpop.f32.mrf.mxu0
    %v2358 = vadd.f32 0.0, %v2357
    %v2359 = vpop.f32.mrf.mxu0
    %v2360 = vadd.f32 0.0, %v2359
    %2361 = vmatmul.bf16.gmra.mxu0 %v1288
    %v2362 = vpop.f32.mrf.mxu0
    %v2363 = vadd.f32 0.0, %v2362
    %v2364 = vpop.f32.mrf.mxu0
    %v2365 = vadd.f32 0.0, %v2364
    %2366 = vmatmul.bf16.gmra.mxu0 %v1290
    %v2367 = vpop.f32.mrf.mxu0
    %v2368 = vadd.f32 0.0, %v2367
    %v2369 = vpop.f32.mrf.mxu0
    %v2370 = vadd.f32 0.0, %v2369
    %2371 = vmatmul.bf16.gmra.mxu0 %v1292
    %v2372 = vpop.f32.mrf.mxu0
    %v2373 = vadd.f32 0.0, %v2372
    %v2374 = vpop.f32.mrf.mxu0
    %v2375 = vadd.f32 0.0, %v2374
    %2376 = vdwg.mxu0
    %2377 = vmatpush.bf16.msra.mxu0 %v1813
    %2378 = vmatpush.bf16.msra.mxu0 %v1805
    %2379 = vmatpush.bf16.msra.mxu0 %v1797
    %2380 = vmatpush.bf16.msra.mxu0 %v1789
    %2381 = vmatpush.bf16.msra.mxu0 %v1781
    %2382 = vmatpush.bf16.msra.mxu0 %v1773
    %2383 = vmatpush.bf16.msra.mxu0 %v1765
    %2384 = vmatpush.bf16.msra.mxu0 %v1757
    %2385 = vmatmul.bf16.gmra.mxu0 %v1287
    %v2386 = vpop.f32.mrf.mxu0
    %v2387 = vadd.f32 %v2358, %v2386
    %v2388 = vpop.f32.mrf.mxu0
    %v2389 = vadd.f32 %v2360, %v2388
    %2390 = vmatmul.bf16.gmra.mxu0 %v1289
    %v2391 = vpop.f32.mrf.mxu0
    %v2392 = vadd.f32 %v2363, %v2391
    %v2393 = vpop.f32.mrf.mxu0
    %v2394 = vadd.f32 %v2365, %v2393
    %2395 = vmatmul.bf16.gmra.mxu0 %v1291
    %v2396 = vpop.f32.mrf.mxu0
    %v2397 = vadd.f32 %v2368, %v2396
    %v2398 = vpop.f32.mrf.mxu0
    %v2399 = vadd.f32 %v2370, %v2398
    %2400 = vmatmul.bf16.gmra.mxu0 %v1293
    %v2401 = vpop.f32.mrf.mxu0
    %v2402 = vadd.f32 %v2373, %v2401
    %v2403 = vpop.f32.mrf.mxu0
    %v2404 = vadd.f32 %v2375, %v2403
    %2405 = vdwg.mxu0
    %v2414 = vunpack.c.l.b16 %v938
    %v2415 = vunpack.c.h.b16 %v938
    %v2416 = vunpack.c.l.b16 %v942
    %v2417 = vunpack.c.h.b16 %v942
    %v2418 = vunpack.c.l.b16 %v946
    %v2419 = vunpack.c.h.b16 %v946
    %v2420 = vunpack.c.l.b16 %v950
    %v2421 = vunpack.c.h.b16 %v950
    %v2422 = vunpack.c.l.b16 %v954
    %v2423 = vunpack.c.h.b16 %v954
    %v2424 = vunpack.c.l.b16 %v958
    %v2425 = vunpack.c.h.b16 %v958
    %v2426 = vunpack.c.l.b16 %v962
    %v2427 = vunpack.c.h.b16 %v962
    %v2428 = vunpack.c.l.b16 %v966
    %v2429 = vunpack.c.h.b16 %v966
    %v2430 = vpack.c.b16 %v2416, %v2414
    %v2431 = vpack.c.b16 %v2417, %v2415
    %v2432 = vpack.c.b16 %v2420, %v2418
    %v2433 = vpack.c.b16 %v2421, %v2419
    %v2434 = vpack.c.b16 %v2424, %v2422
    %v2435 = vpack.c.b16 %v2425, %v2423
    %v2436 = vpack.c.b16 %v2428, %v2426
    %v2437 = vpack.c.b16 %v2429, %v2427
    %v2574 = vunpack.c.l.b16 %v990
    %v2575 = vunpack.c.h.b16 %v990
    %v2576 = vunpack.c.l.b16 %v991
    %v2577 = vunpack.c.h.b16 %v991
    %v2578 = vunpack.c.l.b16 %v992
    %v2579 = vunpack.c.h.b16 %v992
    %v2580 = vunpack.c.l.b16 %v993
    %v2581 = vunpack.c.h.b16 %v993
    %v2582 = vunpack.c.l.b16 %v994
    %v2583 = vunpack.c.h.b16 %v994
    %v2584 = vunpack.c.l.b16 %v995
    %v2585 = vunpack.c.h.b16 %v995
    %v2586 = vunpack.c.l.b16 %v996
    %v2587 = vunpack.c.h.b16 %v996
    %v2588 = vunpack.c.l.b16 %v997
    %v2589 = vunpack.c.h.b16 %v997
    %v2590 = vunpack.c.l.b16 %v998
    %v2591 = vunpack.c.h.b16 %v998
    %v2592 = vunpack.c.l.b16 %v999
    %v2593 = vunpack.c.h.b16 %v999
    %v2594 = vunpack.c.l.b16 %v1000
    %v2595 = vunpack.c.h.b16 %v1000
    %v2596 = vunpack.c.l.b16 %v1001
    %v2597 = vunpack.c.h.b16 %v1001
    %v2598 = vunpack.c.l.b16 %v1002
    %v2599 = vunpack.c.h.b16 %v1002
    %v2600 = vunpack.c.l.b16 %v1003
    %v2601 = vunpack.c.h.b16 %v1003
    %v2602 = vunpack.c.l.b16 %v1004
    %v2603 = vunpack.c.h.b16 %v1004
    %v2604 = vunpack.c.l.b16 %v1005
    %v2605 = vunpack.c.h.b16 %v1005
    %v2606 = vunpack.c.l.b16 %v1006
    %v2607 = vunpack.c.h.b16 %v1006
    %v2608 = vunpack.c.l.b16 %v1007
    %v2609 = vunpack.c.h.b16 %v1007
    %v2610 = vunpack.c.l.b16 %v1008
    %v2611 = vunpack.c.h.b16 %v1008
    %v2612 = vunpack.c.l.b16 %v1009
    %v2613 = vunpack.c.h.b16 %v1009
    %v2614 = vunpack.c.l.b16 %v1010
    %v2615 = vunpack.c.h.b16 %v1010
    %v2616 = vunpack.c.l.b16 %v1011
    %v2617 = vunpack.c.h.b16 %v1011
    %v2618 = vunpack.c.l.b16 %v1012
    %v2619 = vunpack.c.h.b16 %v1012
    %v2620 = vunpack.c.l.b16 %v1013
    %v2621 = vunpack.c.h.b16 %v1013
    %v2622 = vunpack.c.l.b16 %v1014
    %v2623 = vunpack.c.h.b16 %v1014
    %v2624 = vunpack.c.l.b16 %v1015
    %v2625 = vunpack.c.h.b16 %v1015
    %v2626 = vunpack.c.l.b16 %v1016
    %v2627 = vunpack.c.h.b16 %v1016
    %v2628 = vunpack.c.l.b16 %v1017
    %v2629 = vunpack.c.h.b16 %v1017
    %v2630 = vunpack.c.l.b16 %v1018
    %v2631 = vunpack.c.h.b16 %v1018
    %v2632 = vunpack.c.l.b16 %v1019
    %v2633 = vunpack.c.h.b16 %v1019
    %v2634 = vunpack.c.l.b16 %v1020
    %v2635 = vunpack.c.h.b16 %v1020
    %v2636 = vunpack.c.l.b16 %v1021
    %v2637 = vunpack.c.h.b16 %v1021
    %v2638 = vunpack.c.l.b16 %v1022
    %v2639 = vunpack.c.h.b16 %v1022
    %v2640 = vunpack.c.l.b16 %v1023
    %v2641 = vunpack.c.h.b16 %v1023
    %v2642 = vunpack.c.l.b16 %v1024
    %v2643 = vunpack.c.h.b16 %v1024
    %v2644 = vunpack.c.l.b16 %v1025
    %v2645 = vunpack.c.h.b16 %v1025
    %v2646 = vunpack.c.l.b16 %v1026
    %v2647 = vunpack.c.h.b16 %v1026
    %v2648 = vunpack.c.l.b16 %v1027
    %v2649 = vunpack.c.h.b16 %v1027
    %v2650 = vunpack.c.l.b16 %v1028
    %v2651 = vunpack.c.h.b16 %v1028
    %v2652 = vunpack.c.l.b16 %v1029
    %v2653 = vunpack.c.h.b16 %v1029
    %v2654 = vunpack.c.l.b16 %v1030
    %v2655 = vunpack.c.h.b16 %v1030
    %v2656 = vunpack.c.l.b16 %v1031
    %v2657 = vunpack.c.h.b16 %v1031
    %v2658 = vunpack.c.l.b16 %v1032
    %v2659 = vunpack.c.h.b16 %v1032
    %v2660 = vunpack.c.l.b16 %v1033
    %v2661 = vunpack.c.h.b16 %v1033
    %v2662 = vunpack.c.l.b16 %v1034
    %v2663 = vunpack.c.h.b16 %v1034
    %v2664 = vunpack.c.l.b16 %v1035
    %v2665 = vunpack.c.h.b16 %v1035
    %v2666 = vunpack.c.l.b16 %v1036
    %v2667 = vunpack.c.h.b16 %v1036
    %v2668 = vunpack.c.l.b16 %v1037
    %v2669 = vunpack.c.h.b16 %v1037
    %v2670 = vunpack.c.l.b16 %v1038
    %v2671 = vunpack.c.h.b16 %v1038
    %v2672 = vunpack.c.l.b16 %v1039
    %v2673 = vunpack.c.h.b16 %v1039
    %v2674 = vunpack.c.l.b16 %v1040
    %v2675 = vunpack.c.h.b16 %v1040
    %v2676 = vunpack.c.l.b16 %v1041
    %v2677 = vunpack.c.h.b16 %v1041
    %v2678 = vunpack.c.l.b16 %v1042
    %v2679 = vunpack.c.h.b16 %v1042
    %v2680 = vunpack.c.l.b16 %v1043
    %v2681 = vunpack.c.h.b16 %v1043
    %v2682 = vunpack.c.l.b16 %v1044
    %v2683 = vunpack.c.h.b16 %v1044
    %v2684 = vunpack.c.l.b16 %v1045
    %v2685 = vunpack.c.h.b16 %v1045
    %v2686 = vunpack.c.l.b16 %v1046
    %v2687 = vunpack.c.h.b16 %v1046
    %v2688 = vunpack.c.l.b16 %v1047
    %v2689 = vunpack.c.h.b16 %v1047
    %v2690 = vunpack.c.l.b16 %v1048
    %v2691 = vunpack.c.h.b16 %v1048
    %v2692 = vunpack.c.l.b16 %v1049
    %v2693 = vunpack.c.h.b16 %v1049
    %v2694 = vunpack.c.l.b16 %v1050
    %v2695 = vunpack.c.h.b16 %v1050
    %v2696 = vunpack.c.l.b16 %v1051
    %v2697 = vunpack.c.h.b16 %v1051
    %v2698 = vunpack.c.l.b16 %v1052
    %v2699 = vunpack.c.h.b16 %v1052
    %v2700 = vunpack.c.l.b16 %v1053
    %v2701 = vunpack.c.h.b16 %v1053
    %v2702 = vunpack.c.l.b16 %v1054
    %v2703 = vunpack.c.h.b16 %v1054
    %v2704 = vunpack.c.l.b16 %v1055
    %v2705 = vunpack.c.h.b16 %v1055
    %v2706 = vunpack.c.l.b16 %v1056
    %v2707 = vunpack.c.h.b16 %v1056
    %v2708 = vunpack.c.l.b16 %v1057
    %v2709 = vunpack.c.h.b16 %v1057
    %v2710 = vunpack.c.l.b16 %v1058
    %v2711 = vunpack.c.h.b16 %v1058
    %v2712 = vunpack.c.l.b16 %v1059
    %v2713 = vunpack.c.h.b16 %v1059
    %v2714 = vunpack.c.l.b16 %v1060
    %v2715 = vunpack.c.h.b16 %v1060
    %v2716 = vunpack.c.l.b16 %v1061
    %v2717 = vunpack.c.h.b16 %v1061
    %v2718 = vunpack.c.l.b16 %v1062
    %v2719 = vunpack.c.h.b16 %v1062
    %v2720 = vunpack.c.l.b16 %v1063
    %v2721 = vunpack.c.h.b16 %v1063
    %v2722 = vunpack.c.l.b16 %v1064
    %v2723 = vunpack.c.h.b16 %v1064
    %v2724 = vunpack.c.l.b16 %v1065
    %v2725 = vunpack.c.h.b16 %v1065
    %v2726 = vunpack.c.l.b16 %v1066
    %v2727 = vunpack.c.h.b16 %v1066
    %v2728 = vunpack.c.l.b16 %v1067
    %v2729 = vunpack.c.h.b16 %v1067
    %v2730 = vunpack.c.l.b16 %v1068
    %v2731 = vunpack.c.h.b16 %v1068
    %v2732 = vunpack.c.l.b16 %v1069
    %v2733 = vunpack.c.h.b16 %v1069
    %v2734 = vunpack.c.l.b16 %v1070
    %v2735 = vunpack.c.h.b16 %v1070
    %v2736 = vunpack.c.l.b16 %v1071
    %v2737 = vunpack.c.h.b16 %v1071
    %v2738 = vunpack.c.l.b16 %v1072
    %v2739 = vunpack.c.h.b16 %v1072
    %v2740 = vunpack.c.l.b16 %v1073
    %v2741 = vunpack.c.h.b16 %v1073
    %v2742 = vunpack.c.l.b16 %v1074
    %v2743 = vunpack.c.h.b16 %v1074
    %v2744 = vunpack.c.l.b16 %v1075
    %v2745 = vunpack.c.h.b16 %v1075
    %v2746 = vunpack.c.l.b16 %v1076
    %v2747 = vunpack.c.h.b16 %v1076
    %v2748 = vunpack.c.l.b16 %v1077
    %v2749 = vunpack.c.h.b16 %v1077
    %v2750 = vunpack.c.l.b16 %v1078
    %v2751 = vunpack.c.h.b16 %v1078
    %v2752 = vunpack.c.l.b16 %v1079
    %v2753 = vunpack.c.h.b16 %v1079
    %v2754 = vunpack.c.l.b16 %v1080
    %v2755 = vunpack.c.h.b16 %v1080
    %v2756 = vunpack.c.l.b16 %v1081
    %v2757 = vunpack.c.h.b16 %v1081
    %v2758 = vunpack.c.l.b16 %v1082
    %v2759 = vunpack.c.h.b16 %v1082
    %v2760 = vunpack.c.l.b16 %v1083
    %v2761 = vunpack.c.h.b16 %v1083
    %v2762 = vunpack.c.l.b16 %v1084
    %v2763 = vunpack.c.h.b16 %v1084
    %v2764 = vunpack.c.l.b16 %v1085
    %v2765 = vunpack.c.h.b16 %v1085
    %v2766 = vunpack.c.l.b16 %v1086
    %v2767 = vunpack.c.h.b16 %v1086
    %v2768 = vunpack.c.l.b16 %v1087
    %v2769 = vunpack.c.h.b16 %v1087
    %v2770 = vunpack.c.l.b16 %v1088
    %v2771 = vunpack.c.h.b16 %v1088
    %v2772 = vunpack.c.l.b16 %v1089
    %v2773 = vunpack.c.h.b16 %v1089
    %v2774 = vunpack.c.l.b16 %v1090
    %v2775 = vunpack.c.h.b16 %v1090
    %v2776 = vunpack.c.l.b16 %v1091
    %v2777 = vunpack.c.h.b16 %v1091
    %v2778 = vunpack.c.l.b16 %v1092
    %v2779 = vunpack.c.h.b16 %v1092
    %v2780 = vunpack.c.l.b16 %v1093
    %v2781 = vunpack.c.h.b16 %v1093
    %v2782 = vunpack.c.l.b16 %v1094
    %v2783 = vunpack.c.h.b16 %v1094
    %v2784 = vunpack.c.l.b16 %v1095
    %v2785 = vunpack.c.h.b16 %v1095
    %v2786 = vunpack.c.l.b16 %v1096
    %v2787 = vunpack.c.h.b16 %v1096
    %v2788 = vunpack.c.l.b16 %v1097
    %v2789 = vunpack.c.h.b16 %v1097
    %v2790 = vunpack.c.l.b16 %v1098
    %v2791 = vunpack.c.h.b16 %v1098
    %v2792 = vunpack.c.l.b16 %v1099
    %v2793 = vunpack.c.h.b16 %v1099
    %v2794 = vunpack.c.l.b16 %v1100
    %v2795 = vunpack.c.h.b16 %v1100
    %v2796 = vunpack.c.l.b16 %v1101
    %v2797 = vunpack.c.h.b16 %v1101
    %v2798 = vunpack.c.l.b16 %v1102
    %v2799 = vunpack.c.h.b16 %v1102
    %v2800 = vunpack.c.l.b16 %v1103
    %v2801 = vunpack.c.h.b16 %v1103
    %v2802 = vunpack.c.l.b16 %v1104
    %v2803 = vunpack.c.h.b16 %v1104
    %v2804 = vunpack.c.l.b16 %v1105
    %v2805 = vunpack.c.h.b16 %v1105
    %v2806 = vunpack.c.l.b16 %v1106
    %v2807 = vunpack.c.h.b16 %v1106
    %v2808 = vunpack.c.l.b16 %v1107
    %v2809 = vunpack.c.h.b16 %v1107
    %v2810 = vunpack.c.l.b16 %v1108
    %v2811 = vunpack.c.h.b16 %v1108
    %v2812 = vunpack.c.l.b16 %v1109
    %v2813 = vunpack.c.h.b16 %v1109
    %v2814 = vunpack.c.l.b16 %v1110
    %v2815 = vunpack.c.h.b16 %v1110
    %v2816 = vunpack.c.l.b16 %v1111
    %v2817 = vunpack.c.h.b16 %v1111
    %v2818 = vunpack.c.l.b16 %v1112
    %v2819 = vunpack.c.h.b16 %v1112
    %v2820 = vunpack.c.l.b16 %v1113
    %v2821 = vunpack.c.h.b16 %v1113
    %v2822 = vunpack.c.l.b16 %v1114
    %v2823 = vunpack.c.h.b16 %v1114
    %v2824 = vunpack.c.l.b16 %v1115
    %v2825 = vunpack.c.h.b16 %v1115
    %v2826 = vunpack.c.l.b16 %v1116
    %v2827 = vunpack.c.h.b16 %v1116
    %v2828 = vunpack.c.l.b16 %v1117
    %v2829 = vunpack.c.h.b16 %v1117
    %v2830 = vpack.c.b16 %v2582, %v2574
    %v2831 = vpack.c.b16 %v2583, %v2575
    %v2832 = vpack.c.b16 %v2584, %v2576
    %v2833 = vpack.c.b16 %v2585, %v2577
    %v2834 = vpack.c.b16 %v2586, %v2578
    %v2835 = vpack.c.b16 %v2587, %v2579
    %v2836 = vpack.c.b16 %v2588, %v2580
    %v2837 = vpack.c.b16 %v2589, %v2581
    %v2838 = vpack.c.b16 %v2598, %v2590
    %v2839 = vpack.c.b16 %v2599, %v2591
    %v2840 = vpack.c.b16 %v2600, %v2592
    %v2841 = vpack.c.b16 %v2601, %v2593
    %v2842 = vpack.c.b16 %v2602, %v2594
    %v2843 = vpack.c.b16 %v2603, %v2595
    %v2844 = vpack.c.b16 %v2604, %v2596
    %v2845 = vpack.c.b16 %v2605, %v2597
    %v2846 = vpack.c.b16 %v2614, %v2606
    %v2847 = vpack.c.b16 %v2615, %v2607
    %v2848 = vpack.c.b16 %v2616, %v2608
    %v2849 = vpack.c.b16 %v2617, %v2609
    %v2850 = vpack.c.b16 %v2618, %v2610
    %v2851 = vpack.c.b16 %v2619, %v2611
    %v2852 = vpack.c.b16 %v2620, %v2612
    %v2853 = vpack.c.b16 %v2621, %v2613
    %v2854 = vpack.c.b16 %v2630, %v2622
    %v2855 = vpack.c.b16 %v2631, %v2623
    %v2856 = vpack.c.b16 %v2632, %v2624
    %v2857 = vpack.c.b16 %v2633, %v2625
    %v2858 = vpack.c.b16 %v2634, %v2626
    %v2859 = vpack.c.b16 %v2635, %v2627
    %v2860 = vpack.c.b16 %v2636, %v2628
    %v2861 = vpack.c.b16 %v2637, %v2629
    %v2862 = vpack.c.b16 %v2646, %v2638
    %v2863 = vpack.c.b16 %v2647, %v2639
    %v2864 = vpack.c.b16 %v2648, %v2640
    %v2865 = vpack.c.b16 %v2649, %v2641
    %v2866 = vpack.c.b16 %v2650, %v2642
    %v2867 = vpack.c.b16 %v2651, %v2643
    %v2868 = vpack.c.b16 %v2652, %v2644
    %v2869 = vpack.c.b16 %v2653, %v2645
    %v2870 = vpack.c.b16 %v2662, %v2654
    %v2871 = vpack.c.b16 %v2663, %v2655
    %v2872 = vpack.c.b16 %v2664, %v2656
    %v2873 = vpack.c.b16 %v2665, %v2657
    %v2874 = vpack.c.b16 %v2666, %v2658
    %v2875 = vpack.c.b16 %v2667, %v2659
    %v2876 = vpack.c.b16 %v2668, %v2660
    %v2877 = vpack.c.b16 %v2669, %v2661
    %v2878 = vpack.c.b16 %v2678, %v2670
    %v2879 = vpack.c.b16 %v2679, %v2671
    %v2880 = vpack.c.b16 %v2680, %v2672
    %v2881 = vpack.c.b16 %v2681, %v2673
    %v2882 = vpack.c.b16 %v2682, %v2674
    %v2883 = vpack.c.b16 %v2683, %v2675
    %v2884 = vpack.c.b16 %v2684, %v2676
    %v2885 = vpack.c.b16 %v2685, %v2677
    %v2886 = vpack.c.b16 %v2694, %v2686
    %v2887 = vpack.c.b16 %v2695, %v2687
    %v2888 = vpack.c.b16 %v2696, %v2688
    %v2889 = vpack.c.b16 %v2697, %v2689
    %v2890 = vpack.c.b16 %v2698, %v2690
    %v2891 = vpack.c.b16 %v2699, %v2691
    %v2892 = vpack.c.b16 %v2700, %v2692
    %v2893 = vpack.c.b16 %v2701, %v2693
    %v2894 = vpack.c.b16 %v2710, %v2702
    %v2895 = vpack.c.b16 %v2711, %v2703
    %v2896 = vpack.c.b16 %v2712, %v2704
    %v2897 = vpack.c.b16 %v2713, %v2705
    %v2898 = vpack.c.b16 %v2714, %v2706
    %v2899 = vpack.c.b16 %v2715, %v2707
    %v2900 = vpack.c.b16 %v2716, %v2708
    %v2901 = vpack.c.b16 %v2717, %v2709
    %v2902 = vpack.c.b16 %v2726, %v2718
    %v2903 = vpack.c.b16 %v2727, %v2719
    %v2904 = vpack.c.b16 %v2728, %v2720
    %v2905 = vpack.c.b16 %v2729, %v2721
    %v2906 = vpack.c.b16 %v2730, %v2722
    %v2907 = vpack.c.b16 %v2731, %v2723
    %v2908 = vpack.c.b16 %v2732, %v2724
    %v2909 = vpack.c.b16 %v2733, %v2725
    %v2910 = vpack.c.b16 %v2742, %v2734
    %v2911 = vpack.c.b16 %v2743, %v2735
    %v2912 = vpack.c.b16 %v2744, %v2736
    %v2913 = vpack.c.b16 %v2745, %v2737
    %v2914 = vpack.c.b16 %v2746, %v2738
    %v2915 = vpack.c.b16 %v2747, %v2739
    %v2916 = vpack.c.b16 %v2748, %v2740
    %v2917 = vpack.c.b16 %v2749, %v2741
    %v2918 = vpack.c.b16 %v2758, %v2750
    %v2919 = vpack.c.b16 %v2759, %v2751
    %v2920 = vpack.c.b16 %v2760, %v2752
    %v2921 = vpack.c.b16 %v2761, %v2753
    %v2922 = vpack.c.b16 %v2762, %v2754
    %v2923 = vpack.c.b16 %v2763, %v2755
    %v2924 = vpack.c.b16 %v2764, %v2756
    %v2925 = vpack.c.b16 %v2765, %v2757
    %v2926 = vpack.c.b16 %v2774, %v2766
    %v2927 = vpack.c.b16 %v2775, %v2767
    %v2928 = vpack.c.b16 %v2776, %v2768
    %v2929 = vpack.c.b16 %v2777, %v2769
    %v2930 = vpack.c.b16 %v2778, %v2770
    %v2931 = vpack.c.b16 %v2779, %v2771
    %v2932 = vpack.c.b16 %v2780, %v2772
    %v2933 = vpack.c.b16 %v2781, %v2773
    %v2934 = vpack.c.b16 %v2790, %v2782
    %v2935 = vpack.c.b16 %v2791, %v2783
    %v2936 = vpack.c.b16 %v2792, %v2784
    %v2937 = vpack.c.b16 %v2793, %v2785
    %v2938 = vpack.c.b16 %v2794, %v2786
    %v2939 = vpack.c.b16 %v2795, %v2787
    %v2940 = vpack.c.b16 %v2796, %v2788
    %v2941 = vpack.c.b16 %v2797, %v2789
    %v2942 = vpack.c.b16 %v2806, %v2798
    %v2943 = vpack.c.b16 %v2807, %v2799
    %v2944 = vpack.c.b16 %v2808, %v2800
    %v2945 = vpack.c.b16 %v2809, %v2801
    %v2946 = vpack.c.b16 %v2810, %v2802
    %v2947 = vpack.c.b16 %v2811, %v2803
    %v2948 = vpack.c.b16 %v2812, %v2804
    %v2949 = vpack.c.b16 %v2813, %v2805
    %v2950 = vpack.c.b16 %v2822, %v2814
    %v2951 = vpack.c.b16 %v2823, %v2815
    %v2952 = vpack.c.b16 %v2824, %v2816
    %v2953 = vpack.c.b16 %v2825, %v2817
    %v2954 = vpack.c.b16 %v2826, %v2818
    %v2955 = vpack.c.b16 %v2827, %v2819
    %v2956 = vpack.c.b16 %v2828, %v2820
    %v2957 = vpack.c.b16 %v2829, %v2821
    %3086 = vmatpush.bf16.msra.mxu0 %v2886
    %3087 = vmatpush.bf16.msra.mxu0 %v2878
    %3088 = vmatpush.bf16.msra.mxu0 %v2870
    %3089 = vmatpush.bf16.msra.mxu0 %v2862
    %3090 = vmatpush.bf16.msra.mxu0 %v2854
    %3091 = vmatpush.bf16.msra.mxu0 %v2846
    %3092 = vmatpush.bf16.msra.mxu0 %v2838
    %3093 = vmatpush.bf16.msra.mxu0 %v2830
    %3094 = vmatmul.bf16.gmra.mxu0 %v2430
    %v3095 = vpop.f32.mrf.mxu0
    %v3096 = vadd.f32 %v1981, %v3095
    %v3097 = vpop.f32.mrf.mxu0
    %v3098 = vadd.f32 %v1983, %v3097
    %3099 = vmatmul.bf16.gmra.mxu0 %v2432
    %v3100 = vpop.f32.mrf.mxu0
    %v3101 = vadd.f32 %v1986, %v3100
    %v3102 = vpop.f32.mrf.mxu0
    %v3103 = vadd.f32 %v1988, %v3102
    %3104 = vmatmul.bf16.gmra.mxu0 %v2434
    %v3105 = vpop.f32.mrf.mxu0
    %v3106 = vadd.f32 %v1991, %v3105
    %v3107 = vpop.f32.mrf.mxu0
    %v3108 = vadd.f32 %v1993, %v3107
    %3109 = vmatmul.bf16.gmra.mxu0 %v2436
    %v3110 = vpop.f32.mrf.mxu0
    %v3111 = vadd.f32 %v1996, %v3110
    %v3112 = vpop.f32.mrf.mxu0
    %v3113 = vadd.f32 %v1998, %v3112
    %3114 = vdwg.mxu0
    %3115 = vmatpush.bf16.msra.mxu0 %v2950
    %3116 = vmatpush.bf16.msra.mxu0 %v2942
    %3117 = vmatpush.bf16.msra.mxu0 %v2934
    %3118 = vmatpush.bf16.msra.mxu0 %v2926
    %3119 = vmatpush.bf16.msra.mxu0 %v2918
    %3120 = vmatpush.bf16.msra.mxu0 %v2910
    %3121 = vmatpush.bf16.msra.mxu0 %v2902
    %3122 = vmatpush.bf16.msra.mxu0 %v2894
    %3123 = vmatmul.bf16.gmra.mxu0 %v2431
    %v3124 = vpop.f32.mrf.mxu0
    %v3125 = vadd.f32 %v3096, %v3124
    %v3126 = vpop.f32.mrf.mxu0
    %v3127 = vadd.f32 %v3098, %v3126
    %3128 = vmatmul.bf16.gmra.mxu0 %v2433
    %v3129 = vpop.f32.mrf.mxu0
    %v3130 = vadd.f32 %v3101, %v3129
    %v3131 = vpop.f32.mrf.mxu0
    %v3132 = vadd.f32 %v3103, %v3131
    %3133 = vmatmul.bf16.gmra.mxu0 %v2435
    %v3134 = vpop.f32.mrf.mxu0
    %v3135 = vadd.f32 %v3106, %v3134
    %v3136 = vpop.f32.mrf.mxu0
    %v3137 = vadd.f32 %v3108, %v3136
    %3138 = vmatmul.bf16.gmra.mxu0 %v2437
    %v3139 = vpop.f32.mrf.mxu0
    %v3140 = vadd.f32 %v3111, %v3139
    %v3141 = vpop.f32.mrf.mxu0
    %v3142 = vadd.f32 %v3113, %v3141
    %3143 = vdwg.mxu0
    %3144 = vmatpush.bf16.msra.mxu0 %v2887
    %3145 = vmatpush.bf16.msra.mxu0 %v2879
    %3146 = vmatpush.bf16.msra.mxu0 %v2871
    %3147 = vmatpush.bf16.msra.mxu0 %v2863
    %3148 = vmatpush.bf16.msra.mxu0 %v2855
    %3149 = vmatpush.bf16.msra.mxu0 %v2847
    %3150 = vmatpush.bf16.msra.mxu0 %v2839
    %3151 = vmatpush.bf16.msra.mxu0 %v2831
    %3152 = vmatmul.bf16.gmra.mxu0 %v2430
    %v3153 = vpop.f32.mrf.mxu0
    %v3154 = vadd.f32 %v2039, %v3153
    %v3155 = vpop.f32.mrf.mxu0
    %v3156 = vadd.f32 %v2041, %v3155
    %3157 = vmatmul.bf16.gmra.mxu0 %v2432
    %v3158 = vpop.f32.mrf.mxu0
    %v3159 = vadd.f32 %v2044, %v3158
    %v3160 = vpop.f32.mrf.mxu0
    %v3161 = vadd.f32 %v2046, %v3160
    %3162 = vmatmul.bf16.gmra.mxu0 %v2434
    %v3163 = vpop.f32.mrf.mxu0
    %v3164 = vadd.f32 %v2049, %v3163
    %v3165 = vpop.f32.mrf.mxu0
    %v3166 = vadd.f32 %v2051, %v3165
    %3167 = vmatmul.bf16.gmra.mxu0 %v2436
    %v3168 = vpop.f32.mrf.mxu0
    %v3169 = vadd.f32 %v2054, %v3168
    %v3170 = vpop.f32.mrf.mxu0
    %v3171 = vadd.f32 %v2056, %v3170
    %3172 = vdwg.mxu0
    %3173 = vmatpush.bf16.msra.mxu0 %v2951
    %3174 = vmatpush.bf16.msra.mxu0 %v2943
    %3175 = vmatpush.bf16.msra.mxu0 %v2935
    %3176 = vmatpush.bf16.msra.mxu0 %v2927
    %3177 = vmatpush.bf16.msra.mxu0 %v2919
    %3178 = vmatpush.bf16.msra.mxu0 %v2911
    %3179 = vmatpush.bf16.msra.mxu0 %v2903
    %3180 = vmatpush.bf16.msra.mxu0 %v2895
    %3181 = vmatmul.bf16.gmra.mxu0 %v2431
    %v3182 = vpop.f32.mrf.mxu0
    %v3183 = vadd.f32 %v3154, %v3182
    %v3184 = vpop.f32.mrf.mxu0
    %v3185 = vadd.f32 %v3156, %v3184
    %3186 = vmatmul.bf16.gmra.mxu0 %v2433
    %v3187 = vpop.f32.mrf.mxu0
    %v3188 = vadd.f32 %v3159, %v3187
    %v3189 = vpop.f32.mrf.mxu0
    %v3190 = vadd.f32 %v3161, %v3189
    %3191 = vmatmul.bf16.gmra.mxu0 %v2435
    %v3192 = vpop.f32.mrf.mxu0
    %v3193 = vadd.f32 %v3164, %v3192
    %v3194 = vpop.f32.mrf.mxu0
    %v3195 = vadd.f32 %v3166, %v3194
    %3196 = vmatmul.bf16.gmra.mxu0 %v2437
    %v3197 = vpop.f32.mrf.mxu0
    %v3198 = vadd.f32 %v3169, %v3197
    %v3199 = vpop.f32.mrf.mxu0
    %v3200 = vadd.f32 %v3171, %v3199
    %3201 = vdwg.mxu0
    %3202 = vmatpush.bf16.msra.mxu0 %v2888
    %3203 = vmatpush.bf16.msra.mxu0 %v2880
    %3204 = vmatpush.bf16.msra.mxu0 %v2872
    %3205 = vmatpush.bf16.msra.mxu0 %v2864
    %3206 = vmatpush.bf16.msra.mxu0 %v2856
    %3207 = vmatpush.bf16.msra.mxu0 %v2848
    %3208 = vmatpush.bf16.msra.mxu0 %v2840
    %3209 = vmatpush.bf16.msra.mxu0 %v2832
    %3210 = vmatmul.bf16.gmra.mxu0 %v2430
    %v3211 = vpop.f32.mrf.mxu0
    %v3212 = vadd.f32 %v2097, %v3211
    %v3213 = vpop.f32.mrf.mxu0
    %v3214 = vadd.f32 %v2099, %v3213
    %3215 = vmatmul.bf16.gmra.mxu0 %v2432
    %v3216 = vpop.f32.mrf.mxu0
    %v3217 = vadd.f32 %v2102, %v3216
    %v3218 = vpop.f32.mrf.mxu0
    %v3219 = vadd.f32 %v2104, %v3218
    %3220 = vmatmul.bf16.gmra.mxu0 %v2434
    %v3221 = vpop.f32.mrf.mxu0
    %v3222 = vadd.f32 %v2107, %v3221
    %v3223 = vpop.f32.mrf.mxu0
    %v3224 = vadd.f32 %v2109, %v3223
    %3225 = vmatmul.bf16.gmra.mxu0 %v2436
    %v3226 = vpop.f32.mrf.mxu0
    %v3227 = vadd.f32 %v2112, %v3226
    %v3228 = vpop.f32.mrf.mxu0
    %v3229 = vadd.f32 %v2114, %v3228
    %3230 = vdwg.mxu0
    %3231 = vmatpush.bf16.msra.mxu0 %v2952
    %3232 = vmatpush.bf16.msra.mxu0 %v2944
    %3233 = vmatpush.bf16.msra.mxu0 %v2936
    %3234 = vmatpush.bf16.msra.mxu0 %v2928
    %3235 = vmatpush.bf16.msra.mxu0 %v2920
    %3236 = vmatpush.bf16.msra.mxu0 %v2912
    %3237 = vmatpush.bf16.msra.mxu0 %v2904
    %3238 = vmatpush.bf16.msra.mxu0 %v2896
    %3239 = vmatmul.bf16.gmra.mxu0 %v2431
    %v3240 = vpop.f32.mrf.mxu0
    %v3241 = vadd.f32 %v3212, %v3240
    %v3242 = vpop.f32.mrf.mxu0
    %v3243 = vadd.f32 %v3214, %v3242
    %3244 = vmatmul.bf16.gmra.mxu0 %v2433
    %v3245 = vpop.f32.mrf.mxu0
    %v3246 = vadd.f32 %v3217, %v3245
    %v3247 = vpop.f32.mrf.mxu0
    %v3248 = vadd.f32 %v3219, %v3247
    %3249 = vmatmul.bf16.gmra.mxu0 %v2435
    %v3250 = vpop.f32.mrf.mxu0
    %v3251 = vadd.f32 %v3222, %v3250
    %v3252 = vpop.f32.mrf.mxu0
    %v3253 = vadd.f32 %v3224, %v3252
    %3254 = vmatmul.bf16.gmra.mxu0 %v2437
    %v3255 = vpop.f32.mrf.mxu0
    %v3256 = vadd.f32 %v3227, %v3255
    %v3257 = vpop.f32.mrf.mxu0
    %v3258 = vadd.f32 %v3229, %v3257
    %3259 = vdwg.mxu0
    %3260 = vmatpush.bf16.msra.mxu0 %v2889
    %3261 = vmatpush.bf16.msra.mxu0 %v2881
    %3262 = vmatpush.bf16.msra.mxu0 %v2873
    %3263 = vmatpush.bf16.msra.mxu0 %v2865
    %3264 = vmatpush.bf16.msra.mxu0 %v2857
    %3265 = vmatpush.bf16.msra.mxu0 %v2849
    %3266 = vmatpush.bf16.msra.mxu0 %v2841
    %3267 = vmatpush.bf16.msra.mxu0 %v2833
    %3268 = vmatmul.bf16.gmra.mxu0 %v2430
    %v3269 = vpop.f32.mrf.mxu0
    %v3270 = vadd.f32 %v2155, %v3269
    %v3271 = vpop.f32.mrf.mxu0
    %v3272 = vadd.f32 %v2157, %v3271
    %3273 = vmatmul.bf16.gmra.mxu0 %v2432
    %v3274 = vpop.f32.mrf.mxu0
    %v3275 = vadd.f32 %v2160, %v3274
    %v3276 = vpop.f32.mrf.mxu0
    %v3277 = vadd.f32 %v2162, %v3276
    %3278 = vmatmul.bf16.gmra.mxu0 %v2434
    %v3279 = vpop.f32.mrf.mxu0
    %v3280 = vadd.f32 %v2165, %v3279
    %v3281 = vpop.f32.mrf.mxu0
    %v3282 = vadd.f32 %v2167, %v3281
    %3283 = vmatmul.bf16.gmra.mxu0 %v2436
    %v3284 = vpop.f32.mrf.mxu0
    %v3285 = vadd.f32 %v2170, %v3284
    %v3286 = vpop.f32.mrf.mxu0
    %v3287 = vadd.f32 %v2172, %v3286
    %3288 = vdwg.mxu0
    %3289 = vmatpush.bf16.msra.mxu0 %v2953
    %3290 = vmatpush.bf16.msra.mxu0 %v2945
    %3291 = vmatpush.bf16.msra.mxu0 %v2937
    %3292 = vmatpush.bf16.msra.mxu0 %v2929
    %3293 = vmatpush.bf16.msra.mxu0 %v2921
    %3294 = vmatpush.bf16.msra.mxu0 %v2913
    %3295 = vmatpush.bf16.msra.mxu0 %v2905
    %3296 = vmatpush.bf16.msra.mxu0 %v2897
    %3297 = vmatmul.bf16.gmra.mxu0 %v2431
    %v3298 = vpop.f32.mrf.mxu0
    %v3299 = vadd.f32 %v3270, %v3298
    %v3300 = vpop.f32.mrf.mxu0
    %v3301 = vadd.f32 %v3272, %v3300
    %3302 = vmatmul.bf16.gmra.mxu0 %v2433
    %v3303 = vpop.f32.mrf.mxu0
    %v3304 = vadd.f32 %v3275, %v3303
    %v3305 = vpop.f32.mrf.mxu0
    %v3306 = vadd.f32 %v3277, %v3305
    %3307 = vmatmul.bf16.gmra.mxu0 %v2435
    %v3308 = vpop.f32.mrf.mxu0
    %v3309 = vadd.f32 %v3280, %v3308
    %v3310 = vpop.f32.mrf.mxu0
    %v3311 = vadd.f32 %v3282, %v3310
    %3312 = vmatmul.bf16.gmra.mxu0 %v2437
    %v3313 = vpop.f32.mrf.mxu0
    %v3314 = vadd.f32 %v3285, %v3313
    %v3315 = vpop.f32.mrf.mxu0
    %v3316 = vadd.f32 %v3287, %v3315
    %3317 = vdwg.mxu0
    %3318 = vmatpush.bf16.msra.mxu0 %v2890
    %3319 = vmatpush.bf16.msra.mxu0 %v2882
    %3320 = vmatpush.bf16.msra.mxu0 %v2874
    %3321 = vmatpush.bf16.msra.mxu0 %v2866
    %3322 = vmatpush.bf16.msra.mxu0 %v2858
    %3323 = vmatpush.bf16.msra.mxu0 %v2850
    %3324 = vmatpush.bf16.msra.mxu0 %v2842
    %3325 = vmatpush.bf16.msra.mxu0 %v2834
    %3326 = vmatmul.bf16.gmra.mxu0 %v2430
    %v3327 = vpop.f32.mrf.mxu0
    %v3328 = vadd.f32 %v2213, %v3327
    %v3329 = vpop.f32.mrf.mxu0
    %v3330 = vadd.f32 %v2215, %v3329
    %3331 = vmatmul.bf16.gmra.mxu0 %v2432
    %v3332 = vpop.f32.mrf.mxu0
    %v3333 = vadd.f32 %v2218, %v3332
    %v3334 = vpop.f32.mrf.mxu0
    %v3335 = vadd.f32 %v2220, %v3334
    %3336 = vmatmul.bf16.gmra.mxu0 %v2434
    %v3337 = vpop.f32.mrf.mxu0
    %v3338 = vadd.f32 %v2223, %v3337
    %v3339 = vpop.f32.mrf.mxu0
    %v3340 = vadd.f32 %v2225, %v3339
    %3341 = vmatmul.bf16.gmra.mxu0 %v2436
    %v3342 = vpop.f32.mrf.mxu0
    %v3343 = vadd.f32 %v2228, %v3342
    %v3344 = vpop.f32.mrf.mxu0
    %v3345 = vadd.f32 %v2230, %v3344
    %3346 = vdwg.mxu0
    %3347 = vmatpush.bf16.msra.mxu0 %v2954
    %3348 = vmatpush.bf16.msra.mxu0 %v2946
    %3349 = vmatpush.bf16.msra.mxu0 %v2938
    %3350 = vmatpush.bf16.msra.mxu0 %v2930
    %3351 = vmatpush.bf16.msra.mxu0 %v2922
    %3352 = vmatpush.bf16.msra.mxu0 %v2914
    %3353 = vmatpush.bf16.msra.mxu0 %v2906
    %3354 = vmatpush.bf16.msra.mxu0 %v2898
    %3355 = vmatmul.bf16.gmra.mxu0 %v2431
    %v3356 = vpop.f32.mrf.mxu0
    %v3357 = vadd.f32 %v3328, %v3356
    %v3358 = vpop.f32.mrf.mxu0
    %v3359 = vadd.f32 %v3330, %v3358
    %3360 = vmatmul.bf16.gmra.mxu0 %v2433
    %v3361 = vpop.f32.mrf.mxu0
    %v3362 = vadd.f32 %v3333, %v3361
    %v3363 = vpop.f32.mrf.mxu0
    %v3364 = vadd.f32 %v3335, %v3363
    %3365 = vmatmul.bf16.gmra.mxu0 %v2435
    %v3366 = vpop.f32.mrf.mxu0
    %v3367 = vadd.f32 %v3338, %v3366
    %v3368 = vpop.f32.mrf.mxu0
    %v3369 = vadd.f32 %v3340, %v3368
    %3370 = vmatmul.bf16.gmra.mxu0 %v2437
    %v3371 = vpop.f32.mrf.mxu0
    %v3372 = vadd.f32 %v3343, %v3371
    %v3373 = vpop.f32.mrf.mxu0
    %v3374 = vadd.f32 %v3345, %v3373
    %3375 = vdwg.mxu0
    %3376 = vmatpush.bf16.msra.mxu0 %v2891
    %3377 = vmatpush.bf16.msra.mxu0 %v2883
    %3378 = vmatpush.bf16.msra.mxu0 %v2875
    %3379 = vmatpush.bf16.msra.mxu0 %v2867
    %3380 = vmatpush.bf16.msra.mxu0 %v2859
    %3381 = vmatpush.bf16.msra.mxu0 %v2851
    %3382 = vmatpush.bf16.msra.mxu0 %v2843
    %3383 = vmatpush.bf16.msra.mxu0 %v2835
    %3384 = vmatmul.bf16.gmra.mxu0 %v2430
    %v3385 = vpop.f32.mrf.mxu0
    %v3386 = vadd.f32 %v2271, %v3385
    %v3387 = vpop.f32.mrf.mxu0
    %v3388 = vadd.f32 %v2273, %v3387
    %3389 = vmatmul.bf16.gmra.mxu0 %v2432
    %v3390 = vpop.f32.mrf.mxu0
    %v3391 = vadd.f32 %v2276, %v3390
    %v3392 = vpop.f32.mrf.mxu0
    %v3393 = vadd.f32 %v2278, %v3392
    %3394 = vmatmul.bf16.gmra.mxu0 %v2434
    %v3395 = vpop.f32.mrf.mxu0
    %v3396 = vadd.f32 %v2281, %v3395
    %v3397 = vpop.f32.mrf.mxu0
    %v3398 = vadd.f32 %v2283, %v3397
    %3399 = vmatmul.bf16.gmra.mxu0 %v2436
    %v3400 = vpop.f32.mrf.mxu0
    %v3401 = vadd.f32 %v2286, %v3400
    %v3402 = vpop.f32.mrf.mxu0
    %v3403 = vadd.f32 %v2288, %v3402
    %3404 = vdwg.mxu0
    %3405 = vmatpush.bf16.msra.mxu0 %v2955
    %3406 = vmatpush.bf16.msra.mxu0 %v2947
    %3407 = vmatpush.bf16.msra.mxu0 %v2939
    %3408 = vmatpush.bf16.msra.mxu0 %v2931
    %3409 = vmatpush.bf16.msra.mxu0 %v2923
    %3410 = vmatpush.bf16.msra.mxu0 %v2915
    %3411 = vmatpush.bf16.msra.mxu0 %v2907
    %3412 = vmatpush.bf16.msra.mxu0 %v2899
    %3413 = vmatmul.bf16.gmra.mxu0 %v2431
    %v3414 = vpop.f32.mrf.mxu0
    %v3415 = vadd.f32 %v3386, %v3414
    %v3416 = vpop.f32.mrf.mxu0
    %v3417 = vadd.f32 %v3388, %v3416
    %3418 = vmatmul.bf16.gmra.mxu0 %v2433
    %v3419 = vpop.f32.mrf.mxu0
    %v3420 = vadd.f32 %v3391, %v3419
    %v3421 = vpop.f32.mrf.mxu0
    %v3422 = vadd.f32 %v3393, %v3421
    %3423 = vmatmul.bf16.gmra.mxu0 %v2435
    %v3424 = vpop.f32.mrf.mxu0
    %v3425 = vadd.f32 %v3396, %v3424
    %v3426 = vpop.f32.mrf.mxu0
    %v3427 = vadd.f32 %v3398, %v3426
    %3428 = vmatmul.bf16.gmra.mxu0 %v2437
    %v3429 = vpop.f32.mrf.mxu0
    %v3430 = vadd.f32 %v3401, %v3429
    %v3431 = vpop.f32.mrf.mxu0
    %v3432 = vadd.f32 %v3403, %v3431
    %3433 = vdwg.mxu0
    %3434 = vmatpush.bf16.msra.mxu0 %v2892
    %3435 = vmatpush.bf16.msra.mxu0 %v2884
    %3436 = vmatpush.bf16.msra.mxu0 %v2876
    %3437 = vmatpush.bf16.msra.mxu0 %v2868
    %3438 = vmatpush.bf16.msra.mxu0 %v2860
    %3439 = vmatpush.bf16.msra.mxu0 %v2852
    %3440 = vmatpush.bf16.msra.mxu0 %v2844
    %3441 = vmatpush.bf16.msra.mxu0 %v2836
    %3442 = vmatmul.bf16.gmra.mxu0 %v2430
    %v3443 = vpop.f32.mrf.mxu0
    %v3444 = vadd.f32 %v2329, %v3443
    %v3445 = vpop.f32.mrf.mxu0
    %v3446 = vadd.f32 %v2331, %v3445
    %3447 = vmatmul.bf16.gmra.mxu0 %v2432
    %v3448 = vpop.f32.mrf.mxu0
    %v3449 = vadd.f32 %v2334, %v3448
    %v3450 = vpop.f32.mrf.mxu0
    %v3451 = vadd.f32 %v2336, %v3450
    %3452 = vmatmul.bf16.gmra.mxu0 %v2434
    %v3453 = vpop.f32.mrf.mxu0
    %v3454 = vadd.f32 %v2339, %v3453
    %v3455 = vpop.f32.mrf.mxu0
    %v3456 = vadd.f32 %v2341, %v3455
    %3457 = vmatmul.bf16.gmra.mxu0 %v2436
    %v3458 = vpop.f32.mrf.mxu0
    %v3459 = vadd.f32 %v2344, %v3458
    %v3460 = vpop.f32.mrf.mxu0
    %v3461 = vadd.f32 %v2346, %v3460
    %3462 = vdwg.mxu0
    %3463 = vmatpush.bf16.msra.mxu0 %v2956
    %3464 = vmatpush.bf16.msra.mxu0 %v2948
    %3465 = vmatpush.bf16.msra.mxu0 %v2940
    %3466 = vmatpush.bf16.msra.mxu0 %v2932
    %3467 = vmatpush.bf16.msra.mxu0 %v2924
    %3468 = vmatpush.bf16.msra.mxu0 %v2916
    %3469 = vmatpush.bf16.msra.mxu0 %v2908
    %3470 = vmatpush.bf16.msra.mxu0 %v2900
    %3471 = vmatmul.bf16.gmra.mxu0 %v2431
    %v3472 = vpop.f32.mrf.mxu0
    %v3473 = vadd.f32 %v3444, %v3472
    %v3474 = vpop.f32.mrf.mxu0
    %v3475 = vadd.f32 %v3446, %v3474
    %3476 = vmatmul.bf16.gmra.mxu0 %v2433
    %v3477 = vpop.f32.mrf.mxu0
    %v3478 = vadd.f32 %v3449, %v3477
    %v3479 = vpop.f32.mrf.mxu0
    %v3480 = vadd.f32 %v3451, %v3479
    %3481 = vmatmul.bf16.gmra.mxu0 %v2435
    %v3482 = vpop.f32.mrf.mxu0
    %v3483 = vadd.f32 %v3454, %v3482
    %v3484 = vpop.f32.mrf.mxu0
    %v3485 = vadd.f32 %v3456, %v3484
    %3486 = vmatmul.bf16.gmra.mxu0 %v2437
    %v3487 = vpop.f32.mrf.mxu0
    %v3488 = vadd.f32 %v3459, %v3487
    %v3489 = vpop.f32.mrf.mxu0
    %v3490 = vadd.f32 %v3461, %v3489
    %3491 = vdwg.mxu0
    %3492 = vmatpush.bf16.msra.mxu0 %v2893
    %3493 = vmatpush.bf16.msra.mxu0 %v2885
    %3494 = vmatpush.bf16.msra.mxu0 %v2877
    %3495 = vmatpush.bf16.msra.mxu0 %v2869
    %3496 = vmatpush.bf16.msra.mxu0 %v2861
    %3497 = vmatpush.bf16.msra.mxu0 %v2853
    %3498 = vmatpush.bf16.msra.mxu0 %v2845
    %3499 = vmatpush.bf16.msra.mxu0 %v2837
    %3500 = vmatmul.bf16.gmra.mxu0 %v2430
    %v3501 = vpop.f32.mrf.mxu0
    %v3502 = vadd.f32 %v2387, %v3501
    %v3503 = vpop.f32.mrf.mxu0
    %v3504 = vadd.f32 %v2389, %v3503
    %3505 = vmatmul.bf16.gmra.mxu0 %v2432
    %v3506 = vpop.f32.mrf.mxu0
    %v3507 = vadd.f32 %v2392, %v3506
    %v3508 = vpop.f32.mrf.mxu0
    %v3509 = vadd.f32 %v2394, %v3508
    %3510 = vmatmul.bf16.gmra.mxu0 %v2434
    %v3511 = vpop.f32.mrf.mxu0
    %v3512 = vadd.f32 %v2397, %v3511
    %v3513 = vpop.f32.mrf.mxu0
    %v3514 = vadd.f32 %v2399, %v3513
    %3515 = vmatmul.bf16.gmra.mxu0 %v2436
    %v3516 = vpop.f32.mrf.mxu0
    %v3517 = vadd.f32 %v2402, %v3516
    %v3518 = vpop.f32.mrf.mxu0
    %v3519 = vadd.f32 %v2404, %v3518
    %3520 = vdwg.mxu0
    %3521 = vmatpush.bf16.msra.mxu0 %v2957
    %3522 = vmatpush.bf16.msra.mxu0 %v2949
    %3523 = vmatpush.bf16.msra.mxu0 %v2941
    %3524 = vmatpush.bf16.msra.mxu0 %v2933
    %3525 = vmatpush.bf16.msra.mxu0 %v2925
    %3526 = vmatpush.bf16.msra.mxu0 %v2917
    %3527 = vmatpush.bf16.msra.mxu0 %v2909
    %3528 = vmatpush.bf16.msra.mxu0 %v2901
    %3529 = vmatmul.bf16.gmra.mxu0 %v2431
    %v3530 = vpop.f32.mrf.mxu0
    %v3531 = vadd.f32 %v3502, %v3530
    %v3532 = vpop.f32.mrf.mxu0
    %v3533 = vadd.f32 %v3504, %v3532
    %3534 = vmatmul.bf16.gmra.mxu0 %v2433
    %v3535 = vpop.f32.mrf.mxu0
    %v3536 = vadd.f32 %v3507, %v3535
    %v3537 = vpop.f32.mrf.mxu0
    %v3538 = vadd.f32 %v3509, %v3537
    %3539 = vmatmul.bf16.gmra.mxu0 %v2435
    %v3540 = vpop.f32.mrf.mxu0
    %v3541 = vadd.f32 %v3512, %v3540
    %v3542 = vpop.f32.mrf.mxu0
    %v3543 = vadd.f32 %v3514, %v3542
    %3544 = vmatmul.bf16.gmra.mxu0 %v2437
    %v3545 = vpop.f32.mrf.mxu0
    %v3546 = vadd.f32 %v3517, %v3545
    %v3547 = vpop.f32.mrf.mxu0
    %v3548 = vadd.f32 %v3519, %v3547
    %3549 = vdwg.mxu0
    // Predicated region
    $region90: #{gcn_res_forward.1} parent=1 // pred_check
      _
    $region91: #{gcn_res_forward.1} parent=1 // pred_check_branch
      %3551 = sbr.rel target = $region93
    $region92: #{gcn_res_forward.1} parent=1 // pred_region
      %3552 = sst [smem:[#allocation19]] [#allocation28]
      %3553 = sst [smem:[#allocation20]] [#allocation27]
    $region93: #{gcn_res_forward.1} parent=1 // pred_fallthru
      _
    %3555 = shalt.err (0)
    %s3557 = sshll.u32 %s6, 4
    %s3558 = int_to_ptr.hbm [resolvable:$true] %s3557
    %s3559 = sshll.u32 %s167, 4
    %s3560 = int_to_ptr.vmem [resolvable:$true] %s3559
    %3562 = dma.hbm_to_vmem [thread:$0]  %s3558, 16384, %s3560, %s168
    %s3563 = sshll.u32 %s987, 4
    %3564 = dma.done %s972, %s3563
    %v3565 = vld [vmem:[%s971] sm:$0xff]
    %v3566 = vld [vmem:[%s971 + $0x8] sm:$0xff]
    %v3567 = vld [vmem:[%s971 + $0x10] sm:$0xff]
    %v3568 = vld [vmem:[%s971 + $0x18] sm:$0xff]
    %v3569 = vld [vmem:[%s971 + $0x20] sm:$0xff]
    %v3570 = vld [vmem:[%s971 + $0x28] sm:$0xff]
    %v3571 = vld [vmem:[%s971 + $0x30] sm:$0xff]
    %v3572 = vld [vmem:[%s971 + $0x38] sm:$0xff]
    %v3573 = vld [vmem:[%s971 + $0x40] sm:$0xff]
    %v3574 = vld [vmem:[%s971 + $0x48] sm:$0xff]
    %v3575 = vld [vmem:[%s971 + $0x50] sm:$0xff]
    %v3576 = vld [vmem:[%s971 + $0x58] sm:$0xff]
    %v3577 = vld [vmem:[%s971 + $0x60] sm:$0xff]
    %v3578 = vld [vmem:[%s971 + $0x68] sm:$0xff]
    %v3579 = vld [vmem:[%s971 + $0x70] sm:$0xff]
    %v3580 = vld [vmem:[%s971 + $0x78] sm:$0xff]
    %v3581 = vld [vmem:[%s971 + $0x80] sm:$0xff]
    %v3582 = vld [vmem:[%s971 + $0x88] sm:$0xff]
    %v3583 = vld [vmem:[%s971 + $0x90] sm:$0xff]
    %v3584 = vld [vmem:[%s971 + $0x98] sm:$0xff]
    %v3585 = vld [vmem:[%s971 + $0xa0] sm:$0xff]
    %v3586 = vld [vmem:[%s971 + $0xa8] sm:$0xff]
    %v3587 = vld [vmem:[%s971 + $0xb0] sm:$0xff]
    %v3588 = vld [vmem:[%s971 + $0xb8] sm:$0xff]
    %v3589 = vld [vmem:[%s971 + $0xc0] sm:$0xff]
    %v3590 = vld [vmem:[%s971 + $0xc8] sm:$0xff]
    %v3591 = vld [vmem:[%s971 + $0xd0] sm:$0xff]
    %v3592 = vld [vmem:[%s971 + $0xd8] sm:$0xff]
    %v3593 = vld [vmem:[%s971 + $0xe0] sm:$0xff]
    %v3594 = vld [vmem:[%s971 + $0xe8] sm:$0xff]
    %v3595 = vld [vmem:[%s971 + $0xf0] sm:$0xff]
    %v3596 = vld [vmem:[%s971 + $0xf8] sm:$0xff]
    %v3597 = vld [vmem:[%s971 + $0x100] sm:$0xff]
    %v3598 = vld [vmem:[%s971 + $0x108] sm:$0xff]
    %v3599 = vld [vmem:[%s971 + $0x110] sm:$0xff]
    %v3600 = vld [vmem:[%s971 + $0x118] sm:$0xff]
    %v3601 = vld [vmem:[%s971 + $0x120] sm:$0xff]
    %v3602 = vld [vmem:[%s971 + $0x128] sm:$0xff]
    %v3603 = vld [vmem:[%s971 + $0x130] sm:$0xff]
    %v3604 = vld [vmem:[%s971 + $0x138] sm:$0xff]
    %v3605 = vld [vmem:[%s971 + $0x140] sm:$0xff]
    %v3606 = vld [vmem:[%s971 + $0x148] sm:$0xff]
    %v3607 = vld [vmem:[%s971 + $0x150] sm:$0xff]
    %v3608 = vld [vmem:[%s971 + $0x158] sm:$0xff]
    %v3609 = vld [vmem:[%s971 + $0x160] sm:$0xff]
    %v3610 = vld [vmem:[%s971 + $0x168] sm:$0xff]
    %v3611 = vld [vmem:[%s971 + $0x170] sm:$0xff]
    %v3612 = vld [vmem:[%s971 + $0x178] sm:$0xff]
    %v3613 = vld [vmem:[%s971 + $0x180] sm:$0xff]
    %v3614 = vld [vmem:[%s971 + $0x188] sm:$0xff]
    %v3615 = vld [vmem:[%s971 + $0x190] sm:$0xff]
    %v3616 = vld [vmem:[%s971 + $0x198] sm:$0xff]
    %v3617 = vld [vmem:[%s971 + $0x1a0] sm:$0xff]
    %v3618 = vld [vmem:[%s971 + $0x1a8] sm:$0xff]
    %v3619 = vld [vmem:[%s971 + $0x1b0] sm:$0xff]
    %v3620 = vld [vmem:[%s971 + $0x1b8] sm:$0xff]
    %v3621 = vld [vmem:[%s971 + $0x1c0] sm:$0xff]
    %v3622 = vld [vmem:[%s971 + $0x1c8] sm:$0xff]
    %v3623 = vld [vmem:[%s971 + $0x1d0] sm:$0xff]
    %v3624 = vld [vmem:[%s971 + $0x1d8] sm:$0xff]
    %v3625 = vld [vmem:[%s971 + $0x1e0] sm:$0xff]
    %v3626 = vld [vmem:[%s971 + $0x1e8] sm:$0xff]
    %v3627 = vld [vmem:[%s971 + $0x1f0] sm:$0xff]
    %v3628 = vld [vmem:[%s971 + $0x1f8] sm:$0xff]
    %v3629 = vld [vmem:[%s971 + $0x200] sm:$0xff]
    %v3630 = vld [vmem:[%s971 + $0x208] sm:$0xff]
    %v3631 = vld [vmem:[%s971 + $0x210] sm:$0xff]
    %v3632 = vld [vmem:[%s971 + $0x218] sm:$0xff]
    %v3633 = vld [vmem:[%s971 + $0x220] sm:$0xff]
    %v3634 = vld [vmem:[%s971 + $0x228] sm:$0xff]
    %v3635 = vld [vmem:[%s971 + $0x230] sm:$0xff]
    %v3636 = vld [vmem:[%s971 + $0x238] sm:$0xff]
    %v3637 = vld [vmem:[%s971 + $0x240] sm:$0xff]
    %v3638 = vld [vmem:[%s971 + $0x248] sm:$0xff]
    %v3639 = vld [vmem:[%s971 + $0x250] sm:$0xff]
    %v3640 = vld [vmem:[%s971 + $0x258] sm:$0xff]
    %v3641 = vld [vmem:[%s971 + $0x260] sm:$0xff]
    %v3642 = vld [vmem:[%s971 + $0x268] sm:$0xff]
    %v3643 = vld [vmem:[%s971 + $0x270] sm:$0xff]
    %v3644 = vld [vmem:[%s971 + $0x278] sm:$0xff]
    %v3645 = vld [vmem:[%s971 + $0x280] sm:$0xff]
    %v3646 = vld [vmem:[%s971 + $0x288] sm:$0xff]
    %v3647 = vld [vmem:[%s971 + $0x290] sm:$0xff]
    %v3648 = vld [vmem:[%s971 + $0x298] sm:$0xff]
    %v3649 = vld [vmem:[%s971 + $0x2a0] sm:$0xff]
    %v3650 = vld [vmem:[%s971 + $0x2a8] sm:$0xff]
    %v3651 = vld [vmem:[%s971 + $0x2b0] sm:$0xff]
    %v3652 = vld [vmem:[%s971 + $0x2b8] sm:$0xff]
    %v3653 = vld [vmem:[%s971 + $0x2c0] sm:$0xff]
    %v3654 = vld [vmem:[%s971 + $0x2c8] sm:$0xff]
    %v3655 = vld [vmem:[%s971 + $0x2d0] sm:$0xff]
    %v3656 = vld [vmem:[%s971 + $0x2d8] sm:$0xff]
    %v3657 = vld [vmem:[%s971 + $0x2e0] sm:$0xff]
    %v3658 = vld [vmem:[%s971 + $0x2e8] sm:$0xff]
    %v3659 = vld [vmem:[%s971 + $0x2f0] sm:$0xff]
    %v3660 = vld [vmem:[%s971 + $0x2f8] sm:$0xff]
    %v3661 = vld [vmem:[%s971 + $0x300] sm:$0xff]
    %v3662 = vld [vmem:[%s971 + $0x308] sm:$0xff]
    %v3663 = vld [vmem:[%s971 + $0x310] sm:$0xff]
    %v3664 = vld [vmem:[%s971 + $0x318] sm:$0xff]
    %v3665 = vld [vmem:[%s971 + $0x320] sm:$0xff]
    %v3666 = vld [vmem:[%s971 + $0x328] sm:$0xff]
    %v3667 = vld [vmem:[%s971 + $0x330] sm:$0xff]
    %v3668 = vld [vmem:[%s971 + $0x338] sm:$0xff]
    %v3669 = vld [vmem:[%s971 + $0x340] sm:$0xff]
    %v3670 = vld [vmem:[%s971 + $0x348] sm:$0xff]
    %v3671 = vld [vmem:[%s971 + $0x350] sm:$0xff]
    %v3672 = vld [vmem:[%s971 + $0x358] sm:$0xff]
    %v3673 = vld [vmem:[%s971 + $0x360] sm:$0xff]
    %v3674 = vld [vmem:[%s971 + $0x368] sm:$0xff]
    %v3675 = vld [vmem:[%s971 + $0x370] sm:$0xff]
    %v3676 = vld [vmem:[%s971 + $0x378] sm:$0xff]
    %v3677 = vld [vmem:[%s971 + $0x380] sm:$0xff]
    %v3678 = vld [vmem:[%s971 + $0x388] sm:$0xff]
    %v3679 = vld [vmem:[%s971 + $0x390] sm:$0xff]
    %v3680 = vld [vmem:[%s971 + $0x398] sm:$0xff]
    %v3681 = vld [vmem:[%s971 + $0x3a0] sm:$0xff]
    %v3682 = vld [vmem:[%s971 + $0x3a8] sm:$0xff]
    %v3683 = vld [vmem:[%s971 + $0x3b0] sm:$0xff]
    %v3684 = vld [vmem:[%s971 + $0x3b8] sm:$0xff]
    %v3685 = vld [vmem:[%s971 + $0x3c0] sm:$0xff]
    %v3686 = vld [vmem:[%s971 + $0x3c8] sm:$0xff]
    %v3687 = vld [vmem:[%s971 + $0x3d0] sm:$0xff]
    %v3688 = vld [vmem:[%s971 + $0x3d8] sm:$0xff]
    %v3689 = vld [vmem:[%s971 + $0x3e0] sm:$0xff]
    %v3690 = vld [vmem:[%s971 + $0x3e8] sm:$0xff]
    %v3691 = vld [vmem:[%s971 + $0x3f0] sm:$0xff]
    %v3692 = vld [vmem:[%s971 + $0x3f8] sm:$0xff]
    %v3701 = vunpack.c.l.b16 %v940
    %v3702 = vunpack.c.h.b16 %v940
    %v3703 = vunpack.c.l.b16 %v944
    %v3704 = vunpack.c.h.b16 %v944
    %v3705 = vunpack.c.l.b16 %v948
    %v3706 = vunpack.c.h.b16 %v948
    %v3707 = vunpack.c.l.b16 %v952
    %v3708 = vunpack.c.h.b16 %v952
    %v3709 = vunpack.c.l.b16 %v956
    %v3710 = vunpack.c.h.b16 %v956
    %v3711 = vunpack.c.l.b16 %v960
    %v3712 = vunpack.c.h.b16 %v960
    %v3713 = vunpack.c.l.b16 %v964
    %v3714 = vunpack.c.h.b16 %v964
    %v3715 = vunpack.c.l.b16 %v968
    %v3716 = vunpack.c.h.b16 %v968
    %v3717 = vpack.c.b16 %v3703, %v3701
    %v3718 = vpack.c.b16 %v3704, %v3702
    %v3719 = vpack.c.b16 %v3707, %v3705
    %v3720 = vpack.c.b16 %v3708, %v3706
    %v3721 = vpack.c.b16 %v3711, %v3709
    %v3722 = vpack.c.b16 %v3712, %v3710
    %v3723 = vpack.c.b16 %v3715, %v3713
    %v3724 = vpack.c.b16 %v3716, %v3714
    %v3861 = vunpack.c.l.b16 %v3565
    %v3862 = vunpack.c.h.b16 %v3565
    %v3863 = vunpack.c.l.b16 %v3566
    %v3864 = vunpack.c.h.b16 %v3566
    %v3865 = vunpack.c.l.b16 %v3567
    %v3866 = vunpack.c.h.b16 %v3567
    %v3867 = vunpack.c.l.b16 %v3568
    %v3868 = vunpack.c.h.b16 %v3568
    %v3869 = vunpack.c.l.b16 %v3569
    %v3870 = vunpack.c.h.b16 %v3569
    %v3871 = vunpack.c.l.b16 %v3570
    %v3872 = vunpack.c.h.b16 %v3570
    %v3873 = vunpack.c.l.b16 %v3571
    %v3874 = vunpack.c.h.b16 %v3571
    %v3875 = vunpack.c.l.b16 %v3572
    %v3876 = vunpack.c.h.b16 %v3572
    %v3877 = vunpack.c.l.b16 %v3573
    %v3878 = vunpack.c.h.b16 %v3573
    %v3879 = vunpack.c.l.b16 %v3574
    %v3880 = vunpack.c.h.b16 %v3574
    %v3881 = vunpack.c.l.b16 %v3575
    %v3882 = vunpack.c.h.b16 %v3575
    %v3883 = vunpack.c.l.b16 %v3576
    %v3884 = vunpack.c.h.b16 %v3576
    %v3885 = vunpack.c.l.b16 %v3577
    %v3886 = vunpack.c.h.b16 %v3577
    %v3887 = vunpack.c.l.b16 %v3578
    %v3888 = vunpack.c.h.b16 %v3578
    %v3889 = vunpack.c.l.b16 %v3579
    %v3890 = vunpack.c.h.b16 %v3579
    %v3891 = vunpack.c.l.b16 %v3580
    %v3892 = vunpack.c.h.b16 %v3580
    %v3893 = vunpack.c.l.b16 %v3581
    %v3894 = vunpack.c.h.b16 %v3581
    %v3895 = vunpack.c.l.b16 %v3582
    %v3896 = vunpack.c.h.b16 %v3582
    %v3897 = vunpack.c.l.b16 %v3583
    %v3898 = vunpack.c.h.b16 %v3583
    %v3899 = vunpack.c.l.b16 %v3584
    %v3900 = vunpack.c.h.b16 %v3584
    %v3901 = vunpack.c.l.b16 %v3585
    %v3902 = vunpack.c.h.b16 %v3585
    %v3903 = vunpack.c.l.b16 %v3586
    %v3904 = vunpack.c.h.b16 %v3586
    %v3905 = vunpack.c.l.b16 %v3587
    %v3906 = vunpack.c.h.b16 %v3587
    %v3907 = vunpack.c.l.b16 %v3588
    %v3908 = vunpack.c.h.b16 %v3588
    %v3909 = vunpack.c.l.b16 %v3589
    %v3910 = vunpack.c.h.b16 %v3589
    %v3911 = vunpack.c.l.b16 %v3590
    %v3912 = vunpack.c.h.b16 %v3590
    %v3913 = vunpack.c.l.b16 %v3591
    %v3914 = vunpack.c.h.b16 %v3591
    %v3915 = vunpack.c.l.b16 %v3592
    %v3916 = vunpack.c.h.b16 %v3592
    %v3917 = vunpack.c.l.b16 %v3593
    %v3918 = vunpack.c.h.b16 %v3593
    %v3919 = vunpack.c.l.b16 %v3594
    %v3920 = vunpack.c.h.b16 %v3594
    %v3921 = vunpack.c.l.b16 %v3595
    %v3922 = vunpack.c.h.b16 %v3595
    %v3923 = vunpack.c.l.b16 %v3596
    %v3924 = vunpack.c.h.b16 %v3596
    %v3925 = vunpack.c.l.b16 %v3597
    %v3926 = vunpack.c.h.b16 %v3597
    %v3927 = vunpack.c.l.b16 %v3598
    %v3928 = vunpack.c.h.b16 %v3598
    %v3929 = vunpack.c.l.b16 %v3599
    %v3930 = vunpack.c.h.b16 %v3599
    %v3931 = vunpack.c.l.b16 %v3600
    %v3932 = vunpack.c.h.b16 %v3600
    %v3933 = vunpack.c.l.b16 %v3601
    %v3934 = vunpack.c.h.b16 %v3601
    %v3935 = vunpack.c.l.b16 %v3602
    %v3936 = vunpack.c.h.b16 %v3602
    %v3937 = vunpack.c.l.b16 %v3603
    %v3938 = vunpack.c.h.b16 %v3603
    %v3939 = vunpack.c.l.b16 %v3604
    %v3940 = vunpack.c.h.b16 %v3604
    %v3941 = vunpack.c.l.b16 %v3605
    %v3942 = vunpack.c.h.b16 %v3605
    %v3943 = vunpack.c.l.b16 %v3606
    %v3944 = vunpack.c.h.b16 %v3606
    %v3945 = vunpack.c.l.b16 %v3607
    %v3946 = vunpack.c.h.b16 %v3607
    %v3947 = vunpack.c.l.b16 %v3608
    %v3948 = vunpack.c.h.b16 %v3608
    %v3949 = vunpack.c.l.b16 %v3609
    %v3950 = vunpack.c.h.b16 %v3609
    %v3951 = vunpack.c.l.b16 %v3610
    %v3952 = vunpack.c.h.b16 %v3610
    %v3953 = vunpack.c.l.b16 %v3611
    %v3954 = vunpack.c.h.b16 %v3611
    %v3955 = vunpack.c.l.b16 %v3612
    %v3956 = vunpack.c.h.b16 %v3612
    %v3957 = vunpack.c.l.b16 %v3613
    %v3958 = vunpack.c.h.b16 %v3613
    %v3959 = vunpack.c.l.b16 %v3614
    %v3960 = vunpack.c.h.b16 %v3614
    %v3961 = vunpack.c.l.b16 %v3615
    %v3962 = vunpack.c.h.b16 %v3615
    %v3963 = vunpack.c.l.b16 %v3616
    %v3964 = vunpack.c.h.b16 %v3616
    %v3965 = vunpack.c.l.b16 %v3617
    %v3966 = vunpack.c.h.b16 %v3617
    %v3967 = vunpack.c.l.b16 %v3618
    %v3968 = vunpack.c.h.b16 %v3618
    %v3969 = vunpack.c.l.b16 %v3619
    %v3970 = vunpack.c.h.b16 %v3619
    %v3971 = vunpack.c.l.b16 %v3620
    %v3972 = vunpack.c.h.b16 %v3620
    %v3973 = vunpack.c.l.b16 %v3621
    %v3974 = vunpack.c.h.b16 %v3621
    %v3975 = vunpack.c.l.b16 %v3622
    %v3976 = vunpack.c.h.b16 %v3622
    %v3977 = vunpack.c.l.b16 %v3623
    %v3978 = vunpack.c.h.b16 %v3623
    %v3979 = vunpack.c.l.b16 %v3624
    %v3980 = vunpack.c.h.b16 %v3624
    %v3981 = vunpack.c.l.b16 %v3625
    %v3982 = vunpack.c.h.b16 %v3625
    %v3983 = vunpack.c.l.b16 %v3626
    %v3984 = vunpack.c.h.b16 %v3626
    %v3985 = vunpack.c.l.b16 %v3627
    %v3986 = vunpack.c.h.b16 %v3627
    %v3987 = vunpack.c.l.b16 %v3628
    %v3988 = vunpack.c.h.b16 %v3628
    %v3989 = vunpack.c.l.b16 %v3629
    %v3990 = vunpack.c.h.b16 %v3629
    %v3991 = vunpack.c.l.b16 %v3630
    %v3992 = vunpack.c.h.b16 %v3630
    %v3993 = vunpack.c.l.b16 %v3631
    %v3994 = vunpack.c.h.b16 %v3631
    %v3995 = vunpack.c.l.b16 %v3632
    %v3996 = vunpack.c.h.b16 %v3632
    %v3997 = vunpack.c.l.b16 %v3633
    %v3998 = vunpack.c.h.b16 %v3633
    %v3999 = vunpack.c.l.b16 %v3634
    %v4000 = vunpack.c.h.b16 %v3634
    %v4001 = vunpack.c.l.b16 %v3635
    %v4002 = vunpack.c.h.b16 %v3635
    %v4003 = vunpack.c.l.b16 %v3636
    %v4004 = vunpack.c.h.b16 %v3636
    %v4005 = vunpack.c.l.b16 %v3637
    %v4006 = vunpack.c.h.b16 %v3637
    %v4007 = vunpack.c.l.b16 %v3638
    %v4008 = vunpack.c.h.b16 %v3638
    %v4009 = vunpack.c.l.b16 %v3639
    %v4010 = vunpack.c.h.b16 %v3639
    %v4011 = vunpack.c.l.b16 %v3640
    %v4012 = vunpack.c.h.b16 %v3640
    %v4013 = vunpack.c.l.b16 %v3641
    %v4014 = vunpack.c.h.b16 %v3641
    %v4015 = vunpack.c.l.b16 %v3642
    %v4016 = vunpack.c.h.b16 %v3642
    %v4017 = vunpack.c.l.b16 %v3643
    %v4018 = vunpack.c.h.b16 %v3643
    %v4019 = vunpack.c.l.b16 %v3644
    %v4020 = vunpack.c.h.b16 %v3644
    %v4021 = vunpack.c.l.b16 %v3645
    %v4022 = vunpack.c.h.b16 %v3645
    %v4023 = vunpack.c.l.b16 %v3646
    %v4024 = vunpack.c.h.b16 %v3646
    %v4025 = vunpack.c.l.b16 %v3647
    %v4026 = vunpack.c.h.b16 %v3647
    %v4027 = vunpack.c.l.b16 %v3648
    %v4028 = vunpack.c.h.b16 %v3648
    %v4029 = vunpack.c.l.b16 %v3649
    %v4030 = vunpack.c.h.b16 %v3649
    %v4031 = vunpack.c.l.b16 %v3650
    %v4032 = vunpack.c.h.b16 %v3650
    %v4033 = vunpack.c.l.b16 %v3651
    %v4034 = vunpack.c.h.b16 %v3651
    %v4035 = vunpack.c.l.b16 %v3652
    %v4036 = vunpack.c.h.b16 %v3652
    %v4037 = vunpack.c.l.b16 %v3653
    %v4038 = vunpack.c.h.b16 %v3653
    %v4039 = vunpack.c.l.b16 %v3654
    %v4040 = vunpack.c.h.b16 %v3654
    %v4041 = vunpack.c.l.b16 %v3655
    %v4042 = vunpack.c.h.b16 %v3655
    %v4043 = vunpack.c.l.b16 %v3656
    %v4044 = vunpack.c.h.b16 %v3656
    %v4045 = vunpack.c.l.b16 %v3657
    %v4046 = vunpack.c.h.b16 %v3657
    %v4047 = vunpack.c.l.b16 %v3658
    %v4048 = vunpack.c.h.b16 %v3658
    %v4049 = vunpack.c.l.b16 %v3659
    %v4050 = vunpack.c.h.b16 %v3659
    %v4051 = vunpack.c.l.b16 %v3660
    %v4052 = vunpack.c.h.b16 %v3660
    %v4053 = vunpack.c.l.b16 %v3661
    %v4054 = vunpack.c.h.b16 %v3661
    %v4055 = vunpack.c.l.b16 %v3662
    %v4056 = vunpack.c.h.b16 %v3662
    %v4057 = vunpack.c.l.b16 %v3663
    %v4058 = vunpack.c.h.b16 %v3663
    %v4059 = vunpack.c.l.b16 %v3664
    %v4060 = vunpack.c.h.b16 %v3664
    %v4061 = vunpack.c.l.b16 %v3665
    %v4062 = vunpack.c.h.b16 %v3665
    %v4063 = vunpack.c.l.b16 %v3666
    %v4064 = vunpack.c.h.b16 %v3666
    %v4065 = vunpack.c.l.b16 %v3667
    %v4066 = vunpack.c.h.b16 %v3667
    %v4067 = vunpack.c.l.b16 %v3668
    %v4068 = vunpack.c.h.b16 %v3668
    %v4069 = vunpack.c.l.b16 %v3669
    %v4070 = vunpack.c.h.b16 %v3669
    %v4071 = vunpack.c.l.b16 %v3670
    %v4072 = vunpack.c.h.b16 %v3670
    %v4073 = vunpack.c.l.b16 %v3671
    %v4074 = vunpack.c.h.b16 %v3671
    %v4075 = vunpack.c.l.b16 %v3672
    %v4076 = vunpack.c.h.b16 %v3672
    %v4077 = vunpack.c.l.b16 %v3673
    %v4078 = vunpack.c.h.b16 %v3673
    %v4079 = vunpack.c.l.b16 %v3674
    %v4080 = vunpack.c.h.b16 %v3674
    %v4081 = vunpack.c.l.b16 %v3675
    %v4082 = vunpack.c.h.b16 %v3675
    %v4083 = vunpack.c.l.b16 %v3676
    %v4084 = vunpack.c.h.b16 %v3676
    %v4085 = vunpack.c.l.b16 %v3677
    %v4086 = vunpack.c.h.b16 %v3677
    %v4087 = vunpack.c.l.b16 %v3678
    %v4088 = vunpack.c.h.b16 %v3678
    %v4089 = vunpack.c.l.b16 %v3679
    %v4090 = vunpack.c.h.b16 %v3679
    %v4091 = vunpack.c.l.b16 %v3680
    %v4092 = vunpack.c.h.b16 %v3680
    %v4093 = vunpack.c.l.b16 %v3681
    %v4094 = vunpack.c.h.b16 %v3681
    %v4095 = vunpack.c.l.b16 %v3682
    %v4096 = vunpack.c.h.b16 %v3682
    %v4097 = vunpack.c.l.b16 %v3683
    %v4098 = vunpack.c.h.b16 %v3683
    %v4099 = vunpack.c.l.b16 %v3684
    %v4100 = vunpack.c.h.b16 %v3684
    %v4101 = vunpack.c.l.b16 %v3685
    %v4102 = vunpack.c.h.b16 %v3685
    %v4103 = vunpack.c.l.b16 %v3686
    %v4104 = vunpack.c.h.b16 %v3686
    %v4105 = vunpack.c.l.b16 %v3687
    %v4106 = vunpack.c.h.b16 %v3687
    %v4107 = vunpack.c.l.b16 %v3688
    %v4108 = vunpack.c.h.b16 %v3688
    %v4109 = vunpack.c.l.b16 %v3689
    %v4110 = vunpack.c.h.b16 %v3689
    %v4111 = vunpack.c.l.b16 %v3690
    %v4112 = vunpack.c.h.b16 %v3690
    %v4113 = vunpack.c.l.b16 %v3691
    %v4114 = vunpack.c.h.b16 %v3691
    %v4115 = vunpack.c.l.b16 %v3692
    %v4116 = vunpack.c.h.b16 %v3692
    %v4117 = vpack.c.b16 %v3869, %v3861
    %v4118 = vpack.c.b16 %v3870, %v3862
    %v4119 = vpack.c.b16 %v3871, %v3863
    %v4120 = vpack.c.b16 %v3872, %v3864
    %v4121 = vpack.c.b16 %v3873, %v3865
    %v4122 = vpack.c.b16 %v3874, %v3866
    %v4123 = vpack.c.b16 %v3875, %v3867
    %v4124 = vpack.c.b16 %v3876, %v3868
    %v4125 = vpack.c.b16 %v3885, %v3877
    %v4126 = vpack.c.b16 %v3886, %v3878
    %v4127 = vpack.c.b16 %v3887, %v3879
    %v4128 = vpack.c.b16 %v3888, %v3880
    %v4129 = vpack.c.b16 %v3889, %v3881
    %v4130 = vpack.c.b16 %v3890, %v3882
    %v4131 = vpack.c.b16 %v3891, %v3883
    %v4132 = vpack.c.b16 %v3892, %v3884
    %v4133 = vpack.c.b16 %v3901, %v3893
    %v4134 = vpack.c.b16 %v3902, %v3894
    %v4135 = vpack.c.b16 %v3903, %v3895
    %v4136 = vpack.c.b16 %v3904, %v3896
    %v4137 = vpack.c.b16 %v3905, %v3897
    %v4138 = vpack.c.b16 %v3906, %v3898
    %v4139 = vpack.c.b16 %v3907, %v3899
    %v4140 = vpack.c.b16 %v3908, %v3900
    %v4141 = vpack.c.b16 %v3917, %v3909
    %v4142 = vpack.c.b16 %v3918, %v3910
    %v4143 = vpack.c.b16 %v3919, %v3911
    %v4144 = vpack.c.b16 %v3920, %v3912
    %v4145 = vpack.c.b16 %v3921, %v3913
    %v4146 = vpack.c.b16 %v3922, %v3914
    %v4147 = vpack.c.b16 %v3923, %v3915
    %v4148 = vpack.c.b16 %v3924, %v3916
    %v4149 = vpack.c.b16 %v3933, %v3925
    %v4150 = vpack.c.b16 %v3934, %v3926
    %v4151 = vpack.c.b16 %v3935, %v3927
    %v4152 = vpack.c.b16 %v3936, %v3928
    %v4153 = vpack.c.b16 %v3937, %v3929
    %v4154 = vpack.c.b16 %v3938, %v3930
    %v4155 = vpack.c.b16 %v3939, %v3931
    %v4156 = vpack.c.b16 %v3940, %v3932
    %v4157 = vpack.c.b16 %v3949, %v3941
    %v4158 = vpack.c.b16 %v3950, %v3942
    %v4159 = vpack.c.b16 %v3951, %v3943
    %v4160 = vpack.c.b16 %v3952, %v3944
    %v4161 = vpack.c.b16 %v3953, %v3945
    %v4162 = vpack.c.b16 %v3954, %v3946
    %v4163 = vpack.c.b16 %v3955, %v3947
    %v4164 = vpack.c.b16 %v3956, %v3948
    %v4165 = vpack.c.b16 %v3965, %v3957
    %v4166 = vpack.c.b16 %v3966, %v3958
    %v4167 = vpack.c.b16 %v3967, %v3959
    %v4168 = vpack.c.b16 %v3968, %v3960
    %v4169 = vpack.c.b16 %v3969, %v3961
    %v4170 = vpack.c.b16 %v3970, %v3962
    %v4171 = vpack.c.b16 %v3971, %v3963
    %v4172 = vpack.c.b16 %v3972, %v3964
    %v4173 = vpack.c.b16 %v3981, %v3973
    %v4174 = vpack.c.b16 %v3982, %v3974
    %v4175 = vpack.c.b16 %v3983, %v3975
    %v4176 = vpack.c.b16 %v3984, %v3976
    %v4177 = vpack.c.b16 %v3985, %v3977
    %v4178 = vpack.c.b16 %v3986, %v3978
    %v4179 = vpack.c.b16 %v3987, %v3979
    %v4180 = vpack.c.b16 %v3988, %v3980
    %v4181 = vpack.c.b16 %v3997, %v3989
    %v4182 = vpack.c.b16 %v3998, %v3990
    %v4183 = vpack.c.b16 %v3999, %v3991
    %v4184 = vpack.c.b16 %v4000, %v3992
    %v4185 = vpack.c.b16 %v4001, %v3993
    %v4186 = vpack.c.b16 %v4002, %v3994
    %v4187 = vpack.c.b16 %v4003, %v3995
    %v4188 = vpack.c.b16 %v4004, %v3996
    %v4189 = vpack.c.b16 %v4013, %v4005
    %v4190 = vpack.c.b16 %v4014, %v4006
    %v4191 = vpack.c.b16 %v4015, %v4007
    %v4192 = vpack.c.b16 %v4016, %v4008
    %v4193 = vpack.c.b16 %v4017, %v4009
    %v4194 = vpack.c.b16 %v4018, %v4010
    %v4195 = vpack.c.b16 %v4019, %v4011
    %v4196 = vpack.c.b16 %v4020, %v4012
    %v4197 = vpack.c.b16 %v4029, %v4021
    %v4198 = vpack.c.b16 %v4030, %v4022
    %v4199 = vpack.c.b16 %v4031, %v4023
    %v4200 = vpack.c.b16 %v4032, %v4024
    %v4201 = vpack.c.b16 %v4033, %v4025
    %v4202 = vpack.c.b16 %v4034, %v4026
    %v4203 = vpack.c.b16 %v4035, %v4027
    %v4204 = vpack.c.b16 %v4036, %v4028
    %v4205 = vpack.c.b16 %v4045, %v4037
    %v4206 = vpack.c.b16 %v4046, %v4038
    %v4207 = vpack.c.b16 %v4047, %v4039
    %v4208 = vpack.c.b16 %v4048, %v4040
    %v4209 = vpack.c.b16 %v4049, %v4041
    %v4210 = vpack.c.b16 %v4050, %v4042
    %v4211 = vpack.c.b16 %v4051, %v4043
    %v4212 = vpack.c.b16 %v4052, %v4044
    %v4213 = vpack.c.b16 %v4061, %v4053
    %v4214 = vpack.c.b16 %v4062, %v4054
    %v4215 = vpack.c.b16 %v4063, %v4055
    %v4216 = vpack.c.b16 %v4064, %v4056
    %v4217 = vpack.c.b16 %v4065, %v4057
    %v4218 = vpack.c.b16 %v4066, %v4058
    %v4219 = vpack.c.b16 %v4067, %v4059
    %v4220 = vpack.c.b16 %v4068, %v4060
    %v4221 = vpack.c.b16 %v4077, %v4069
    %v4222 = vpack.c.b16 %v4078, %v4070
    %v4223 = vpack.c.b16 %v4079, %v4071
    %v4224 = vpack.c.b16 %v4080, %v4072
    %v4225 = vpack.c.b16 %v4081, %v4073
    %v4226 = vpack.c.b16 %v4082, %v4074
    %v4227 = vpack.c.b16 %v4083, %v4075
    %v4228 = vpack.c.b16 %v4084, %v4076
    %v4229 = vpack.c.b16 %v4093, %v4085
    %v4230 = vpack.c.b16 %v4094, %v4086
    %v4231 = vpack.c.b16 %v4095, %v4087
    %v4232 = vpack.c.b16 %v4096, %v4088
    %v4233 = vpack.c.b16 %v4097, %v4089
    %v4234 = vpack.c.b16 %v4098, %v4090
    %v4235 = vpack.c.b16 %v4099, %v4091
    %v4236 = vpack.c.b16 %v4100, %v4092
    %v4237 = vpack.c.b16 %v4109, %v4101
    %v4238 = vpack.c.b16 %v4110, %v4102
    %v4239 = vpack.c.b16 %v4111, %v4103
    %v4240 = vpack.c.b16 %v4112, %v4104
    %v4241 = vpack.c.b16 %v4113, %v4105
    %v4242 = vpack.c.b16 %v4114, %v4106
    %v4243 = vpack.c.b16 %v4115, %v4107
    %v4244 = vpack.c.b16 %v4116, %v4108
    %4373 = vmatpush.bf16.msra.mxu0 %v4173
    %4374 = vmatpush.bf16.msra.mxu0 %v4165
    %4375 = vmatpush.bf16.msra.mxu0 %v4157
    %4376 = vmatpush.bf16.msra.mxu0 %v4149
    %4377 = vmatpush.bf16.msra.mxu0 %v4141
    %4378 = vmatpush.bf16.msra.mxu0 %v4133
    %4379 = vmatpush.bf16.msra.mxu0 %v4125
    %4380 = vmatpush.bf16.msra.mxu0 %v4117
    %4381 = vmatmul.bf16.gmra.mxu0 %v3717
    %v4382 = vpop.f32.mrf.mxu0
    %v4383 = vadd.f32 0.0, %v4382
    %v4384 = vpop.f32.mrf.mxu0
    %v4385 = vadd.f32 0.0, %v4384
    %4386 = vmatmul.bf16.gmra.mxu0 %v3719
    %v4387 = vpop.f32.mrf.mxu0
    %v4388 = vadd.f32 0.0, %v4387
    %v4389 = vpop.f32.mrf.mxu0
    %v4390 = vadd.f32 0.0, %v4389
    %4391 = vmatmul.bf16.gmra.mxu0 %v3721
    %v4392 = vpop.f32.mrf.mxu0
    %v4393 = vadd.f32 0.0, %v4392
    %v4394 = vpop.f32.mrf.mxu0
    %v4395 = vadd.f32 0.0, %v4394
    %4396 = vmatmul.bf16.gmra.mxu0 %v3723
    %v4397 = vpop.f32.mrf.mxu0
    %v4398 = vadd.f32 0.0, %v4397
    %v4399 = vpop.f32.mrf.mxu0
    %v4400 = vadd.f32 0.0, %v4399
    %4401 = vdwg.mxu0
    %4402 = vmatpush.bf16.msra.mxu0 %v4237
    %4403 = vmatpush.bf16.msra.mxu0 %v4229
    %4404 = vmatpush.bf16.msra.mxu0 %v4221
    %4405 = vmatpush.bf16.msra.mxu0 %v4213
    %4406 = vmatpush.bf16.msra.mxu0 %v4205
    %4407 = vmatpush.bf16.msra.mxu0 %v4197
    %4408 = vmatpush.bf16.msra.mxu0 %v4189
    %4409 = vmatpush.bf16.msra.mxu0 %v4181
    %4410 = vmatmul.bf16.gmra.mxu0 %v3718
    %v4411 = vpop.f32.mrf.mxu0
    %v4412 = vadd.f32 %v4383, %v4411
    %v4413 = vpop.f32.mrf.mxu0
    %v4414 = vadd.f32 %v4385, %v4413
    %4415 = vmatmul.bf16.gmra.mxu0 %v3720
    %v4416 = vpop.f32.mrf.mxu0
    %v4417 = vadd.f32 %v4388, %v4416
    %v4418 = vpop.f32.mrf.mxu0
    %v4419 = vadd.f32 %v4390, %v4418
    %4420 = vmatmul.bf16.gmra.mxu0 %v3722
    %v4421 = vpop.f32.mrf.mxu0
    %v4422 = vadd.f32 %v4393, %v4421
    %v4423 = vpop.f32.mrf.mxu0
    %v4424 = vadd.f32 %v4395, %v4423
    %4425 = vmatmul.bf16.gmra.mxu0 %v3724
    %v4426 = vpop.f32.mrf.mxu0
    %v4427 = vadd.f32 %v4398, %v4426
    %v4428 = vpop.f32.mrf.mxu0
    %v4429 = vadd.f32 %v4400, %v4428
    %4430 = vdwg.mxu0
    %4431 = vmatpush.bf16.msra.mxu0 %v4174
    %4432 = vmatpush.bf16.msra.mxu0 %v4166
    %4433 = vmatpush.bf16.msra.mxu0 %v4158
    %4434 = vmatpush.bf16.msra.mxu0 %v4150
    %4435 = vmatpush.bf16.msra.mxu0 %v4142
    %4436 = vmatpush.bf16.msra.mxu0 %v4134
    %4437 = vmatpush.bf16.msra.mxu0 %v4126
    %4438 = vmatpush.bf16.msra.mxu0 %v4118
    %4439 = vmatmul.bf16.gmra.mxu0 %v3717
    %v4440 = vpop.f32.mrf.mxu0
    %v4441 = vadd.f32 0.0, %v4440
    %v4442 = vpop.f32.mrf.mxu0
    %v4443 = vadd.f32 0.0, %v4442
    %4444 = vmatmul.bf16.gmra.mxu0 %v3719
    %v4445 = vpop.f32.mrf.mxu0
    %v4446 = vadd.f32 0.0, %v4445
    %v4447 = vpop.f32.mrf.mxu0
    %v4448 = vadd.f32 0.0, %v4447
    %4449 = vmatmul.bf16.gmra.mxu0 %v3721
    %v4450 = vpop.f32.mrf.mxu0
    %v4451 = vadd.f32 0.0, %v4450
    %v4452 = vpop.f32.mrf.mxu0
    %v4453 = vadd.f32 0.0, %v4452
    %4454 = vmatmul.bf16.gmra.mxu0 %v3723
    %v4455 = vpop.f32.mrf.mxu0
    %v4456 = vadd.f32 0.0, %v4455
    %v4457 = vpop.f32.mrf.mxu0
    %v4458 = vadd.f32 0.0, %v4457
    %4459 = vdwg.mxu0
    %4460 = vmatpush.bf16.msra.mxu0 %v4238
    %4461 = vmatpush.bf16.msra.mxu0 %v4230
    %4462 = vmatpush.bf16.msra.mxu0 %v4222
    %4463 = vmatpush.bf16.msra.mxu0 %v4214
    %4464 = vmatpush.bf16.msra.mxu0 %v4206
    %4465 = vmatpush.bf16.msra.mxu0 %v4198
    %4466 = vmatpush.bf16.msra.mxu0 %v4190
    %4467 = vmatpush.bf16.msra.mxu0 %v4182
    %4468 = vmatmul.bf16.gmra.mxu0 %v3718
    %v4469 = vpop.f32.mrf.mxu0
    %v4470 = vadd.f32 %v4441, %v4469
    %v4471 = vpop.f32.mrf.mxu0
    %v4472 = vadd.f32 %v4443, %v4471
    %4473 = vmatmul.bf16.gmra.mxu0 %v3720
    %v4474 = vpop.f32.mrf.mxu0
    %v4475 = vadd.f32 %v4446, %v4474
    %v4476 = vpop.f32.mrf.mxu0
    %v4477 = vadd.f32 %v4448, %v4476
    %4478 = vmatmul.bf16.gmra.mxu0 %v3722
    %v4479 = vpop.f32.mrf.mxu0
    %v4480 = vadd.f32 %v4451, %v4479
    %v4481 = vpop.f32.mrf.mxu0
    %v4482 = vadd.f32 %v4453, %v4481
    %4483 = vmatmul.bf16.gmra.mxu0 %v3724
    %v4484 = vpop.f32.mrf.mxu0
    %v4485 = vadd.f32 %v4456, %v4484
    %v4486 = vpop.f32.mrf.mxu0
    %v4487 = vadd.f32 %v4458, %v4486
    %4488 = vdwg.mxu0
    %4489 = vmatpush.bf16.msra.mxu0 %v4175
    %4490 = vmatpush.bf16.msra.mxu0 %v4167
    %4491 = vmatpush.bf16.msra.mxu0 %v4159
    %4492 = vmatpush.bf16.msra.mxu0 %v4151
    %4493 = vmatpush.bf16.msra.mxu0 %v4143
    %4494 = vmatpush.bf16.msra.mxu0 %v4135
    %4495 = vmatpush.bf16.msra.mxu0 %v4127
    %4496 = vmatpush.bf16.msra.mxu0 %v4119
    %4497 = vmatmul.bf16.gmra.mxu0 %v3717
    %v4498 = vpop.f32.mrf.mxu0
    %v4499 = vadd.f32 0.0, %v4498
    %v4500 = vpop.f32.mrf.mxu0
    %v4501 = vadd.f32 0.0, %v4500
    %4502 = vmatmul.bf16.gmra.mxu0 %v3719
    %v4503 = vpop.f32.mrf.mxu0
    %v4504 = vadd.f32 0.0, %v4503
    %v4505 = vpop.f32.mrf.mxu0
    %v4506 = vadd.f32 0.0, %v4505
    %4507 = vmatmul.bf16.gmra.mxu0 %v3721
    %v4508 = vpop.f32.mrf.mxu0
    %v4509 = vadd.f32 0.0, %v4508
    %v4510 = vpop.f32.mrf.mxu0
    %v4511 = vadd.f32 0.0, %v4510
    %4512 = vmatmul.bf16.gmra.mxu0 %v3723
    %v4513 = vpop.f32.mrf.mxu0
    %v4514 = vadd.f32 0.0, %v4513
    %v4515 = vpop.f32.mrf.mxu0
    %v4516 = vadd.f32 0.0, %v4515
    %4517 = vdwg.mxu0
    %4518 = vmatpush.bf16.msra.mxu0 %v4239
    %4519 = vmatpush.bf16.msra.mxu0 %v4231
    %4520 = vmatpush.bf16.msra.mxu0 %v4223
    %4521 = vmatpush.bf16.msra.mxu0 %v4215
    %4522 = vmatpush.bf16.msra.mxu0 %v4207
    %4523 = vmatpush.bf16.msra.mxu0 %v4199
    %4524 = vmatpush.bf16.msra.mxu0 %v4191
    %4525 = vmatpush.bf16.msra.mxu0 %v4183
    %4526 = vmatmul.bf16.gmra.mxu0 %v3718
    %v4527 = vpop.f32.mrf.mxu0
    %v4528 = vadd.f32 %v4499, %v4527
    %v4529 = vpop.f32.mrf.mxu0
    %v4530 = vadd.f32 %v4501, %v4529
    %4531 = vmatmul.bf16.gmra.mxu0 %v3720
    %v4532 = vpop.f32.mrf.mxu0
    %v4533 = vadd.f32 %v4504, %v4532
    %v4534 = vpop.f32.mrf.mxu0
    %v4535 = vadd.f32 %v4506, %v4534
    %4536 = vmatmul.bf16.gmra.mxu0 %v3722
    %v4537 = vpop.f32.mrf.mxu0
    %v4538 = vadd.f32 %v4509, %v4537
    %v4539 = vpop.f32.mrf.mxu0
    %v4540 = vadd.f32 %v4511, %v4539
    %4541 = vmatmul.bf16.gmra.mxu0 %v3724
    %v4542 = vpop.f32.mrf.mxu0
    %v4543 = vadd.f32 %v4514, %v4542
    %v4544 = vpop.f32.mrf.mxu0
    %v4545 = vadd.f32 %v4516, %v4544
    %4546 = vdwg.mxu0
    %4547 = vmatpush.bf16.msra.mxu0 %v4176
    %4548 = vmatpush.bf16.msra.mxu0 %v4168
    %4549 = vmatpush.bf16.msra.mxu0 %v4160
    %4550 = vmatpush.bf16.msra.mxu0 %v4152
    %4551 = vmatpush.bf16.msra.mxu0 %v4144
    %4552 = vmatpush.bf16.msra.mxu0 %v4136
    %4553 = vmatpush.bf16.msra.mxu0 %v4128
    %4554 = vmatpush.bf16.msra.mxu0 %v4120
    %4555 = vmatmul.bf16.gmra.mxu0 %v3717
    %v4556 = vpop.f32.mrf.mxu0
    %v4557 = vadd.f32 0.0, %v4556
    %v4558 = vpop.f32.mrf.mxu0
    %v4559 = vadd.f32 0.0, %v4558
    %4560 = vmatmul.bf16.gmra.mxu0 %v3719
    %v4561 = vpop.f32.mrf.mxu0
    %v4562 = vadd.f32 0.0, %v4561
    %v4563 = vpop.f32.mrf.mxu0
    %v4564 = vadd.f32 0.0, %v4563
    %4565 = vmatmul.bf16.gmra.mxu0 %v3721
    %v4566 = vpop.f32.mrf.mxu0
    %v4567 = vadd.f32 0.0, %v4566
    %v4568 = vpop.f32.mrf.mxu0
    %v4569 = vadd.f32 0.0, %v4568
    %4570 = vmatmul.bf16.gmra.mxu0 %v3723
    %v4571 = vpop.f32.mrf.mxu0
    %v4572 = vadd.f32 0.0, %v4571
    %v4573 = vpop.f32.mrf.mxu0
    %v4574 = vadd.f32 0.0, %v4573
    %4575 = vdwg.mxu0
    %4576 = vmatpush.bf16.msra.mxu0 %v4240
    %4577 = vmatpush.bf16.msra.mxu0 %v4232
    %4578 = vmatpush.bf16.msra.mxu0 %v4224
    %4579 = vmatpush.bf16.msra.mxu0 %v4216
    %4580 = vmatpush.bf16.msra.mxu0 %v4208
    %4581 = vmatpush.bf16.msra.mxu0 %v4200
    %4582 = vmatpush.bf16.msra.mxu0 %v4192
    %4583 = vmatpush.bf16.msra.mxu0 %v4184
    %4584 = vmatmul.bf16.gmra.mxu0 %v3718
    %v4585 = vpop.f32.mrf.mxu0
    %v4586 = vadd.f32 %v4557, %v4585
    %v4587 = vpop.f32.mrf.mxu0
    %v4588 = vadd.f32 %v4559, %v4587
    %4589 = vmatmul.bf16.gmra.mxu0 %v3720
    %v4590 = vpop.f32.mrf.mxu0
    %v4591 = vadd.f32 %v4562, %v4590
    %v4592 = vpop.f32.mrf.mxu0
    %v4593 = vadd.f32 %v4564, %v4592
    %4594 = vmatmul.bf16.gmra.mxu0 %v3722
    %v4595 = vpop.f32.mrf.mxu0
    %v4596 = vadd.f32 %v4567, %v4595
    %v4597 = vpop.f32.mrf.mxu0
    %v4598 = vadd.f32 %v4569, %v4597
    %4599 = vmatmul.bf16.gmra.mxu0 %v3724
    %v4600 = vpop.f32.mrf.mxu0
    %v4601 = vadd.f32 %v4572, %v4600
    %v4602 = vpop.f32.mrf.mxu0
    %v4603 = vadd.f32 %v4574, %v4602
    %4604 = vdwg.mxu0
    %4605 = vmatpush.bf16.msra.mxu0 %v4177
    %4606 = vmatpush.bf16.msra.mxu0 %v4169
    %4607 = vmatpush.bf16.msra.mxu0 %v4161
    %4608 = vmatpush.bf16.msra.mxu0 %v4153
    %4609 = vmatpush.bf16.msra.mxu0 %v4145
    %4610 = vmatpush.bf16.msra.mxu0 %v4137
    %4611 = vmatpush.bf16.msra.mxu0 %v4129
    %4612 = vmatpush.bf16.msra.mxu0 %v4121
    %4613 = vmatmul.bf16.gmra.mxu0 %v3717
    %v4614 = vpop.f32.mrf.mxu0
    %v4615 = vadd.f32 0.0, %v4614
    %v4616 = vpop.f32.mrf.mxu0
    %v4617 = vadd.f32 0.0, %v4616
    %4618 = vmatmul.bf16.gmra.mxu0 %v3719
    %v4619 = vpop.f32.mrf.mxu0
    %v4620 = vadd.f32 0.0, %v4619
    %v4621 = vpop.f32.mrf.mxu0
    %v4622 = vadd.f32 0.0, %v4621
    %4623 = vmatmul.bf16.gmra.mxu0 %v3721
    %v4624 = vpop.f32.mrf.mxu0
    %v4625 = vadd.f32 0.0, %v4624
    %v4626 = vpop.f32.mrf.mxu0
    %v4627 = vadd.f32 0.0, %v4626
    %4628 = vmatmul.bf16.gmra.mxu0 %v3723
    %v4629 = vpop.f32.mrf.mxu0
    %v4630 = vadd.f32 0.0, %v4629
    %v4631 = vpop.f32.mrf.mxu0
    %v4632 = vadd.f32 0.0, %v4631
    %4633 = vdwg.mxu0
    %4634 = vmatpush.bf16.msra.mxu0 %v4241
    %4635 = vmatpush.bf16.msra.mxu0 %v4233
    %4636 = vmatpush.bf16.msra.mxu0 %v4225
    %4637 = vmatpush.bf16.msra.mxu0 %v4217
    %4638 = vmatpush.bf16.msra.mxu0 %v4209
    %4639 = vmatpush.bf16.msra.mxu0 %v4201
    %4640 = vmatpush.bf16.msra.mxu0 %v4193
    %4641 = vmatpush.bf16.msra.mxu0 %v4185
    %4642 = vmatmul.bf16.gmra.mxu0 %v3718
    %v4643 = vpop.f32.mrf.mxu0
    %v4644 = vadd.f32 %v4615, %v4643
    %v4645 = vpop.f32.mrf.mxu0
    %v4646 = vadd.f32 %v4617, %v4645
    %4647 = vmatmul.bf16.gmra.mxu0 %v3720
    %v4648 = vpop.f32.mrf.mxu0
    %v4649 = vadd.f32 %v4620, %v4648
    %v4650 = vpop.f32.mrf.mxu0
    %v4651 = vadd.f32 %v4622, %v4650
    %4652 = vmatmul.bf16.gmra.mxu0 %v3722
    %v4653 = vpop.f32.mrf.mxu0
    %v4654 = vadd.f32 %v4625, %v4653
    %v4655 = vpop.f32.mrf.mxu0
    %v4656 = vadd.f32 %v4627, %v4655
    %4657 = vmatmul.bf16.gmra.mxu0 %v3724
    %v4658 = vpop.f32.mrf.mxu0
    %v4659 = vadd.f32 %v4630, %v4658
    %v4660 = vpop.f32.mrf.mxu0
    %v4661 = vadd.f32 %v4632, %v4660
    %4662 = vdwg.mxu0
    %4663 = vmatpush.bf16.msra.mxu0 %v4178
    %4664 = vmatpush.bf16.msra.mxu0 %v4170
    %4665 = vmatpush.bf16.msra.mxu0 %v4162
    %4666 = vmatpush.bf16.msra.mxu0 %v4154
    %4667 = vmatpush.bf16.msra.mxu0 %v4146
    %4668 = vmatpush.bf16.msra.mxu0 %v4138
    %4669 = vmatpush.bf16.msra.mxu0 %v4130
    %4670 = vmatpush.bf16.msra.mxu0 %v4122
    %4671 = vmatmul.bf16.gmra.mxu0 %v3717
    %v4672 = vpop.f32.mrf.mxu0
    %v4673 = vadd.f32 0.0, %v4672
    %v4674 = vpop.f32.mrf.mxu0
    %v4675 = vadd.f32 0.0, %v4674
    %4676 = vmatmul.bf16.gmra.mxu0 %v3719
    %v4677 = vpop.f32.mrf.mxu0
    %v4678 = vadd.f32 0.0, %v4677
    %v4679 = vpop.f32.mrf.mxu0
    %v4680 = vadd.f32 0.0, %v4679
    %4681 = vmatmul.bf16.gmra.mxu0 %v3721
    %v4682 = vpop.f32.mrf.mxu0
    %v4683 = vadd.f32 0.0, %v4682
    %v4684 = vpop.f32.mrf.mxu0
    %v4685 = vadd.f32 0.0, %v4684
    %4686 = vmatmul.bf16.gmra.mxu0 %v3723
    %v4687 = vpop.f32.mrf.mxu0
    %v4688 = vadd.f32 0.0, %v4687
    %v4689 = vpop.f32.mrf.mxu0
    %v4690 = vadd.f32 0.0, %v4689
    %4691 = vdwg.mxu0
    %4692 = vmatpush.bf16.msra.mxu0 %v4242
    %4693 = vmatpush.bf16.msra.mxu0 %v4234
    %4694 = vmatpush.bf16.msra.mxu0 %v4226
    %4695 = vmatpush.bf16.msra.mxu0 %v4218
    %4696 = vmatpush.bf16.msra.mxu0 %v4210
    %4697 = vmatpush.bf16.msra.mxu0 %v4202
    %4698 = vmatpush.bf16.msra.mxu0 %v4194
    %4699 = vmatpush.bf16.msra.mxu0 %v4186
    %4700 = vmatmul.bf16.gmra.mxu0 %v3718
    %v4701 = vpop.f32.mrf.mxu0
    %v4702 = vadd.f32 %v4673, %v4701
    %v4703 = vpop.f32.mrf.mxu0
    %v4704 = vadd.f32 %v4675, %v4703
    %4705 = vmatmul.bf16.gmra.mxu0 %v3720
    %v4706 = vpop.f32.mrf.mxu0
    %v4707 = vadd.f32 %v4678, %v4706
    %v4708 = vpop.f32.mrf.mxu0
    %v4709 = vadd.f32 %v4680, %v4708
    %4710 = vmatmul.bf16.gmra.mxu0 %v3722
    %v4711 = vpop.f32.mrf.mxu0
    %v4712 = vadd.f32 %v4683, %v4711
    %v4713 = vpop.f32.mrf.mxu0
    %v4714 = vadd.f32 %v4685, %v4713
    %4715 = vmatmul.bf16.gmra.mxu0 %v3724
    %v4716 = vpop.f32.mrf.mxu0
    %v4717 = vadd.f32 %v4688, %v4716
    %v4718 = vpop.f32.mrf.mxu0
    %v4719 = vadd.f32 %v4690, %v4718
    %4720 = vdwg.mxu0
    %4721 = vmatpush.bf16.msra.mxu0 %v4179
    %4722 = vmatpush.bf16.msra.mxu0 %v4171
    %4723 = vmatpush.bf16.msra.mxu0 %v4163
    %4724 = vmatpush.bf16.msra.mxu0 %v4155
    %4725 = vmatpush.bf16.msra.mxu0 %v4147
    %4726 = vmatpush.bf16.msra.mxu0 %v4139
    %4727 = vmatpush.bf16.msra.mxu0 %v4131
    %4728 = vmatpush.bf16.msra.mxu0 %v4123
    %4729 = vmatmul.bf16.gmra.mxu0 %v3717
    %v4730 = vpop.f32.mrf.mxu0
    %v4731 = vadd.f32 0.0, %v4730
    %v4732 = vpop.f32.mrf.mxu0
    %v4733 = vadd.f32 0.0, %v4732
    %4734 = vmatmul.bf16.gmra.mxu0 %v3719
    %v4735 = vpop.f32.mrf.mxu0
    %v4736 = vadd.f32 0.0, %v4735
    %v4737 = vpop.f32.mrf.mxu0
    %v4738 = vadd.f32 0.0, %v4737
    %4739 = vmatmul.bf16.gmra.mxu0 %v3721
    %v4740 = vpop.f32.mrf.mxu0
    %v4741 = vadd.f32 0.0, %v4740
    %v4742 = vpop.f32.mrf.mxu0
    %v4743 = vadd.f32 0.0, %v4742
    %4744 = vmatmul.bf16.gmra.mxu0 %v3723
    %v4745 = vpop.f32.mrf.mxu0
    %v4746 = vadd.f32 0.0, %v4745
    %v4747 = vpop.f32.mrf.mxu0
    %v4748 = vadd.f32 0.0, %v4747
    %4749 = vdwg.mxu0
    %4750 = vmatpush.bf16.msra.mxu0 %v4243
    %4751 = vmatpush.bf16.msra.mxu0 %v4235
    %4752 = vmatpush.bf16.msra.mxu0 %v4227
    %4753 = vmatpush.bf16.msra.mxu0 %v4219
    %4754 = vmatpush.bf16.msra.mxu0 %v4211
    %4755 = vmatpush.bf16.msra.mxu0 %v4203
    %4756 = vmatpush.bf16.msra.mxu0 %v4195
    %4757 = vmatpush.bf16.msra.mxu0 %v4187
    %4758 = vmatmul.bf16.gmra.mxu0 %v3718
    %v4759 = vpop.f32.mrf.mxu0
    %v4760 = vadd.f32 %v4731, %v4759
    %v4761 = vpop.f32.mrf.mxu0
    %v4762 = vadd.f32 %v4733, %v4761
    %4763 = vmatmul.bf16.gmra.mxu0 %v3720
    %v4764 = vpop.f32.mrf.mxu0
    %v4765 = vadd.f32 %v4736, %v4764
    %v4766 = vpop.f32.mrf.mxu0
    %v4767 = vadd.f32 %v4738, %v4766
    %4768 = vmatmul.bf16.gmra.mxu0 %v3722
    %v4769 = vpop.f32.mrf.mxu0
    %v4770 = vadd.f32 %v4741, %v4769
    %v4771 = vpop.f32.mrf.mxu0
    %v4772 = vadd.f32 %v4743, %v4771
    %4773 = vmatmul.bf16.gmra.mxu0 %v3724
    %v4774 = vpop.f32.mrf.mxu0
    %v4775 = vadd.f32 %v4746, %v4774
    %v4776 = vpop.f32.mrf.mxu0
    %v4777 = vadd.f32 %v4748, %v4776
    %4778 = vdwg.mxu0
    %4779 = vmatpush.bf16.msra.mxu0 %v4180
    %4780 = vmatpush.bf16.msra.mxu0 %v4172
    %4781 = vmatpush.bf16.msra.mxu0 %v4164
    %4782 = vmatpush.bf16.msra.mxu0 %v4156
    %4783 = vmatpush.bf16.msra.mxu0 %v4148
    %4784 = vmatpush.bf16.msra.mxu0 %v4140
    %4785 = vmatpush.bf16.msra.mxu0 %v4132
    %4786 = vmatpush.bf16.msra.mxu0 %v4124
    %4787 = vmatmul.bf16.gmra.mxu0 %v3717
    %v4788 = vpop.f32.mrf.mxu0
    %v4789 = vadd.f32 0.0, %v4788
    %v4790 = vpop.f32.mrf.mxu0
    %v4791 = vadd.f32 0.0, %v4790
    %4792 = vmatmul.bf16.gmra.mxu0 %v3719
    %v4793 = vpop.f32.mrf.mxu0
    %v4794 = vadd.f32 0.0, %v4793
    %v4795 = vpop.f32.mrf.mxu0
    %v4796 = vadd.f32 0.0, %v4795
    %4797 = vmatmul.bf16.gmra.mxu0 %v3721
    %v4798 = vpop.f32.mrf.mxu0
    %v4799 = vadd.f32 0.0, %v4798
    %v4800 = vpop.f32.mrf.mxu0
    %v4801 = vadd.f32 0.0, %v4800
    %4802 = vmatmul.bf16.gmra.mxu0 %v3723
    %v4803 = vpop.f32.mrf.mxu0
    %v4804 = vadd.f32 0.0, %v4803
    %v4805 = vpop.f32.mrf.mxu0
    %v4806 = vadd.f32 0.0, %v4805
    %4807 = vdwg.mxu0
    %4808 = vmatpush.bf16.msra.mxu0 %v4244
    %4809 = vmatpush.bf16.msra.mxu0 %v4236
    %4810 = vmatpush.bf16.msra.mxu0 %v4228
    %4811 = vmatpush.bf16.msra.mxu0 %v4220
    %4812 = vmatpush.bf16.msra.mxu0 %v4212
    %4813 = vmatpush.bf16.msra.mxu0 %v4204
    %4814 = vmatpush.bf16.msra.mxu0 %v4196
    %4815 = vmatpush.bf16.msra.mxu0 %v4188
    %4816 = vmatmul.bf16.gmra.mxu0 %v3718
    %v4817 = vpop.f32.mrf.mxu0
    %v4818 = vadd.f32 %v4789, %v4817
    %v4819 = vpop.f32.mrf.mxu0
    %v4820 = vadd.f32 %v4791, %v4819
    %4821 = vmatmul.bf16.gmra.mxu0 %v3720
    %v4822 = vpop.f32.mrf.mxu0
    %v4823 = vadd.f32 %v4794, %v4822
    %v4824 = vpop.f32.mrf.mxu0
    %v4825 = vadd.f32 %v4796, %v4824
    %4826 = vmatmul.bf16.gmra.mxu0 %v3722
    %v4827 = vpop.f32.mrf.mxu0
    %v4828 = vadd.f32 %v4799, %v4827
    %v4829 = vpop.f32.mrf.mxu0
    %v4830 = vadd.f32 %v4801, %v4829
    %4831 = vmatmul.bf16.gmra.mxu0 %v3724
    %v4832 = vpop.f32.mrf.mxu0
    %v4833 = vadd.f32 %v4804, %v4832
    %v4834 = vpop.f32.mrf.mxu0
    %v4835 = vadd.f32 %v4806, %v4834
    %4836 = vdwg.mxu0
    %v4837 = vadd.f32 %v3125, %v4412
    %v4838 = vadd.f32 %v3183, %v4470
    %v4839 = vadd.f32 %v3241, %v4528
    %v4840 = vadd.f32 %v3299, %v4586
    %v4841 = vadd.f32 %v3357, %v4644
    %v4842 = vadd.f32 %v3415, %v4702
    %v4843 = vadd.f32 %v3473, %v4760
    %v4844 = vadd.f32 %v3531, %v4818
    %v4845 = vadd.f32 %v3127, %v4414
    %v4846 = vadd.f32 %v3185, %v4472
    %v4847 = vadd.f32 %v3243, %v4530
    %v4848 = vadd.f32 %v3301, %v4588
    %v4849 = vadd.f32 %v3359, %v4646
    %v4850 = vadd.f32 %v3417, %v4704
    %v4851 = vadd.f32 %v3475, %v4762
    %v4852 = vadd.f32 %v3533, %v4820
    %v4853 = vadd.f32 %v3130, %v4417
    %v4854 = vadd.f32 %v3188, %v4475
    %v4855 = vadd.f32 %v3246, %v4533
    %v4856 = vadd.f32 %v3304, %v4591
    %v4857 = vadd.f32 %v3362, %v4649
    %v4858 = vadd.f32 %v3420, %v4707
    %v4859 = vadd.f32 %v3478, %v4765
    %v4860 = vadd.f32 %v3536, %v4823
    %v4861 = vadd.f32 %v3132, %v4419
    %v4862 = vadd.f32 %v3190, %v4477
    %v4863 = vadd.f32 %v3248, %v4535
    %v4864 = vadd.f32 %v3306, %v4593
    %v4865 = vadd.f32 %v3364, %v4651
    %v4866 = vadd.f32 %v3422, %v4709
    %v4867 = vadd.f32 %v3480, %v4767
    %v4868 = vadd.f32 %v3538, %v4825
    %v4869 = vadd.f32 %v3135, %v4422
    %v4870 = vadd.f32 %v3193, %v4480
    %v4871 = vadd.f32 %v3251, %v4538
    %v4872 = vadd.f32 %v3309, %v4596
    %v4873 = vadd.f32 %v3367, %v4654
    %v4874 = vadd.f32 %v3425, %v4712
    %v4875 = vadd.f32 %v3483, %v4770
    %v4876 = vadd.f32 %v3541, %v4828
    %v4877 = vadd.f32 %v3137, %v4424
    %v4878 = vadd.f32 %v3195, %v4482
    %v4879 = vadd.f32 %v3253, %v4540
    %v4880 = vadd.f32 %v3311, %v4598
    %v4881 = vadd.f32 %v3369, %v4656
    %v4882 = vadd.f32 %v3427, %v4714
    %v4883 = vadd.f32 %v3485, %v4772
    %v4884 = vadd.f32 %v3543, %v4830
    %v4885 = vadd.f32 %v3140, %v4427
    %v4886 = vadd.f32 %v3198, %v4485
    %v4887 = vadd.f32 %v3256, %v4543
    %v4888 = vadd.f32 %v3314, %v4601
    %v4889 = vadd.f32 %v3372, %v4659
    %v4890 = vadd.f32 %v3430, %v4717
    %v4891 = vadd.f32 %v3488, %v4775
    %v4892 = vadd.f32 %v3546, %v4833
    %v4893 = vadd.f32 %v3142, %v4429
    %v4894 = vadd.f32 %v3200, %v4487
    %v4895 = vadd.f32 %v3258, %v4545
    %v4896 = vadd.f32 %v3316, %v4603
    %v4897 = vadd.f32 %v3374, %v4661
    %v4898 = vadd.f32 %v3432, %v4719
    %v4899 = vadd.f32 %v3490, %v4777
    %v4900 = vadd.f32 %v3548, %v4835
    %s4901 = scalar_lea.hbm %s6, 1024
    // Predicated region
    $region94: #{gcn_res_forward.1} parent=1 // pred_check
      _
    $region95: #{gcn_res_forward.1} parent=1 // pred_check_branch
      %4903 = sbr.rel target = $region97
    $region96: #{gcn_res_forward.1} parent=1 // pred_region
      %4904 = sst [smem:[#allocation19]] [#allocation30]
      %4905 = sst [smem:[#allocation20]] [#allocation29]
    $region97: #{gcn_res_forward.1} parent=1 // pred_fallthru
      _
    %4907 = shalt.err (0)
    %s4909 = sshll.u32 %s4901, 4
    %s4910 = int_to_ptr.hbm [resolvable:$true] %s4909
    %s4911 = sshll.u32 %s971, 4
    %s4912 = int_to_ptr.vmem [resolvable:$true] %s4911
    %4914 = dma.hbm_to_vmem [thread:$0]  %s4910, 16384, %s4912, %s972
    %s4915 = sshll.u32 %s987, 4
    %4916 = dma.done [#allocation3], %s4915
    %v4917 = vld [vmem:[#allocation2] sm:$0xff]
    %v4918 = vld [vmem:[#allocation2 + $0x8] sm:$0xff]
    %v4919 = vld [vmem:[#allocation2 + $0x10] sm:$0xff]
    %v4920 = vld [vmem:[#allocation2 + $0x18] sm:$0xff]
    %v4921 = vld [vmem:[#allocation2 + $0x20] sm:$0xff]
    %v4922 = vld [vmem:[#allocation2 + $0x28] sm:$0xff]
    %v4923 = vld [vmem:[#allocation2 + $0x30] sm:$0xff]
    %v4924 = vld [vmem:[#allocation2 + $0x38] sm:$0xff]
    %v4925 = vld [vmem:[#allocation2 + $0x40] sm:$0xff]
    %v4926 = vld [vmem:[#allocation2 + $0x48] sm:$0xff]
    %v4927 = vld [vmem:[#allocation2 + $0x50] sm:$0xff]
    %v4928 = vld [vmem:[#allocation2 + $0x58] sm:$0xff]
    %v4929 = vld [vmem:[#allocation2 + $0x60] sm:$0xff]
    %v4930 = vld [vmem:[#allocation2 + $0x68] sm:$0xff]
    %v4931 = vld [vmem:[#allocation2 + $0x70] sm:$0xff]
    %v4932 = vld [vmem:[#allocation2 + $0x78] sm:$0xff]
    %v4933 = vld [vmem:[#allocation2 + $0x80] sm:$0xff]
    %v4934 = vld [vmem:[#allocation2 + $0x88] sm:$0xff]
    %v4935 = vld [vmem:[#allocation2 + $0x90] sm:$0xff]
    %v4936 = vld [vmem:[#allocation2 + $0x98] sm:$0xff]
    %v4937 = vld [vmem:[#allocation2 + $0xa0] sm:$0xff]
    %v4938 = vld [vmem:[#allocation2 + $0xa8] sm:$0xff]
    %v4939 = vld [vmem:[#allocation2 + $0xb0] sm:$0xff]
    %v4940 = vld [vmem:[#allocation2 + $0xb8] sm:$0xff]
    %v4941 = vld [vmem:[#allocation2 + $0xc0] sm:$0xff]
    %v4942 = vld [vmem:[#allocation2 + $0xc8] sm:$0xff]
    %v4943 = vld [vmem:[#allocation2 + $0xd0] sm:$0xff]
    %v4944 = vld [vmem:[#allocation2 + $0xd8] sm:$0xff]
    %v4945 = vld [vmem:[#allocation2 + $0xe0] sm:$0xff]
    %v4946 = vld [vmem:[#allocation2 + $0xe8] sm:$0xff]
    %v4947 = vld [vmem:[#allocation2 + $0xf0] sm:$0xff]
    %v4948 = vld [vmem:[#allocation2 + $0xf8] sm:$0xff]
    %v4949 = vld [vmem:[#allocation2 + $0x100] sm:$0xff]
    %v4950 = vld [vmem:[#allocation2 + $0x108] sm:$0xff]
    %v4951 = vld [vmem:[#allocation2 + $0x110] sm:$0xff]
    %v4952 = vld [vmem:[#allocation2 + $0x118] sm:$0xff]
    %v4953 = vld [vmem:[#allocation2 + $0x120] sm:$0xff]
    %v4954 = vld [vmem:[#allocation2 + $0x128] sm:$0xff]
    %v4955 = vld [vmem:[#allocation2 + $0x130] sm:$0xff]
    %v4956 = vld [vmem:[#allocation2 + $0x138] sm:$0xff]
    %v4957 = vld [vmem:[#allocation2 + $0x140] sm:$0xff]
    %v4958 = vld [vmem:[#allocation2 + $0x148] sm:$0xff]
    %v4959 = vld [vmem:[#allocation2 + $0x150] sm:$0xff]
    %v4960 = vld [vmem:[#allocation2 + $0x158] sm:$0xff]
    %v4961 = vld [vmem:[#allocation2 + $0x160] sm:$0xff]
    %v4962 = vld [vmem:[#allocation2 + $0x168] sm:$0xff]
    %v4963 = vld [vmem:[#allocation2 + $0x170] sm:$0xff]
    %v4964 = vld [vmem:[#allocation2 + $0x178] sm:$0xff]
    %v4965 = vld [vmem:[#allocation2 + $0x180] sm:$0xff]
    %v4966 = vld [vmem:[#allocation2 + $0x188] sm:$0xff]
    %v4967 = vld [vmem:[#allocation2 + $0x190] sm:$0xff]
    %v4968 = vld [vmem:[#allocation2 + $0x198] sm:$0xff]
    %v4969 = vld [vmem:[#allocation2 + $0x1a0] sm:$0xff]
    %v4970 = vld [vmem:[#allocation2 + $0x1a8] sm:$0xff]
    %v4971 = vld [vmem:[#allocation2 + $0x1b0] sm:$0xff]
    %v4972 = vld [vmem:[#allocation2 + $0x1b8] sm:$0xff]
    %v4973 = vld [vmem:[#allocation2 + $0x1c0] sm:$0xff]
    %v4974 = vld [vmem:[#allocation2 + $0x1c8] sm:$0xff]
    %v4975 = vld [vmem:[#allocation2 + $0x1d0] sm:$0xff]
    %v4976 = vld [vmem:[#allocation2 + $0x1d8] sm:$0xff]
    %v4977 = vld [vmem:[#allocation2 + $0x1e0] sm:$0xff]
    %v4978 = vld [vmem:[#allocation2 + $0x1e8] sm:$0xff]
    %v4979 = vld [vmem:[#allocation2 + $0x1f0] sm:$0xff]
    %v4980 = vld [vmem:[#allocation2 + $0x1f8] sm:$0xff]
    %v4981 = vld [vmem:[#allocation2 + $0x200] sm:$0xff]
    %v4982 = vld [vmem:[#allocation2 + $0x208] sm:$0xff]
    %v4983 = vld [vmem:[#allocation2 + $0x210] sm:$0xff]
    %v4984 = vld [vmem:[#allocation2 + $0x218] sm:$0xff]
    %v4985 = vld [vmem:[#allocation2 + $0x220] sm:$0xff]
    %v4986 = vld [vmem:[#allocation2 + $0x228] sm:$0xff]
    %v4987 = vld [vmem:[#allocation2 + $0x230] sm:$0xff]
    %v4988 = vld [vmem:[#allocation2 + $0x238] sm:$0xff]
    %v4989 = vld [vmem:[#allocation2 + $0x240] sm:$0xff]
    %v4990 = vld [vmem:[#allocation2 + $0x248] sm:$0xff]
    %v4991 = vld [vmem:[#allocation2 + $0x250] sm:$0xff]
    %v4992 = vld [vmem:[#allocation2 + $0x258] sm:$0xff]
    %v4993 = vld [vmem:[#allocation2 + $0x260] sm:$0xff]
    %v4994 = vld [vmem:[#allocation2 + $0x268] sm:$0xff]
    %v4995 = vld [vmem:[#allocation2 + $0x270] sm:$0xff]
    %v4996 = vld [vmem:[#allocation2 + $0x278] sm:$0xff]
    %v4997 = vld [vmem:[#allocation2 + $0x280] sm:$0xff]
    %v4998 = vld [vmem:[#allocation2 + $0x288] sm:$0xff]
    %v4999 = vld [vmem:[#allocation2 + $0x290] sm:$0xff]
    %v5000 = vld [vmem:[#allocation2 + $0x298] sm:$0xff]
    %v5001 = vld [vmem:[#allocation2 + $0x2a0] sm:$0xff]
    %v5002 = vld [vmem:[#allocation2 + $0x2a8] sm:$0xff]
    %v5003 = vld [vmem:[#allocation2 + $0x2b0] sm:$0xff]
    %v5004 = vld [vmem:[#allocation2 + $0x2b8] sm:$0xff]
    %v5005 = vld [vmem:[#allocation2 + $0x2c0] sm:$0xff]
    %v5006 = vld [vmem:[#allocation2 + $0x2c8] sm:$0xff]
    %v5007 = vld [vmem:[#allocation2 + $0x2d0] sm:$0xff]
    %v5008 = vld [vmem:[#allocation2 + $0x2d8] sm:$0xff]
    %v5009 = vld [vmem:[#allocation2 + $0x2e0] sm:$0xff]
    %v5010 = vld [vmem:[#allocation2 + $0x2e8] sm:$0xff]
    %v5011 = vld [vmem:[#allocation2 + $0x2f0] sm:$0xff]
    %v5012 = vld [vmem:[#allocation2 + $0x2f8] sm:$0xff]
    %v5013 = vld [vmem:[#allocation2 + $0x300] sm:$0xff]
    %v5014 = vld [vmem:[#allocation2 + $0x308] sm:$0xff]
    %v5015 = vld [vmem:[#allocation2 + $0x310] sm:$0xff]
    %v5016 = vld [vmem:[#allocation2 + $0x318] sm:$0xff]
    %v5017 = vld [vmem:[#allocation2 + $0x320] sm:$0xff]
    %v5018 = vld [vmem:[#allocation2 + $0x328] sm:$0xff]
    %v5019 = vld [vmem:[#allocation2 + $0x330] sm:$0xff]
    %v5020 = vld [vmem:[#allocation2 + $0x338] sm:$0xff]
    %v5021 = vld [vmem:[#allocation2 + $0x340] sm:$0xff]
    %v5022 = vld [vmem:[#allocation2 + $0x348] sm:$0xff]
    %v5023 = vld [vmem:[#allocation2 + $0x350] sm:$0xff]
    %v5024 = vld [vmem:[#allocation2 + $0x358] sm:$0xff]
    %v5025 = vld [vmem:[#allocation2 + $0x360] sm:$0xff]
    %v5026 = vld [vmem:[#allocation2 + $0x368] sm:$0xff]
    %v5027 = vld [vmem:[#allocation2 + $0x370] sm:$0xff]
    %v5028 = vld [vmem:[#allocation2 + $0x378] sm:$0xff]
    %v5029 = vld [vmem:[#allocation2 + $0x380] sm:$0xff]
    %v5030 = vld [vmem:[#allocation2 + $0x388] sm:$0xff]
    %v5031 = vld [vmem:[#allocation2 + $0x390] sm:$0xff]
    %v5032 = vld [vmem:[#allocation2 + $0x398] sm:$0xff]
    %v5033 = vld [vmem:[#allocation2 + $0x3a0] sm:$0xff]
    %v5034 = vld [vmem:[#allocation2 + $0x3a8] sm:$0xff]
    %v5035 = vld [vmem:[#allocation2 + $0x3b0] sm:$0xff]
    %v5036 = vld [vmem:[#allocation2 + $0x3b8] sm:$0xff]
    %v5037 = vld [vmem:[#allocation2 + $0x3c0] sm:$0xff]
    %v5038 = vld [vmem:[#allocation2 + $0x3c8] sm:$0xff]
    %v5039 = vld [vmem:[#allocation2 + $0x3d0] sm:$0xff]
    %v5040 = vld [vmem:[#allocation2 + $0x3d8] sm:$0xff]
    %v5041 = vld [vmem:[#allocation2 + $0x3e0] sm:$0xff]
    %v5042 = vld [vmem:[#allocation2 + $0x3e8] sm:$0xff]
    %v5043 = vld [vmem:[#allocation2 + $0x3f0] sm:$0xff]
    %v5044 = vld [vmem:[#allocation2 + $0x3f8] sm:$0xff]
    %v5053 = vunpack.c.l.b16 %v941
    %v5054 = vunpack.c.h.b16 %v941
    %v5055 = vunpack.c.l.b16 %v945
    %v5056 = vunpack.c.h.b16 %v945
    %v5057 = vunpack.c.l.b16 %v949
    %v5058 = vunpack.c.h.b16 %v949
    %v5059 = vunpack.c.l.b16 %v953
    %v5060 = vunpack.c.h.b16 %v953
    %v5061 = vunpack.c.l.b16 %v957
    %v5062 = vunpack.c.h.b16 %v957
    %v5063 = vunpack.c.l.b16 %v961
    %v5064 = vunpack.c.h.b16 %v961
    %v5065 = vunpack.c.l.b16 %v965
    %v5066 = vunpack.c.h.b16 %v965
    %v5067 = vunpack.c.l.b16 %v969
    %v5068 = vunpack.c.h.b16 %v969
    %v5069 = vpack.c.b16 %v5055, %v5053
    %v5070 = vpack.c.b16 %v5056, %v5054
    %v5071 = vpack.c.b16 %v5059, %v5057
    %v5072 = vpack.c.b16 %v5060, %v5058
    %v5073 = vpack.c.b16 %v5063, %v5061
    %v5074 = vpack.c.b16 %v5064, %v5062
    %v5075 = vpack.c.b16 %v5067, %v5065
    %v5076 = vpack.c.b16 %v5068, %v5066
    %v5213 = vunpack.c.l.b16 %v4917
    %v5214 = vunpack.c.h.b16 %v4917
    %v5215 = vunpack.c.l.b16 %v4918
    %v5216 = vunpack.c.h.b16 %v4918
    %v5217 = vunpack.c.l.b16 %v4919
    %v5218 = vunpack.c.h.b16 %v4919
    %v5219 = vunpack.c.l.b16 %v4920
    %v5220 = vunpack.c.h.b16 %v4920
    %v5221 = vunpack.c.l.b16 %v4921
    %v5222 = vunpack.c.h.b16 %v4921
    %v5223 = vunpack.c.l.b16 %v4922
    %v5224 = vunpack.c.h.b16 %v4922
    %v5225 = vunpack.c.l.b16 %v4923
    %v5226 = vunpack.c.h.b16 %v4923
    %v5227 = vunpack.c.l.b16 %v4924
    %v5228 = vunpack.c.h.b16 %v4924
    %v5229 = vunpack.c.l.b16 %v4925
    %v5230 = vunpack.c.h.b16 %v4925
    %v5231 = vunpack.c.l.b16 %v4926
    %v5232 = vunpack.c.h.b16 %v4926
    %v5233 = vunpack.c.l.b16 %v4927
    %v5234 = vunpack.c.h.b16 %v4927
    %v5235 = vunpack.c.l.b16 %v4928
    %v5236 = vunpack.c.h.b16 %v4928
    %v5237 = vunpack.c.l.b16 %v4929
    %v5238 = vunpack.c.h.b16 %v4929
    %v5239 = vunpack.c.l.b16 %v4930
    %v5240 = vunpack.c.h.b16 %v4930
    %v5241 = vunpack.c.l.b16 %v4931
    %v5242 = vunpack.c.h.b16 %v4931
    %v5243 = vunpack.c.l.b16 %v4932
    %v5244 = vunpack.c.h.b16 %v4932
    %v5245 = vunpack.c.l.b16 %v4933
    %v5246 = vunpack.c.h.b16 %v4933
    %v5247 = vunpack.c.l.b16 %v4934
    %v5248 = vunpack.c.h.b16 %v4934
    %v5249 = vunpack.c.l.b16 %v4935
    %v5250 = vunpack.c.h.b16 %v4935
    %v5251 = vunpack.c.l.b16 %v4936
    %v5252 = vunpack.c.h.b16 %v4936
    %v5253 = vunpack.c.l.b16 %v4937
    %v5254 = vunpack.c.h.b16 %v4937
    %v5255 = vunpack.c.l.b16 %v4938
    %v5256 = vunpack.c.h.b16 %v4938
    %v5257 = vunpack.c.l.b16 %v4939
    %v5258 = vunpack.c.h.b16 %v4939
    %v5259 = vunpack.c.l.b16 %v4940
    %v5260 = vunpack.c.h.b16 %v4940
    %v5261 = vunpack.c.l.b16 %v4941
    %v5262 = vunpack.c.h.b16 %v4941
    %v5263 = vunpack.c.l.b16 %v4942
    %v5264 = vunpack.c.h.b16 %v4942
    %v5265 = vunpack.c.l.b16 %v4943
    %v5266 = vunpack.c.h.b16 %v4943
    %v5267 = vunpack.c.l.b16 %v4944
    %v5268 = vunpack.c.h.b16 %v4944
    %v5269 = vunpack.c.l.b16 %v4945
    %v5270 = vunpack.c.h.b16 %v4945
    %v5271 = vunpack.c.l.b16 %v4946
    %v5272 = vunpack.c.h.b16 %v4946
    %v5273 = vunpack.c.l.b16 %v4947
    %v5274 = vunpack.c.h.b16 %v4947
    %v5275 = vunpack.c.l.b16 %v4948
    %v5276 = vunpack.c.h.b16 %v4948
    %v5277 = vunpack.c.l.b16 %v4949
    %v5278 = vunpack.c.h.b16 %v4949
    %v5279 = vunpack.c.l.b16 %v4950
    %v5280 = vunpack.c.h.b16 %v4950
    %v5281 = vunpack.c.l.b16 %v4951
    %v5282 = vunpack.c.h.b16 %v4951
    %v5283 = vunpack.c.l.b16 %v4952
    %v5284 = vunpack.c.h.b16 %v4952
    %v5285 = vunpack.c.l.b16 %v4953
    %v5286 = vunpack.c.h.b16 %v4953
    %v5287 = vunpack.c.l.b16 %v4954
    %v5288 = vunpack.c.h.b16 %v4954
    %v5289 = vunpack.c.l.b16 %v4955
    %v5290 = vunpack.c.h.b16 %v4955
    %v5291 = vunpack.c.l.b16 %v4956
    %v5292 = vunpack.c.h.b16 %v4956
    %v5293 = vunpack.c.l.b16 %v4957
    %v5294 = vunpack.c.h.b16 %v4957
    %v5295 = vunpack.c.l.b16 %v4958
    %v5296 = vunpack.c.h.b16 %v4958
    %v5297 = vunpack.c.l.b16 %v4959
    %v5298 = vunpack.c.h.b16 %v4959
    %v5299 = vunpack.c.l.b16 %v4960
    %v5300 = vunpack.c.h.b16 %v4960
    %v5301 = vunpack.c.l.b16 %v4961
    %v5302 = vunpack.c.h.b16 %v4961
    %v5303 = vunpack.c.l.b16 %v4962
    %v5304 = vunpack.c.h.b16 %v4962
    %v5305 = vunpack.c.l.b16 %v4963
    %v5306 = vunpack.c.h.b16 %v4963
    %v5307 = vunpack.c.l.b16 %v4964
    %v5308 = vunpack.c.h.b16 %v4964
    %v5309 = vunpack.c.l.b16 %v4965
    %v5310 = vunpack.c.h.b16 %v4965
    %v5311 = vunpack.c.l.b16 %v4966
    %v5312 = vunpack.c.h.b16 %v4966
    %v5313 = vunpack.c.l.b16 %v4967
    %v5314 = vunpack.c.h.b16 %v4967
    %v5315 = vunpack.c.l.b16 %v4968
    %v5316 = vunpack.c.h.b16 %v4968
    %v5317 = vunpack.c.l.b16 %v4969
    %v5318 = vunpack.c.h.b16 %v4969
    %v5319 = vunpack.c.l.b16 %v4970
    %v5320 = vunpack.c.h.b16 %v4970
    %v5321 = vunpack.c.l.b16 %v4971
    %v5322 = vunpack.c.h.b16 %v4971
    %v5323 = vunpack.c.l.b16 %v4972
    %v5324 = vunpack.c.h.b16 %v4972
    %v5325 = vunpack.c.l.b16 %v4973
    %v5326 = vunpack.c.h.b16 %v4973
    %v5327 = vunpack.c.l.b16 %v4974
    %v5328 = vunpack.c.h.b16 %v4974
    %v5329 = vunpack.c.l.b16 %v4975
    %v5330 = vunpack.c.h.b16 %v4975
    %v5331 = vunpack.c.l.b16 %v4976
    %v5332 = vunpack.c.h.b16 %v4976
    %v5333 = vunpack.c.l.b16 %v4977
    %v5334 = vunpack.c.h.b16 %v4977
    %v5335 = vunpack.c.l.b16 %v4978
    %v5336 = vunpack.c.h.b16 %v4978
    %v5337 = vunpack.c.l.b16 %v4979
    %v5338 = vunpack.c.h.b16 %v4979
    %v5339 = vunpack.c.l.b16 %v4980
    %v5340 = vunpack.c.h.b16 %v4980
    %v5341 = vunpack.c.l.b16 %v4981
    %v5342 = vunpack.c.h.b16 %v4981
    %v5343 = vunpack.c.l.b16 %v4982
    %v5344 = vunpack.c.h.b16 %v4982
    %v5345 = vunpack.c.l.b16 %v4983
    %v5346 = vunpack.c.h.b16 %v4983
    %v5347 = vunpack.c.l.b16 %v4984
    %v5348 = vunpack.c.h.b16 %v4984
    %v5349 = vunpack.c.l.b16 %v4985
    %v5350 = vunpack.c.h.b16 %v4985
    %v5351 = vunpack.c.l.b16 %v4986
    %v5352 = vunpack.c.h.b16 %v4986
    %v5353 = vunpack.c.l.b16 %v4987
    %v5354 = vunpack.c.h.b16 %v4987
    %v5355 = vunpack.c.l.b16 %v4988
    %v5356 = vunpack.c.h.b16 %v4988
    %v5357 = vunpack.c.l.b16 %v4989
    %v5358 = vunpack.c.h.b16 %v4989
    %v5359 = vunpack.c.l.b16 %v4990
    %v5360 = vunpack.c.h.b16 %v4990
    %v5361 = vunpack.c.l.b16 %v4991
    %v5362 = vunpack.c.h.b16 %v4991
    %v5363 = vunpack.c.l.b16 %v4992
    %v5364 = vunpack.c.h.b16 %v4992
    %v5365 = vunpack.c.l.b16 %v4993
    %v5366 = vunpack.c.h.b16 %v4993
    %v5367 = vunpack.c.l.b16 %v4994
    %v5368 = vunpack.c.h.b16 %v4994
    %v5369 = vunpack.c.l.b16 %v4995
    %v5370 = vunpack.c.h.b16 %v4995
    %v5371 = vunpack.c.l.b16 %v4996
    %v5372 = vunpack.c.h.b16 %v4996
    %v5373 = vunpack.c.l.b16 %v4997
    %v5374 = vunpack.c.h.b16 %v4997
    %v5375 = vunpack.c.l.b16 %v4998
    %v5376 = vunpack.c.h.b16 %v4998
    %v5377 = vunpack.c.l.b16 %v4999
    %v5378 = vunpack.c.h.b16 %v4999
    %v5379 = vunpack.c.l.b16 %v5000
    %v5380 = vunpack.c.h.b16 %v5000
    %v5381 = vunpack.c.l.b16 %v5001
    %v5382 = vunpack.c.h.b16 %v5001
    %v5383 = vunpack.c.l.b16 %v5002
    %v5384 = vunpack.c.h.b16 %v5002
    %v5385 = vunpack.c.l.b16 %v5003
    %v5386 = vunpack.c.h.b16 %v5003
    %v5387 = vunpack.c.l.b16 %v5004
    %v5388 = vunpack.c.h.b16 %v5004
    %v5389 = vunpack.c.l.b16 %v5005
    %v5390 = vunpack.c.h.b16 %v5005
    %v5391 = vunpack.c.l.b16 %v5006
    %v5392 = vunpack.c.h.b16 %v5006
    %v5393 = vunpack.c.l.b16 %v5007
    %v5394 = vunpack.c.h.b16 %v5007
    %v5395 = vunpack.c.l.b16 %v5008
    %v5396 = vunpack.c.h.b16 %v5008
    %v5397 = vunpack.c.l.b16 %v5009
    %v5398 = vunpack.c.h.b16 %v5009
    %v5399 = vunpack.c.l.b16 %v5010
    %v5400 = vunpack.c.h.b16 %v5010
    %v5401 = vunpack.c.l.b16 %v5011
    %v5402 = vunpack.c.h.b16 %v5011
    %v5403 = vunpack.c.l.b16 %v5012
    %v5404 = vunpack.c.h.b16 %v5012
    %v5405 = vunpack.c.l.b16 %v5013
    %v5406 = vunpack.c.h.b16 %v5013
    %v5407 = vunpack.c.l.b16 %v5014
    %v5408 = vunpack.c.h.b16 %v5014
    %v5409 = vunpack.c.l.b16 %v5015
    %v5410 = vunpack.c.h.b16 %v5015
    %v5411 = vunpack.c.l.b16 %v5016
    %v5412 = vunpack.c.h.b16 %v5016
    %v5413 = vunpack.c.l.b16 %v5017
    %v5414 = vunpack.c.h.b16 %v5017
    %v5415 = vunpack.c.l.b16 %v5018
    %v5416 = vunpack.c.h.b16 %v5018
    %v5417 = vunpack.c.l.b16 %v5019
    %v5418 = vunpack.c.h.b16 %v5019
    %v5419 = vunpack.c.l.b16 %v5020
    %v5420 = vunpack.c.h.b16 %v5020
    %v5421 = vunpack.c.l.b16 %v5021
    %v5422 = vunpack.c.h.b16 %v5021
    %v5423 = vunpack.c.l.b16 %v5022
    %v5424 = vunpack.c.h.b16 %v5022
    %v5425 = vunpack.c.l.b16 %v5023
    %v5426 = vunpack.c.h.b16 %v5023
    %v5427 = vunpack.c.l.b16 %v5024
    %v5428 = vunpack.c.h.b16 %v5024
    %v5429 = vunpack.c.l.b16 %v5025
    %v5430 = vunpack.c.h.b16 %v5025
    %v5431 = vunpack.c.l.b16 %v5026
    %v5432 = vunpack.c.h.b16 %v5026
    %v5433 = vunpack.c.l.b16 %v5027
    %v5434 = vunpack.c.h.b16 %v5027
    %v5435 = vunpack.c.l.b16 %v5028
    %v5436 = vunpack.c.h.b16 %v5028
    %v5437 = vunpack.c.l.b16 %v5029
    %v5438 = vunpack.c.h.b16 %v5029
    %v5439 = vunpack.c.l.b16 %v5030
    %v5440 = vunpack.c.h.b16 %v5030
    %v5441 = vunpack.c.l.b16 %v5031
    %v5442 = vunpack.c.h.b16 %v5031
    %v5443 = vunpack.c.l.b16 %v5032
    %v5444 = vunpack.c.h.b16 %v5032
    %v5445 = vunpack.c.l.b16 %v5033
    %v5446 = vunpack.c.h.b16 %v5033
    %v5447 = vunpack.c.l.b16 %v5034
    %v5448 = vunpack.c.h.b16 %v5034
    %v5449 = vunpack.c.l.b16 %v5035
    %v5450 = vunpack.c.h.b16 %v5035
    %v5451 = vunpack.c.l.b16 %v5036
    %v5452 = vunpack.c.h.b16 %v5036
    %v5453 = vunpack.c.l.b16 %v5037
    %v5454 = vunpack.c.h.b16 %v5037
    %v5455 = vunpack.c.l.b16 %v5038
    %v5456 = vunpack.c.h.b16 %v5038
    %v5457 = vunpack.c.l.b16 %v5039
    %v5458 = vunpack.c.h.b16 %v5039
    %v5459 = vunpack.c.l.b16 %v5040
    %v5460 = vunpack.c.h.b16 %v5040
    %v5461 = vunpack.c.l.b16 %v5041
    %v5462 = vunpack.c.h.b16 %v5041
    %v5463 = vunpack.c.l.b16 %v5042
    %v5464 = vunpack.c.h.b16 %v5042
    %v5465 = vunpack.c.l.b16 %v5043
    %v5466 = vunpack.c.h.b16 %v5043
    %v5467 = vunpack.c.l.b16 %v5044
    %v5468 = vunpack.c.h.b16 %v5044
    %v5469 = vpack.c.b16 %v5221, %v5213
    %v5470 = vpack.c.b16 %v5222, %v5214
    %v5471 = vpack.c.b16 %v5223, %v5215
    %v5472 = vpack.c.b16 %v5224, %v5216
    %v5473 = vpack.c.b16 %v5225, %v5217
    %v5474 = vpack.c.b16 %v5226, %v5218
    %v5475 = vpack.c.b16 %v5227, %v5219
    %v5476 = vpack.c.b16 %v5228, %v5220
    %v5477 = vpack.c.b16 %v5237, %v5229
    %v5478 = vpack.c.b16 %v5238, %v5230
    %v5479 = vpack.c.b16 %v5239, %v5231
    %v5480 = vpack.c.b16 %v5240, %v5232
    %v5481 = vpack.c.b16 %v5241, %v5233
    %v5482 = vpack.c.b16 %v5242, %v5234
    %v5483 = vpack.c.b16 %v5243, %v5235
    %v5484 = vpack.c.b16 %v5244, %v5236
    %v5485 = vpack.c.b16 %v5253, %v5245
    %v5486 = vpack.c.b16 %v5254, %v5246
    %v5487 = vpack.c.b16 %v5255, %v5247
    %v5488 = vpack.c.b16 %v5256, %v5248
    %v5489 = vpack.c.b16 %v5257, %v5249
    %v5490 = vpack.c.b16 %v5258, %v5250
    %v5491 = vpack.c.b16 %v5259, %v5251
    %v5492 = vpack.c.b16 %v5260, %v5252
    %v5493 = vpack.c.b16 %v5269, %v5261
    %v5494 = vpack.c.b16 %v5270, %v5262
    %v5495 = vpack.c.b16 %v5271, %v5263
    %v5496 = vpack.c.b16 %v5272, %v5264
    %v5497 = vpack.c.b16 %v5273, %v5265
    %v5498 = vpack.c.b16 %v5274, %v5266
    %v5499 = vpack.c.b16 %v5275, %v5267
    %v5500 = vpack.c.b16 %v5276, %v5268
    %v5501 = vpack.c.b16 %v5285, %v5277
    %v5502 = vpack.c.b16 %v5286, %v5278
    %v5503 = vpack.c.b16 %v5287, %v5279
    %v5504 = vpack.c.b16 %v5288, %v5280
    %v5505 = vpack.c.b16 %v5289, %v5281
    %v5506 = vpack.c.b16 %v5290, %v5282
    %v5507 = vpack.c.b16 %v5291, %v5283
    %v5508 = vpack.c.b16 %v5292, %v5284
    %v5509 = vpack.c.b16 %v5301, %v5293
    %v5510 = vpack.c.b16 %v5302, %v5294
    %v5511 = vpack.c.b16 %v5303, %v5295
    %v5512 = vpack.c.b16 %v5304, %v5296
    %v5513 = vpack.c.b16 %v5305, %v5297
    %v5514 = vpack.c.b16 %v5306, %v5298
    %v5515 = vpack.c.b16 %v5307, %v5299
    %v5516 = vpack.c.b16 %v5308, %v5300
    %v5517 = vpack.c.b16 %v5317, %v5309
    %v5518 = vpack.c.b16 %v5318, %v5310
    %v5519 = vpack.c.b16 %v5319, %v5311
    %v5520 = vpack.c.b16 %v5320, %v5312
    %v5521 = vpack.c.b16 %v5321, %v5313
    %v5522 = vpack.c.b16 %v5322, %v5314
    %v5523 = vpack.c.b16 %v5323, %v5315
    %v5524 = vpack.c.b16 %v5324, %v5316
    %v5525 = vpack.c.b16 %v5333, %v5325
    %v5526 = vpack.c.b16 %v5334, %v5326
    %v5527 = vpack.c.b16 %v5335, %v5327
    %v5528 = vpack.c.b16 %v5336, %v5328
    %v5529 = vpack.c.b16 %v5337, %v5329
    %v5530 = vpack.c.b16 %v5338, %v5330
    %v5531 = vpack.c.b16 %v5339, %v5331
    %v5532 = vpack.c.b16 %v5340, %v5332
    %v5533 = vpack.c.b16 %v5349, %v5341
    %v5534 = vpack.c.b16 %v5350, %v5342
    %v5535 = vpack.c.b16 %v5351, %v5343
    %v5536 = vpack.c.b16 %v5352, %v5344
    %v5537 = vpack.c.b16 %v5353, %v5345
    %v5538 = vpack.c.b16 %v5354, %v5346
    %v5539 = vpack.c.b16 %v5355, %v5347
    %v5540 = vpack.c.b16 %v5356, %v5348
    %v5541 = vpack.c.b16 %v5365, %v5357
    %v5542 = vpack.c.b16 %v5366, %v5358
    %v5543 = vpack.c.b16 %v5367, %v5359
    %v5544 = vpack.c.b16 %v5368, %v5360
    %v5545 = vpack.c.b16 %v5369, %v5361
    %v5546 = vpack.c.b16 %v5370, %v5362
    %v5547 = vpack.c.b16 %v5371, %v5363
    %v5548 = vpack.c.b16 %v5372, %v5364
    %v5549 = vpack.c.b16 %v5381, %v5373
    %v5550 = vpack.c.b16 %v5382, %v5374
    %v5551 = vpack.c.b16 %v5383, %v5375
    %v5552 = vpack.c.b16 %v5384, %v5376
    %v5553 = vpack.c.b16 %v5385, %v5377
    %v5554 = vpack.c.b16 %v5386, %v5378
    %v5555 = vpack.c.b16 %v5387, %v5379
    %v5556 = vpack.c.b16 %v5388, %v5380
    %v5557 = vpack.c.b16 %v5397, %v5389
    %v5558 = vpack.c.b16 %v5398, %v5390
    %v5559 = vpack.c.b16 %v5399, %v5391
    %v5560 = vpack.c.b16 %v5400, %v5392
    %v5561 = vpack.c.b16 %v5401, %v5393
    %v5562 = vpack.c.b16 %v5402, %v5394
    %v5563 = vpack.c.b16 %v5403, %v5395
    %v5564 = vpack.c.b16 %v5404, %v5396
    %v5565 = vpack.c.b16 %v5413, %v5405
    %v5566 = vpack.c.b16 %v5414, %v5406
    %v5567 = vpack.c.b16 %v5415, %v5407
    %v5568 = vpack.c.b16 %v5416, %v5408
    %v5569 = vpack.c.b16 %v5417, %v5409
    %v5570 = vpack.c.b16 %v5418, %v5410
    %v5571 = vpack.c.b16 %v5419, %v5411
    %v5572 = vpack.c.b16 %v5420, %v5412
    %v5573 = vpack.c.b16 %v5429, %v5421
    %v5574 = vpack.c.b16 %v5430, %v5422
    %v5575 = vpack.c.b16 %v5431, %v5423
    %v5576 = vpack.c.b16 %v5432, %v5424
    %v5577 = vpack.c.b16 %v5433, %v5425
    %v5578 = vpack.c.b16 %v5434, %v5426
    %v5579 = vpack.c.b16 %v5435, %v5427
    %v5580 = vpack.c.b16 %v5436, %v5428
    %v5581 = vpack.c.b16 %v5445, %v5437
    %v5582 = vpack.c.b16 %v5446, %v5438
    %v5583 = vpack.c.b16 %v5447, %v5439
    %v5584 = vpack.c.b16 %v5448, %v5440
    %v5585 = vpack.c.b16 %v5449, %v5441
    %v5586 = vpack.c.b16 %v5450, %v5442
    %v5587 = vpack.c.b16 %v5451, %v5443
    %v5588 = vpack.c.b16 %v5452, %v5444
    %v5589 = vpack.c.b16 %v5461, %v5453
    %v5590 = vpack.c.b16 %v5462, %v5454
    %v5591 = vpack.c.b16 %v5463, %v5455
    %v5592 = vpack.c.b16 %v5464, %v5456
    %v5593 = vpack.c.b16 %v5465, %v5457
    %v5594 = vpack.c.b16 %v5466, %v5458
    %v5595 = vpack.c.b16 %v5467, %v5459
    %v5596 = vpack.c.b16 %v5468, %v5460
    %5725 = vmatpush.bf16.msra.mxu0 %v5525
    %5726 = vmatpush.bf16.msra.mxu0 %v5517
    %5727 = vmatpush.bf16.msra.mxu0 %v5509
    %5728 = vmatpush.bf16.msra.mxu0 %v5501
    %5729 = vmatpush.bf16.msra.mxu0 %v5493
    %5730 = vmatpush.bf16.msra.mxu0 %v5485
    %5731 = vmatpush.bf16.msra.mxu0 %v5477
    %5732 = vmatpush.bf16.msra.mxu0 %v5469
    %5733 = vmatmul.bf16.gmra.mxu0 %v5069
    %v5734 = vpop.f32.mrf.mxu0
    %v5735 = vadd.f32 0.0, %v5734
    %v5736 = vpop.f32.mrf.mxu0
    %v5737 = vadd.f32 0.0, %v5736
    %5738 = vmatmul.bf16.gmra.mxu0 %v5071
    %v5739 = vpop.f32.mrf.mxu0
    %v5740 = vadd.f32 0.0, %v5739
    %v5741 = vpop.f32.mrf.mxu0
    %v5742 = vadd.f32 0.0, %v5741
    %5743 = vmatmul.bf16.gmra.mxu0 %v5073
    %v5744 = vpop.f32.mrf.mxu0
    %v5745 = vadd.f32 0.0, %v5744
    %v5746 = vpop.f32.mrf.mxu0
    %v5747 = vadd.f32 0.0, %v5746
    %5748 = vmatmul.bf16.gmra.mxu0 %v5075
    %v5749 = vpop.f32.mrf.mxu0
    %v5750 = vadd.f32 0.0, %v5749
    %v5751 = vpop.f32.mrf.mxu0
    %v5752 = vadd.f32 0.0, %v5751
    %5753 = vdwg.mxu0
    %5754 = vmatpush.bf16.msra.mxu0 %v5589
    %5755 = vmatpush.bf16.msra.mxu0 %v5581
    %5756 = vmatpush.bf16.msra.mxu0 %v5573
    %5757 = vmatpush.bf16.msra.mxu0 %v5565
    %5758 = vmatpush.bf16.msra.mxu0 %v5557
    %5759 = vmatpush.bf16.msra.mxu0 %v5549
    %5760 = vmatpush.bf16.msra.mxu0 %v5541
    %5761 = vmatpush.bf16.msra.mxu0 %v5533
    %5762 = vmatmul.bf16.gmra.mxu0 %v5070
    %v5763 = vpop.f32.mrf.mxu0
    %v5764 = vadd.f32 %v5735, %v5763
    %v5765 = vpop.f32.mrf.mxu0
    %v5766 = vadd.f32 %v5737, %v5765
    %5767 = vmatmul.bf16.gmra.mxu0 %v5072
    %v5768 = vpop.f32.mrf.mxu0
    %v5769 = vadd.f32 %v5740, %v5768
    %v5770 = vpop.f32.mrf.mxu0
    %v5771 = vadd.f32 %v5742, %v5770
    %5772 = vmatmul.bf16.gmra.mxu0 %v5074
    %v5773 = vpop.f32.mrf.mxu0
    %v5774 = vadd.f32 %v5745, %v5773
    %v5775 = vpop.f32.mrf.mxu0
    %v5776 = vadd.f32 %v5747, %v5775
    %5777 = vmatmul.bf16.gmra.mxu0 %v5076
    %v5778 = vpop.f32.mrf.mxu0
    %v5779 = vadd.f32 %v5750, %v5778
    %v5780 = vpop.f32.mrf.mxu0
    %v5781 = vadd.f32 %v5752, %v5780
    %5782 = vdwg.mxu0
    %5783 = vmatpush.bf16.msra.mxu0 %v5526
    %5784 = vmatpush.bf16.msra.mxu0 %v5518
    %5785 = vmatpush.bf16.msra.mxu0 %v5510
    %5786 = vmatpush.bf16.msra.mxu0 %v5502
    %5787 = vmatpush.bf16.msra.mxu0 %v5494
    %5788 = vmatpush.bf16.msra.mxu0 %v5486
    %5789 = vmatpush.bf16.msra.mxu0 %v5478
    %5790 = vmatpush.bf16.msra.mxu0 %v5470
    %5791 = vmatmul.bf16.gmra.mxu0 %v5069
    %v5792 = vpop.f32.mrf.mxu0
    %v5793 = vadd.f32 0.0, %v5792
    %v5794 = vpop.f32.mrf.mxu0
    %v5795 = vadd.f32 0.0, %v5794
    %5796 = vmatmul.bf16.gmra.mxu0 %v5071
    %v5797 = vpop.f32.mrf.mxu0
    %v5798 = vadd.f32 0.0, %v5797
    %v5799 = vpop.f32.mrf.mxu0
    %v5800 = vadd.f32 0.0, %v5799
    %5801 = vmatmul.bf16.gmra.mxu0 %v5073
    %v5802 = vpop.f32.mrf.mxu0
    %v5803 = vadd.f32 0.0, %v5802
    %v5804 = vpop.f32.mrf.mxu0
    %v5805 = vadd.f32 0.0, %v5804
    %5806 = vmatmul.bf16.gmra.mxu0 %v5075
    %v5807 = vpop.f32.mrf.mxu0
    %v5808 = vadd.f32 0.0, %v5807
    %v5809 = vpop.f32.mrf.mxu0
    %v5810 = vadd.f32 0.0, %v5809
    %5811 = vdwg.mxu0
    %5812 = vmatpush.bf16.msra.mxu0 %v5590
    %5813 = vmatpush.bf16.msra.mxu0 %v5582
    %5814 = vmatpush.bf16.msra.mxu0 %v5574
    %5815 = vmatpush.bf16.msra.mxu0 %v5566
    %5816 = vmatpush.bf16.msra.mxu0 %v5558
    %5817 = vmatpush.bf16.msra.mxu0 %v5550
    %5818 = vmatpush.bf16.msra.mxu0 %v5542
    %5819 = vmatpush.bf16.msra.mxu0 %v5534
    %5820 = vmatmul.bf16.gmra.mxu0 %v5070
    %v5821 = vpop.f32.mrf.mxu0
    %v5822 = vadd.f32 %v5793, %v5821
    %v5823 = vpop.f32.mrf.mxu0
    %v5824 = vadd.f32 %v5795, %v5823
    %5825 = vmatmul.bf16.gmra.mxu0 %v5072
    %v5826 = vpop.f32.mrf.mxu0
    %v5827 = vadd.f32 %v5798, %v5826
    %v5828 = vpop.f32.mrf.mxu0
    %v5829 = vadd.f32 %v5800, %v5828
    %5830 = vmatmul.bf16.gmra.mxu0 %v5074
    %v5831 = vpop.f32.mrf.mxu0
    %v5832 = vadd.f32 %v5803, %v5831
    %v5833 = vpop.f32.mrf.mxu0
    %v5834 = vadd.f32 %v5805, %v5833
    %5835 = vmatmul.bf16.gmra.mxu0 %v5076
    %v5836 = vpop.f32.mrf.mxu0
    %v5837 = vadd.f32 %v5808, %v5836
    %v5838 = vpop.f32.mrf.mxu0
    %v5839 = vadd.f32 %v5810, %v5838
    %5840 = vdwg.mxu0
    %5841 = vmatpush.bf16.msra.mxu0 %v5527
    %5842 = vmatpush.bf16.msra.mxu0 %v5519
    %5843 = vmatpush.bf16.msra.mxu0 %v5511
    %5844 = vmatpush.bf16.msra.mxu0 %v5503
    %5845 = vmatpush.bf16.msra.mxu0 %v5495
    %5846 = vmatpush.bf16.msra.mxu0 %v5487
    %5847 = vmatpush.bf16.msra.mxu0 %v5479
    %5848 = vmatpush.bf16.msra.mxu0 %v5471
    %5849 = vmatmul.bf16.gmra.mxu0 %v5069
    %v5850 = vpop.f32.mrf.mxu0
    %v5851 = vadd.f32 0.0, %v5850
    %v5852 = vpop.f32.mrf.mxu0
    %v5853 = vadd.f32 0.0, %v5852
    %5854 = vmatmul.bf16.gmra.mxu0 %v5071
    %v5855 = vpop.f32.mrf.mxu0
    %v5856 = vadd.f32 0.0, %v5855
    %v5857 = vpop.f32.mrf.mxu0
    %v5858 = vadd.f32 0.0, %v5857
    %5859 = vmatmul.bf16.gmra.mxu0 %v5073
    %v5860 = vpop.f32.mrf.mxu0
    %v5861 = vadd.f32 0.0, %v5860
    %v5862 = vpop.f32.mrf.mxu0
    %v5863 = vadd.f32 0.0, %v5862
    %5864 = vmatmul.bf16.gmra.mxu0 %v5075
    %v5865 = vpop.f32.mrf.mxu0
    %v5866 = vadd.f32 0.0, %v5865
    %v5867 = vpop.f32.mrf.mxu0
    %v5868 = vadd.f32 0.0, %v5867
    %5869 = vdwg.mxu0
    %5870 = vmatpush.bf16.msra.mxu0 %v5591
    %5871 = vmatpush.bf16.msra.mxu0 %v5583
    %5872 = vmatpush.bf16.msra.mxu0 %v5575
    %5873 = vmatpush.bf16.msra.mxu0 %v5567
    %5874 = vmatpush.bf16.msra.mxu0 %v5559
    %5875 = vmatpush.bf16.msra.mxu0 %v5551
    %5876 = vmatpush.bf16.msra.mxu0 %v5543
    %5877 = vmatpush.bf16.msra.mxu0 %v5535
    %5878 = vmatmul.bf16.gmra.mxu0 %v5070
    %v5879 = vpop.f32.mrf.mxu0
    %v5880 = vadd.f32 %v5851, %v5879
    %v5881 = vpop.f32.mrf.mxu0
    %v5882 = vadd.f32 %v5853, %v5881
    %5883 = vmatmul.bf16.gmra.mxu0 %v5072
    %v5884 = vpop.f32.mrf.mxu0
    %v5885 = vadd.f32 %v5856, %v5884
    %v5886 = vpop.f32.mrf.mxu0
    %v5887 = vadd.f32 %v5858, %v5886
    %5888 = vmatmul.bf16.gmra.mxu0 %v5074
    %v5889 = vpop.f32.mrf.mxu0
    %v5890 = vadd.f32 %v5861, %v5889
    %v5891 = vpop.f32.mrf.mxu0
    %v5892 = vadd.f32 %v5863, %v5891
    %5893 = vmatmul.bf16.gmra.mxu0 %v5076
    %v5894 = vpop.f32.mrf.mxu0
    %v5895 = vadd.f32 %v5866, %v5894
    %v5896 = vpop.f32.mrf.mxu0
    %v5897 = vadd.f32 %v5868, %v5896
    %5898 = vdwg.mxu0
    %5899 = vmatpush.bf16.msra.mxu0 %v5528
    %5900 = vmatpush.bf16.msra.mxu0 %v5520
    %5901 = vmatpush.bf16.msra.mxu0 %v5512
    %5902 = vmatpush.bf16.msra.mxu0 %v5504
    %5903 = vmatpush.bf16.msra.mxu0 %v5496
    %5904 = vmatpush.bf16.msra.mxu0 %v5488
    %5905 = vmatpush.bf16.msra.mxu0 %v5480
    %5906 = vmatpush.bf16.msra.mxu0 %v5472
    %5907 = vmatmul.bf16.gmra.mxu0 %v5069
    %v5908 = vpop.f32.mrf.mxu0
    %v5909 = vadd.f32 0.0, %v5908
    %v5910 = vpop.f32.mrf.mxu0
    %v5911 = vadd.f32 0.0, %v5910
    %5912 = vmatmul.bf16.gmra.mxu0 %v5071
    %v5913 = vpop.f32.mrf.mxu0
    %v5914 = vadd.f32 0.0, %v5913
    %v5915 = vpop.f32.mrf.mxu0
    %v5916 = vadd.f32 0.0, %v5915
    %5917 = vmatmul.bf16.gmra.mxu0 %v5073
    %v5918 = vpop.f32.mrf.mxu0
    %v5919 = vadd.f32 0.0, %v5918
    %v5920 = vpop.f32.mrf.mxu0
    %v5921 = vadd.f32 0.0, %v5920
    %5922 = vmatmul.bf16.gmra.mxu0 %v5075
    %v5923 = vpop.f32.mrf.mxu0
    %v5924 = vadd.f32 0.0, %v5923
    %v5925 = vpop.f32.mrf.mxu0
    %v5926 = vadd.f32 0.0, %v5925
    %5927 = vdwg.mxu0
    %5928 = vmatpush.bf16.msra.mxu0 %v5592
    %5929 = vmatpush.bf16.msra.mxu0 %v5584
    %5930 = vmatpush.bf16.msra.mxu0 %v5576
    %5931 = vmatpush.bf16.msra.mxu0 %v5568
    %5932 = vmatpush.bf16.msra.mxu0 %v5560
    %5933 = vmatpush.bf16.msra.mxu0 %v5552
    %5934 = vmatpush.bf16.msra.mxu0 %v5544
    %5935 = vmatpush.bf16.msra.mxu0 %v5536
    %5936 = vmatmul.bf16.gmra.mxu0 %v5070
    %v5937 = vpop.f32.mrf.mxu0
    %v5938 = vadd.f32 %v5909, %v5937
    %v5939 = vpop.f32.mrf.mxu0
    %v5940 = vadd.f32 %v5911, %v5939
    %5941 = vmatmul.bf16.gmra.mxu0 %v5072
    %v5942 = vpop.f32.mrf.mxu0
    %v5943 = vadd.f32 %v5914, %v5942
    %v5944 = vpop.f32.mrf.mxu0
    %v5945 = vadd.f32 %v5916, %v5944
    %5946 = vmatmul.bf16.gmra.mxu0 %v5074
    %v5947 = vpop.f32.mrf.mxu0
    %v5948 = vadd.f32 %v5919, %v5947
    %v5949 = vpop.f32.mrf.mxu0
    %v5950 = vadd.f32 %v5921, %v5949
    %5951 = vmatmul.bf16.gmra.mxu0 %v5076
    %v5952 = vpop.f32.mrf.mxu0
    %v5953 = vadd.f32 %v5924, %v5952
    %v5954 = vpop.f32.mrf.mxu0
    %v5955 = vadd.f32 %v5926, %v5954
    %5956 = vdwg.mxu0
    %5957 = vmatpush.bf16.msra.mxu0 %v5529
    %5958 = vmatpush.bf16.msra.mxu0 %v5521
    %5959 = vmatpush.bf16.msra.mxu0 %v5513
    %5960 = vmatpush.bf16.msra.mxu0 %v5505
    %5961 = vmatpush.bf16.msra.mxu0 %v5497
    %5962 = vmatpush.bf16.msra.mxu0 %v5489
    %5963 = vmatpush.bf16.msra.mxu0 %v5481
    %5964 = vmatpush.bf16.msra.mxu0 %v5473
    %5965 = vmatmul.bf16.gmra.mxu0 %v5069
    %v5966 = vpop.f32.mrf.mxu0
    %v5967 = vadd.f32 0.0, %v5966
    %v5968 = vpop.f32.mrf.mxu0
    %v5969 = vadd.f32 0.0, %v5968
    %5970 = vmatmul.bf16.gmra.mxu0 %v5071
    %v5971 = vpop.f32.mrf.mxu0
    %v5972 = vadd.f32 0.0, %v5971
    %v5973 = vpop.f32.mrf.mxu0
    %v5974 = vadd.f32 0.0, %v5973
    %5975 = vmatmul.bf16.gmra.mxu0 %v5073
    %v5976 = vpop.f32.mrf.mxu0
    %v5977 = vadd.f32 0.0, %v5976
    %v5978 = vpop.f32.mrf.mxu0
    %v5979 = vadd.f32 0.0, %v5978
    %5980 = vmatmul.bf16.gmra.mxu0 %v5075
    %v5981 = vpop.f32.mrf.mxu0
    %v5982 = vadd.f32 0.0, %v5981
    %v5983 = vpop.f32.mrf.mxu0
    %v5984 = vadd.f32 0.0, %v5983
    %5985 = vdwg.mxu0
    %5986 = vmatpush.bf16.msra.mxu0 %v5593
    %5987 = vmatpush.bf16.msra.mxu0 %v5585
    %5988 = vmatpush.bf16.msra.mxu0 %v5577
    %5989 = vmatpush.bf16.msra.mxu0 %v5569
    %5990 = vmatpush.bf16.msra.mxu0 %v5561
    %5991 = vmatpush.bf16.msra.mxu0 %v5553
    %5992 = vmatpush.bf16.msra.mxu0 %v5545
    %5993 = vmatpush.bf16.msra.mxu0 %v5537
    %5994 = vmatmul.bf16.gmra.mxu0 %v5070
    %v5995 = vpop.f32.mrf.mxu0
    %v5996 = vadd.f32 %v5967, %v5995
    %v5997 = vpop.f32.mrf.mxu0
    %v5998 = vadd.f32 %v5969, %v5997
    %5999 = vmatmul.bf16.gmra.mxu0 %v5072
    %v6000 = vpop.f32.mrf.mxu0
    %v6001 = vadd.f32 %v5972, %v6000
    %v6002 = vpop.f32.mrf.mxu0
    %v6003 = vadd.f32 %v5974, %v6002
    %6004 = vmatmul.bf16.gmra.mxu0 %v5074
    %v6005 = vpop.f32.mrf.mxu0
    %v6006 = vadd.f32 %v5977, %v6005
    %v6007 = vpop.f32.mrf.mxu0
    %v6008 = vadd.f32 %v5979, %v6007
    %6009 = vmatmul.bf16.gmra.mxu0 %v5076
    %v6010 = vpop.f32.mrf.mxu0
    %v6011 = vadd.f32 %v5982, %v6010
    %v6012 = vpop.f32.mrf.mxu0
    %v6013 = vadd.f32 %v5984, %v6012
    %6014 = vdwg.mxu0
    %6015 = vmatpush.bf16.msra.mxu0 %v5530
    %6016 = vmatpush.bf16.msra.mxu0 %v5522
    %6017 = vmatpush.bf16.msra.mxu0 %v5514
    %6018 = vmatpush.bf16.msra.mxu0 %v5506
    %6019 = vmatpush.bf16.msra.mxu0 %v5498
    %6020 = vmatpush.bf16.msra.mxu0 %v5490
    %6021 = vmatpush.bf16.msra.mxu0 %v5482
    %6022 = vmatpush.bf16.msra.mxu0 %v5474
    %6023 = vmatmul.bf16.gmra.mxu0 %v5069
    %v6024 = vpop.f32.mrf.mxu0
    %v6025 = vadd.f32 0.0, %v6024
    %v6026 = vpop.f32.mrf.mxu0
    %v6027 = vadd.f32 0.0, %v6026
    %6028 = vmatmul.bf16.gmra.mxu0 %v5071
    %v6029 = vpop.f32.mrf.mxu0
    %v6030 = vadd.f32 0.0, %v6029
    %v6031 = vpop.f32.mrf.mxu0
    %v6032 = vadd.f32 0.0, %v6031
    %6033 = vmatmul.bf16.gmra.mxu0 %v5073
    %v6034 = vpop.f32.mrf.mxu0
    %v6035 = vadd.f32 0.0, %v6034
    %v6036 = vpop.f32.mrf.mxu0
    %v6037 = vadd.f32 0.0, %v6036
    %6038 = vmatmul.bf16.gmra.mxu0 %v5075
    %v6039 = vpop.f32.mrf.mxu0
    %v6040 = vadd.f32 0.0, %v6039
    %v6041 = vpop.f32.mrf.mxu0
    %v6042 = vadd.f32 0.0, %v6041
    %6043 = vdwg.mxu0
    %6044 = vmatpush.bf16.msra.mxu0 %v5594
    %6045 = vmatpush.bf16.msra.mxu0 %v5586
    %6046 = vmatpush.bf16.msra.mxu0 %v5578
    %6047 = vmatpush.bf16.msra.mxu0 %v5570
    %6048 = vmatpush.bf16.msra.mxu0 %v5562
    %6049 = vmatpush.bf16.msra.mxu0 %v5554
    %6050 = vmatpush.bf16.msra.mxu0 %v5546
    %6051 = vmatpush.bf16.msra.mxu0 %v5538
    %6052 = vmatmul.bf16.gmra.mxu0 %v5070
    %v6053 = vpop.f32.mrf.mxu0
    %v6054 = vadd.f32 %v6025, %v6053
    %v6055 = vpop.f32.mrf.mxu0
    %v6056 = vadd.f32 %v6027, %v6055
    %6057 = vmatmul.bf16.gmra.mxu0 %v5072
    %v6058 = vpop.f32.mrf.mxu0
    %v6059 = vadd.f32 %v6030, %v6058
    %v6060 = vpop.f32.mrf.mxu0
    %v6061 = vadd.f32 %v6032, %v6060
    %6062 = vmatmul.bf16.gmra.mxu0 %v5074
    %v6063 = vpop.f32.mrf.mxu0
    %v6064 = vadd.f32 %v6035, %v6063
    %v6065 = vpop.f32.mrf.mxu0
    %v6066 = vadd.f32 %v6037, %v6065
    %6067 = vmatmul.bf16.gmra.mxu0 %v5076
    %v6068 = vpop.f32.mrf.mxu0
    %v6069 = vadd.f32 %v6040, %v6068
    %v6070 = vpop.f32.mrf.mxu0
    %v6071 = vadd.f32 %v6042, %v6070
    %6072 = vdwg.mxu0
    %6073 = vmatpush.bf16.msra.mxu0 %v5531
    %6074 = vmatpush.bf16.msra.mxu0 %v5523
    %6075 = vmatpush.bf16.msra.mxu0 %v5515
    %6076 = vmatpush.bf16.msra.mxu0 %v5507
    %6077 = vmatpush.bf16.msra.mxu0 %v5499
    %6078 = vmatpush.bf16.msra.mxu0 %v5491
    %6079 = vmatpush.bf16.msra.mxu0 %v5483
    %6080 = vmatpush.bf16.msra.mxu0 %v5475
    %6081 = vmatmul.bf16.gmra.mxu0 %v5069
    %v6082 = vpop.f32.mrf.mxu0
    %v6083 = vadd.f32 0.0, %v6082
    %v6084 = vpop.f32.mrf.mxu0
    %v6085 = vadd.f32 0.0, %v6084
    %6086 = vmatmul.bf16.gmra.mxu0 %v5071
    %v6087 = vpop.f32.mrf.mxu0
    %v6088 = vadd.f32 0.0, %v6087
    %v6089 = vpop.f32.mrf.mxu0
    %v6090 = vadd.f32 0.0, %v6089
    %6091 = vmatmul.bf16.gmra.mxu0 %v5073
    %v6092 = vpop.f32.mrf.mxu0
    %v6093 = vadd.f32 0.0, %v6092
    %v6094 = vpop.f32.mrf.mxu0
    %v6095 = vadd.f32 0.0, %v6094
    %6096 = vmatmul.bf16.gmra.mxu0 %v5075
    %v6097 = vpop.f32.mrf.mxu0
    %v6098 = vadd.f32 0.0, %v6097
    %v6099 = vpop.f32.mrf.mxu0
    %v6100 = vadd.f32 0.0, %v6099
    %6101 = vdwg.mxu0
    %6102 = vmatpush.bf16.msra.mxu0 %v5595
    %6103 = vmatpush.bf16.msra.mxu0 %v5587
    %6104 = vmatpush.bf16.msra.mxu0 %v5579
    %6105 = vmatpush.bf16.msra.mxu0 %v5571
    %6106 = vmatpush.bf16.msra.mxu0 %v5563
    %6107 = vmatpush.bf16.msra.mxu0 %v5555
    %6108 = vmatpush.bf16.msra.mxu0 %v5547
    %6109 = vmatpush.bf16.msra.mxu0 %v5539
    %6110 = vmatmul.bf16.gmra.mxu0 %v5070
    %v6111 = vpop.f32.mrf.mxu0
    %v6112 = vadd.f32 %v6083, %v6111
    %v6113 = vpop.f32.mrf.mxu0
    %v6114 = vadd.f32 %v6085, %v6113
    %6115 = vmatmul.bf16.gmra.mxu0 %v5072
    %v6116 = vpop.f32.mrf.mxu0
    %v6117 = vadd.f32 %v6088, %v6116
    %v6118 = vpop.f32.mrf.mxu0
    %v6119 = vadd.f32 %v6090, %v6118
    %6120 = vmatmul.bf16.gmra.mxu0 %v5074
    %v6121 = vpop.f32.mrf.mxu0
    %v6122 = vadd.f32 %v6093, %v6121
    %v6123 = vpop.f32.mrf.mxu0
    %v6124 = vadd.f32 %v6095, %v6123
    %6125 = vmatmul.bf16.gmra.mxu0 %v5076
    %v6126 = vpop.f32.mrf.mxu0
    %v6127 = vadd.f32 %v6098, %v6126
    %v6128 = vpop.f32.mrf.mxu0
    %v6129 = vadd.f32 %v6100, %v6128
    %6130 = vdwg.mxu0
    %6131 = vmatpush.bf16.msra.mxu0 %v5532
    %6132 = vmatpush.bf16.msra.mxu0 %v5524
    %6133 = vmatpush.bf16.msra.mxu0 %v5516
    %6134 = vmatpush.bf16.msra.mxu0 %v5508
    %6135 = vmatpush.bf16.msra.mxu0 %v5500
    %6136 = vmatpush.bf16.msra.mxu0 %v5492
    %6137 = vmatpush.bf16.msra.mxu0 %v5484
    %6138 = vmatpush.bf16.msra.mxu0 %v5476
    %6139 = vmatmul.bf16.gmra.mxu0 %v5069
    %v6140 = vpop.f32.mrf.mxu0
    %v6141 = vadd.f32 0.0, %v6140
    %v6142 = vpop.f32.mrf.mxu0
    %v6143 = vadd.f32 0.0, %v6142
    %6144 = vmatmul.bf16.gmra.mxu0 %v5071
    %v6145 = vpop.f32.mrf.mxu0
    %v6146 = vadd.f32 0.0, %v6145
    %v6147 = vpop.f32.mrf.mxu0
    %v6148 = vadd.f32 0.0, %v6147
    %6149 = vmatmul.bf16.gmra.mxu0 %v5073
    %v6150 = vpop.f32.mrf.mxu0
    %v6151 = vadd.f32 0.0, %v6150
    %v6152 = vpop.f32.mrf.mxu0
    %v6153 = vadd.f32 0.0, %v6152
    %6154 = vmatmul.bf16.gmra.mxu0 %v5075
    %v6155 = vpop.f32.mrf.mxu0
    %v6156 = vadd.f32 0.0, %v6155
    %v6157 = vpop.f32.mrf.mxu0
    %v6158 = vadd.f32 0.0, %v6157
    %6159 = vdwg.mxu0
    %6160 = vmatpush.bf16.msra.mxu0 %v5596
    %6161 = vmatpush.bf16.msra.mxu0 %v5588
    %6162 = vmatpush.bf16.msra.mxu0 %v5580
    %6163 = vmatpush.bf16.msra.mxu0 %v5572
    %6164 = vmatpush.bf16.msra.mxu0 %v5564
    %6165 = vmatpush.bf16.msra.mxu0 %v5556
    %6166 = vmatpush.bf16.msra.mxu0 %v5548
    %6167 = vmatpush.bf16.msra.mxu0 %v5540
    %6168 = vmatmul.bf16.gmra.mxu0 %v5070
    %v6169 = vpop.f32.mrf.mxu0
    %v6170 = vadd.f32 %v6141, %v6169
    %v6171 = vpop.f32.mrf.mxu0
    %v6172 = vadd.f32 %v6143, %v6171
    %6173 = vmatmul.bf16.gmra.mxu0 %v5072
    %v6174 = vpop.f32.mrf.mxu0
    %v6175 = vadd.f32 %v6146, %v6174
    %v6176 = vpop.f32.mrf.mxu0
    %v6177 = vadd.f32 %v6148, %v6176
    %6178 = vmatmul.bf16.gmra.mxu0 %v5074
    %v6179 = vpop.f32.mrf.mxu0
    %v6180 = vadd.f32 %v6151, %v6179
    %v6181 = vpop.f32.mrf.mxu0
    %v6182 = vadd.f32 %v6153, %v6181
    %6183 = vmatmul.bf16.gmra.mxu0 %v5076
    %v6184 = vpop.f32.mrf.mxu0
    %v6185 = vadd.f32 %v6156, %v6184
    %v6186 = vpop.f32.mrf.mxu0
    %v6187 = vadd.f32 %v6158, %v6186
    %6188 = vdwg.mxu0
    %v6189 = vadd.f32 %v4837, %v5764
    %v6190 = vadd.f32 %v4838, %v5822
    %v6191 = vadd.f32 %v4839, %v5880
    %v6192 = vadd.f32 %v4840, %v5938
    %v6193 = vadd.f32 %v4841, %v5996
    %v6194 = vadd.f32 %v4842, %v6054
    %v6195 = vadd.f32 %v4843, %v6112
    %v6196 = vadd.f32 %v4844, %v6170
    %v6197 = vadd.f32 %v4845, %v5766
    %v6198 = vadd.f32 %v4846, %v5824
    %v6199 = vadd.f32 %v4847, %v5882
    %v6200 = vadd.f32 %v4848, %v5940
    %v6201 = vadd.f32 %v4849, %v5998
    %v6202 = vadd.f32 %v4850, %v6056
    %v6203 = vadd.f32 %v4851, %v6114
    %v6204 = vadd.f32 %v4852, %v6172
    %v6205 = vadd.f32 %v4853, %v5769
    %v6206 = vadd.f32 %v4854, %v5827
    %v6207 = vadd.f32 %v4855, %v5885
    %v6208 = vadd.f32 %v4856, %v5943
    %v6209 = vadd.f32 %v4857, %v6001
    %v6210 = vadd.f32 %v4858, %v6059
    %v6211 = vadd.f32 %v4859, %v6117
    %v6212 = vadd.f32 %v4860, %v6175
    %v6213 = vadd.f32 %v4861, %v5771
    %v6214 = vadd.f32 %v4862, %v5829
    %v6215 = vadd.f32 %v4863, %v5887
    %v6216 = vadd.f32 %v4864, %v5945
    %v6217 = vadd.f32 %v4865, %v6003
    %v6218 = vadd.f32 %v4866, %v6061
    %v6219 = vadd.f32 %v4867, %v6119
    %v6220 = vadd.f32 %v4868, %v6177
    %v6221 = vadd.f32 %v4869, %v5774
    %v6222 = vadd.f32 %v4870, %v5832
    %v6223 = vadd.f32 %v4871, %v5890
    %v6224 = vadd.f32 %v4872, %v5948
    %v6225 = vadd.f32 %v4873, %v6006
    %v6226 = vadd.f32 %v4874, %v6064
    %v6227 = vadd.f32 %v4875, %v6122
    %v6228 = vadd.f32 %v4876, %v6180
    %v6229 = vadd.f32 %v4877, %v5776
    %v6230 = vadd.f32 %v4878, %v5834
    %v6231 = vadd.f32 %v4879, %v5892
    %v6232 = vadd.f32 %v4880, %v5950
    %v6233 = vadd.f32 %v4881, %v6008
    %v6234 = vadd.f32 %v4882, %v6066
    %v6235 = vadd.f32 %v4883, %v6124
    %v6236 = vadd.f32 %v4884, %v6182
    %v6237 = vadd.f32 %v4885, %v5779
    %v6238 = vadd.f32 %v4886, %v5837
    %v6239 = vadd.f32 %v4887, %v5895
    %v6240 = vadd.f32 %v4888, %v5953
    %v6241 = vadd.f32 %v4889, %v6011
    %v6242 = vadd.f32 %v4890, %v6069
    %v6243 = vadd.f32 %v4891, %v6127
    %v6244 = vadd.f32 %v4892, %v6185
    %v6245 = vadd.f32 %v4893, %v5781
    %v6246 = vadd.f32 %v4894, %v5839
    %v6247 = vadd.f32 %v4895, %v5897
    %v6248 = vadd.f32 %v4896, %v5955
    %v6249 = vadd.f32 %v4897, %v6013
    %v6250 = vadd.f32 %v4898, %v6071
    %v6251 = vadd.f32 %v4899, %v6129
    %v6252 = vadd.f32 %v4900, %v6187
    %v6253 = vpack.c.bf16 %v6197, %v6189
    %v6254 = vpack.c.bf16 %v6198, %v6190
    %v6255 = vpack.c.bf16 %v6199, %v6191
    %v6256 = vpack.c.bf16 %v6200, %v6192
    %v6257 = vpack.c.bf16 %v6201, %v6193
    %v6258 = vpack.c.bf16 %v6202, %v6194
    %v6259 = vpack.c.bf16 %v6203, %v6195
    %v6260 = vpack.c.bf16 %v6204, %v6196
    %v6261 = vpack.c.bf16 %v6213, %v6205
    %v6262 = vpack.c.bf16 %v6214, %v6206
    %v6263 = vpack.c.bf16 %v6215, %v6207
    %v6264 = vpack.c.bf16 %v6216, %v6208
    %v6265 = vpack.c.bf16 %v6217, %v6209
    %v6266 = vpack.c.bf16 %v6218, %v6210
    %v6267 = vpack.c.bf16 %v6219, %v6211
    %v6268 = vpack.c.bf16 %v6220, %v6212
    %v6269 = vpack.c.bf16 %v6229, %v6221
    %v6270 = vpack.c.bf16 %v6230, %v6222
    %v6271 = vpack.c.bf16 %v6231, %v6223
    %v6272 = vpack.c.bf16 %v6232, %v6224
    %v6273 = vpack.c.bf16 %v6233, %v6225
    %v6274 = vpack.c.bf16 %v6234, %v6226
    %v6275 = vpack.c.bf16 %v6235, %v6227
    %v6276 = vpack.c.bf16 %v6236, %v6228
    %v6277 = vpack.c.bf16 %v6245, %v6237
    %v6278 = vpack.c.bf16 %v6246, %v6238
    %v6279 = vpack.c.bf16 %v6247, %v6239
    %v6280 = vpack.c.bf16 %v6248, %v6240
    %v6281 = vpack.c.bf16 %v6249, %v6241
    %v6282 = vpack.c.bf16 %v6250, %v6242
    %v6283 = vpack.c.bf16 %v6251, %v6243
    %v6284 = vpack.c.bf16 %v6252, %v6244
    %v6285 = vld [vmem:[#allocation8] sm:$0xff]
    %v6287 = vperm.slane %v6285, 0
    %v6288 = vperm.slane %v6285, 1
    %v6289 = vperm.slane %v6285, 2
    %v6290 = vperm.slane %v6285, 3
    %v6291 = vperm.slane %v6285, 4
    %v6292 = vperm.slane %v6285, 5
    %v6293 = vperm.slane %v6285, 6
    %v6294 = vperm.slane %v6285, 7
    %6303 = vmatpush.bf16.msra.mxu0 0
    %6304 = vmatpush.bf16.msra.mxu0 0
    %6305 = vmatpush.bf16.msra.mxu0 0
    %6306 = vmatpush.bf16.msra.mxu0 0
    %6307 = vmatpush.bf16.msra.mxu0 %v6277
    %6308 = vmatpush.bf16.msra.mxu0 %v6269
    %6309 = vmatpush.bf16.msra.mxu0 %v6261
    %6310 = vmatpush.bf16.msra.mxu0 %v6253
    %6311 = vmatmul.bf16.gmra.mxu0 %v631
    %v6312 = vpop.f32.mrf.mxu0
    %v6313 = vadd.f32 %v6287, %v6312
    %v6314 = vpop.f32.mrf.mxu0
    %v6315 = vadd.f32 %v6287, %v6314
    %6316 = vmatmul.bf16.gmra.mxu0 %v634
    %v6317 = vpop.f32.mrf.mxu0
    %v6318 = vadd.f32 %v6287, %v6317
    %v6319 = vpop.f32.mrf.mxu0
    %v6320 = vadd.f32 %v6287, %v6319
    %6321 = vmatmul.bf16.gmra.mxu0 %v637
    %v6322 = vpop.f32.mrf.mxu0
    %v6323 = vadd.f32 %v6287, %v6322
    %v6324 = vpop.f32.mrf.mxu0
    %v6325 = vadd.f32 %v6287, %v6324
    %6326 = vmatmul.bf16.gmra.mxu0 %v640
    %v6327 = vpop.f32.mrf.mxu0
    %v6328 = vadd.f32 %v6287, %v6327
    %v6329 = vpop.f32.mrf.mxu0
    %v6330 = vadd.f32 %v6287, %v6329
    %6331 = vdwg.mxu0
    %6332 = vmatpush.bf16.msra.mxu0 0
    %6333 = vmatpush.bf16.msra.mxu0 0
    %6334 = vmatpush.bf16.msra.mxu0 0
    %6335 = vmatpush.bf16.msra.mxu0 0
    %6336 = vmatpush.bf16.msra.mxu0 %v6278
    %6337 = vmatpush.bf16.msra.mxu0 %v6270
    %6338 = vmatpush.bf16.msra.mxu0 %v6262
    %6339 = vmatpush.bf16.msra.mxu0 %v6254
    %6340 = vmatmul.bf16.gmra.mxu0 %v631
    %v6341 = vpop.f32.mrf.mxu0
    %v6342 = vadd.f32 %v6288, %v6341
    %v6343 = vpop.f32.mrf.mxu0
    %v6344 = vadd.f32 %v6288, %v6343
    %6345 = vmatmul.bf16.gmra.mxu0 %v634
    %v6346 = vpop.f32.mrf.mxu0
    %v6347 = vadd.f32 %v6288, %v6346
    %v6348 = vpop.f32.mrf.mxu0
    %v6349 = vadd.f32 %v6288, %v6348
    %6350 = vmatmul.bf16.gmra.mxu0 %v637
    %v6351 = vpop.f32.mrf.mxu0
    %v6352 = vadd.f32 %v6288, %v6351
    %v6353 = vpop.f32.mrf.mxu0
    %v6354 = vadd.f32 %v6288, %v6353
    %6355 = vmatmul.bf16.gmra.mxu0 %v640
    %v6356 = vpop.f32.mrf.mxu0
    %v6357 = vadd.f32 %v6288, %v6356
    %v6358 = vpop.f32.mrf.mxu0
    %v6359 = vadd.f32 %v6288, %v6358
    %6360 = vdwg.mxu0
    %6361 = vmatpush.bf16.msra.mxu0 0
    %6362 = vmatpush.bf16.msra.mxu0 0
    %6363 = vmatpush.bf16.msra.mxu0 0
    %6364 = vmatpush.bf16.msra.mxu0 0
    %6365 = vmatpush.bf16.msra.mxu0 %v6279
    %6366 = vmatpush.bf16.msra.mxu0 %v6271
    %6367 = vmatpush.bf16.msra.mxu0 %v6263
    %6368 = vmatpush.bf16.msra.mxu0 %v6255
    %6369 = vmatmul.bf16.gmra.mxu0 %v631
    %v6370 = vpop.f32.mrf.mxu0
    %v6371 = vadd.f32 %v6289, %v6370
    %v6372 = vpop.f32.mrf.mxu0
    %v6373 = vadd.f32 %v6289, %v6372
    %6374 = vmatmul.bf16.gmra.mxu0 %v634
    %v6375 = vpop.f32.mrf.mxu0
    %v6376 = vadd.f32 %v6289, %v6375
    %v6377 = vpop.f32.mrf.mxu0
    %v6378 = vadd.f32 %v6289, %v6377
    %6379 = vmatmul.bf16.gmra.mxu0 %v637
    %v6380 = vpop.f32.mrf.mxu0
    %v6381 = vadd.f32 %v6289, %v6380
    %v6382 = vpop.f32.mrf.mxu0
    %v6383 = vadd.f32 %v6289, %v6382
    %6384 = vmatmul.bf16.gmra.mxu0 %v640
    %v6385 = vpop.f32.mrf.mxu0
    %v6386 = vadd.f32 %v6289, %v6385
    %v6387 = vpop.f32.mrf.mxu0
    %v6388 = vadd.f32 %v6289, %v6387
    %6389 = vdwg.mxu0
    %6390 = vmatpush.bf16.msra.mxu0 0
    %6391 = vmatpush.bf16.msra.mxu0 0
    %6392 = vmatpush.bf16.msra.mxu0 0
    %6393 = vmatpush.bf16.msra.mxu0 0
    %6394 = vmatpush.bf16.msra.mxu0 %v6280
    %6395 = vmatpush.bf16.msra.mxu0 %v6272
    %6396 = vmatpush.bf16.msra.mxu0 %v6264
    %6397 = vmatpush.bf16.msra.mxu0 %v6256
    %6398 = vmatmul.bf16.gmra.mxu0 %v631
    %v6399 = vpop.f32.mrf.mxu0
    %v6400 = vadd.f32 %v6290, %v6399
    %v6401 = vpop.f32.mrf.mxu0
    %v6402 = vadd.f32 %v6290, %v6401
    %6403 = vmatmul.bf16.gmra.mxu0 %v634
    %v6404 = vpop.f32.mrf.mxu0
    %v6405 = vadd.f32 %v6290, %v6404
    %v6406 = vpop.f32.mrf.mxu0
    %v6407 = vadd.f32 %v6290, %v6406
    %6408 = vmatmul.bf16.gmra.mxu0 %v637
    %v6409 = vpop.f32.mrf.mxu0
    %v6410 = vadd.f32 %v6290, %v6409
    %v6411 = vpop.f32.mrf.mxu0
    %v6412 = vadd.f32 %v6290, %v6411
    %6413 = vmatmul.bf16.gmra.mxu0 %v640
    %v6414 = vpop.f32.mrf.mxu0
    %v6415 = vadd.f32 %v6290, %v6414
    %v6416 = vpop.f32.mrf.mxu0
    %v6417 = vadd.f32 %v6290, %v6416
    %6418 = vdwg.mxu0
    %6419 = vmatpush.bf16.msra.mxu0 0
    %6420 = vmatpush.bf16.msra.mxu0 0
    %6421 = vmatpush.bf16.msra.mxu0 0
    %6422 = vmatpush.bf16.msra.mxu0 0
    %6423 = vmatpush.bf16.msra.mxu0 %v6281
    %6424 = vmatpush.bf16.msra.mxu0 %v6273
    %6425 = vmatpush.bf16.msra.mxu0 %v6265
    %6426 = vmatpush.bf16.msra.mxu0 %v6257
    %6427 = vmatmul.bf16.gmra.mxu0 %v631
    %v6428 = vpop.f32.mrf.mxu0
    %v6429 = vadd.f32 %v6291, %v6428
    %v6430 = vpop.f32.mrf.mxu0
    %v6431 = vadd.f32 %v6291, %v6430
    %6432 = vmatmul.bf16.gmra.mxu0 %v634
    %v6433 = vpop.f32.mrf.mxu0
    %v6434 = vadd.f32 %v6291, %v6433
    %v6435 = vpop.f32.mrf.mxu0
    %v6436 = vadd.f32 %v6291, %v6435
    %6437 = vmatmul.bf16.gmra.mxu0 %v637
    %v6438 = vpop.f32.mrf.mxu0
    %v6439 = vadd.f32 %v6291, %v6438
    %v6440 = vpop.f32.mrf.mxu0
    %v6441 = vadd.f32 %v6291, %v6440
    %6442 = vmatmul.bf16.gmra.mxu0 %v640
    %v6443 = vpop.f32.mrf.mxu0
    %v6444 = vadd.f32 %v6291, %v6443
    %v6445 = vpop.f32.mrf.mxu0
    %v6446 = vadd.f32 %v6291, %v6445
    %6447 = vdwg.mxu0
    %6448 = vmatpush.bf16.msra.mxu0 0
    %6449 = vmatpush.bf16.msra.mxu0 0
    %6450 = vmatpush.bf16.msra.mxu0 0
    %6451 = vmatpush.bf16.msra.mxu0 0
    %6452 = vmatpush.bf16.msra.mxu0 %v6282
    %6453 = vmatpush.bf16.msra.mxu0 %v6274
    %6454 = vmatpush.bf16.msra.mxu0 %v6266
    %6455 = vmatpush.bf16.msra.mxu0 %v6258
    %6456 = vmatmul.bf16.gmra.mxu0 %v631
    %v6457 = vpop.f32.mrf.mxu0
    %v6458 = vadd.f32 %v6292, %v6457
    %v6459 = vpop.f32.mrf.mxu0
    %v6460 = vadd.f32 %v6292, %v6459
    %6461 = vmatmul.bf16.gmra.mxu0 %v634
    %v6462 = vpop.f32.mrf.mxu0
    %v6463 = vadd.f32 %v6292, %v6462
    %v6464 = vpop.f32.mrf.mxu0
    %v6465 = vadd.f32 %v6292, %v6464
    %6466 = vmatmul.bf16.gmra.mxu0 %v637
    %v6467 = vpop.f32.mrf.mxu0
    %v6468 = vadd.f32 %v6292, %v6467
    %v6469 = vpop.f32.mrf.mxu0
    %v6470 = vadd.f32 %v6292, %v6469
    %6471 = vmatmul.bf16.gmra.mxu0 %v640
    %v6472 = vpop.f32.mrf.mxu0
    %v6473 = vadd.f32 %v6292, %v6472
    %v6474 = vpop.f32.mrf.mxu0
    %v6475 = vadd.f32 %v6292, %v6474
    %6476 = vdwg.mxu0
    %6477 = vmatpush.bf16.msra.mxu0 0
    %6478 = vmatpush.bf16.msra.mxu0 0
    %6479 = vmatpush.bf16.msra.mxu0 0
    %6480 = vmatpush.bf16.msra.mxu0 0
    %6481 = vmatpush.bf16.msra.mxu0 %v6283
    %6482 = vmatpush.bf16.msra.mxu0 %v6275
    %6483 = vmatpush.bf16.msra.mxu0 %v6267
    %6484 = vmatpush.bf16.msra.mxu0 %v6259
    %6485 = vmatmul.bf16.gmra.mxu0 %v631
    %v6486 = vpop.f32.mrf.mxu0
    %v6487 = vadd.f32 %v6293, %v6486
    %v6488 = vpop.f32.mrf.mxu0
    %v6489 = vadd.f32 %v6293, %v6488
    %6490 = vmatmul.bf16.gmra.mxu0 %v634
    %v6491 = vpop.f32.mrf.mxu0
    %v6492 = vadd.f32 %v6293, %v6491
    %v6493 = vpop.f32.mrf.mxu0
    %v6494 = vadd.f32 %v6293, %v6493
    %6495 = vmatmul.bf16.gmra.mxu0 %v637
    %v6496 = vpop.f32.mrf.mxu0
    %v6497 = vadd.f32 %v6293, %v6496
    %v6498 = vpop.f32.mrf.mxu0
    %v6499 = vadd.f32 %v6293, %v6498
    %6500 = vmatmul.bf16.gmra.mxu0 %v640
    %v6501 = vpop.f32.mrf.mxu0
    %v6502 = vadd.f32 %v6293, %v6501
    %v6503 = vpop.f32.mrf.mxu0
    %v6504 = vadd.f32 %v6293, %v6503
    %6505 = vdwg.mxu0
    %6506 = vmatpush.bf16.msra.mxu0 0
    %6507 = vmatpush.bf16.msra.mxu0 0
    %6508 = vmatpush.bf16.msra.mxu0 0
    %6509 = vmatpush.bf16.msra.mxu0 0
    %6510 = vmatpush.bf16.msra.mxu0 %v6284
    %6511 = vmatpush.bf16.msra.mxu0 %v6276
    %6512 = vmatpush.bf16.msra.mxu0 %v6268
    %6513 = vmatpush.bf16.msra.mxu0 %v6260
    %6514 = vmatmul.bf16.gmra.mxu0 %v631
    %v6515 = vpop.f32.mrf.mxu0
    %v6516 = vadd.f32 %v6294, %v6515
    %v6517 = vpop.f32.mrf.mxu0
    %v6518 = vadd.f32 %v6294, %v6517
    %6519 = vmatmul.bf16.gmra.mxu0 %v634
    %v6520 = vpop.f32.mrf.mxu0
    %v6521 = vadd.f32 %v6294, %v6520
    %v6522 = vpop.f32.mrf.mxu0
    %v6523 = vadd.f32 %v6294, %v6522
    %6524 = vmatmul.bf16.gmra.mxu0 %v637
    %v6525 = vpop.f32.mrf.mxu0
    %v6526 = vadd.f32 %v6294, %v6525
    %v6527 = vpop.f32.mrf.mxu0
    %v6528 = vadd.f32 %v6294, %v6527
    %6529 = vmatmul.bf16.gmra.mxu0 %v640
    %v6530 = vpop.f32.mrf.mxu0
    %v6531 = vadd.f32 %v6294, %v6530
    %v6532 = vpop.f32.mrf.mxu0
    %v6533 = vadd.f32 %v6294, %v6532
    %6534 = vdwg.mxu0
    %v6535 = vmax.f32 %v6313, 0.0
    %v6536 = vmax.f32 %v6342, 0.0
    %v6537 = vmax.f32 %v6371, 0.0
    %v6538 = vmax.f32 %v6400, 0.0
    %v6539 = vmax.f32 %v6429, 0.0
    %v6540 = vmax.f32 %v6458, 0.0
    %v6541 = vmax.f32 %v6487, 0.0
    %v6542 = vmax.f32 %v6516, 0.0
    %v6543 = vmax.f32 %v6315, 0.0
    %v6544 = vmax.f32 %v6344, 0.0
    %v6545 = vmax.f32 %v6373, 0.0
    %v6546 = vmax.f32 %v6402, 0.0
    %v6547 = vmax.f32 %v6431, 0.0
    %v6548 = vmax.f32 %v6460, 0.0
    %v6549 = vmax.f32 %v6489, 0.0
    %v6550 = vmax.f32 %v6518, 0.0
    %v6551 = vmax.f32 %v6318, 0.0
    %v6552 = vmax.f32 %v6347, 0.0
    %v6553 = vmax.f32 %v6376, 0.0
    %v6554 = vmax.f32 %v6405, 0.0
    %v6555 = vmax.f32 %v6434, 0.0
    %v6556 = vmax.f32 %v6463, 0.0
    %v6557 = vmax.f32 %v6492, 0.0
    %v6558 = vmax.f32 %v6521, 0.0
    %v6559 = vmax.f32 %v6320, 0.0
    %v6560 = vmax.f32 %v6349, 0.0
    %v6561 = vmax.f32 %v6378, 0.0
    %v6562 = vmax.f32 %v6407, 0.0
    %v6563 = vmax.f32 %v6436, 0.0
    %v6564 = vmax.f32 %v6465, 0.0
    %v6565 = vmax.f32 %v6494, 0.0
    %v6566 = vmax.f32 %v6523, 0.0
    %v6567 = vmax.f32 %v6323, 0.0
    %v6568 = vmax.f32 %v6352, 0.0
    %v6569 = vmax.f32 %v6381, 0.0
    %v6570 = vmax.f32 %v6410, 0.0
    %v6571 = vmax.f32 %v6439, 0.0
    %v6572 = vmax.f32 %v6468, 0.0
    %v6573 = vmax.f32 %v6497, 0.0
    %v6574 = vmax.f32 %v6526, 0.0
    %v6575 = vmax.f32 %v6325, 0.0
    %v6576 = vmax.f32 %v6354, 0.0
    %v6577 = vmax.f32 %v6383, 0.0
    %v6578 = vmax.f32 %v6412, 0.0
    %v6579 = vmax.f32 %v6441, 0.0
    %v6580 = vmax.f32 %v6470, 0.0
    %v6581 = vmax.f32 %v6499, 0.0
    %v6582 = vmax.f32 %v6528, 0.0
    %v6583 = vmax.f32 %v6328, 0.0
    %v6584 = vmax.f32 %v6357, 0.0
    %v6585 = vmax.f32 %v6386, 0.0
    %v6586 = vmax.f32 %v6415, 0.0
    %v6587 = vmax.f32 %v6444, 0.0
    %v6588 = vmax.f32 %v6473, 0.0
    %v6589 = vmax.f32 %v6502, 0.0
    %v6590 = vmax.f32 %v6531, 0.0
    %v6591 = vmax.f32 %v6330, 0.0
    %v6592 = vmax.f32 %v6359, 0.0
    %v6593 = vmax.f32 %v6388, 0.0
    %v6594 = vmax.f32 %v6417, 0.0
    %v6595 = vmax.f32 %v6446, 0.0
    %v6596 = vmax.f32 %v6475, 0.0
    %v6597 = vmax.f32 %v6504, 0.0
    %v6598 = vmax.f32 %v6533, 0.0
    %v6599 = vadd.f32 %v6535, %v874
    %v6600 = vadd.f32 %v6536, %v875
    %v6601 = vadd.f32 %v6537, %v876
    %v6602 = vadd.f32 %v6538, %v877
    %v6603 = vadd.f32 %v6539, %v878
    %v6604 = vadd.f32 %v6540, %v879
    %v6605 = vadd.f32 %v6541, %v880
    %v6606 = vadd.f32 %v6542, %v881
    %v6607 = vadd.f32 %v6543, %v882
    %v6608 = vadd.f32 %v6544, %v883
    %v6609 = vadd.f32 %v6545, %v884
    %v6610 = vadd.f32 %v6546, %v885
    %v6611 = vadd.f32 %v6547, %v886
    %v6612 = vadd.f32 %v6548, %v887
    %v6613 = vadd.f32 %v6549, %v888
    %v6614 = vadd.f32 %v6550, %v889
    %v6615 = vadd.f32 %v6551, %v890
    %v6616 = vadd.f32 %v6552, %v891
    %v6617 = vadd.f32 %v6553, %v892
    %v6618 = vadd.f32 %v6554, %v893
    %v6619 = vadd.f32 %v6555, %v894
    %v6620 = vadd.f32 %v6556, %v895
    %v6621 = vadd.f32 %v6557, %v896
    %v6622 = vadd.f32 %v6558, %v897
    %v6623 = vadd.f32 %v6559, %v898
    %v6624 = vadd.f32 %v6560, %v899
    %v6625 = vadd.f32 %v6561, %v900
    %v6626 = vadd.f32 %v6562, %v901
    %v6627 = vadd.f32 %v6563, %v902
    %v6628 = vadd.f32 %v6564, %v903
    %v6629 = vadd.f32 %v6565, %v904
    %v6630 = vadd.f32 %v6566, %v905
    %v6631 = vadd.f32 %v6567, %v906
    %v6632 = vadd.f32 %v6568, %v907
    %v6633 = vadd.f32 %v6569, %v908
    %v6634 = vadd.f32 %v6570, %v909
    %v6635 = vadd.f32 %v6571, %v910
    %v6636 = vadd.f32 %v6572, %v911
    %v6637 = vadd.f32 %v6573, %v912
    %v6638 = vadd.f32 %v6574, %v913
    %v6639 = vadd.f32 %v6575, %v914
    %v6640 = vadd.f32 %v6576, %v915
    %v6641 = vadd.f32 %v6577, %v916
    %v6642 = vadd.f32 %v6578, %v917
    %v6643 = vadd.f32 %v6579, %v918
    %v6644 = vadd.f32 %v6580, %v919
    %v6645 = vadd.f32 %v6581, %v920
    %v6646 = vadd.f32 %v6582, %v921
    %v6647 = vadd.f32 %v6583, %v922
    %v6648 = vadd.f32 %v6584, %v923
    %v6649 = vadd.f32 %v6585, %v924
    %v6650 = vadd.f32 %v6586, %v925
    %v6651 = vadd.f32 %v6587, %v926
    %v6652 = vadd.f32 %v6588, %v927
    %v6653 = vadd.f32 %v6589, %v928
    %v6654 = vadd.f32 %v6590, %v929
    %v6655 = vadd.f32 %v6591, %v930
    %v6656 = vadd.f32 %v6592, %v931
    %v6657 = vadd.f32 %v6593, %v932
    %v6658 = vadd.f32 %v6594, %v933
    %v6659 = vadd.f32 %v6595, %v934
    %v6660 = vadd.f32 %v6596, %v935
    %v6661 = vadd.f32 %v6597, %v936
    %v6662 = vadd.f32 %v6598, %v937
    %v6663 = vpack.c.bf16 %v6600, %v6599
    %v6664 = vpack.c.bf16 %v6602, %v6601
    %v6665 = vpack.c.bf16 %v6604, %v6603
    %v6666 = vpack.c.bf16 %v6606, %v6605
    %v6667 = vpack.c.bf16 %v6608, %v6607
    %v6668 = vpack.c.bf16 %v6610, %v6609
    %v6669 = vpack.c.bf16 %v6612, %v6611
    %v6670 = vpack.c.bf16 %v6614, %v6613
    %v6671 = vpack.c.bf16 %v6616, %v6615
    %v6672 = vpack.c.bf16 %v6618, %v6617
    %v6673 = vpack.c.bf16 %v6620, %v6619
    %v6674 = vpack.c.bf16 %v6622, %v6621
    %v6675 = vpack.c.bf16 %v6624, %v6623
    %v6676 = vpack.c.bf16 %v6626, %v6625
    %v6677 = vpack.c.bf16 %v6628, %v6627
    %v6678 = vpack.c.bf16 %v6630, %v6629
    %v6679 = vpack.c.bf16 %v6632, %v6631
    %v6680 = vpack.c.bf16 %v6634, %v6633
    %v6681 = vpack.c.bf16 %v6636, %v6635
    %v6682 = vpack.c.bf16 %v6638, %v6637
    %v6683 = vpack.c.bf16 %v6640, %v6639
    %v6684 = vpack.c.bf16 %v6642, %v6641
    %v6685 = vpack.c.bf16 %v6644, %v6643
    %v6686 = vpack.c.bf16 %v6646, %v6645
    %v6687 = vpack.c.bf16 %v6648, %v6647
    %v6688 = vpack.c.bf16 %v6650, %v6649
    %v6689 = vpack.c.bf16 %v6652, %v6651
    %v6690 = vpack.c.bf16 %v6654, %v6653
    %v6691 = vpack.c.bf16 %v6656, %v6655
    %v6692 = vpack.c.bf16 %v6658, %v6657
    %v6693 = vpack.c.bf16 %v6660, %v6659
    %v6694 = vpack.c.bf16 %v6662, %v6661
    %s6695 = scalar_lea.hbm %s6, 2048
    // Predicated region
    $region98: #{gcn_res_forward.1} parent=1 // pred_check
      _
    $region99: #{gcn_res_forward.1} parent=1 // pred_check_branch
      %6697 = sbr.rel target = $region101
    $region100: #{gcn_res_forward.1} parent=1 // pred_region
      %6698 = sst [smem:[#allocation19]] [#allocation32]
      %6699 = sst [smem:[#allocation20]] [#allocation31]
    $region101: #{gcn_res_forward.1} parent=1 // pred_fallthru
      _
    %6701 = shalt.err (0)
    %s6703 = sshll.u32 %s6695, 4
    %s6704 = int_to_ptr.hbm [resolvable:$true] %s6703
    %s6705 = sshll.u32 [#allocation2], 4
    %s6706 = int_to_ptr.vmem [resolvable:$true] %s6705
    %6708 = dma.hbm_to_vmem [thread:$0]  %s6704, 16384, %s6706, [#allocation3]
    %s6709 = sshll.u32 %s987, 4
    %6710 = dma.done %s168, %s6709
    %v6711 = vld [vmem:[%s167] sm:$0xff]
    %v6712 = vld [vmem:[%s167 + $0x8] sm:$0xff]
    %v6713 = vld [vmem:[%s167 + $0x10] sm:$0xff]
    %v6714 = vld [vmem:[%s167 + $0x18] sm:$0xff]
    %v6715 = vld [vmem:[%s167 + $0x20] sm:$0xff]
    %v6716 = vld [vmem:[%s167 + $0x28] sm:$0xff]
    %v6717 = vld [vmem:[%s167 + $0x30] sm:$0xff]
    %v6718 = vld [vmem:[%s167 + $0x38] sm:$0xff]
    %v6719 = vld [vmem:[%s167 + $0x40] sm:$0xff]
    %v6720 = vld [vmem:[%s167 + $0x48] sm:$0xff]
    %v6721 = vld [vmem:[%s167 + $0x50] sm:$0xff]
    %v6722 = vld [vmem:[%s167 + $0x58] sm:$0xff]
    %v6723 = vld [vmem:[%s167 + $0x60] sm:$0xff]
    %v6724 = vld [vmem:[%s167 + $0x68] sm:$0xff]
    %v6725 = vld [vmem:[%s167 + $0x70] sm:$0xff]
    %v6726 = vld [vmem:[%s167 + $0x78] sm:$0xff]
    %v6727 = vld [vmem:[%s167 + $0x80] sm:$0xff]
    %v6728 = vld [vmem:[%s167 + $0x88] sm:$0xff]
    %v6729 = vld [vmem:[%s167 + $0x90] sm:$0xff]
    %v6730 = vld [vmem:[%s167 + $0x98] sm:$0xff]
    %v6731 = vld [vmem:[%s167 + $0xa0] sm:$0xff]
    %v6732 = vld [vmem:[%s167 + $0xa8] sm:$0xff]
    %v6733 = vld [vmem:[%s167 + $0xb0] sm:$0xff]
    %v6734 = vld [vmem:[%s167 + $0xb8] sm:$0xff]
    %v6735 = vld [vmem:[%s167 + $0xc0] sm:$0xff]
    %v6736 = vld [vmem:[%s167 + $0xc8] sm:$0xff]
    %v6737 = vld [vmem:[%s167 + $0xd0] sm:$0xff]
    %v6738 = vld [vmem:[%s167 + $0xd8] sm:$0xff]
    %v6739 = vld [vmem:[%s167 + $0xe0] sm:$0xff]
    %v6740 = vld [vmem:[%s167 + $0xe8] sm:$0xff]
    %v6741 = vld [vmem:[%s167 + $0xf0] sm:$0xff]
    %v6742 = vld [vmem:[%s167 + $0xf8] sm:$0xff]
    %v6743 = vld [vmem:[%s167 + $0x100] sm:$0xff]
    %v6744 = vld [vmem:[%s167 + $0x108] sm:$0xff]
    %v6745 = vld [vmem:[%s167 + $0x110] sm:$0xff]
    %v6746 = vld [vmem:[%s167 + $0x118] sm:$0xff]
    %v6747 = vld [vmem:[%s167 + $0x120] sm:$0xff]
    %v6748 = vld [vmem:[%s167 + $0x128] sm:$0xff]
    %v6749 = vld [vmem:[%s167 + $0x130] sm:$0xff]
    %v6750 = vld [vmem:[%s167 + $0x138] sm:$0xff]
    %v6751 = vld [vmem:[%s167 + $0x140] sm:$0xff]
    %v6752 = vld [vmem:[%s167 + $0x148] sm:$0xff]
    %v6753 = vld [vmem:[%s167 + $0x150] sm:$0xff]
    %v6754 = vld [vmem:[%s167 + $0x158] sm:$0xff]
    %v6755 = vld [vmem:[%s167 + $0x160] sm:$0xff]
    %v6756 = vld [vmem:[%s167 + $0x168] sm:$0xff]
    %v6757 = vld [vmem:[%s167 + $0x170] sm:$0xff]
    %v6758 = vld [vmem:[%s167 + $0x178] sm:$0xff]
    %v6759 = vld [vmem:[%s167 + $0x180] sm:$0xff]
    %v6760 = vld [vmem:[%s167 + $0x188] sm:$0xff]
    %v6761 = vld [vmem:[%s167 + $0x190] sm:$0xff]
    %v6762 = vld [vmem:[%s167 + $0x198] sm:$0xff]
    %v6763 = vld [vmem:[%s167 + $0x1a0] sm:$0xff]
    %v6764 = vld [vmem:[%s167 + $0x1a8] sm:$0xff]
    %v6765 = vld [vmem:[%s167 + $0x1b0] sm:$0xff]
    %v6766 = vld [vmem:[%s167 + $0x1b8] sm:$0xff]
    %v6767 = vld [vmem:[%s167 + $0x1c0] sm:$0xff]
    %v6768 = vld [vmem:[%s167 + $0x1c8] sm:$0xff]
    %v6769 = vld [vmem:[%s167 + $0x1d0] sm:$0xff]
    %v6770 = vld [vmem:[%s167 + $0x1d8] sm:$0xff]
    %v6771 = vld [vmem:[%s167 + $0x1e0] sm:$0xff]
    %v6772 = vld [vmem:[%s167 + $0x1e8] sm:$0xff]
    %v6773 = vld [vmem:[%s167 + $0x1f0] sm:$0xff]
    %v6774 = vld [vmem:[%s167 + $0x1f8] sm:$0xff]
    %v6775 = vld [vmem:[%s167 + $0x200] sm:$0xff]
    %v6776 = vld [vmem:[%s167 + $0x208] sm:$0xff]
    %v6777 = vld [vmem:[%s167 + $0x210] sm:$0xff]
    %v6778 = vld [vmem:[%s167 + $0x218] sm:$0xff]
    %v6779 = vld [vmem:[%s167 + $0x220] sm:$0xff]
    %v6780 = vld [vmem:[%s167 + $0x228] sm:$0xff]
    %v6781 = vld [vmem:[%s167 + $0x230] sm:$0xff]
    %v6782 = vld [vmem:[%s167 + $0x238] sm:$0xff]
    %v6783 = vld [vmem:[%s167 + $0x240] sm:$0xff]
    %v6784 = vld [vmem:[%s167 + $0x248] sm:$0xff]
    %v6785 = vld [vmem:[%s167 + $0x250] sm:$0xff]
    %v6786 = vld [vmem:[%s167 + $0x258] sm:$0xff]
    %v6787 = vld [vmem:[%s167 + $0x260] sm:$0xff]
    %v6788 = vld [vmem:[%s167 + $0x268] sm:$0xff]
    %v6789 = vld [vmem:[%s167 + $0x270] sm:$0xff]
    %v6790 = vld [vmem:[%s167 + $0x278] sm:$0xff]
    %v6791 = vld [vmem:[%s167 + $0x280] sm:$0xff]
    %v6792 = vld [vmem:[%s167 + $0x288] sm:$0xff]
    %v6793 = vld [vmem:[%s167 + $0x290] sm:$0xff]
    %v6794 = vld [vmem:[%s167 + $0x298] sm:$0xff]
    %v6795 = vld [vmem:[%s167 + $0x2a0] sm:$0xff]
    %v6796 = vld [vmem:[%s167 + $0x2a8] sm:$0xff]
    %v6797 = vld [vmem:[%s167 + $0x2b0] sm:$0xff]
    %v6798 = vld [vmem:[%s167 + $0x2b8] sm:$0xff]
    %v6799 = vld [vmem:[%s167 + $0x2c0] sm:$0xff]
    %v6800 = vld [vmem:[%s167 + $0x2c8] sm:$0xff]
    %v6801 = vld [vmem:[%s167 + $0x2d0] sm:$0xff]
    %v6802 = vld [vmem:[%s167 + $0x2d8] sm:$0xff]
    %v6803 = vld [vmem:[%s167 + $0x2e0] sm:$0xff]
    %v6804 = vld [vmem:[%s167 + $0x2e8] sm:$0xff]
    %v6805 = vld [vmem:[%s167 + $0x2f0] sm:$0xff]
    %v6806 = vld [vmem:[%s167 + $0x2f8] sm:$0xff]
    %v6807 = vld [vmem:[%s167 + $0x300] sm:$0xff]
    %v6808 = vld [vmem:[%s167 + $0x308] sm:$0xff]
    %v6809 = vld [vmem:[%s167 + $0x310] sm:$0xff]
    %v6810 = vld [vmem:[%s167 + $0x318] sm:$0xff]
    %v6811 = vld [vmem:[%s167 + $0x320] sm:$0xff]
    %v6812 = vld [vmem:[%s167 + $0x328] sm:$0xff]
    %v6813 = vld [vmem:[%s167 + $0x330] sm:$0xff]
    %v6814 = vld [vmem:[%s167 + $0x338] sm:$0xff]
    %v6815 = vld [vmem:[%s167 + $0x340] sm:$0xff]
    %v6816 = vld [vmem:[%s167 + $0x348] sm:$0xff]
    %v6817 = vld [vmem:[%s167 + $0x350] sm:$0xff]
    %v6818 = vld [vmem:[%s167 + $0x358] sm:$0xff]
    %v6819 = vld [vmem:[%s167 + $0x360] sm:$0xff]
    %v6820 = vld [vmem:[%s167 + $0x368] sm:$0xff]
    %v6821 = vld [vmem:[%s167 + $0x370] sm:$0xff]
    %v6822 = vld [vmem:[%s167 + $0x378] sm:$0xff]
    %v6823 = vld [vmem:[%s167 + $0x380] sm:$0xff]
    %v6824 = vld [vmem:[%s167 + $0x388] sm:$0xff]
    %v6825 = vld [vmem:[%s167 + $0x390] sm:$0xff]
    %v6826 = vld [vmem:[%s167 + $0x398] sm:$0xff]
    %v6827 = vld [vmem:[%s167 + $0x3a0] sm:$0xff]
    %v6828 = vld [vmem:[%s167 + $0x3a8] sm:$0xff]
    %v6829 = vld [vmem:[%s167 + $0x3b0] sm:$0xff]
    %v6830 = vld [vmem:[%s167 + $0x3b8] sm:$0xff]
    %v6831 = vld [vmem:[%s167 + $0x3c0] sm:$0xff]
    %v6832 = vld [vmem:[%s167 + $0x3c8] sm:$0xff]
    %v6833 = vld [vmem:[%s167 + $0x3d0] sm:$0xff]
    %v6834 = vld [vmem:[%s167 + $0x3d8] sm:$0xff]
    %v6835 = vld [vmem:[%s167 + $0x3e0] sm:$0xff]
    %v6836 = vld [vmem:[%s167 + $0x3e8] sm:$0xff]
    %v6837 = vld [vmem:[%s167 + $0x3f0] sm:$0xff]
    %v6838 = vld [vmem:[%s167 + $0x3f8] sm:$0xff]
    %s6839 = scalar_lea.hbm %s6, 3072
    // Predicated region
    $region102: #{gcn_res_forward.1} parent=1 // pred_check
      _
    $region103: #{gcn_res_forward.1} parent=1 // pred_check_branch
      %6841 = sbr.rel target = $region105
    $region104: #{gcn_res_forward.1} parent=1 // pred_region
      %6842 = sst [smem:[#allocation19]] [#allocation34]
      %6843 = sst [smem:[#allocation20]] [#allocation33]
    $region105: #{gcn_res_forward.1} parent=1 // pred_fallthru
      _
    %6845 = shalt.err (0)
    %s6847 = sshll.u32 %s6839, 4
    %s6848 = int_to_ptr.hbm [resolvable:$true] %s6847
    %s6849 = sshll.u32 %s167, 4
    %s6850 = int_to_ptr.vmem [resolvable:$true] %s6849
    %6852 = dma.hbm_to_vmem [thread:$0]  %s6848, 16384, %s6850, %s168
    %s6853 = sshll.u32 %s987, 4
    %6854 = dma.done %s972, %s6853
    %v6855 = vld [vmem:[%s971] sm:$0xff]
    %v6856 = vld [vmem:[%s971 + $0x8] sm:$0xff]
    %v6857 = vld [vmem:[%s971 + $0x10] sm:$0xff]
    %v6858 = vld [vmem:[%s971 + $0x18] sm:$0xff]
    %v6859 = vld [vmem:[%s971 + $0x20] sm:$0xff]
    %v6860 = vld [vmem:[%s971 + $0x28] sm:$0xff]
    %v6861 = vld [vmem:[%s971 + $0x30] sm:$0xff]
    %v6862 = vld [vmem:[%s971 + $0x38] sm:$0xff]
    %v6863 = vld [vmem:[%s971 + $0x40] sm:$0xff]
    %v6864 = vld [vmem:[%s971 + $0x48] sm:$0xff]
    %v6865 = vld [vmem:[%s971 + $0x50] sm:$0xff]
    %v6866 = vld [vmem:[%s971 + $0x58] sm:$0xff]
    %v6867 = vld [vmem:[%s971 + $0x60] sm:$0xff]
    %v6868 = vld [vmem:[%s971 + $0x68] sm:$0xff]
    %v6869 = vld [vmem:[%s971 + $0x70] sm:$0xff]
    %v6870 = vld [vmem:[%s971 + $0x78] sm:$0xff]
    %v6871 = vld [vmem:[%s971 + $0x80] sm:$0xff]
    %v6872 = vld [vmem:[%s971 + $0x88] sm:$0xff]
    %v6873 = vld [vmem:[%s971 + $0x90] sm:$0xff]
    %v6874 = vld [vmem:[%s971 + $0x98] sm:$0xff]
    %v6875 = vld [vmem:[%s971 + $0xa0] sm:$0xff]
    %v6876 = vld [vmem:[%s971 + $0xa8] sm:$0xff]
    %v6877 = vld [vmem:[%s971 + $0xb0] sm:$0xff]
    %v6878 = vld [vmem:[%s971 + $0xb8] sm:$0xff]
    %v6879 = vld [vmem:[%s971 + $0xc0] sm:$0xff]
    %v6880 = vld [vmem:[%s971 + $0xc8] sm:$0xff]
    %v6881 = vld [vmem:[%s971 + $0xd0] sm:$0xff]
    %v6882 = vld [vmem:[%s971 + $0xd8] sm:$0xff]
    %v6883 = vld [vmem:[%s971 + $0xe0] sm:$0xff]
    %v6884 = vld [vmem:[%s971 + $0xe8] sm:$0xff]
    %v6885 = vld [vmem:[%s971 + $0xf0] sm:$0xff]
    %v6886 = vld [vmem:[%s971 + $0xf8] sm:$0xff]
    %v6887 = vld [vmem:[%s971 + $0x100] sm:$0xff]
    %v6888 = vld [vmem:[%s971 + $0x108] sm:$0xff]
    %v6889 = vld [vmem:[%s971 + $0x110] sm:$0xff]
    %v6890 = vld [vmem:[%s971 + $0x118] sm:$0xff]
    %v6891 = vld [vmem:[%s971 + $0x120] sm:$0xff]
    %v6892 = vld [vmem:[%s971 + $0x128] sm:$0xff]
    %v6893 = vld [vmem:[%s971 + $0x130] sm:$0xff]
    %v6894 = vld [vmem:[%s971 + $0x138] sm:$0xff]
    %v6895 = vld [vmem:[%s971 + $0x140] sm:$0xff]
    %v6896 = vld [vmem:[%s971 + $0x148] sm:$0xff]
    %v6897 = vld [vmem:[%s971 + $0x150] sm:$0xff]
    %v6898 = vld [vmem:[%s971 + $0x158] sm:$0xff]
    %v6899 = vld [vmem:[%s971 + $0x160] sm:$0xff]
    %v6900 = vld [vmem:[%s971 + $0x168] sm:$0xff]
    %v6901 = vld [vmem:[%s971 + $0x170] sm:$0xff]
    %v6902 = vld [vmem:[%s971 + $0x178] sm:$0xff]
    %v6903 = vld [vmem:[%s971 + $0x180] sm:$0xff]
    %v6904 = vld [vmem:[%s971 + $0x188] sm:$0xff]
    %v6905 = vld [vmem:[%s971 + $0x190] sm:$0xff]
    %v6906 = vld [vmem:[%s971 + $0x198] sm:$0xff]
    %v6907 = vld [vmem:[%s971 + $0x1a0] sm:$0xff]
    %v6908 = vld [vmem:[%s971 + $0x1a8] sm:$0xff]
    %v6909 = vld [vmem:[%s971 + $0x1b0] sm:$0xff]
    %v6910 = vld [vmem:[%s971 + $0x1b8] sm:$0xff]
    %v6911 = vld [vmem:[%s971 + $0x1c0] sm:$0xff]
    %v6912 = vld [vmem:[%s971 + $0x1c8] sm:$0xff]
    %v6913 = vld [vmem:[%s971 + $0x1d0] sm:$0xff]
    %v6914 = vld [vmem:[%s971 + $0x1d8] sm:$0xff]
    %v6915 = vld [vmem:[%s971 + $0x1e0] sm:$0xff]
    %v6916 = vld [vmem:[%s971 + $0x1e8] sm:$0xff]
    %v6917 = vld [vmem:[%s971 + $0x1f0] sm:$0xff]
    %v6918 = vld [vmem:[%s971 + $0x1f8] sm:$0xff]
    %v6919 = vld [vmem:[%s971 + $0x200] sm:$0xff]
    %v6920 = vld [vmem:[%s971 + $0x208] sm:$0xff]
    %v6921 = vld [vmem:[%s971 + $0x210] sm:$0xff]
    %v6922 = vld [vmem:[%s971 + $0x218] sm:$0xff]
    %v6923 = vld [vmem:[%s971 + $0x220] sm:$0xff]
    %v6924 = vld [vmem:[%s971 + $0x228] sm:$0xff]
    %v6925 = vld [vmem:[%s971 + $0x230] sm:$0xff]
    %v6926 = vld [vmem:[%s971 + $0x238] sm:$0xff]
    %v6927 = vld [vmem:[%s971 + $0x240] sm:$0xff]
    %v6928 = vld [vmem:[%s971 + $0x248] sm:$0xff]
    %v6929 = vld [vmem:[%s971 + $0x250] sm:$0xff]
    %v6930 = vld [vmem:[%s971 + $0x258] sm:$0xff]
    %v6931 = vld [vmem:[%s971 + $0x260] sm:$0xff]
    %v6932 = vld [vmem:[%s971 + $0x268] sm:$0xff]
    %v6933 = vld [vmem:[%s971 + $0x270] sm:$0xff]
    %v6934 = vld [vmem:[%s971 + $0x278] sm:$0xff]
    %v6935 = vld [vmem:[%s971 + $0x280] sm:$0xff]
    %v6936 = vld [vmem:[%s971 + $0x288] sm:$0xff]
    %v6937 = vld [vmem:[%s971 + $0x290] sm:$0xff]
    %v6938 = vld [vmem:[%s971 + $0x298] sm:$0xff]
    %v6939 = vld [vmem:[%s971 + $0x2a0] sm:$0xff]
    %v6940 = vld [vmem:[%s971 + $0x2a8] sm:$0xff]
    %v6941 = vld [vmem:[%s971 + $0x2b0] sm:$0xff]
    %v6942 = vld [vmem:[%s971 + $0x2b8] sm:$0xff]
    %v6943 = vld [vmem:[%s971 + $0x2c0] sm:$0xff]
    %v6944 = vld [vmem:[%s971 + $0x2c8] sm:$0xff]
    %v6945 = vld [vmem:[%s971 + $0x2d0] sm:$0xff]
    %v6946 = vld [vmem:[%s971 + $0x2d8] sm:$0xff]
    %v6947 = vld [vmem:[%s971 + $0x2e0] sm:$0xff]
    %v6948 = vld [vmem:[%s971 + $0x2e8] sm:$0xff]
    %v6949 = vld [vmem:[%s971 + $0x2f0] sm:$0xff]
    %v6950 = vld [vmem:[%s971 + $0x2f8] sm:$0xff]
    %v6951 = vld [vmem:[%s971 + $0x300] sm:$0xff]
    %v6952 = vld [vmem:[%s971 + $0x308] sm:$0xff]
    %v6953 = vld [vmem:[%s971 + $0x310] sm:$0xff]
    %v6954 = vld [vmem:[%s971 + $0x318] sm:$0xff]
    %v6955 = vld [vmem:[%s971 + $0x320] sm:$0xff]
    %v6956 = vld [vmem:[%s971 + $0x328] sm:$0xff]
    %v6957 = vld [vmem:[%s971 + $0x330] sm:$0xff]
    %v6958 = vld [vmem:[%s971 + $0x338] sm:$0xff]
    %v6959 = vld [vmem:[%s971 + $0x340] sm:$0xff]
    %v6960 = vld [vmem:[%s971 + $0x348] sm:$0xff]
    %v6961 = vld [vmem:[%s971 + $0x350] sm:$0xff]
    %v6962 = vld [vmem:[%s971 + $0x358] sm:$0xff]
    %v6963 = vld [vmem:[%s971 + $0x360] sm:$0xff]
    %v6964 = vld [vmem:[%s971 + $0x368] sm:$0xff]
    %v6965 = vld [vmem:[%s971 + $0x370] sm:$0xff]
    %v6966 = vld [vmem:[%s971 + $0x378] sm:$0xff]
    %v6967 = vld [vmem:[%s971 + $0x380] sm:$0xff]
    %v6968 = vld [vmem:[%s971 + $0x388] sm:$0xff]
    %v6969 = vld [vmem:[%s971 + $0x390] sm:$0xff]
    %v6970 = vld [vmem:[%s971 + $0x398] sm:$0xff]
    %v6971 = vld [vmem:[%s971 + $0x3a0] sm:$0xff]
    %v6972 = vld [vmem:[%s971 + $0x3a8] sm:$0xff]
    %v6973 = vld [vmem:[%s971 + $0x3b0] sm:$0xff]
    %v6974 = vld [vmem:[%s971 + $0x3b8] sm:$0xff]
    %v6975 = vld [vmem:[%s971 + $0x3c0] sm:$0xff]
    %v6976 = vld [vmem:[%s971 + $0x3c8] sm:$0xff]
    %v6977 = vld [vmem:[%s971 + $0x3d0] sm:$0xff]
    %v6978 = vld [vmem:[%s971 + $0x3d8] sm:$0xff]
    %v6979 = vld [vmem:[%s971 + $0x3e0] sm:$0xff]
    %v6980 = vld [vmem:[%s971 + $0x3e8] sm:$0xff]
    %v6981 = vld [vmem:[%s971 + $0x3f0] sm:$0xff]
    %v6982 = vld [vmem:[%s971 + $0x3f8] sm:$0xff]
    %v6991 = vunpack.c.l.b16 %v6664
    %v6992 = vunpack.c.h.b16 %v6664
    %v6993 = vunpack.c.l.b16 %v6668
    %v6994 = vunpack.c.h.b16 %v6668
    %v6995 = vunpack.c.l.b16 %v6672
    %v6996 = vunpack.c.h.b16 %v6672
    %v6997 = vunpack.c.l.b16 %v6676
    %v6998 = vunpack.c.h.b16 %v6676
    %v6999 = vunpack.c.l.b16 %v6680
    %v7000 = vunpack.c.h.b16 %v6680
    %v7001 = vunpack.c.l.b16 %v6684
    %v7002 = vunpack.c.h.b16 %v6684
    %v7003 = vunpack.c.l.b16 %v6688
    %v7004 = vunpack.c.h.b16 %v6688
    %v7005 = vunpack.c.l.b16 %v6692
    %v7006 = vunpack.c.h.b16 %v6692
    %v7007 = vpack.c.b16 %v6993, %v6991
    %v7008 = vpack.c.b16 %v6994, %v6992
    %v7009 = vpack.c.b16 %v6997, %v6995
    %v7010 = vpack.c.b16 %v6998, %v6996
    %v7011 = vpack.c.b16 %v7001, %v6999
    %v7012 = vpack.c.b16 %v7002, %v7000
    %v7013 = vpack.c.b16 %v7005, %v7003
    %v7014 = vpack.c.b16 %v7006, %v7004
    %v7151 = vunpack.c.l.b16 %v6855
    %v7152 = vunpack.c.h.b16 %v6855
    %v7153 = vunpack.c.l.b16 %v6856
    %v7154 = vunpack.c.h.b16 %v6856
    %v7155 = vunpack.c.l.b16 %v6857
    %v7156 = vunpack.c.h.b16 %v6857
    %v7157 = vunpack.c.l.b16 %v6858
    %v7158 = vunpack.c.h.b16 %v6858
    %v7159 = vunpack.c.l.b16 %v6859
    %v7160 = vunpack.c.h.b16 %v6859
    %v7161 = vunpack.c.l.b16 %v6860
    %v7162 = vunpack.c.h.b16 %v6860
    %v7163 = vunpack.c.l.b16 %v6861
    %v7164 = vunpack.c.h.b16 %v6861
    %v7165 = vunpack.c.l.b16 %v6862
    %v7166 = vunpack.c.h.b16 %v6862
    %v7167 = vunpack.c.l.b16 %v6863
    %v7168 = vunpack.c.h.b16 %v6863
    %v7169 = vunpack.c.l.b16 %v6864
    %v7170 = vunpack.c.h.b16 %v6864
    %v7171 = vunpack.c.l.b16 %v6865
    %v7172 = vunpack.c.h.b16 %v6865
    %v7173 = vunpack.c.l.b16 %v6866
    %v7174 = vunpack.c.h.b16 %v6866
    %v7175 = vunpack.c.l.b16 %v6867
    %v7176 = vunpack.c.h.b16 %v6867
    %v7177 = vunpack.c.l.b16 %v6868
    %v7178 = vunpack.c.h.b16 %v6868
    %v7179 = vunpack.c.l.b16 %v6869
    %v7180 = vunpack.c.h.b16 %v6869
    %v7181 = vunpack.c.l.b16 %v6870
    %v7182 = vunpack.c.h.b16 %v6870
    %v7183 = vunpack.c.l.b16 %v6871
    %v7184 = vunpack.c.h.b16 %v6871
    %v7185 = vunpack.c.l.b16 %v6872
    %v7186 = vunpack.c.h.b16 %v6872
    %v7187 = vunpack.c.l.b16 %v6873
    %v7188 = vunpack.c.h.b16 %v6873
    %v7189 = vunpack.c.l.b16 %v6874
    %v7190 = vunpack.c.h.b16 %v6874
    %v7191 = vunpack.c.l.b16 %v6875
    %v7192 = vunpack.c.h.b16 %v6875
    %v7193 = vunpack.c.l.b16 %v6876
    %v7194 = vunpack.c.h.b16 %v6876
    %v7195 = vunpack.c.l.b16 %v6877
    %v7196 = vunpack.c.h.b16 %v6877
    %v7197 = vunpack.c.l.b16 %v6878
    %v7198 = vunpack.c.h.b16 %v6878
    %v7199 = vunpack.c.l.b16 %v6879
    %v7200 = vunpack.c.h.b16 %v6879
    %v7201 = vunpack.c.l.b16 %v6880
    %v7202 = vunpack.c.h.b16 %v6880
    %v7203 = vunpack.c.l.b16 %v6881
    %v7204 = vunpack.c.h.b16 %v6881
    %v7205 = vunpack.c.l.b16 %v6882
    %v7206 = vunpack.c.h.b16 %v6882
    %v7207 = vunpack.c.l.b16 %v6883
    %v7208 = vunpack.c.h.b16 %v6883
    %v7209 = vunpack.c.l.b16 %v6884
    %v7210 = vunpack.c.h.b16 %v6884
    %v7211 = vunpack.c.l.b16 %v6885
    %v7212 = vunpack.c.h.b16 %v6885
    %v7213 = vunpack.c.l.b16 %v6886
    %v7214 = vunpack.c.h.b16 %v6886
    %v7215 = vunpack.c.l.b16 %v6887
    %v7216 = vunpack.c.h.b16 %v6887
    %v7217 = vunpack.c.l.b16 %v6888
    %v7218 = vunpack.c.h.b16 %v6888
    %v7219 = vunpack.c.l.b16 %v6889
    %v7220 = vunpack.c.h.b16 %v6889
    %v7221 = vunpack.c.l.b16 %v6890
    %v7222 = vunpack.c.h.b16 %v6890
    %v7223 = vunpack.c.l.b16 %v6891
    %v7224 = vunpack.c.h.b16 %v6891
    %v7225 = vunpack.c.l.b16 %v6892
    %v7226 = vunpack.c.h.b16 %v6892
    %v7227 = vunpack.c.l.b16 %v6893
    %v7228 = vunpack.c.h.b16 %v6893
    %v7229 = vunpack.c.l.b16 %v6894
    %v7230 = vunpack.c.h.b16 %v6894
    %v7231 = vunpack.c.l.b16 %v6895
    %v7232 = vunpack.c.h.b16 %v6895
    %v7233 = vunpack.c.l.b16 %v6896
    %v7234 = vunpack.c.h.b16 %v6896
    %v7235 = vunpack.c.l.b16 %v6897
    %v7236 = vunpack.c.h.b16 %v6897
    %v7237 = vunpack.c.l.b16 %v6898
    %v7238 = vunpack.c.h.b16 %v6898
    %v7239 = vunpack.c.l.b16 %v6899
    %v7240 = vunpack.c.h.b16 %v6899
    %v7241 = vunpack.c.l.b16 %v6900
    %v7242 = vunpack.c.h.b16 %v6900
    %v7243 = vunpack.c.l.b16 %v6901
    %v7244 = vunpack.c.h.b16 %v6901
    %v7245 = vunpack.c.l.b16 %v6902
    %v7246 = vunpack.c.h.b16 %v6902
    %v7247 = vunpack.c.l.b16 %v6903
    %v7248 = vunpack.c.h.b16 %v6903
    %v7249 = vunpack.c.l.b16 %v6904
    %v7250 = vunpack.c.h.b16 %v6904
    %v7251 = vunpack.c.l.b16 %v6905
    %v7252 = vunpack.c.h.b16 %v6905
    %v7253 = vunpack.c.l.b16 %v6906
    %v7254 = vunpack.c.h.b16 %v6906
    %v7255 = vunpack.c.l.b16 %v6907
    %v7256 = vunpack.c.h.b16 %v6907
    %v7257 = vunpack.c.l.b16 %v6908
    %v7258 = vunpack.c.h.b16 %v6908
    %v7259 = vunpack.c.l.b16 %v6909
    %v7260 = vunpack.c.h.b16 %v6909
    %v7261 = vunpack.c.l.b16 %v6910
    %v7262 = vunpack.c.h.b16 %v6910
    %v7263 = vunpack.c.l.b16 %v6911
    %v7264 = vunpack.c.h.b16 %v6911
    %v7265 = vunpack.c.l.b16 %v6912
    %v7266 = vunpack.c.h.b16 %v6912
    %v7267 = vunpack.c.l.b16 %v6913
    %v7268 = vunpack.c.h.b16 %v6913
    %v7269 = vunpack.c.l.b16 %v6914
    %v7270 = vunpack.c.h.b16 %v6914
    %v7271 = vunpack.c.l.b16 %v6915
    %v7272 = vunpack.c.h.b16 %v6915
    %v7273 = vunpack.c.l.b16 %v6916
    %v7274 = vunpack.c.h.b16 %v6916
    %v7275 = vunpack.c.l.b16 %v6917
    %v7276 = vunpack.c.h.b16 %v6917
    %v7277 = vunpack.c.l.b16 %v6918
    %v7278 = vunpack.c.h.b16 %v6918
    %v7279 = vunpack.c.l.b16 %v6919
    %v7280 = vunpack.c.h.b16 %v6919
    %v7281 = vunpack.c.l.b16 %v6920
    %v7282 = vunpack.c.h.b16 %v6920
    %v7283 = vunpack.c.l.b16 %v6921
    %v7284 = vunpack.c.h.b16 %v6921
    %v7285 = vunpack.c.l.b16 %v6922
    %v7286 = vunpack.c.h.b16 %v6922
    %v7287 = vunpack.c.l.b16 %v6923
    %v7288 = vunpack.c.h.b16 %v6923
    %v7289 = vunpack.c.l.b16 %v6924
    %v7290 = vunpack.c.h.b16 %v6924
    %v7291 = vunpack.c.l.b16 %v6925
    %v7292 = vunpack.c.h.b16 %v6925
    %v7293 = vunpack.c.l.b16 %v6926
    %v7294 = vunpack.c.h.b16 %v6926
    %v7295 = vunpack.c.l.b16 %v6927
    %v7296 = vunpack.c.h.b16 %v6927
    %v7297 = vunpack.c.l.b16 %v6928
    %v7298 = vunpack.c.h.b16 %v6928
    %v7299 = vunpack.c.l.b16 %v6929
    %v7300 = vunpack.c.h.b16 %v6929
    %v7301 = vunpack.c.l.b16 %v6930
    %v7302 = vunpack.c.h.b16 %v6930
    %v7303 = vunpack.c.l.b16 %v6931
    %v7304 = vunpack.c.h.b16 %v6931
    %v7305 = vunpack.c.l.b16 %v6932
    %v7306 = vunpack.c.h.b16 %v6932
    %v7307 = vunpack.c.l.b16 %v6933
    %v7308 = vunpack.c.h.b16 %v6933
    %v7309 = vunpack.c.l.b16 %v6934
    %v7310 = vunpack.c.h.b16 %v6934
    %v7311 = vunpack.c.l.b16 %v6935
    %v7312 = vunpack.c.h.b16 %v6935
    %v7313 = vunpack.c.l.b16 %v6936
    %v7314 = vunpack.c.h.b16 %v6936
    %v7315 = vunpack.c.l.b16 %v6937
    %v7316 = vunpack.c.h.b16 %v6937
    %v7317 = vunpack.c.l.b16 %v6938
    %v7318 = vunpack.c.h.b16 %v6938
    %v7319 = vunpack.c.l.b16 %v6939
    %v7320 = vunpack.c.h.b16 %v6939
    %v7321 = vunpack.c.l.b16 %v6940
    %v7322 = vunpack.c.h.b16 %v6940
    %v7323 = vunpack.c.l.b16 %v6941
    %v7324 = vunpack.c.h.b16 %v6941
    %v7325 = vunpack.c.l.b16 %v6942
    %v7326 = vunpack.c.h.b16 %v6942
    %v7327 = vunpack.c.l.b16 %v6943
    %v7328 = vunpack.c.h.b16 %v6943
    %v7329 = vunpack.c.l.b16 %v6944
    %v7330 = vunpack.c.h.b16 %v6944
    %v7331 = vunpack.c.l.b16 %v6945
    %v7332 = vunpack.c.h.b16 %v6945
    %v7333 = vunpack.c.l.b16 %v6946
    %v7334 = vunpack.c.h.b16 %v6946
    %v7335 = vunpack.c.l.b16 %v6947
    %v7336 = vunpack.c.h.b16 %v6947
    %v7337 = vunpack.c.l.b16 %v6948
    %v7338 = vunpack.c.h.b16 %v6948
    %v7339 = vunpack.c.l.b16 %v6949
    %v7340 = vunpack.c.h.b16 %v6949
    %v7341 = vunpack.c.l.b16 %v6950
    %v7342 = vunpack.c.h.b16 %v6950
    %v7343 = vunpack.c.l.b16 %v6951
    %v7344 = vunpack.c.h.b16 %v6951
    %v7345 = vunpack.c.l.b16 %v6952
    %v7346 = vunpack.c.h.b16 %v6952
    %v7347 = vunpack.c.l.b16 %v6953
    %v7348 = vunpack.c.h.b16 %v6953
    %v7349 = vunpack.c.l.b16 %v6954
    %v7350 = vunpack.c.h.b16 %v6954
    %v7351 = vunpack.c.l.b16 %v6955
    %v7352 = vunpack.c.h.b16 %v6955
    %v7353 = vunpack.c.l.b16 %v6956
    %v7354 = vunpack.c.h.b16 %v6956
    %v7355 = vunpack.c.l.b16 %v6957
    %v7356 = vunpack.c.h.b16 %v6957
    %v7357 = vunpack.c.l.b16 %v6958
    %v7358 = vunpack.c.h.b16 %v6958
    %v7359 = vunpack.c.l.b16 %v6959
    %v7360 = vunpack.c.h.b16 %v6959
    %v7361 = vunpack.c.l.b16 %v6960
    %v7362 = vunpack.c.h.b16 %v6960
    %v7363 = vunpack.c.l.b16 %v6961
    %v7364 = vunpack.c.h.b16 %v6961
    %v7365 = vunpack.c.l.b16 %v6962
    %v7366 = vunpack.c.h.b16 %v6962
    %v7367 = vunpack.c.l.b16 %v6963
    %v7368 = vunpack.c.h.b16 %v6963
    %v7369 = vunpack.c.l.b16 %v6964
    %v7370 = vunpack.c.h.b16 %v6964
    %v7371 = vunpack.c.l.b16 %v6965
    %v7372 = vunpack.c.h.b16 %v6965
    %v7373 = vunpack.c.l.b16 %v6966
    %v7374 = vunpack.c.h.b16 %v6966
    %v7375 = vunpack.c.l.b16 %v6967
    %v7376 = vunpack.c.h.b16 %v6967
    %v7377 = vunpack.c.l.b16 %v6968
    %v7378 = vunpack.c.h.b16 %v6968
    %v7379 = vunpack.c.l.b16 %v6969
    %v7380 = vunpack.c.h.b16 %v6969
    %v7381 = vunpack.c.l.b16 %v6970
    %v7382 = vunpack.c.h.b16 %v6970
    %v7383 = vunpack.c.l.b16 %v6971
    %v7384 = vunpack.c.h.b16 %v6971
    %v7385 = vunpack.c.l.b16 %v6972
    %v7386 = vunpack.c.h.b16 %v6972
    %v7387 = vunpack.c.l.b16 %v6973
    %v7388 = vunpack.c.h.b16 %v6973
    %v7389 = vunpack.c.l.b16 %v6974
    %v7390 = vunpack.c.h.b16 %v6974
    %v7391 = vunpack.c.l.b16 %v6975
    %v7392 = vunpack.c.h.b16 %v6975
    %v7393 = vunpack.c.l.b16 %v6976
    %v7394 = vunpack.c.h.b16 %v6976
    %v7395 = vunpack.c.l.b16 %v6977
    %v7396 = vunpack.c.h.b16 %v6977
    %v7397 = vunpack.c.l.b16 %v6978
    %v7398 = vunpack.c.h.b16 %v6978
    %v7399 = vunpack.c.l.b16 %v6979
    %v7400 = vunpack.c.h.b16 %v6979
    %v7401 = vunpack.c.l.b16 %v6980
    %v7402 = vunpack.c.h.b16 %v6980
    %v7403 = vunpack.c.l.b16 %v6981
    %v7404 = vunpack.c.h.b16 %v6981
    %v7405 = vunpack.c.l.b16 %v6982
    %v7406 = vunpack.c.h.b16 %v6982
    %v7407 = vpack.c.b16 %v7159, %v7151
    %v7408 = vpack.c.b16 %v7160, %v7152
    %v7409 = vpack.c.b16 %v7161, %v7153
    %v7410 = vpack.c.b16 %v7162, %v7154
    %v7411 = vpack.c.b16 %v7163, %v7155
    %v7412 = vpack.c.b16 %v7164, %v7156
    %v7413 = vpack.c.b16 %v7165, %v7157
    %v7414 = vpack.c.b16 %v7166, %v7158
    %v7415 = vpack.c.b16 %v7175, %v7167
    %v7416 = vpack.c.b16 %v7176, %v7168
    %v7417 = vpack.c.b16 %v7177, %v7169
    %v7418 = vpack.c.b16 %v7178, %v7170
    %v7419 = vpack.c.b16 %v7179, %v7171
    %v7420 = vpack.c.b16 %v7180, %v7172
    %v7421 = vpack.c.b16 %v7181, %v7173
    %v7422 = vpack.c.b16 %v7182, %v7174
    %v7423 = vpack.c.b16 %v7191, %v7183
    %v7424 = vpack.c.b16 %v7192, %v7184
    %v7425 = vpack.c.b16 %v7193, %v7185
    %v7426 = vpack.c.b16 %v7194, %v7186
    %v7427 = vpack.c.b16 %v7195, %v7187
    %v7428 = vpack.c.b16 %v7196, %v7188
    %v7429 = vpack.c.b16 %v7197, %v7189
    %v7430 = vpack.c.b16 %v7198, %v7190
    %v7431 = vpack.c.b16 %v7207, %v7199
    %v7432 = vpack.c.b16 %v7208, %v7200
    %v7433 = vpack.c.b16 %v7209, %v7201
    %v7434 = vpack.c.b16 %v7210, %v7202
    %v7435 = vpack.c.b16 %v7211, %v7203
    %v7436 = vpack.c.b16 %v7212, %v7204
    %v7437 = vpack.c.b16 %v7213, %v7205
    %v7438 = vpack.c.b16 %v7214, %v7206
    %v7439 = vpack.c.b16 %v7223, %v7215
    %v7440 = vpack.c.b16 %v7224, %v7216
    %v7441 = vpack.c.b16 %v7225, %v7217
    %v7442 = vpack.c.b16 %v7226, %v7218
    %v7443 = vpack.c.b16 %v7227, %v7219
    %v7444 = vpack.c.b16 %v7228, %v7220
    %v7445 = vpack.c.b16 %v7229, %v7221
    %v7446 = vpack.c.b16 %v7230, %v7222
    %v7447 = vpack.c.b16 %v7239, %v7231
    %v7448 = vpack.c.b16 %v7240, %v7232
    %v7449 = vpack.c.b16 %v7241, %v7233
    %v7450 = vpack.c.b16 %v7242, %v7234
    %v7451 = vpack.c.b16 %v7243, %v7235
    %v7452 = vpack.c.b16 %v7244, %v7236
    %v7453 = vpack.c.b16 %v7245, %v7237
    %v7454 = vpack.c.b16 %v7246, %v7238
    %v7455 = vpack.c.b16 %v7255, %v7247
    %v7456 = vpack.c.b16 %v7256, %v7248
    %v7457 = vpack.c.b16 %v7257, %v7249
    %v7458 = vpack.c.b16 %v7258, %v7250
    %v7459 = vpack.c.b16 %v7259, %v7251
    %v7460 = vpack.c.b16 %v7260, %v7252
    %v7461 = vpack.c.b16 %v7261, %v7253
    %v7462 = vpack.c.b16 %v7262, %v7254
    %v7463 = vpack.c.b16 %v7271, %v7263
    %v7464 = vpack.c.b16 %v7272, %v7264
    %v7465 = vpack.c.b16 %v7273, %v7265
    %v7466 = vpack.c.b16 %v7274, %v7266
    %v7467 = vpack.c.b16 %v7275, %v7267
    %v7468 = vpack.c.b16 %v7276, %v7268
    %v7469 = vpack.c.b16 %v7277, %v7269
    %v7470 = vpack.c.b16 %v7278, %v7270
    %v7471 = vpack.c.b16 %v7287, %v7279
    %v7472 = vpack.c.b16 %v7288, %v7280
    %v7473 = vpack.c.b16 %v7289, %v7281
    %v7474 = vpack.c.b16 %v7290, %v7282
    %v7475 = vpack.c.b16 %v7291, %v7283
    %v7476 = vpack.c.b16 %v7292, %v7284
    %v7477 = vpack.c.b16 %v7293, %v7285
    %v7478 = vpack.c.b16 %v7294, %v7286
    %v7479 = vpack.c.b16 %v7303, %v7295
    %v7480 = vpack.c.b16 %v7304, %v7296
    %v7481 = vpack.c.b16 %v7305, %v7297
    %v7482 = vpack.c.b16 %v7306, %v7298
    %v7483 = vpack.c.b16 %v7307, %v7299
    %v7484 = vpack.c.b16 %v7308, %v7300
    %v7485 = vpack.c.b16 %v7309, %v7301
    %v7486 = vpack.c.b16 %v7310, %v7302
    %v7487 = vpack.c.b16 %v7319, %v7311
    %v7488 = vpack.c.b16 %v7320, %v7312
    %v7489 = vpack.c.b16 %v7321, %v7313
    %v7490 = vpack.c.b16 %v7322, %v7314
    %v7491 = vpack.c.b16 %v7323, %v7315
    %v7492 = vpack.c.b16 %v7324, %v7316
    %v7493 = vpack.c.b16 %v7325, %v7317
    %v7494 = vpack.c.b16 %v7326, %v7318
    %v7495 = vpack.c.b16 %v7335, %v7327
    %v7496 = vpack.c.b16 %v7336, %v7328
    %v7497 = vpack.c.b16 %v7337, %v7329
    %v7498 = vpack.c.b16 %v7338, %v7330
    %v7499 = vpack.c.b16 %v7339, %v7331
    %v7500 = vpack.c.b16 %v7340, %v7332
    %v7501 = vpack.c.b16 %v7341, %v7333
    %v7502 = vpack.c.b16 %v7342, %v7334
    %v7503 = vpack.c.b16 %v7351, %v7343
    %v7504 = vpack.c.b16 %v7352, %v7344
    %v7505 = vpack.c.b16 %v7353, %v7345
    %v7506 = vpack.c.b16 %v7354, %v7346
    %v7507 = vpack.c.b16 %v7355, %v7347
    %v7508 = vpack.c.b16 %v7356, %v7348
    %v7509 = vpack.c.b16 %v7357, %v7349
    %v7510 = vpack.c.b16 %v7358, %v7350
    %v7511 = vpack.c.b16 %v7367, %v7359
    %v7512 = vpack.c.b16 %v7368, %v7360
    %v7513 = vpack.c.b16 %v7369, %v7361
    %v7514 = vpack.c.b16 %v7370, %v7362
    %v7515 = vpack.c.b16 %v7371, %v7363
    %v7516 = vpack.c.b16 %v7372, %v7364
    %v7517 = vpack.c.b16 %v7373, %v7365
    %v7518 = vpack.c.b16 %v7374, %v7366
    %v7519 = vpack.c.b16 %v7383, %v7375
    %v7520 = vpack.c.b16 %v7384, %v7376
    %v7521 = vpack.c.b16 %v7385, %v7377
    %v7522 = vpack.c.b16 %v7386, %v7378
    %v7523 = vpack.c.b16 %v7387, %v7379
    %v7524 = vpack.c.b16 %v7388, %v7380
    %v7525 = vpack.c.b16 %v7389, %v7381
    %v7526 = vpack.c.b16 %v7390, %v7382
    %v7527 = vpack.c.b16 %v7399, %v7391
    %v7528 = vpack.c.b16 %v7400, %v7392
    %v7529 = vpack.c.b16 %v7401, %v7393
    %v7530 = vpack.c.b16 %v7402, %v7394
    %v7531 = vpack.c.b16 %v7403, %v7395
    %v7532 = vpack.c.b16 %v7404, %v7396
    %v7533 = vpack.c.b16 %v7405, %v7397
    %v7534 = vpack.c.b16 %v7406, %v7398
    %7663 = vmatpush.bf16.msra.mxu0 %v7463
    %7664 = vmatpush.bf16.msra.mxu0 %v7455
    %7665 = vmatpush.bf16.msra.mxu0 %v7447
    %7666 = vmatpush.bf16.msra.mxu0 %v7439
    %7667 = vmatpush.bf16.msra.mxu0 %v7431
    %7668 = vmatpush.bf16.msra.mxu0 %v7423
    %7669 = vmatpush.bf16.msra.mxu0 %v7415
    %7670 = vmatpush.bf16.msra.mxu0 %v7407
    %7671 = vmatmul.bf16.gmra.mxu0 %v7007
    %v7672 = vpop.f32.mrf.mxu0
    %v7673 = vadd.f32 0.0, %v7672
    %v7674 = vpop.f32.mrf.mxu0
    %v7675 = vadd.f32 0.0, %v7674
    %7676 = vmatmul.bf16.gmra.mxu0 %v7009
    %v7677 = vpop.f32.mrf.mxu0
    %v7678 = vadd.f32 0.0, %v7677
    %v7679 = vpop.f32.mrf.mxu0
    %v7680 = vadd.f32 0.0, %v7679
    %7681 = vmatmul.bf16.gmra.mxu0 %v7011
    %v7682 = vpop.f32.mrf.mxu0
    %v7683 = vadd.f32 0.0, %v7682
    %v7684 = vpop.f32.mrf.mxu0
    %v7685 = vadd.f32 0.0, %v7684
    %7686 = vmatmul.bf16.gmra.mxu0 %v7013
    %v7687 = vpop.f32.mrf.mxu0
    %v7688 = vadd.f32 0.0, %v7687
    %v7689 = vpop.f32.mrf.mxu0
    %v7690 = vadd.f32 0.0, %v7689
    %7691 = vdwg.mxu0
    %7692 = vmatpush.bf16.msra.mxu0 %v7527
    %7693 = vmatpush.bf16.msra.mxu0 %v7519
    %7694 = vmatpush.bf16.msra.mxu0 %v7511
    %7695 = vmatpush.bf16.msra.mxu0 %v7503
    %7696 = vmatpush.bf16.msra.mxu0 %v7495
    %7697 = vmatpush.bf16.msra.mxu0 %v7487
    %7698 = vmatpush.bf16.msra.mxu0 %v7479
    %7699 = vmatpush.bf16.msra.mxu0 %v7471
    %7700 = vmatmul.bf16.gmra.mxu0 %v7008
    %v7701 = vpop.f32.mrf.mxu0
    %v7702 = vadd.f32 %v7673, %v7701
    %v7703 = vpop.f32.mrf.mxu0
    %v7704 = vadd.f32 %v7675, %v7703
    %7705 = vmatmul.bf16.gmra.mxu0 %v7010
    %v7706 = vpop.f32.mrf.mxu0
    %v7707 = vadd.f32 %v7678, %v7706
    %v7708 = vpop.f32.mrf.mxu0
    %v7709 = vadd.f32 %v7680, %v7708
    %7710 = vmatmul.bf16.gmra.mxu0 %v7012
    %v7711 = vpop.f32.mrf.mxu0
    %v7712 = vadd.f32 %v7683, %v7711
    %v7713 = vpop.f32.mrf.mxu0
    %v7714 = vadd.f32 %v7685, %v7713
    %7715 = vmatmul.bf16.gmra.mxu0 %v7014
    %v7716 = vpop.f32.mrf.mxu0
    %v7717 = vadd.f32 %v7688, %v7716
    %v7718 = vpop.f32.mrf.mxu0
    %v7719 = vadd.f32 %v7690, %v7718
    %7720 = vdwg.mxu0
    %7721 = vmatpush.bf16.msra.mxu0 %v7464
    %7722 = vmatpush.bf16.msra.mxu0 %v7456
    %7723 = vmatpush.bf16.msra.mxu0 %v7448
    %7724 = vmatpush.bf16.msra.mxu0 %v7440
    %7725 = vmatpush.bf16.msra.mxu0 %v7432
    %7726 = vmatpush.bf16.msra.mxu0 %v7424
    %7727 = vmatpush.bf16.msra.mxu0 %v7416
    %7728 = vmatpush.bf16.msra.mxu0 %v7408
    %7729 = vmatmul.bf16.gmra.mxu0 %v7007
    %v7730 = vpop.f32.mrf.mxu0
    %v7731 = vadd.f32 0.0, %v7730
    %v7732 = vpop.f32.mrf.mxu0
    %v7733 = vadd.f32 0.0, %v7732
    %7734 = vmatmul.bf16.gmra.mxu0 %v7009
    %v7735 = vpop.f32.mrf.mxu0
    %v7736 = vadd.f32 0.0, %v7735
    %v7737 = vpop.f32.mrf.mxu0
    %v7738 = vadd.f32 0.0, %v7737
    %7739 = vmatmul.bf16.gmra.mxu0 %v7011
    %v7740 = vpop.f32.mrf.mxu0
    %v7741 = vadd.f32 0.0, %v7740
    %v7742 = vpop.f32.mrf.mxu0
    %v7743 = vadd.f32 0.0, %v7742
    %7744 = vmatmul.bf16.gmra.mxu0 %v7013
    %v7745 = vpop.f32.mrf.mxu0
    %v7746 = vadd.f32 0.0, %v7745
    %v7747 = vpop.f32.mrf.mxu0
    %v7748 = vadd.f32 0.0, %v7747
    %7749 = vdwg.mxu0
    %7750 = vmatpush.bf16.msra.mxu0 %v7528
    %7751 = vmatpush.bf16.msra.mxu0 %v7520
    %7752 = vmatpush.bf16.msra.mxu0 %v7512
    %7753 = vmatpush.bf16.msra.mxu0 %v7504
    %7754 = vmatpush.bf16.msra.mxu0 %v7496
    %7755 = vmatpush.bf16.msra.mxu0 %v7488
    %7756 = vmatpush.bf16.msra.mxu0 %v7480
    %7757 = vmatpush.bf16.msra.mxu0 %v7472
    %7758 = vmatmul.bf16.gmra.mxu0 %v7008
    %v7759 = vpop.f32.mrf.mxu0
    %v7760 = vadd.f32 %v7731, %v7759
    %v7761 = vpop.f32.mrf.mxu0
    %v7762 = vadd.f32 %v7733, %v7761
    %7763 = vmatmul.bf16.gmra.mxu0 %v7010
    %v7764 = vpop.f32.mrf.mxu0
    %v7765 = vadd.f32 %v7736, %v7764
    %v7766 = vpop.f32.mrf.mxu0
    %v7767 = vadd.f32 %v7738, %v7766
    %7768 = vmatmul.bf16.gmra.mxu0 %v7012
    %v7769 = vpop.f32.mrf.mxu0
    %v7770 = vadd.f32 %v7741, %v7769
    %v7771 = vpop.f32.mrf.mxu0
    %v7772 = vadd.f32 %v7743, %v7771
    %7773 = vmatmul.bf16.gmra.mxu0 %v7014
    %v7774 = vpop.f32.mrf.mxu0
    %v7775 = vadd.f32 %v7746, %v7774
    %v7776 = vpop.f32.mrf.mxu0
    %v7777 = vadd.f32 %v7748, %v7776
    %7778 = vdwg.mxu0
    %7779 = vmatpush.bf16.msra.mxu0 %v7465
    %7780 = vmatpush.bf16.msra.mxu0 %v7457
    %7781 = vmatpush.bf16.msra.mxu0 %v7449
    %7782 = vmatpush.bf16.msra.mxu0 %v7441
    %7783 = vmatpush.bf16.msra.mxu0 %v7433
    %7784 = vmatpush.bf16.msra.mxu0 %v7425
    %7785 = vmatpush.bf16.msra.mxu0 %v7417
    %7786 = vmatpush.bf16.msra.mxu0 %v7409
    %7787 = vmatmul.bf16.gmra.mxu0 %v7007
    %v7788 = vpop.f32.mrf.mxu0
    %v7789 = vadd.f32 0.0, %v7788
    %v7790 = vpop.f32.mrf.mxu0
    %v7791 = vadd.f32 0.0, %v7790
    %7792 = vmatmul.bf16.gmra.mxu0 %v7009
    %v7793 = vpop.f32.mrf.mxu0
    %v7794 = vadd.f32 0.0, %v7793
    %v7795 = vpop.f32.mrf.mxu0
    %v7796 = vadd.f32 0.0, %v7795
    %7797 = vmatmul.bf16.gmra.mxu0 %v7011
    %v7798 = vpop.f32.mrf.mxu0
    %v7799 = vadd.f32 0.0, %v7798
    %v7800 = vpop.f32.mrf.mxu0
    %v7801 = vadd.f32 0.0, %v7800
    %7802 = vmatmul.bf16.gmra.mxu0 %v7013
    %v7803 = vpop.f32.mrf.mxu0
    %v7804 = vadd.f32 0.0, %v7803
    %v7805 = vpop.f32.mrf.mxu0
    %v7806 = vadd.f32 0.0, %v7805
    %7807 = vdwg.mxu0
    %7808 = vmatpush.bf16.msra.mxu0 %v7529
    %7809 = vmatpush.bf16.msra.mxu0 %v7521
    %7810 = vmatpush.bf16.msra.mxu0 %v7513
    %7811 = vmatpush.bf16.msra.mxu0 %v7505
    %7812 = vmatpush.bf16.msra.mxu0 %v7497
    %7813 = vmatpush.bf16.msra.mxu0 %v7489
    %7814 = vmatpush.bf16.msra.mxu0 %v7481
    %7815 = vmatpush.bf16.msra.mxu0 %v7473
    %7816 = vmatmul.bf16.gmra.mxu0 %v7008
    %v7817 = vpop.f32.mrf.mxu0
    %v7818 = vadd.f32 %v7789, %v7817
    %v7819 = vpop.f32.mrf.mxu0
    %v7820 = vadd.f32 %v7791, %v7819
    %7821 = vmatmul.bf16.gmra.mxu0 %v7010
    %v7822 = vpop.f32.mrf.mxu0
    %v7823 = vadd.f32 %v7794, %v7822
    %v7824 = vpop.f32.mrf.mxu0
    %v7825 = vadd.f32 %v7796, %v7824
    %7826 = vmatmul.bf16.gmra.mxu0 %v7012
    %v7827 = vpop.f32.mrf.mxu0
    %v7828 = vadd.f32 %v7799, %v7827
    %v7829 = vpop.f32.mrf.mxu0
    %v7830 = vadd.f32 %v7801, %v7829
    %7831 = vmatmul.bf16.gmra.mxu0 %v7014
    %v7832 = vpop.f32.mrf.mxu0
    %v7833 = vadd.f32 %v7804, %v7832
    %v7834 = vpop.f32.mrf.mxu0
    %v7835 = vadd.f32 %v7806, %v7834
    %7836 = vdwg.mxu0
    %7837 = vmatpush.bf16.msra.mxu0 %v7466
    %7838 = vmatpush.bf16.msra.mxu0 %v7458
    %7839 = vmatpush.bf16.msra.mxu0 %v7450
    %7840 = vmatpush.bf16.msra.mxu0 %v7442
    %7841 = vmatpush.bf16.msra.mxu0 %v7434
    %7842 = vmatpush.bf16.msra.mxu0 %v7426
    %7843 = vmatpush.bf16.msra.mxu0 %v7418
    %7844 = vmatpush.bf16.msra.mxu0 %v7410
    %7845 = vmatmul.bf16.gmra.mxu0 %v7007
    %v7846 = vpop.f32.mrf.mxu0
    %v7847 = vadd.f32 0.0, %v7846
    %v7848 = vpop.f32.mrf.mxu0
    %v7849 = vadd.f32 0.0, %v7848
    %7850 = vmatmul.bf16.gmra.mxu0 %v7009
    %v7851 = vpop.f32.mrf.mxu0
    %v7852 = vadd.f32 0.0, %v7851
    %v7853 = vpop.f32.mrf.mxu0
    %v7854 = vadd.f32 0.0, %v7853
    %7855 = vmatmul.bf16.gmra.mxu0 %v7011
    %v7856 = vpop.f32.mrf.mxu0
    %v7857 = vadd.f32 0.0, %v7856
    %v7858 = vpop.f32.mrf.mxu0
    %v7859 = vadd.f32 0.0, %v7858
    %7860 = vmatmul.bf16.gmra.mxu0 %v7013
    %v7861 = vpop.f32.mrf.mxu0
    %v7862 = vadd.f32 0.0, %v7861
    %v7863 = vpop.f32.mrf.mxu0
    %v7864 = vadd.f32 0.0, %v7863
    %7865 = vdwg.mxu0
    %7866 = vmatpush.bf16.msra.mxu0 %v7530
    %7867 = vmatpush.bf16.msra.mxu0 %v7522
    %7868 = vmatpush.bf16.msra.mxu0 %v7514
    %7869 = vmatpush.bf16.msra.mxu0 %v7506
    %7870 = vmatpush.bf16.msra.mxu0 %v7498
    %7871 = vmatpush.bf16.msra.mxu0 %v7490
    %7872 = vmatpush.bf16.msra.mxu0 %v7482
    %7873 = vmatpush.bf16.msra.mxu0 %v7474
    %7874 = vmatmul.bf16.gmra.mxu0 %v7008
    %v7875 = vpop.f32.mrf.mxu0
    %v7876 = vadd.f32 %v7847, %v7875
    %v7877 = vpop.f32.mrf.mxu0
    %v7878 = vadd.f32 %v7849, %v7877
    %7879 = vmatmul.bf16.gmra.mxu0 %v7010
    %v7880 = vpop.f32.mrf.mxu0
    %v7881 = vadd.f32 %v7852, %v7880
    %v7882 = vpop.f32.mrf.mxu0
    %v7883 = vadd.f32 %v7854, %v7882
    %7884 = vmatmul.bf16.gmra.mxu0 %v7012
    %v7885 = vpop.f32.mrf.mxu0
    %v7886 = vadd.f32 %v7857, %v7885
    %v7887 = vpop.f32.mrf.mxu0
    %v7888 = vadd.f32 %v7859, %v7887
    %7889 = vmatmul.bf16.gmra.mxu0 %v7014
    %v7890 = vpop.f32.mrf.mxu0
    %v7891 = vadd.f32 %v7862, %v7890
    %v7892 = vpop.f32.mrf.mxu0
    %v7893 = vadd.f32 %v7864, %v7892
    %7894 = vdwg.mxu0
    %7895 = vmatpush.bf16.msra.mxu0 %v7467
    %7896 = vmatpush.bf16.msra.mxu0 %v7459
    %7897 = vmatpush.bf16.msra.mxu0 %v7451
    %7898 = vmatpush.bf16.msra.mxu0 %v7443
    %7899 = vmatpush.bf16.msra.mxu0 %v7435
    %7900 = vmatpush.bf16.msra.mxu0 %v7427
    %7901 = vmatpush.bf16.msra.mxu0 %v7419
    %7902 = vmatpush.bf16.msra.mxu0 %v7411
    %7903 = vmatmul.bf16.gmra.mxu0 %v7007
    %v7904 = vpop.f32.mrf.mxu0
    %v7905 = vadd.f32 0.0, %v7904
    %v7906 = vpop.f32.mrf.mxu0
    %v7907 = vadd.f32 0.0, %v7906
    %7908 = vmatmul.bf16.gmra.mxu0 %v7009
    %v7909 = vpop.f32.mrf.mxu0
    %v7910 = vadd.f32 0.0, %v7909
    %v7911 = vpop.f32.mrf.mxu0
    %v7912 = vadd.f32 0.0, %v7911
    %7913 = vmatmul.bf16.gmra.mxu0 %v7011
    %v7914 = vpop.f32.mrf.mxu0
    %v7915 = vadd.f32 0.0, %v7914
    %v7916 = vpop.f32.mrf.mxu0
    %v7917 = vadd.f32 0.0, %v7916
    %7918 = vmatmul.bf16.gmra.mxu0 %v7013
    %v7919 = vpop.f32.mrf.mxu0
    %v7920 = vadd.f32 0.0, %v7919
    %v7921 = vpop.f32.mrf.mxu0
    %v7922 = vadd.f32 0.0, %v7921
    %7923 = vdwg.mxu0
    %7924 = vmatpush.bf16.msra.mxu0 %v7531
    %7925 = vmatpush.bf16.msra.mxu0 %v7523
    %7926 = vmatpush.bf16.msra.mxu0 %v7515
    %7927 = vmatpush.bf16.msra.mxu0 %v7507
    %7928 = vmatpush.bf16.msra.mxu0 %v7499
    %7929 = vmatpush.bf16.msra.mxu0 %v7491
    %7930 = vmatpush.bf16.msra.mxu0 %v7483
    %7931 = vmatpush.bf16.msra.mxu0 %v7475
    %7932 = vmatmul.bf16.gmra.mxu0 %v7008
    %v7933 = vpop.f32.mrf.mxu0
    %v7934 = vadd.f32 %v7905, %v7933
    %v7935 = vpop.f32.mrf.mxu0
    %v7936 = vadd.f32 %v7907, %v7935
    %7937 = vmatmul.bf16.gmra.mxu0 %v7010
    %v7938 = vpop.f32.mrf.mxu0
    %v7939 = vadd.f32 %v7910, %v7938
    %v7940 = vpop.f32.mrf.mxu0
    %v7941 = vadd.f32 %v7912, %v7940
    %7942 = vmatmul.bf16.gmra.mxu0 %v7012
    %v7943 = vpop.f32.mrf.mxu0
    %v7944 = vadd.f32 %v7915, %v7943
    %v7945 = vpop.f32.mrf.mxu0
    %v7946 = vadd.f32 %v7917, %v7945
    %7947 = vmatmul.bf16.gmra.mxu0 %v7014
    %v7948 = vpop.f32.mrf.mxu0
    %v7949 = vadd.f32 %v7920, %v7948
    %v7950 = vpop.f32.mrf.mxu0
    %v7951 = vadd.f32 %v7922, %v7950
    %7952 = vdwg.mxu0
    %7953 = vmatpush.bf16.msra.mxu0 %v7468
    %7954 = vmatpush.bf16.msra.mxu0 %v7460
    %7955 = vmatpush.bf16.msra.mxu0 %v7452
    %7956 = vmatpush.bf16.msra.mxu0 %v7444
    %7957 = vmatpush.bf16.msra.mxu0 %v7436
    %7958 = vmatpush.bf16.msra.mxu0 %v7428
    %7959 = vmatpush.bf16.msra.mxu0 %v7420
    %7960 = vmatpush.bf16.msra.mxu0 %v7412
    %7961 = vmatmul.bf16.gmra.mxu0 %v7007
    %v7962 = vpop.f32.mrf.mxu0
    %v7963 = vadd.f32 0.0, %v7962
    %v7964 = vpop.f32.mrf.mxu0
    %v7965 = vadd.f32 0.0, %v7964
    %7966 = vmatmul.bf16.gmra.mxu0 %v7009
    %v7967 = vpop.f32.mrf.mxu0
    %v7968 = vadd.f32 0.0, %v7967
    %v7969 = vpop.f32.mrf.mxu0
    %v7970 = vadd.f32 0.0, %v7969
    %7971 = vmatmul.bf16.gmra.mxu0 %v7011
    %v7972 = vpop.f32.mrf.mxu0
    %v7973 = vadd.f32 0.0, %v7972
    %v7974 = vpop.f32.mrf.mxu0
    %v7975 = vadd.f32 0.0, %v7974
    %7976 = vmatmul.bf16.gmra.mxu0 %v7013
    %v7977 = vpop.f32.mrf.mxu0
    %v7978 = vadd.f32 0.0, %v7977
    %v7979 = vpop.f32.mrf.mxu0
    %v7980 = vadd.f32 0.0, %v7979
    %7981 = vdwg.mxu0
    %7982 = vmatpush.bf16.msra.mxu0 %v7532
    %7983 = vmatpush.bf16.msra.mxu0 %v7524
    %7984 = vmatpush.bf16.msra.mxu0 %v7516
    %7985 = vmatpush.bf16.msra.mxu0 %v7508
    %7986 = vmatpush.bf16.msra.mxu0 %v7500
    %7987 = vmatpush.bf16.msra.mxu0 %v7492
    %7988 = vmatpush.bf16.msra.mxu0 %v7484
    %7989 = vmatpush.bf16.msra.mxu0 %v7476
    %7990 = vmatmul.bf16.gmra.mxu0 %v7008
    %v7991 = vpop.f32.mrf.mxu0
    %v7992 = vadd.f32 %v7963, %v7991
    %v7993 = vpop.f32.mrf.mxu0
    %v7994 = vadd.f32 %v7965, %v7993
    %7995 = vmatmul.bf16.gmra.mxu0 %v7010
    %v7996 = vpop.f32.mrf.mxu0
    %v7997 = vadd.f32 %v7968, %v7996
    %v7998 = vpop.f32.mrf.mxu0
    %v7999 = vadd.f32 %v7970, %v7998
    %8000 = vmatmul.bf16.gmra.mxu0 %v7012
    %v8001 = vpop.f32.mrf.mxu0
    %v8002 = vadd.f32 %v7973, %v8001
    %v8003 = vpop.f32.mrf.mxu0
    %v8004 = vadd.f32 %v7975, %v8003
    %8005 = vmatmul.bf16.gmra.mxu0 %v7014
    %v8006 = vpop.f32.mrf.mxu0
    %v8007 = vadd.f32 %v7978, %v8006
    %v8008 = vpop.f32.mrf.mxu0
    %v8009 = vadd.f32 %v7980, %v8008
    %8010 = vdwg.mxu0
    %8011 = vmatpush.bf16.msra.mxu0 %v7469
    %8012 = vmatpush.bf16.msra.mxu0 %v7461
    %8013 = vmatpush.bf16.msra.mxu0 %v7453
    %8014 = vmatpush.bf16.msra.mxu0 %v7445
    %8015 = vmatpush.bf16.msra.mxu0 %v7437
    %8016 = vmatpush.bf16.msra.mxu0 %v7429
    %8017 = vmatpush.bf16.msra.mxu0 %v7421
    %8018 = vmatpush.bf16.msra.mxu0 %v7413
    %8019 = vmatmul.bf16.gmra.mxu0 %v7007
    %v8020 = vpop.f32.mrf.mxu0
    %v8021 = vadd.f32 0.0, %v8020
    %v8022 = vpop.f32.mrf.mxu0
    %v8023 = vadd.f32 0.0, %v8022
    %8024 = vmatmul.bf16.gmra.mxu0 %v7009
    %v8025 = vpop.f32.mrf.mxu0
    %v8026 = vadd.f32 0.0, %v8025
    %v8027 = vpop.f32.mrf.mxu0
    %v8028 = vadd.f32 0.0, %v8027
    %8029 = vmatmul.bf16.gmra.mxu0 %v7011
    %v8030 = vpop.f32.mrf.mxu0
    %v8031 = vadd.f32 0.0, %v8030
    %v8032 = vpop.f32.mrf.mxu0
    %v8033 = vadd.f32 0.0, %v8032
    %8034 = vmatmul.bf16.gmra.mxu0 %v7013
    %v8035 = vpop.f32.mrf.mxu0
    %v8036 = vadd.f32 0.0, %v8035
    %v8037 = vpop.f32.mrf.mxu0
    %v8038 = vadd.f32 0.0, %v8037
    %8039 = vdwg.mxu0
    %8040 = vmatpush.bf16.msra.mxu0 %v7533
    %8041 = vmatpush.bf16.msra.mxu0 %v7525
    %8042 = vmatpush.bf16.msra.mxu0 %v7517
    %8043 = vmatpush.bf16.msra.mxu0 %v7509
    %8044 = vmatpush.bf16.msra.mxu0 %v7501
    %8045 = vmatpush.bf16.msra.mxu0 %v7493
    %8046 = vmatpush.bf16.msra.mxu0 %v7485
    %8047 = vmatpush.bf16.msra.mxu0 %v7477
    %8048 = vmatmul.bf16.gmra.mxu0 %v7008
    %v8049 = vpop.f32.mrf.mxu0
    %v8050 = vadd.f32 %v8021, %v8049
    %v8051 = vpop.f32.mrf.mxu0
    %v8052 = vadd.f32 %v8023, %v8051
    %8053 = vmatmul.bf16.gmra.mxu0 %v7010
    %v8054 = vpop.f32.mrf.mxu0
    %v8055 = vadd.f32 %v8026, %v8054
    %v8056 = vpop.f32.mrf.mxu0
    %v8057 = vadd.f32 %v8028, %v8056
    %8058 = vmatmul.bf16.gmra.mxu0 %v7012
    %v8059 = vpop.f32.mrf.mxu0
    %v8060 = vadd.f32 %v8031, %v8059
    %v8061 = vpop.f32.mrf.mxu0
    %v8062 = vadd.f32 %v8033, %v8061
    %8063 = vmatmul.bf16.gmra.mxu0 %v7014
    %v8064 = vpop.f32.mrf.mxu0
    %v8065 = vadd.f32 %v8036, %v8064
    %v8066 = vpop.f32.mrf.mxu0
    %v8067 = vadd.f32 %v8038, %v8066
    %8068 = vdwg.mxu0
    %8069 = vmatpush.bf16.msra.mxu0 %v7470
    %8070 = vmatpush.bf16.msra.mxu0 %v7462
    %8071 = vmatpush.bf16.msra.mxu0 %v7454
    %8072 = vmatpush.bf16.msra.mxu0 %v7446
    %8073 = vmatpush.bf16.msra.mxu0 %v7438
    %8074 = vmatpush.bf16.msra.mxu0 %v7430
    %8075 = vmatpush.bf16.msra.mxu0 %v7422
    %8076 = vmatpush.bf16.msra.mxu0 %v7414
    %8077 = vmatmul.bf16.gmra.mxu0 %v7007
    %v8078 = vpop.f32.mrf.mxu0
    %v8079 = vadd.f32 0.0, %v8078
    %v8080 = vpop.f32.mrf.mxu0
    %v8081 = vadd.f32 0.0, %v8080
    %8082 = vmatmul.bf16.gmra.mxu0 %v7009
    %v8083 = vpop.f32.mrf.mxu0
    %v8084 = vadd.f32 0.0, %v8083
    %v8085 = vpop.f32.mrf.mxu0
    %v8086 = vadd.f32 0.0, %v8085
    %8087 = vmatmul.bf16.gmra.mxu0 %v7011
    %v8088 = vpop.f32.mrf.mxu0
    %v8089 = vadd.f32 0.0, %v8088
    %v8090 = vpop.f32.mrf.mxu0
    %v8091 = vadd.f32 0.0, %v8090
    %8092 = vmatmul.bf16.gmra.mxu0 %v7013
    %v8093 = vpop.f32.mrf.mxu0
    %v8094 = vadd.f32 0.0, %v8093
    %v8095 = vpop.f32.mrf.mxu0
    %v8096 = vadd.f32 0.0, %v8095
    %8097 = vdwg.mxu0
    %8098 = vmatpush.bf16.msra.mxu0 %v7534
    %8099 = vmatpush.bf16.msra.mxu0 %v7526
    %8100 = vmatpush.bf16.msra.mxu0 %v7518
    %8101 = vmatpush.bf16.msra.mxu0 %v7510
    %8102 = vmatpush.bf16.msra.mxu0 %v7502
    %8103 = vmatpush.bf16.msra.mxu0 %v7494
    %8104 = vmatpush.bf16.msra.mxu0 %v7486
    %8105 = vmatpush.bf16.msra.mxu0 %v7478
    %8106 = vmatmul.bf16.gmra.mxu0 %v7008
    %v8107 = vpop.f32.mrf.mxu0
    %v8108 = vadd.f32 %v8079, %v8107
    %v8109 = vpop.f32.mrf.mxu0
    %v8110 = vadd.f32 %v8081, %v8109
    %8111 = vmatmul.bf16.gmra.mxu0 %v7010
    %v8112 = vpop.f32.mrf.mxu0
    %v8113 = vadd.f32 %v8084, %v8112
    %v8114 = vpop.f32.mrf.mxu0
    %v8115 = vadd.f32 %v8086, %v8114
    %8116 = vmatmul.bf16.gmra.mxu0 %v7012
    %v8117 = vpop.f32.mrf.mxu0
    %v8118 = vadd.f32 %v8089, %v8117
    %v8119 = vpop.f32.mrf.mxu0
    %v8120 = vadd.f32 %v8091, %v8119
    %8121 = vmatmul.bf16.gmra.mxu0 %v7014
    %v8122 = vpop.f32.mrf.mxu0
    %v8123 = vadd.f32 %v8094, %v8122
    %v8124 = vpop.f32.mrf.mxu0
    %v8125 = vadd.f32 %v8096, %v8124
    %8126 = vdwg.mxu0
    %v8135 = vunpack.c.l.b16 %v6663
    %v8136 = vunpack.c.h.b16 %v6663
    %v8137 = vunpack.c.l.b16 %v6667
    %v8138 = vunpack.c.h.b16 %v6667
    %v8139 = vunpack.c.l.b16 %v6671
    %v8140 = vunpack.c.h.b16 %v6671
    %v8141 = vunpack.c.l.b16 %v6675
    %v8142 = vunpack.c.h.b16 %v6675
    %v8143 = vunpack.c.l.b16 %v6679
    %v8144 = vunpack.c.h.b16 %v6679
    %v8145 = vunpack.c.l.b16 %v6683
    %v8146 = vunpack.c.h.b16 %v6683
    %v8147 = vunpack.c.l.b16 %v6687
    %v8148 = vunpack.c.h.b16 %v6687
    %v8149 = vunpack.c.l.b16 %v6691
    %v8150 = vunpack.c.h.b16 %v6691
    %v8151 = vpack.c.b16 %v8137, %v8135
    %v8152 = vpack.c.b16 %v8138, %v8136
    %v8153 = vpack.c.b16 %v8141, %v8139
    %v8154 = vpack.c.b16 %v8142, %v8140
    %v8155 = vpack.c.b16 %v8145, %v8143
    %v8156 = vpack.c.b16 %v8146, %v8144
    %v8157 = vpack.c.b16 %v8149, %v8147
    %v8158 = vpack.c.b16 %v8150, %v8148
    %v8295 = vunpack.c.l.b16 %v6711
    %v8296 = vunpack.c.h.b16 %v6711
    %v8297 = vunpack.c.l.b16 %v6712
    %v8298 = vunpack.c.h.b16 %v6712
    %v8299 = vunpack.c.l.b16 %v6713
    %v8300 = vunpack.c.h.b16 %v6713
    %v8301 = vunpack.c.l.b16 %v6714
    %v8302 = vunpack.c.h.b16 %v6714
    %v8303 = vunpack.c.l.b16 %v6715
    %v8304 = vunpack.c.h.b16 %v6715
    %v8305 = vunpack.c.l.b16 %v6716
    %v8306 = vunpack.c.h.b16 %v6716
    %v8307 = vunpack.c.l.b16 %v6717
    %v8308 = vunpack.c.h.b16 %v6717
    %v8309 = vunpack.c.l.b16 %v6718
    %v8310 = vunpack.c.h.b16 %v6718
    %v8311 = vunpack.c.l.b16 %v6719
    %v8312 = vunpack.c.h.b16 %v6719
    %v8313 = vunpack.c.l.b16 %v6720
    %v8314 = vunpack.c.h.b16 %v6720
    %v8315 = vunpack.c.l.b16 %v6721
    %v8316 = vunpack.c.h.b16 %v6721
    %v8317 = vunpack.c.l.b16 %v6722
    %v8318 = vunpack.c.h.b16 %v6722
    %v8319 = vunpack.c.l.b16 %v6723
    %v8320 = vunpack.c.h.b16 %v6723
    %v8321 = vunpack.c.l.b16 %v6724
    %v8322 = vunpack.c.h.b16 %v6724
    %v8323 = vunpack.c.l.b16 %v6725
    %v8324 = vunpack.c.h.b16 %v6725
    %v8325 = vunpack.c.l.b16 %v6726
    %v8326 = vunpack.c.h.b16 %v6726
    %v8327 = vunpack.c.l.b16 %v6727
    %v8328 = vunpack.c.h.b16 %v6727
    %v8329 = vunpack.c.l.b16 %v6728
    %v8330 = vunpack.c.h.b16 %v6728
    %v8331 = vunpack.c.l.b16 %v6729
    %v8332 = vunpack.c.h.b16 %v6729
    %v8333 = vunpack.c.l.b16 %v6730
    %v8334 = vunpack.c.h.b16 %v6730
    %v8335 = vunpack.c.l.b16 %v6731
    %v8336 = vunpack.c.h.b16 %v6731
    %v8337 = vunpack.c.l.b16 %v6732
    %v8338 = vunpack.c.h.b16 %v6732
    %v8339 = vunpack.c.l.b16 %v6733
    %v8340 = vunpack.c.h.b16 %v6733
    %v8341 = vunpack.c.l.b16 %v6734
    %v8342 = vunpack.c.h.b16 %v6734
    %v8343 = vunpack.c.l.b16 %v6735
    %v8344 = vunpack.c.h.b16 %v6735
    %v8345 = vunpack.c.l.b16 %v6736
    %v8346 = vunpack.c.h.b16 %v6736
    %v8347 = vunpack.c.l.b16 %v6737
    %v8348 = vunpack.c.h.b16 %v6737
    %v8349 = vunpack.c.l.b16 %v6738
    %v8350 = vunpack.c.h.b16 %v6738
    %v8351 = vunpack.c.l.b16 %v6739
    %v8352 = vunpack.c.h.b16 %v6739
    %v8353 = vunpack.c.l.b16 %v6740
    %v8354 = vunpack.c.h.b16 %v6740
    %v8355 = vunpack.c.l.b16 %v6741
    %v8356 = vunpack.c.h.b16 %v6741
    %v8357 = vunpack.c.l.b16 %v6742
    %v8358 = vunpack.c.h.b16 %v6742
    %v8359 = vunpack.c.l.b16 %v6743
    %v8360 = vunpack.c.h.b16 %v6743
    %v8361 = vunpack.c.l.b16 %v6744
    %v8362 = vunpack.c.h.b16 %v6744
    %v8363 = vunpack.c.l.b16 %v6745
    %v8364 = vunpack.c.h.b16 %v6745
    %v8365 = vunpack.c.l.b16 %v6746
    %v8366 = vunpack.c.h.b16 %v6746
    %v8367 = vunpack.c.l.b16 %v6747
    %v8368 = vunpack.c.h.b16 %v6747
    %v8369 = vunpack.c.l.b16 %v6748
    %v8370 = vunpack.c.h.b16 %v6748
    %v8371 = vunpack.c.l.b16 %v6749
    %v8372 = vunpack.c.h.b16 %v6749
    %v8373 = vunpack.c.l.b16 %v6750
    %v8374 = vunpack.c.h.b16 %v6750
    %v8375 = vunpack.c.l.b16 %v6751
    %v8376 = vunpack.c.h.b16 %v6751
    %v8377 = vunpack.c.l.b16 %v6752
    %v8378 = vunpack.c.h.b16 %v6752
    %v8379 = vunpack.c.l.b16 %v6753
    %v8380 = vunpack.c.h.b16 %v6753
    %v8381 = vunpack.c.l.b16 %v6754
    %v8382 = vunpack.c.h.b16 %v6754
    %v8383 = vunpack.c.l.b16 %v6755
    %v8384 = vunpack.c.h.b16 %v6755
    %v8385 = vunpack.c.l.b16 %v6756
    %v8386 = vunpack.c.h.b16 %v6756
    %v8387 = vunpack.c.l.b16 %v6757
    %v8388 = vunpack.c.h.b16 %v6757
    %v8389 = vunpack.c.l.b16 %v6758
    %v8390 = vunpack.c.h.b16 %v6758
    %v8391 = vunpack.c.l.b16 %v6759
    %v8392 = vunpack.c.h.b16 %v6759
    %v8393 = vunpack.c.l.b16 %v6760
    %v8394 = vunpack.c.h.b16 %v6760
    %v8395 = vunpack.c.l.b16 %v6761
    %v8396 = vunpack.c.h.b16 %v6761
    %v8397 = vunpack.c.l.b16 %v6762
    %v8398 = vunpack.c.h.b16 %v6762
    %v8399 = vunpack.c.l.b16 %v6763
    %v8400 = vunpack.c.h.b16 %v6763
    %v8401 = vunpack.c.l.b16 %v6764
    %v8402 = vunpack.c.h.b16 %v6764
    %v8403 = vunpack.c.l.b16 %v6765
    %v8404 = vunpack.c.h.b16 %v6765
    %v8405 = vunpack.c.l.b16 %v6766
    %v8406 = vunpack.c.h.b16 %v6766
    %v8407 = vunpack.c.l.b16 %v6767
    %v8408 = vunpack.c.h.b16 %v6767
    %v8409 = vunpack.c.l.b16 %v6768
    %v8410 = vunpack.c.h.b16 %v6768
    %v8411 = vunpack.c.l.b16 %v6769
    %v8412 = vunpack.c.h.b16 %v6769
    %v8413 = vunpack.c.l.b16 %v6770
    %v8414 = vunpack.c.h.b16 %v6770
    %v8415 = vunpack.c.l.b16 %v6771
    %v8416 = vunpack.c.h.b16 %v6771
    %v8417 = vunpack.c.l.b16 %v6772
    %v8418 = vunpack.c.h.b16 %v6772
    %v8419 = vunpack.c.l.b16 %v6773
    %v8420 = vunpack.c.h.b16 %v6773
    %v8421 = vunpack.c.l.b16 %v6774
    %v8422 = vunpack.c.h.b16 %v6774
    %v8423 = vunpack.c.l.b16 %v6775
    %v8424 = vunpack.c.h.b16 %v6775
    %v8425 = vunpack.c.l.b16 %v6776
    %v8426 = vunpack.c.h.b16 %v6776
    %v8427 = vunpack.c.l.b16 %v6777
    %v8428 = vunpack.c.h.b16 %v6777
    %v8429 = vunpack.c.l.b16 %v6778
    %v8430 = vunpack.c.h.b16 %v6778
    %v8431 = vunpack.c.l.b16 %v6779
    %v8432 = vunpack.c.h.b16 %v6779
    %v8433 = vunpack.c.l.b16 %v6780
    %v8434 = vunpack.c.h.b16 %v6780
    %v8435 = vunpack.c.l.b16 %v6781
    %v8436 = vunpack.c.h.b16 %v6781
    %v8437 = vunpack.c.l.b16 %v6782
    %v8438 = vunpack.c.h.b16 %v6782
    %v8439 = vunpack.c.l.b16 %v6783
    %v8440 = vunpack.c.h.b16 %v6783
    %v8441 = vunpack.c.l.b16 %v6784
    %v8442 = vunpack.c.h.b16 %v6784
    %v8443 = vunpack.c.l.b16 %v6785
    %v8444 = vunpack.c.h.b16 %v6785
    %v8445 = vunpack.c.l.b16 %v6786
    %v8446 = vunpack.c.h.b16 %v6786
    %v8447 = vunpack.c.l.b16 %v6787
    %v8448 = vunpack.c.h.b16 %v6787
    %v8449 = vunpack.c.l.b16 %v6788
    %v8450 = vunpack.c.h.b16 %v6788
    %v8451 = vunpack.c.l.b16 %v6789
    %v8452 = vunpack.c.h.b16 %v6789
    %v8453 = vunpack.c.l.b16 %v6790
    %v8454 = vunpack.c.h.b16 %v6790
    %v8455 = vunpack.c.l.b16 %v6791
    %v8456 = vunpack.c.h.b16 %v6791
    %v8457 = vunpack.c.l.b16 %v6792
    %v8458 = vunpack.c.h.b16 %v6792
    %v8459 = vunpack.c.l.b16 %v6793
    %v8460 = vunpack.c.h.b16 %v6793
    %v8461 = vunpack.c.l.b16 %v6794
    %v8462 = vunpack.c.h.b16 %v6794
    %v8463 = vunpack.c.l.b16 %v6795
    %v8464 = vunpack.c.h.b16 %v6795
    %v8465 = vunpack.c.l.b16 %v6796
    %v8466 = vunpack.c.h.b16 %v6796
    %v8467 = vunpack.c.l.b16 %v6797
    %v8468 = vunpack.c.h.b16 %v6797
    %v8469 = vunpack.c.l.b16 %v6798
    %v8470 = vunpack.c.h.b16 %v6798
    %v8471 = vunpack.c.l.b16 %v6799
    %v8472 = vunpack.c.h.b16 %v6799
    %v8473 = vunpack.c.l.b16 %v6800
    %v8474 = vunpack.c.h.b16 %v6800
    %v8475 = vunpack.c.l.b16 %v6801
    %v8476 = vunpack.c.h.b16 %v6801
    %v8477 = vunpack.c.l.b16 %v6802
    %v8478 = vunpack.c.h.b16 %v6802
    %v8479 = vunpack.c.l.b16 %v6803
    %v8480 = vunpack.c.h.b16 %v6803
    %v8481 = vunpack.c.l.b16 %v6804
    %v8482 = vunpack.c.h.b16 %v6804
    %v8483 = vunpack.c.l.b16 %v6805
    %v8484 = vunpack.c.h.b16 %v6805
    %v8485 = vunpack.c.l.b16 %v6806
    %v8486 = vunpack.c.h.b16 %v6806
    %v8487 = vunpack.c.l.b16 %v6807
    %v8488 = vunpack.c.h.b16 %v6807
    %v8489 = vunpack.c.l.b16 %v6808
    %v8490 = vunpack.c.h.b16 %v6808
    %v8491 = vunpack.c.l.b16 %v6809
    %v8492 = vunpack.c.h.b16 %v6809
    %v8493 = vunpack.c.l.b16 %v6810
    %v8494 = vunpack.c.h.b16 %v6810
    %v8495 = vunpack.c.l.b16 %v6811
    %v8496 = vunpack.c.h.b16 %v6811
    %v8497 = vunpack.c.l.b16 %v6812
    %v8498 = vunpack.c.h.b16 %v6812
    %v8499 = vunpack.c.l.b16 %v6813
    %v8500 = vunpack.c.h.b16 %v6813
    %v8501 = vunpack.c.l.b16 %v6814
    %v8502 = vunpack.c.h.b16 %v6814
    %v8503 = vunpack.c.l.b16 %v6815
    %v8504 = vunpack.c.h.b16 %v6815
    %v8505 = vunpack.c.l.b16 %v6816
    %v8506 = vunpack.c.h.b16 %v6816
    %v8507 = vunpack.c.l.b16 %v6817
    %v8508 = vunpack.c.h.b16 %v6817
    %v8509 = vunpack.c.l.b16 %v6818
    %v8510 = vunpack.c.h.b16 %v6818
    %v8511 = vunpack.c.l.b16 %v6819
    %v8512 = vunpack.c.h.b16 %v6819
    %v8513 = vunpack.c.l.b16 %v6820
    %v8514 = vunpack.c.h.b16 %v6820
    %v8515 = vunpack.c.l.b16 %v6821
    %v8516 = vunpack.c.h.b16 %v6821
    %v8517 = vunpack.c.l.b16 %v6822
    %v8518 = vunpack.c.h.b16 %v6822
    %v8519 = vunpack.c.l.b16 %v6823
    %v8520 = vunpack.c.h.b16 %v6823
    %v8521 = vunpack.c.l.b16 %v6824
    %v8522 = vunpack.c.h.b16 %v6824
    %v8523 = vunpack.c.l.b16 %v6825
    %v8524 = vunpack.c.h.b16 %v6825
    %v8525 = vunpack.c.l.b16 %v6826
    %v8526 = vunpack.c.h.b16 %v6826
    %v8527 = vunpack.c.l.b16 %v6827
    %v8528 = vunpack.c.h.b16 %v6827
    %v8529 = vunpack.c.l.b16 %v6828
    %v8530 = vunpack.c.h.b16 %v6828
    %v8531 = vunpack.c.l.b16 %v6829
    %v8532 = vunpack.c.h.b16 %v6829
    %v8533 = vunpack.c.l.b16 %v6830
    %v8534 = vunpack.c.h.b16 %v6830
    %v8535 = vunpack.c.l.b16 %v6831
    %v8536 = vunpack.c.h.b16 %v6831
    %v8537 = vunpack.c.l.b16 %v6832
    %v8538 = vunpack.c.h.b16 %v6832
    %v8539 = vunpack.c.l.b16 %v6833
    %v8540 = vunpack.c.h.b16 %v6833
    %v8541 = vunpack.c.l.b16 %v6834
    %v8542 = vunpack.c.h.b16 %v6834
    %v8543 = vunpack.c.l.b16 %v6835
    %v8544 = vunpack.c.h.b16 %v6835
    %v8545 = vunpack.c.l.b16 %v6836
    %v8546 = vunpack.c.h.b16 %v6836
    %v8547 = vunpack.c.l.b16 %v6837
    %v8548 = vunpack.c.h.b16 %v6837
    %v8549 = vunpack.c.l.b16 %v6838
    %v8550 = vunpack.c.h.b16 %v6838
    %v8551 = vpack.c.b16 %v8303, %v8295
    %v8552 = vpack.c.b16 %v8304, %v8296
    %v8553 = vpack.c.b16 %v8305, %v8297
    %v8554 = vpack.c.b16 %v8306, %v8298
    %v8555 = vpack.c.b16 %v8307, %v8299
    %v8556 = vpack.c.b16 %v8308, %v8300
    %v8557 = vpack.c.b16 %v8309, %v8301
    %v8558 = vpack.c.b16 %v8310, %v8302
    %v8559 = vpack.c.b16 %v8319, %v8311
    %v8560 = vpack.c.b16 %v8320, %v8312
    %v8561 = vpack.c.b16 %v8321, %v8313
    %v8562 = vpack.c.b16 %v8322, %v8314
    %v8563 = vpack.c.b16 %v8323, %v8315
    %v8564 = vpack.c.b16 %v8324, %v8316
    %v8565 = vpack.c.b16 %v8325, %v8317
    %v8566 = vpack.c.b16 %v8326, %v8318
    %v8567 = vpack.c.b16 %v8335, %v8327
    %v8568 = vpack.c.b16 %v8336, %v8328
    %v8569 = vpack.c.b16 %v8337, %v8329
    %v8570 = vpack.c.b16 %v8338, %v8330
    %v8571 = vpack.c.b16 %v8339, %v8331
    %v8572 = vpack.c.b16 %v8340, %v8332
    %v8573 = vpack.c.b16 %v8341, %v8333
    %v8574 = vpack.c.b16 %v8342, %v8334
    %v8575 = vpack.c.b16 %v8351, %v8343
    %v8576 = vpack.c.b16 %v8352, %v8344
    %v8577 = vpack.c.b16 %v8353, %v8345
    %v8578 = vpack.c.b16 %v8354, %v8346
    %v8579 = vpack.c.b16 %v8355, %v8347
    %v8580 = vpack.c.b16 %v8356, %v8348
    %v8581 = vpack.c.b16 %v8357, %v8349
    %v8582 = vpack.c.b16 %v8358, %v8350
    %v8583 = vpack.c.b16 %v8367, %v8359
    %v8584 = vpack.c.b16 %v8368, %v8360
    %v8585 = vpack.c.b16 %v8369, %v8361
    %v8586 = vpack.c.b16 %v8370, %v8362
    %v8587 = vpack.c.b16 %v8371, %v8363
    %v8588 = vpack.c.b16 %v8372, %v8364
    %v8589 = vpack.c.b16 %v8373, %v8365
    %v8590 = vpack.c.b16 %v8374, %v8366
    %v8591 = vpack.c.b16 %v8383, %v8375
    %v8592 = vpack.c.b16 %v8384, %v8376
    %v8593 = vpack.c.b16 %v8385, %v8377
    %v8594 = vpack.c.b16 %v8386, %v8378
    %v8595 = vpack.c.b16 %v8387, %v8379
    %v8596 = vpack.c.b16 %v8388, %v8380
    %v8597 = vpack.c.b16 %v8389, %v8381
    %v8598 = vpack.c.b16 %v8390, %v8382
    %v8599 = vpack.c.b16 %v8399, %v8391
    %v8600 = vpack.c.b16 %v8400, %v8392
    %v8601 = vpack.c.b16 %v8401, %v8393
    %v8602 = vpack.c.b16 %v8402, %v8394
    %v8603 = vpack.c.b16 %v8403, %v8395
    %v8604 = vpack.c.b16 %v8404, %v8396
    %v8605 = vpack.c.b16 %v8405, %v8397
    %v8606 = vpack.c.b16 %v8406, %v8398
    %v8607 = vpack.c.b16 %v8415, %v8407
    %v8608 = vpack.c.b16 %v8416, %v8408
    %v8609 = vpack.c.b16 %v8417, %v8409
    %v8610 = vpack.c.b16 %v8418, %v8410
    %v8611 = vpack.c.b16 %v8419, %v8411
    %v8612 = vpack.c.b16 %v8420, %v8412
    %v8613 = vpack.c.b16 %v8421, %v8413
    %v8614 = vpack.c.b16 %v8422, %v8414
    %v8615 = vpack.c.b16 %v8431, %v8423
    %v8616 = vpack.c.b16 %v8432, %v8424
    %v8617 = vpack.c.b16 %v8433, %v8425
    %v8618 = vpack.c.b16 %v8434, %v8426
    %v8619 = vpack.c.b16 %v8435, %v8427
    %v8620 = vpack.c.b16 %v8436, %v8428
    %v8621 = vpack.c.b16 %v8437, %v8429
    %v8622 = vpack.c.b16 %v8438, %v8430
    %v8623 = vpack.c.b16 %v8447, %v8439
    %v8624 = vpack.c.b16 %v8448, %v8440
    %v8625 = vpack.c.b16 %v8449, %v8441
    %v8626 = vpack.c.b16 %v8450, %v8442
    %v8627 = vpack.c.b16 %v8451, %v8443
    %v8628 = vpack.c.b16 %v8452, %v8444
    %v8629 = vpack.c.b16 %v8453, %v8445
    %v8630 = vpack.c.b16 %v8454, %v8446
    %v8631 = vpack.c.b16 %v8463, %v8455
    %v8632 = vpack.c.b16 %v8464, %v8456
    %v8633 = vpack.c.b16 %v8465, %v8457
    %v8634 = vpack.c.b16 %v8466, %v8458
    %v8635 = vpack.c.b16 %v8467, %v8459
    %v8636 = vpack.c.b16 %v8468, %v8460
    %v8637 = vpack.c.b16 %v8469, %v8461
    %v8638 = vpack.c.b16 %v8470, %v8462
    %v8639 = vpack.c.b16 %v8479, %v8471
    %v8640 = vpack.c.b16 %v8480, %v8472
    %v8641 = vpack.c.b16 %v8481, %v8473
    %v8642 = vpack.c.b16 %v8482, %v8474
    %v8643 = vpack.c.b16 %v8483, %v8475
    %v8644 = vpack.c.b16 %v8484, %v8476
    %v8645 = vpack.c.b16 %v8485, %v8477
    %v8646 = vpack.c.b16 %v8486, %v8478
    %v8647 = vpack.c.b16 %v8495, %v8487
    %v8648 = vpack.c.b16 %v8496, %v8488
    %v8649 = vpack.c.b16 %v8497, %v8489
    %v8650 = vpack.c.b16 %v8498, %v8490
    %v8651 = vpack.c.b16 %v8499, %v8491
    %v8652 = vpack.c.b16 %v8500, %v8492
    %v8653 = vpack.c.b16 %v8501, %v8493
    %v8654 = vpack.c.b16 %v8502, %v8494
    %v8655 = vpack.c.b16 %v8511, %v8503
    %v8656 = vpack.c.b16 %v8512, %v8504
    %v8657 = vpack.c.b16 %v8513, %v8505
    %v8658 = vpack.c.b16 %v8514, %v8506
    %v8659 = vpack.c.b16 %v8515, %v8507
    %v8660 = vpack.c.b16 %v8516, %v8508
    %v8661 = vpack.c.b16 %v8517, %v8509
    %v8662 = vpack.c.b16 %v8518, %v8510
    %v8663 = vpack.c.b16 %v8527, %v8519
    %v8664 = vpack.c.b16 %v8528, %v8520
    %v8665 = vpack.c.b16 %v8529, %v8521
    %v8666 = vpack.c.b16 %v8530, %v8522
    %v8667 = vpack.c.b16 %v8531, %v8523
    %v8668 = vpack.c.b16 %v8532, %v8524
    %v8669 = vpack.c.b16 %v8533, %v8525
    %v8670 = vpack.c.b16 %v8534, %v8526
    %v8671 = vpack.c.b16 %v8543, %v8535
    %v8672 = vpack.c.b16 %v8544, %v8536
    %v8673 = vpack.c.b16 %v8545, %v8537
    %v8674 = vpack.c.b16 %v8546, %v8538
    %v8675 = vpack.c.b16 %v8547, %v8539
    %v8676 = vpack.c.b16 %v8548, %v8540
    %v8677 = vpack.c.b16 %v8549, %v8541
    %v8678 = vpack.c.b16 %v8550, %v8542
    %8807 = vmatpush.bf16.msra.mxu0 %v8607
    %8808 = vmatpush.bf16.msra.mxu0 %v8599
    %8809 = vmatpush.bf16.msra.mxu0 %v8591
    %8810 = vmatpush.bf16.msra.mxu0 %v8583
    %8811 = vmatpush.bf16.msra.mxu0 %v8575
    %8812 = vmatpush.bf16.msra.mxu0 %v8567
    %8813 = vmatpush.bf16.msra.mxu0 %v8559
    %8814 = vmatpush.bf16.msra.mxu0 %v8551
    %8815 = vmatmul.bf16.gmra.mxu0 %v8151
    %v8816 = vpop.f32.mrf.mxu0
    %v8817 = vadd.f32 %v7702, %v8816
    %v8818 = vpop.f32.mrf.mxu0
    %v8819 = vadd.f32 %v7704, %v8818
    %8820 = vmatmul.bf16.gmra.mxu0 %v8153
    %v8821 = vpop.f32.mrf.mxu0
    %v8822 = vadd.f32 %v7707, %v8821
    %v8823 = vpop.f32.mrf.mxu0
    %v8824 = vadd.f32 %v7709, %v8823
    %8825 = vmatmul.bf16.gmra.mxu0 %v8155
    %v8826 = vpop.f32.mrf.mxu0
    %v8827 = vadd.f32 %v7712, %v8826
    %v8828 = vpop.f32.mrf.mxu0
    %v8829 = vadd.f32 %v7714, %v8828
    %8830 = vmatmul.bf16.gmra.mxu0 %v8157
    %v8831 = vpop.f32.mrf.mxu0
    %v8832 = vadd.f32 %v7717, %v8831
    %v8833 = vpop.f32.mrf.mxu0
    %v8834 = vadd.f32 %v7719, %v8833
    %8835 = vdwg.mxu0
    %8836 = vmatpush.bf16.msra.mxu0 %v8671
    %8837 = vmatpush.bf16.msra.mxu0 %v8663
    %8838 = vmatpush.bf16.msra.mxu0 %v8655
    %8839 = vmatpush.bf16.msra.mxu0 %v8647
    %8840 = vmatpush.bf16.msra.mxu0 %v8639
    %8841 = vmatpush.bf16.msra.mxu0 %v8631
    %8842 = vmatpush.bf16.msra.mxu0 %v8623
    %8843 = vmatpush.bf16.msra.mxu0 %v8615
    %8844 = vmatmul.bf16.gmra.mxu0 %v8152
    %v8845 = vpop.f32.mrf.mxu0
    %v8846 = vadd.f32 %v8817, %v8845
    %v8847 = vpop.f32.mrf.mxu0
    %v8848 = vadd.f32 %v8819, %v8847
    %8849 = vmatmul.bf16.gmra.mxu0 %v8154
    %v8850 = vpop.f32.mrf.mxu0
    %v8851 = vadd.f32 %v8822, %v8850
    %v8852 = vpop.f32.mrf.mxu0
    %v8853 = vadd.f32 %v8824, %v8852
    %8854 = vmatmul.bf16.gmra.mxu0 %v8156
    %v8855 = vpop.f32.mrf.mxu0
    %v8856 = vadd.f32 %v8827, %v8855
    %v8857 = vpop.f32.mrf.mxu0
    %v8858 = vadd.f32 %v8829, %v8857
    %8859 = vmatmul.bf16.gmra.mxu0 %v8158
    %v8860 = vpop.f32.mrf.mxu0
    %v8861 = vadd.f32 %v8832, %v8860
    %v8862 = vpop.f32.mrf.mxu0
    %v8863 = vadd.f32 %v8834, %v8862
    %8864 = vdwg.mxu0
    %8865 = vmatpush.bf16.msra.mxu0 %v8608
    %8866 = vmatpush.bf16.msra.mxu0 %v8600
    %8867 = vmatpush.bf16.msra.mxu0 %v8592
    %8868 = vmatpush.bf16.msra.mxu0 %v8584
    %8869 = vmatpush.bf16.msra.mxu0 %v8576
    %8870 = vmatpush.bf16.msra.mxu0 %v8568
    %8871 = vmatpush.bf16.msra.mxu0 %v8560
    %8872 = vmatpush.bf16.msra.mxu0 %v8552
    %8873 = vmatmul.bf16.gmra.mxu0 %v8151
    %v8874 = vpop.f32.mrf.mxu0
    %v8875 = vadd.f32 %v7760, %v8874
    %v8876 = vpop.f32.mrf.mxu0
    %v8877 = vadd.f32 %v7762, %v8876
    %8878 = vmatmul.bf16.gmra.mxu0 %v8153
    %v8879 = vpop.f32.mrf.mxu0
    %v8880 = vadd.f32 %v7765, %v8879
    %v8881 = vpop.f32.mrf.mxu0
    %v8882 = vadd.f32 %v7767, %v8881
    %8883 = vmatmul.bf16.gmra.mxu0 %v8155
    %v8884 = vpop.f32.mrf.mxu0
    %v8885 = vadd.f32 %v7770, %v8884
    %v8886 = vpop.f32.mrf.mxu0
    %v8887 = vadd.f32 %v7772, %v8886
    %8888 = vmatmul.bf16.gmra.mxu0 %v8157
    %v8889 = vpop.f32.mrf.mxu0
    %v8890 = vadd.f32 %v7775, %v8889
    %v8891 = vpop.f32.mrf.mxu0
    %v8892 = vadd.f32 %v7777, %v8891
    %8893 = vdwg.mxu0
    %8894 = vmatpush.bf16.msra.mxu0 %v8672
    %8895 = vmatpush.bf16.msra.mxu0 %v8664
    %8896 = vmatpush.bf16.msra.mxu0 %v8656
    %8897 = vmatpush.bf16.msra.mxu0 %v8648
    %8898 = vmatpush.bf16.msra.mxu0 %v8640
    %8899 = vmatpush.bf16.msra.mxu0 %v8632
    %8900 = vmatpush.bf16.msra.mxu0 %v8624
    %8901 = vmatpush.bf16.msra.mxu0 %v8616
    %8902 = vmatmul.bf16.gmra.mxu0 %v8152
    %v8903 = vpop.f32.mrf.mxu0
    %v8904 = vadd.f32 %v8875, %v8903
    %v8905 = vpop.f32.mrf.mxu0
    %v8906 = vadd.f32 %v8877, %v8905
    %8907 = vmatmul.bf16.gmra.mxu0 %v8154
    %v8908 = vpop.f32.mrf.mxu0
    %v8909 = vadd.f32 %v8880, %v8908
    %v8910 = vpop.f32.mrf.mxu0
    %v8911 = vadd.f32 %v8882, %v8910
    %8912 = vmatmul.bf16.gmra.mxu0 %v8156
    %v8913 = vpop.f32.mrf.mxu0
    %v8914 = vadd.f32 %v8885, %v8913
    %v8915 = vpop.f32.mrf.mxu0
    %v8916 = vadd.f32 %v8887, %v8915
    %8917 = vmatmul.bf16.gmra.mxu0 %v8158
    %v8918 = vpop.f32.mrf.mxu0
    %v8919 = vadd.f32 %v8890, %v8918
    %v8920 = vpop.f32.mrf.mxu0
    %v8921 = vadd.f32 %v8892, %v8920
    %8922 = vdwg.mxu0
    %8923 = vmatpush.bf16.msra.mxu0 %v8609
    %8924 = vmatpush.bf16.msra.mxu0 %v8601
    %8925 = vmatpush.bf16.msra.mxu0 %v8593
    %8926 = vmatpush.bf16.msra.mxu0 %v8585
    %8927 = vmatpush.bf16.msra.mxu0 %v8577
    %8928 = vmatpush.bf16.msra.mxu0 %v8569
    %8929 = vmatpush.bf16.msra.mxu0 %v8561
    %8930 = vmatpush.bf16.msra.mxu0 %v8553
    %8931 = vmatmul.bf16.gmra.mxu0 %v8151
    %v8932 = vpop.f32.mrf.mxu0
    %v8933 = vadd.f32 %v7818, %v8932
    %v8934 = vpop.f32.mrf.mxu0
    %v8935 = vadd.f32 %v7820, %v8934
    %8936 = vmatmul.bf16.gmra.mxu0 %v8153
    %v8937 = vpop.f32.mrf.mxu0
    %v8938 = vadd.f32 %v7823, %v8937
    %v8939 = vpop.f32.mrf.mxu0
    %v8940 = vadd.f32 %v7825, %v8939
    %8941 = vmatmul.bf16.gmra.mxu0 %v8155
    %v8942 = vpop.f32.mrf.mxu0
    %v8943 = vadd.f32 %v7828, %v8942
    %v8944 = vpop.f32.mrf.mxu0
    %v8945 = vadd.f32 %v7830, %v8944
    %8946 = vmatmul.bf16.gmra.mxu0 %v8157
    %v8947 = vpop.f32.mrf.mxu0
    %v8948 = vadd.f32 %v7833, %v8947
    %v8949 = vpop.f32.mrf.mxu0
    %v8950 = vadd.f32 %v7835, %v8949
    %8951 = vdwg.mxu0
    %8952 = vmatpush.bf16.msra.mxu0 %v8673
    %8953 = vmatpush.bf16.msra.mxu0 %v8665
    %8954 = vmatpush.bf16.msra.mxu0 %v8657
    %8955 = vmatpush.bf16.msra.mxu0 %v8649
    %8956 = vmatpush.bf16.msra.mxu0 %v8641
    %8957 = vmatpush.bf16.msra.mxu0 %v8633
    %8958 = vmatpush.bf16.msra.mxu0 %v8625
    %8959 = vmatpush.bf16.msra.mxu0 %v8617
    %8960 = vmatmul.bf16.gmra.mxu0 %v8152
    %v8961 = vpop.f32.mrf.mxu0
    %v8962 = vadd.f32 %v8933, %v8961
    %v8963 = vpop.f32.mrf.mxu0
    %v8964 = vadd.f32 %v8935, %v8963
    %8965 = vmatmul.bf16.gmra.mxu0 %v8154
    %v8966 = vpop.f32.mrf.mxu0
    %v8967 = vadd.f32 %v8938, %v8966
    %v8968 = vpop.f32.mrf.mxu0
    %v8969 = vadd.f32 %v8940, %v8968
    %8970 = vmatmul.bf16.gmra.mxu0 %v8156
    %v8971 = vpop.f32.mrf.mxu0
    %v8972 = vadd.f32 %v8943, %v8971
    %v8973 = vpop.f32.mrf.mxu0
    %v8974 = vadd.f32 %v8945, %v8973
    %8975 = vmatmul.bf16.gmra.mxu0 %v8158
    %v8976 = vpop.f32.mrf.mxu0
    %v8977 = vadd.f32 %v8948, %v8976
    %v8978 = vpop.f32.mrf.mxu0
    %v8979 = vadd.f32 %v8950, %v8978
    %8980 = vdwg.mxu0
    %8981 = vmatpush.bf16.msra.mxu0 %v8610
    %8982 = vmatpush.bf16.msra.mxu0 %v8602
    %8983 = vmatpush.bf16.msra.mxu0 %v8594
    %8984 = vmatpush.bf16.msra.mxu0 %v8586
    %8985 = vmatpush.bf16.msra.mxu0 %v8578
    %8986 = vmatpush.bf16.msra.mxu0 %v8570
    %8987 = vmatpush.bf16.msra.mxu0 %v8562
    %8988 = vmatpush.bf16.msra.mxu0 %v8554
    %8989 = vmatmul.bf16.gmra.mxu0 %v8151
    %v8990 = vpop.f32.mrf.mxu0
    %v8991 = vadd.f32 %v7876, %v8990
    %v8992 = vpop.f32.mrf.mxu0
    %v8993 = vadd.f32 %v7878, %v8992
    %8994 = vmatmul.bf16.gmra.mxu0 %v8153
    %v8995 = vpop.f32.mrf.mxu0
    %v8996 = vadd.f32 %v7881, %v8995
    %v8997 = vpop.f32.mrf.mxu0
    %v8998 = vadd.f32 %v7883, %v8997
    %8999 = vmatmul.bf16.gmra.mxu0 %v8155
    %v9000 = vpop.f32.mrf.mxu0
    %v9001 = vadd.f32 %v7886, %v9000
    %v9002 = vpop.f32.mrf.mxu0
    %v9003 = vadd.f32 %v7888, %v9002
    %9004 = vmatmul.bf16.gmra.mxu0 %v8157
    %v9005 = vpop.f32.mrf.mxu0
    %v9006 = vadd.f32 %v7891, %v9005
    %v9007 = vpop.f32.mrf.mxu0
    %v9008 = vadd.f32 %v7893, %v9007
    %9009 = vdwg.mxu0
    %9010 = vmatpush.bf16.msra.mxu0 %v8674
    %9011 = vmatpush.bf16.msra.mxu0 %v8666
    %9012 = vmatpush.bf16.msra.mxu0 %v8658
    %9013 = vmatpush.bf16.msra.mxu0 %v8650
    %9014 = vmatpush.bf16.msra.mxu0 %v8642
    %9015 = vmatpush.bf16.msra.mxu0 %v8634
    %9016 = vmatpush.bf16.msra.mxu0 %v8626
    %9017 = vmatpush.bf16.msra.mxu0 %v8618
    %9018 = vmatmul.bf16.gmra.mxu0 %v8152
    %v9019 = vpop.f32.mrf.mxu0
    %v9020 = vadd.f32 %v8991, %v9019
    %v9021 = vpop.f32.mrf.mxu0
    %v9022 = vadd.f32 %v8993, %v9021
    %9023 = vmatmul.bf16.gmra.mxu0 %v8154
    %v9024 = vpop.f32.mrf.mxu0
    %v9025 = vadd.f32 %v8996, %v9024
    %v9026 = vpop.f32.mrf.mxu0
    %v9027 = vadd.f32 %v8998, %v9026
    %9028 = vmatmul.bf16.gmra.mxu0 %v8156
    %v9029 = vpop.f32.mrf.mxu0
    %v9030 = vadd.f32 %v9001, %v9029
    %v9031 = vpop.f32.mrf.mxu0
    %v9032 = vadd.f32 %v9003, %v9031
    %9033 = vmatmul.bf16.gmra.mxu0 %v8158
    %v9034 = vpop.f32.mrf.mxu0
    %v9035 = vadd.f32 %v9006, %v9034
    %v9036 = vpop.f32.mrf.mxu0
    %v9037 = vadd.f32 %v9008, %v9036
    %9038 = vdwg.mxu0
    %9039 = vmatpush.bf16.msra.mxu0 %v8611
    %9040 = vmatpush.bf16.msra.mxu0 %v8603
    %9041 = vmatpush.bf16.msra.mxu0 %v8595
    %9042 = vmatpush.bf16.msra.mxu0 %v8587
    %9043 = vmatpush.bf16.msra.mxu0 %v8579
    %9044 = vmatpush.bf16.msra.mxu0 %v8571
    %9045 = vmatpush.bf16.msra.mxu0 %v8563
    %9046 = vmatpush.bf16.msra.mxu0 %v8555
    %9047 = vmatmul.bf16.gmra.mxu0 %v8151
    %v9048 = vpop.f32.mrf.mxu0
    %v9049 = vadd.f32 %v7934, %v9048
    %v9050 = vpop.f32.mrf.mxu0
    %v9051 = vadd.f32 %v7936, %v9050
    %9052 = vmatmul.bf16.gmra.mxu0 %v8153
    %v9053 = vpop.f32.mrf.mxu0
    %v9054 = vadd.f32 %v7939, %v9053
    %v9055 = vpop.f32.mrf.mxu0
    %v9056 = vadd.f32 %v7941, %v9055
    %9057 = vmatmul.bf16.gmra.mxu0 %v8155
    %v9058 = vpop.f32.mrf.mxu0
    %v9059 = vadd.f32 %v7944, %v9058
    %v9060 = vpop.f32.mrf.mxu0
    %v9061 = vadd.f32 %v7946, %v9060
    %9062 = vmatmul.bf16.gmra.mxu0 %v8157
    %v9063 = vpop.f32.mrf.mxu0
    %v9064 = vadd.f32 %v7949, %v9063
    %v9065 = vpop.f32.mrf.mxu0
    %v9066 = vadd.f32 %v7951, %v9065
    %9067 = vdwg.mxu0
    %9068 = vmatpush.bf16.msra.mxu0 %v8675
    %9069 = vmatpush.bf16.msra.mxu0 %v8667
    %9070 = vmatpush.bf16.msra.mxu0 %v8659
    %9071 = vmatpush.bf16.msra.mxu0 %v8651
    %9072 = vmatpush.bf16.msra.mxu0 %v8643
    %9073 = vmatpush.bf16.msra.mxu0 %v8635
    %9074 = vmatpush.bf16.msra.mxu0 %v8627
    %9075 = vmatpush.bf16.msra.mxu0 %v8619
    %9076 = vmatmul.bf16.gmra.mxu0 %v8152
    %v9077 = vpop.f32.mrf.mxu0
    %v9078 = vadd.f32 %v9049, %v9077
    %v9079 = vpop.f32.mrf.mxu0
    %v9080 = vadd.f32 %v9051, %v9079
    %9081 = vmatmul.bf16.gmra.mxu0 %v8154
    %v9082 = vpop.f32.mrf.mxu0
    %v9083 = vadd.f32 %v9054, %v9082
    %v9084 = vpop.f32.mrf.mxu0
    %v9085 = vadd.f32 %v9056, %v9084
    %9086 = vmatmul.bf16.gmra.mxu0 %v8156
    %v9087 = vpop.f32.mrf.mxu0
    %v9088 = vadd.f32 %v9059, %v9087
    %v9089 = vpop.f32.mrf.mxu0
    %v9090 = vadd.f32 %v9061, %v9089
    %9091 = vmatmul.bf16.gmra.mxu0 %v8158
    %v9092 = vpop.f32.mrf.mxu0
    %v9093 = vadd.f32 %v9064, %v9092
    %v9094 = vpop.f32.mrf.mxu0
    %v9095 = vadd.f32 %v9066, %v9094
    %9096 = vdwg.mxu0
    %9097 = vmatpush.bf16.msra.mxu0 %v8612
    %9098 = vmatpush.bf16.msra.mxu0 %v8604
    %9099 = vmatpush.bf16.msra.mxu0 %v8596
    %9100 = vmatpush.bf16.msra.mxu0 %v8588
    %9101 = vmatpush.bf16.msra.mxu0 %v8580
    %9102 = vmatpush.bf16.msra.mxu0 %v8572
    %9103 = vmatpush.bf16.msra.mxu0 %v8564
    %9104 = vmatpush.bf16.msra.mxu0 %v8556
    %9105 = vmatmul.bf16.gmra.mxu0 %v8151
    %v9106 = vpop.f32.mrf.mxu0
    %v9107 = vadd.f32 %v7992, %v9106
    %v9108 = vpop.f32.mrf.mxu0
    %v9109 = vadd.f32 %v7994, %v9108
    %9110 = vmatmul.bf16.gmra.mxu0 %v8153
    %v9111 = vpop.f32.mrf.mxu0
    %v9112 = vadd.f32 %v7997, %v9111
    %v9113 = vpop.f32.mrf.mxu0
    %v9114 = vadd.f32 %v7999, %v9113
    %9115 = vmatmul.bf16.gmra.mxu0 %v8155
    %v9116 = vpop.f32.mrf.mxu0
    %v9117 = vadd.f32 %v8002, %v9116
    %v9118 = vpop.f32.mrf.mxu0
    %v9119 = vadd.f32 %v8004, %v9118
    %9120 = vmatmul.bf16.gmra.mxu0 %v8157
    %v9121 = vpop.f32.mrf.mxu0
    %v9122 = vadd.f32 %v8007, %v9121
    %v9123 = vpop.f32.mrf.mxu0
    %v9124 = vadd.f32 %v8009, %v9123
    %9125 = vdwg.mxu0
    %9126 = vmatpush.bf16.msra.mxu0 %v8676
    %9127 = vmatpush.bf16.msra.mxu0 %v8668
    %9128 = vmatpush.bf16.msra.mxu0 %v8660
    %9129 = vmatpush.bf16.msra.mxu0 %v8652
    %9130 = vmatpush.bf16.msra.mxu0 %v8644
    %9131 = vmatpush.bf16.msra.mxu0 %v8636
    %9132 = vmatpush.bf16.msra.mxu0 %v8628
    %9133 = vmatpush.bf16.msra.mxu0 %v8620
    %9134 = vmatmul.bf16.gmra.mxu0 %v8152
    %v9135 = vpop.f32.mrf.mxu0
    %v9136 = vadd.f32 %v9107, %v9135
    %v9137 = vpop.f32.mrf.mxu0
    %v9138 = vadd.f32 %v9109, %v9137
    %9139 = vmatmul.bf16.gmra.mxu0 %v8154
    %v9140 = vpop.f32.mrf.mxu0
    %v9141 = vadd.f32 %v9112, %v9140
    %v9142 = vpop.f32.mrf.mxu0
    %v9143 = vadd.f32 %v9114, %v9142
    %9144 = vmatmul.bf16.gmra.mxu0 %v8156
    %v9145 = vpop.f32.mrf.mxu0
    %v9146 = vadd.f32 %v9117, %v9145
    %v9147 = vpop.f32.mrf.mxu0
    %v9148 = vadd.f32 %v9119, %v9147
    %9149 = vmatmul.bf16.gmra.mxu0 %v8158
    %v9150 = vpop.f32.mrf.mxu0
    %v9151 = vadd.f32 %v9122, %v9150
    %v9152 = vpop.f32.mrf.mxu0
    %v9153 = vadd.f32 %v9124, %v9152
    %9154 = vdwg.mxu0
    %9155 = vmatpush.bf16.msra.mxu0 %v8613
    %9156 = vmatpush.bf16.msra.mxu0 %v8605
    %9157 = vmatpush.bf16.msra.mxu0 %v8597
    %9158 = vmatpush.bf16.msra.mxu0 %v8589
    %9159 = vmatpush.bf16.msra.mxu0 %v8581
    %9160 = vmatpush.bf16.msra.mxu0 %v8573
    %9161 = vmatpush.bf16.msra.mxu0 %v8565
    %9162 = vmatpush.bf16.msra.mxu0 %v8557
    %9163 = vmatmul.bf16.gmra.mxu0 %v8151
    %v9164 = vpop.f32.mrf.mxu0
    %v9165 = vadd.f32 %v8050, %v9164
    %v9166 = vpop.f32.mrf.mxu0
    %v9167 = vadd.f32 %v8052, %v9166
    %9168 = vmatmul.bf16.gmra.mxu0 %v8153
    %v9169 = vpop.f32.mrf.mxu0
    %v9170 = vadd.f32 %v8055, %v9169
    %v9171 = vpop.f32.mrf.mxu0
    %v9172 = vadd.f32 %v8057, %v9171
    %9173 = vmatmul.bf16.gmra.mxu0 %v8155
    %v9174 = vpop.f32.mrf.mxu0
    %v9175 = vadd.f32 %v8060, %v9174
    %v9176 = vpop.f32.mrf.mxu0
    %v9177 = vadd.f32 %v8062, %v9176
    %9178 = vmatmul.bf16.gmra.mxu0 %v8157
    %v9179 = vpop.f32.mrf.mxu0
    %v9180 = vadd.f32 %v8065, %v9179
    %v9181 = vpop.f32.mrf.mxu0
    %v9182 = vadd.f32 %v8067, %v9181
    %9183 = vdwg.mxu0
    %9184 = vmatpush.bf16.msra.mxu0 %v8677
    %9185 = vmatpush.bf16.msra.mxu0 %v8669
    %9186 = vmatpush.bf16.msra.mxu0 %v8661
    %9187 = vmatpush.bf16.msra.mxu0 %v8653
    %9188 = vmatpush.bf16.msra.mxu0 %v8645
    %9189 = vmatpush.bf16.msra.mxu0 %v8637
    %9190 = vmatpush.bf16.msra.mxu0 %v8629
    %9191 = vmatpush.bf16.msra.mxu0 %v8621
    %9192 = vmatmul.bf16.gmra.mxu0 %v8152
    %v9193 = vpop.f32.mrf.mxu0
    %v9194 = vadd.f32 %v9165, %v9193
    %v9195 = vpop.f32.mrf.mxu0
    %v9196 = vadd.f32 %v9167, %v9195
    %9197 = vmatmul.bf16.gmra.mxu0 %v8154
    %v9198 = vpop.f32.mrf.mxu0
    %v9199 = vadd.f32 %v9170, %v9198
    %v9200 = vpop.f32.mrf.mxu0
    %v9201 = vadd.f32 %v9172, %v9200
    %9202 = vmatmul.bf16.gmra.mxu0 %v8156
    %v9203 = vpop.f32.mrf.mxu0
    %v9204 = vadd.f32 %v9175, %v9203
    %v9205 = vpop.f32.mrf.mxu0
    %v9206 = vadd.f32 %v9177, %v9205
    %9207 = vmatmul.bf16.gmra.mxu0 %v8158
    %v9208 = vpop.f32.mrf.mxu0
    %v9209 = vadd.f32 %v9180, %v9208
    %v9210 = vpop.f32.mrf.mxu0
    %v9211 = vadd.f32 %v9182, %v9210
    %9212 = vdwg.mxu0
    %9213 = vmatpush.bf16.msra.mxu0 %v8614
    %9214 = vmatpush.bf16.msra.mxu0 %v8606
    %9215 = vmatpush.bf16.msra.mxu0 %v8598
    %9216 = vmatpush.bf16.msra.mxu0 %v8590
    %9217 = vmatpush.bf16.msra.mxu0 %v8582
    %9218 = vmatpush.bf16.msra.mxu0 %v8574
    %9219 = vmatpush.bf16.msra.mxu0 %v8566
    %9220 = vmatpush.bf16.msra.mxu0 %v8558
    %9221 = vmatmul.bf16.gmra.mxu0 %v8151
    %v9222 = vpop.f32.mrf.mxu0
    %v9223 = vadd.f32 %v8108, %v9222
    %v9224 = vpop.f32.mrf.mxu0
    %v9225 = vadd.f32 %v8110, %v9224
    %9226 = vmatmul.bf16.gmra.mxu0 %v8153
    %v9227 = vpop.f32.mrf.mxu0
    %v9228 = vadd.f32 %v8113, %v9227
    %v9229 = vpop.f32.mrf.mxu0
    %v9230 = vadd.f32 %v8115, %v9229
    %9231 = vmatmul.bf16.gmra.mxu0 %v8155
    %v9232 = vpop.f32.mrf.mxu0
    %v9233 = vadd.f32 %v8118, %v9232
    %v9234 = vpop.f32.mrf.mxu0
    %v9235 = vadd.f32 %v8120, %v9234
    %9236 = vmatmul.bf16.gmra.mxu0 %v8157
    %v9237 = vpop.f32.mrf.mxu0
    %v9238 = vadd.f32 %v8123, %v9237
    %v9239 = vpop.f32.mrf.mxu0
    %v9240 = vadd.f32 %v8125, %v9239
    %9241 = vdwg.mxu0
    %9242 = vmatpush.bf16.msra.mxu0 %v8678
    %9243 = vmatpush.bf16.msra.mxu0 %v8670
    %9244 = vmatpush.bf16.msra.mxu0 %v8662
    %9245 = vmatpush.bf16.msra.mxu0 %v8654
    %9246 = vmatpush.bf16.msra.mxu0 %v8646
    %9247 = vmatpush.bf16.msra.mxu0 %v8638
    %9248 = vmatpush.bf16.msra.mxu0 %v8630
    %9249 = vmatpush.bf16.msra.mxu0 %v8622
    %9250 = vmatmul.bf16.gmra.mxu0 %v8152
    %v9251 = vpop.f32.mrf.mxu0
    %v9252 = vadd.f32 %v9223, %v9251
    %v9253 = vpop.f32.mrf.mxu0
    %v9254 = vadd.f32 %v9225, %v9253
    %9255 = vmatmul.bf16.gmra.mxu0 %v8154
    %v9256 = vpop.f32.mrf.mxu0
    %v9257 = vadd.f32 %v9228, %v9256
    %v9258 = vpop.f32.mrf.mxu0
    %v9259 = vadd.f32 %v9230, %v9258
    %9260 = vmatmul.bf16.gmra.mxu0 %v8156
    %v9261 = vpop.f32.mrf.mxu0
    %v9262 = vadd.f32 %v9233, %v9261
    %v9263 = vpop.f32.mrf.mxu0
    %v9264 = vadd.f32 %v9235, %v9263
    %9265 = vmatmul.bf16.gmra.mxu0 %v8158
    %v9266 = vpop.f32.mrf.mxu0
    %v9267 = vadd.f32 %v9238, %v9266
    %v9268 = vpop.f32.mrf.mxu0
    %v9269 = vadd.f32 %v9240, %v9268
    %9270 = vdwg.mxu0
    %s9271 = sshll.u32 %s987, 4
    %9272 = dma.done [#allocation3], %s9271
    %v9273 = vld [vmem:[#allocation2] sm:$0xff]
    %v9274 = vld [vmem:[#allocation2 + $0x8] sm:$0xff]
    %v9275 = vld [vmem:[#allocation2 + $0x10] sm:$0xff]
    %v9276 = vld [vmem:[#allocation2 + $0x18] sm:$0xff]
    %v9277 = vld [vmem:[#allocation2 + $0x20] sm:$0xff]
    %v9278 = vld [vmem:[#allocation2 + $0x28] sm:$0xff]
    %v9279 = vld [vmem:[#allocation2 + $0x30] sm:$0xff]
    %v9280 = vld [vmem:[#allocation2 + $0x38] sm:$0xff]
    %v9281 = vld [vmem:[#allocation2 + $0x40] sm:$0xff]
    %v9282 = vld [vmem:[#allocation2 + $0x48] sm:$0xff]
    %v9283 = vld [vmem:[#allocation2 + $0x50] sm:$0xff]
    %v9284 = vld [vmem:[#allocation2 + $0x58] sm:$0xff]
    %v9285 = vld [vmem:[#allocation2 + $0x60] sm:$0xff]
    %v9286 = vld [vmem:[#allocation2 + $0x68] sm:$0xff]
    %v9287 = vld [vmem:[#allocation2 + $0x70] sm:$0xff]
    %v9288 = vld [vmem:[#allocation2 + $0x78] sm:$0xff]
    %v9289 = vld [vmem:[#allocation2 + $0x80] sm:$0xff]
    %v9290 = vld [vmem:[#allocation2 + $0x88] sm:$0xff]
    %v9291 = vld [vmem:[#allocation2 + $0x90] sm:$0xff]
    %v9292 = vld [vmem:[#allocation2 + $0x98] sm:$0xff]
    %v9293 = vld [vmem:[#allocation2 + $0xa0] sm:$0xff]
    %v9294 = vld [vmem:[#allocation2 + $0xa8] sm:$0xff]
    %v9295 = vld [vmem:[#allocation2 + $0xb0] sm:$0xff]
    %v9296 = vld [vmem:[#allocation2 + $0xb8] sm:$0xff]
    %v9297 = vld [vmem:[#allocation2 + $0xc0] sm:$0xff]
    %v9298 = vld [vmem:[#allocation2 + $0xc8] sm:$0xff]
    %v9299 = vld [vmem:[#allocation2 + $0xd0] sm:$0xff]
    %v9300 = vld [vmem:[#allocation2 + $0xd8] sm:$0xff]
    %v9301 = vld [vmem:[#allocation2 + $0xe0] sm:$0xff]
    %v9302 = vld [vmem:[#allocation2 + $0xe8] sm:$0xff]
    %v9303 = vld [vmem:[#allocation2 + $0xf0] sm:$0xff]
    %v9304 = vld [vmem:[#allocation2 + $0xf8] sm:$0xff]
    %v9305 = vld [vmem:[#allocation2 + $0x100] sm:$0xff]
    %v9306 = vld [vmem:[#allocation2 + $0x108] sm:$0xff]
    %v9307 = vld [vmem:[#allocation2 + $0x110] sm:$0xff]
    %v9308 = vld [vmem:[#allocation2 + $0x118] sm:$0xff]
    %v9309 = vld [vmem:[#allocation2 + $0x120] sm:$0xff]
    %v9310 = vld [vmem:[#allocation2 + $0x128] sm:$0xff]
    %v9311 = vld [vmem:[#allocation2 + $0x130] sm:$0xff]
    %v9312 = vld [vmem:[#allocation2 + $0x138] sm:$0xff]
    %v9313 = vld [vmem:[#allocation2 + $0x140] sm:$0xff]
    %v9314 = vld [vmem:[#allocation2 + $0x148] sm:$0xff]
    %v9315 = vld [vmem:[#allocation2 + $0x150] sm:$0xff]
    %v9316 = vld [vmem:[#allocation2 + $0x158] sm:$0xff]
    %v9317 = vld [vmem:[#allocation2 + $0x160] sm:$0xff]
    %v9318 = vld [vmem:[#allocation2 + $0x168] sm:$0xff]
    %v9319 = vld [vmem:[#allocation2 + $0x170] sm:$0xff]
    %v9320 = vld [vmem:[#allocation2 + $0x178] sm:$0xff]
    %v9321 = vld [vmem:[#allocation2 + $0x180] sm:$0xff]
    %v9322 = vld [vmem:[#allocation2 + $0x188] sm:$0xff]
    %v9323 = vld [vmem:[#allocation2 + $0x190] sm:$0xff]
    %v9324 = vld [vmem:[#allocation2 + $0x198] sm:$0xff]
    %v9325 = vld [vmem:[#allocation2 + $0x1a0] sm:$0xff]
    %v9326 = vld [vmem:[#allocation2 + $0x1a8] sm:$0xff]
    %v9327 = vld [vmem:[#allocation2 + $0x1b0] sm:$0xff]
    %v9328 = vld [vmem:[#allocation2 + $0x1b8] sm:$0xff]
    %v9329 = vld [vmem:[#allocation2 + $0x1c0] sm:$0xff]
    %v9330 = vld [vmem:[#allocation2 + $0x1c8] sm:$0xff]
    %v9331 = vld [vmem:[#allocation2 + $0x1d0] sm:$0xff]
    %v9332 = vld [vmem:[#allocation2 + $0x1d8] sm:$0xff]
    %v9333 = vld [vmem:[#allocation2 + $0x1e0] sm:$0xff]
    %v9334 = vld [vmem:[#allocation2 + $0x1e8] sm:$0xff]
    %v9335 = vld [vmem:[#allocation2 + $0x1f0] sm:$0xff]
    %v9336 = vld [vmem:[#allocation2 + $0x1f8] sm:$0xff]
    %v9337 = vld [vmem:[#allocation2 + $0x200] sm:$0xff]
    %v9338 = vld [vmem:[#allocation2 + $0x208] sm:$0xff]
    %v9339 = vld [vmem:[#allocation2 + $0x210] sm:$0xff]
    %v9340 = vld [vmem:[#allocation2 + $0x218] sm:$0xff]
    %v9341 = vld [vmem:[#allocation2 + $0x220] sm:$0xff]
    %v9342 = vld [vmem:[#allocation2 + $0x228] sm:$0xff]
    %v9343 = vld [vmem:[#allocation2 + $0x230] sm:$0xff]
    %v9344 = vld [vmem:[#allocation2 + $0x238] sm:$0xff]
    %v9345 = vld [vmem:[#allocation2 + $0x240] sm:$0xff]
    %v9346 = vld [vmem:[#allocation2 + $0x248] sm:$0xff]
    %v9347 = vld [vmem:[#allocation2 + $0x250] sm:$0xff]
    %v9348 = vld [vmem:[#allocation2 + $0x258] sm:$0xff]
    %v9349 = vld [vmem:[#allocation2 + $0x260] sm:$0xff]
    %v9350 = vld [vmem:[#allocation2 + $0x268] sm:$0xff]
    %v9351 = vld [vmem:[#allocation2 + $0x270] sm:$0xff]
    %v9352 = vld [vmem:[#allocation2 + $0x278] sm:$0xff]
    %v9353 = vld [vmem:[#allocation2 + $0x280] sm:$0xff]
    %v9354 = vld [vmem:[#allocation2 + $0x288] sm:$0xff]
    %v9355 = vld [vmem:[#allocation2 + $0x290] sm:$0xff]
    %v9356 = vld [vmem:[#allocation2 + $0x298] sm:$0xff]
    %v9357 = vld [vmem:[#allocation2 + $0x2a0] sm:$0xff]
    %v9358 = vld [vmem:[#allocation2 + $0x2a8] sm:$0xff]
    %v9359 = vld [vmem:[#allocation2 + $0x2b0] sm:$0xff]
    %v9360 = vld [vmem:[#allocation2 + $0x2b8] sm:$0xff]
    %v9361 = vld [vmem:[#allocation2 + $0x2c0] sm:$0xff]
    %v9362 = vld [vmem:[#allocation2 + $0x2c8] sm:$0xff]
    %v9363 = vld [vmem:[#allocation2 + $0x2d0] sm:$0xff]
    %v9364 = vld [vmem:[#allocation2 + $0x2d8] sm:$0xff]
    %v9365 = vld [vmem:[#allocation2 + $0x2e0] sm:$0xff]
    %v9366 = vld [vmem:[#allocation2 + $0x2e8] sm:$0xff]
    %v9367 = vld [vmem:[#allocation2 + $0x2f0] sm:$0xff]
    %v9368 = vld [vmem:[#allocation2 + $0x2f8] sm:$0xff]
    %v9369 = vld [vmem:[#allocation2 + $0x300] sm:$0xff]
    %v9370 = vld [vmem:[#allocation2 + $0x308] sm:$0xff]
    %v9371 = vld [vmem:[#allocation2 + $0x310] sm:$0xff]
    %v9372 = vld [vmem:[#allocation2 + $0x318] sm:$0xff]
    %v9373 = vld [vmem:[#allocation2 + $0x320] sm:$0xff]
    %v9374 = vld [vmem:[#allocation2 + $0x328] sm:$0xff]
    %v9375 = vld [vmem:[#allocation2 + $0x330] sm:$0xff]
    %v9376 = vld [vmem:[#allocation2 + $0x338] sm:$0xff]
    %v9377 = vld [vmem:[#allocation2 + $0x340] sm:$0xff]
    %v9378 = vld [vmem:[#allocation2 + $0x348] sm:$0xff]
    %v9379 = vld [vmem:[#allocation2 + $0x350] sm:$0xff]
    %v9380 = vld [vmem:[#allocation2 + $0x358] sm:$0xff]
    %v9381 = vld [vmem:[#allocation2 + $0x360] sm:$0xff]
    %v9382 = vld [vmem:[#allocation2 + $0x368] sm:$0xff]
    %v9383 = vld [vmem:[#allocation2 + $0x370] sm:$0xff]
    %v9384 = vld [vmem:[#allocation2 + $0x378] sm:$0xff]
    %v9385 = vld [vmem:[#allocation2 + $0x380] sm:$0xff]
    %v9386 = vld [vmem:[#allocation2 + $0x388] sm:$0xff]
    %v9387 = vld [vmem:[#allocation2 + $0x390] sm:$0xff]
    %v9388 = vld [vmem:[#allocation2 + $0x398] sm:$0xff]
    %v9389 = vld [vmem:[#allocation2 + $0x3a0] sm:$0xff]
    %v9390 = vld [vmem:[#allocation2 + $0x3a8] sm:$0xff]
    %v9391 = vld [vmem:[#allocation2 + $0x3b0] sm:$0xff]
    %v9392 = vld [vmem:[#allocation2 + $0x3b8] sm:$0xff]
    %v9393 = vld [vmem:[#allocation2 + $0x3c0] sm:$0xff]
    %v9394 = vld [vmem:[#allocation2 + $0x3c8] sm:$0xff]
    %v9395 = vld [vmem:[#allocation2 + $0x3d0] sm:$0xff]
    %v9396 = vld [vmem:[#allocation2 + $0x3d8] sm:$0xff]
    %v9397 = vld [vmem:[#allocation2 + $0x3e0] sm:$0xff]
    %v9398 = vld [vmem:[#allocation2 + $0x3e8] sm:$0xff]
    %v9399 = vld [vmem:[#allocation2 + $0x3f0] sm:$0xff]
    %v9400 = vld [vmem:[#allocation2 + $0x3f8] sm:$0xff]
    %v9409 = vunpack.c.l.b16 %v6665
    %v9410 = vunpack.c.h.b16 %v6665
    %v9411 = vunpack.c.l.b16 %v6669
    %v9412 = vunpack.c.h.b16 %v6669
    %v9413 = vunpack.c.l.b16 %v6673
    %v9414 = vunpack.c.h.b16 %v6673
    %v9415 = vunpack.c.l.b16 %v6677
    %v9416 = vunpack.c.h.b16 %v6677
    %v9417 = vunpack.c.l.b16 %v6681
    %v9418 = vunpack.c.h.b16 %v6681
    %v9419 = vunpack.c.l.b16 %v6685
    %v9420 = vunpack.c.h.b16 %v6685
    %v9421 = vunpack.c.l.b16 %v6689
    %v9422 = vunpack.c.h.b16 %v6689
    %v9423 = vunpack.c.l.b16 %v6693
    %v9424 = vunpack.c.h.b16 %v6693
    %v9425 = vpack.c.b16 %v9411, %v9409
    %v9426 = vpack.c.b16 %v9412, %v9410
    %v9427 = vpack.c.b16 %v9415, %v9413
    %v9428 = vpack.c.b16 %v9416, %v9414
    %v9429 = vpack.c.b16 %v9419, %v9417
    %v9430 = vpack.c.b16 %v9420, %v9418
    %v9431 = vpack.c.b16 %v9423, %v9421
    %v9432 = vpack.c.b16 %v9424, %v9422
    %v9569 = vunpack.c.l.b16 %v9273
    %v9570 = vunpack.c.h.b16 %v9273
    %v9571 = vunpack.c.l.b16 %v9274
    %v9572 = vunpack.c.h.b16 %v9274
    %v9573 = vunpack.c.l.b16 %v9275
    %v9574 = vunpack.c.h.b16 %v9275
    %v9575 = vunpack.c.l.b16 %v9276
    %v9576 = vunpack.c.h.b16 %v9276
    %v9577 = vunpack.c.l.b16 %v9277
    %v9578 = vunpack.c.h.b16 %v9277
    %v9579 = vunpack.c.l.b16 %v9278
    %v9580 = vunpack.c.h.b16 %v9278
    %v9581 = vunpack.c.l.b16 %v9279
    %v9582 = vunpack.c.h.b16 %v9279
    %v9583 = vunpack.c.l.b16 %v9280
    %v9584 = vunpack.c.h.b16 %v9280
    %v9585 = vunpack.c.l.b16 %v9281
    %v9586 = vunpack.c.h.b16 %v9281
    %v9587 = vunpack.c.l.b16 %v9282
    %v9588 = vunpack.c.h.b16 %v9282
    %v9589 = vunpack.c.l.b16 %v9283
    %v9590 = vunpack.c.h.b16 %v9283
    %v9591 = vunpack.c.l.b16 %v9284
    %v9592 = vunpack.c.h.b16 %v9284
    %v9593 = vunpack.c.l.b16 %v9285
    %v9594 = vunpack.c.h.b16 %v9285
    %v9595 = vunpack.c.l.b16 %v9286
    %v9596 = vunpack.c.h.b16 %v9286
    %v9597 = vunpack.c.l.b16 %v9287
    %v9598 = vunpack.c.h.b16 %v9287
    %v9599 = vunpack.c.l.b16 %v9288
    %v9600 = vunpack.c.h.b16 %v9288
    %v9601 = vunpack.c.l.b16 %v9289
    %v9602 = vunpack.c.h.b16 %v9289
    %v9603 = vunpack.c.l.b16 %v9290
    %v9604 = vunpack.c.h.b16 %v9290
    %v9605 = vunpack.c.l.b16 %v9291
    %v9606 = vunpack.c.h.b16 %v9291
    %v9607 = vunpack.c.l.b16 %v9292
    %v9608 = vunpack.c.h.b16 %v9292
    %v9609 = vunpack.c.l.b16 %v9293
    %v9610 = vunpack.c.h.b16 %v9293
    %v9611 = vunpack.c.l.b16 %v9294
    %v9612 = vunpack.c.h.b16 %v9294
    %v9613 = vunpack.c.l.b16 %v9295
    %v9614 = vunpack.c.h.b16 %v9295
    %v9615 = vunpack.c.l.b16 %v9296
    %v9616 = vunpack.c.h.b16 %v9296
    %v9617 = vunpack.c.l.b16 %v9297
    %v9618 = vunpack.c.h.b16 %v9297
    %v9619 = vunpack.c.l.b16 %v9298
    %v9620 = vunpack.c.h.b16 %v9298
    %v9621 = vunpack.c.l.b16 %v9299
    %v9622 = vunpack.c.h.b16 %v9299
    %v9623 = vunpack.c.l.b16 %v9300
    %v9624 = vunpack.c.h.b16 %v9300
    %v9625 = vunpack.c.l.b16 %v9301
    %v9626 = vunpack.c.h.b16 %v9301
    %v9627 = vunpack.c.l.b16 %v9302
    %v9628 = vunpack.c.h.b16 %v9302
    %v9629 = vunpack.c.l.b16 %v9303
    %v9630 = vunpack.c.h.b16 %v9303
    %v9631 = vunpack.c.l.b16 %v9304
    %v9632 = vunpack.c.h.b16 %v9304
    %v9633 = vunpack.c.l.b16 %v9305
    %v9634 = vunpack.c.h.b16 %v9305
    %v9635 = vunpack.c.l.b16 %v9306
    %v9636 = vunpack.c.h.b16 %v9306
    %v9637 = vunpack.c.l.b16 %v9307
    %v9638 = vunpack.c.h.b16 %v9307
    %v9639 = vunpack.c.l.b16 %v9308
    %v9640 = vunpack.c.h.b16 %v9308
    %v9641 = vunpack.c.l.b16 %v9309
    %v9642 = vunpack.c.h.b16 %v9309
    %v9643 = vunpack.c.l.b16 %v9310
    %v9644 = vunpack.c.h.b16 %v9310
    %v9645 = vunpack.c.l.b16 %v9311
    %v9646 = vunpack.c.h.b16 %v9311
    %v9647 = vunpack.c.l.b16 %v9312
    %v9648 = vunpack.c.h.b16 %v9312
    %v9649 = vunpack.c.l.b16 %v9313
    %v9650 = vunpack.c.h.b16 %v9313
    %v9651 = vunpack.c.l.b16 %v9314
    %v9652 = vunpack.c.h.b16 %v9314
    %v9653 = vunpack.c.l.b16 %v9315
    %v9654 = vunpack.c.h.b16 %v9315
    %v9655 = vunpack.c.l.b16 %v9316
    %v9656 = vunpack.c.h.b16 %v9316
    %v9657 = vunpack.c.l.b16 %v9317
    %v9658 = vunpack.c.h.b16 %v9317
    %v9659 = vunpack.c.l.b16 %v9318
    %v9660 = vunpack.c.h.b16 %v9318
    %v9661 = vunpack.c.l.b16 %v9319
    %v9662 = vunpack.c.h.b16 %v9319
    %v9663 = vunpack.c.l.b16 %v9320
    %v9664 = vunpack.c.h.b16 %v9320
    %v9665 = vunpack.c.l.b16 %v9321
    %v9666 = vunpack.c.h.b16 %v9321
    %v9667 = vunpack.c.l.b16 %v9322
    %v9668 = vunpack.c.h.b16 %v9322
    %v9669 = vunpack.c.l.b16 %v9323
    %v9670 = vunpack.c.h.b16 %v9323
    %v9671 = vunpack.c.l.b16 %v9324
    %v9672 = vunpack.c.h.b16 %v9324
    %v9673 = vunpack.c.l.b16 %v9325
    %v9674 = vunpack.c.h.b16 %v9325
    %v9675 = vunpack.c.l.b16 %v9326
    %v9676 = vunpack.c.h.b16 %v9326
    %v9677 = vunpack.c.l.b16 %v9327
    %v9678 = vunpack.c.h.b16 %v9327
    %v9679 = vunpack.c.l.b16 %v9328
    %v9680 = vunpack.c.h.b16 %v9328
    %v9681 = vunpack.c.l.b16 %v9329
    %v9682 = vunpack.c.h.b16 %v9329
    %v9683 = vunpack.c.l.b16 %v9330
    %v9684 = vunpack.c.h.b16 %v9330
    %v9685 = vunpack.c.l.b16 %v9331
    %v9686 = vunpack.c.h.b16 %v9331
    %v9687 = vunpack.c.l.b16 %v9332
    %v9688 = vunpack.c.h.b16 %v9332
    %v9689 = vunpack.c.l.b16 %v9333
    %v9690 = vunpack.c.h.b16 %v9333
    %v9691 = vunpack.c.l.b16 %v9334
    %v9692 = vunpack.c.h.b16 %v9334
    %v9693 = vunpack.c.l.b16 %v9335
    %v9694 = vunpack.c.h.b16 %v9335
    %v9695 = vunpack.c.l.b16 %v9336
    %v9696 = vunpack.c.h.b16 %v9336
    %v9697 = vunpack.c.l.b16 %v9337
    %v9698 = vunpack.c.h.b16 %v9337
    %v9699 = vunpack.c.l.b16 %v9338
    %v9700 = vunpack.c.h.b16 %v9338
    %v9701 = vunpack.c.l.b16 %v9339
    %v9702 = vunpack.c.h.b16 %v9339
    %v9703 = vunpack.c.l.b16 %v9340
    %v9704 = vunpack.c.h.b16 %v9340
    %v9705 = vunpack.c.l.b16 %v9341
    %v9706 = vunpack.c.h.b16 %v9341
    %v9707 = vunpack.c.l.b16 %v9342
    %v9708 = vunpack.c.h.b16 %v9342
    %v9709 = vunpack.c.l.b16 %v9343
    %v9710 = vunpack.c.h.b16 %v9343
    %v9711 = vunpack.c.l.b16 %v9344
    %v9712 = vunpack.c.h.b16 %v9344
    %v9713 = vunpack.c.l.b16 %v9345
    %v9714 = vunpack.c.h.b16 %v9345
    %v9715 = vunpack.c.l.b16 %v9346
    %v9716 = vunpack.c.h.b16 %v9346
    %v9717 = vunpack.c.l.b16 %v9347
    %v9718 = vunpack.c.h.b16 %v9347
    %v9719 = vunpack.c.l.b16 %v9348
    %v9720 = vunpack.c.h.b16 %v9348
    %v9721 = vunpack.c.l.b16 %v9349
    %v9722 = vunpack.c.h.b16 %v9349
    %v9723 = vunpack.c.l.b16 %v9350
    %v9724 = vunpack.c.h.b16 %v9350
    %v9725 = vunpack.c.l.b16 %v9351
    %v9726 = vunpack.c.h.b16 %v9351
    %v9727 = vunpack.c.l.b16 %v9352
    %v9728 = vunpack.c.h.b16 %v9352
    %v9729 = vunpack.c.l.b16 %v9353
    %v9730 = vunpack.c.h.b16 %v9353
    %v9731 = vunpack.c.l.b16 %v9354
    %v9732 = vunpack.c.h.b16 %v9354
    %v9733 = vunpack.c.l.b16 %v9355
    %v9734 = vunpack.c.h.b16 %v9355
    %v9735 = vunpack.c.l.b16 %v9356
    %v9736 = vunpack.c.h.b16 %v9356
    %v9737 = vunpack.c.l.b16 %v9357
    %v9738 = vunpack.c.h.b16 %v9357
    %v9739 = vunpack.c.l.b16 %v9358
    %v9740 = vunpack.c.h.b16 %v9358
    %v9741 = vunpack.c.l.b16 %v9359
    %v9742 = vunpack.c.h.b16 %v9359
    %v9743 = vunpack.c.l.b16 %v9360
    %v9744 = vunpack.c.h.b16 %v9360
    %v9745 = vunpack.c.l.b16 %v9361
    %v9746 = vunpack.c.h.b16 %v9361
    %v9747 = vunpack.c.l.b16 %v9362
    %v9748 = vunpack.c.h.b16 %v9362
    %v9749 = vunpack.c.l.b16 %v9363
    %v9750 = vunpack.c.h.b16 %v9363
    %v9751 = vunpack.c.l.b16 %v9364
    %v9752 = vunpack.c.h.b16 %v9364
    %v9753 = vunpack.c.l.b16 %v9365
    %v9754 = vunpack.c.h.b16 %v9365
    %v9755 = vunpack.c.l.b16 %v9366
    %v9756 = vunpack.c.h.b16 %v9366
    %v9757 = vunpack.c.l.b16 %v9367
    %v9758 = vunpack.c.h.b16 %v9367
    %v9759 = vunpack.c.l.b16 %v9368
    %v9760 = vunpack.c.h.b16 %v9368
    %v9761 = vunpack.c.l.b16 %v9369
    %v9762 = vunpack.c.h.b16 %v9369
    %v9763 = vunpack.c.l.b16 %v9370
    %v9764 = vunpack.c.h.b16 %v9370
    %v9765 = vunpack.c.l.b16 %v9371
    %v9766 = vunpack.c.h.b16 %v9371
    %v9767 = vunpack.c.l.b16 %v9372
    %v9768 = vunpack.c.h.b16 %v9372
    %v9769 = vunpack.c.l.b16 %v9373
    %v9770 = vunpack.c.h.b16 %v9373
    %v9771 = vunpack.c.l.b16 %v9374
    %v9772 = vunpack.c.h.b16 %v9374
    %v9773 = vunpack.c.l.b16 %v9375
    %v9774 = vunpack.c.h.b16 %v9375
    %v9775 = vunpack.c.l.b16 %v9376
    %v9776 = vunpack.c.h.b16 %v9376
    %v9777 = vunpack.c.l.b16 %v9377
    %v9778 = vunpack.c.h.b16 %v9377
    %v9779 = vunpack.c.l.b16 %v9378
    %v9780 = vunpack.c.h.b16 %v9378
    %v9781 = vunpack.c.l.b16 %v9379
    %v9782 = vunpack.c.h.b16 %v9379
    %v9783 = vunpack.c.l.b16 %v9380
    %v9784 = vunpack.c.h.b16 %v9380
    %v9785 = vunpack.c.l.b16 %v9381
    %v9786 = vunpack.c.h.b16 %v9381
    %v9787 = vunpack.c.l.b16 %v9382
    %v9788 = vunpack.c.h.b16 %v9382
    %v9789 = vunpack.c.l.b16 %v9383
    %v9790 = vunpack.c.h.b16 %v9383
    %v9791 = vunpack.c.l.b16 %v9384
    %v9792 = vunpack.c.h.b16 %v9384
    %v9793 = vunpack.c.l.b16 %v9385
    %v9794 = vunpack.c.h.b16 %v9385
    %v9795 = vunpack.c.l.b16 %v9386
    %v9796 = vunpack.c.h.b16 %v9386
    %v9797 = vunpack.c.l.b16 %v9387
    %v9798 = vunpack.c.h.b16 %v9387
    %v9799 = vunpack.c.l.b16 %v9388
    %v9800 = vunpack.c.h.b16 %v9388
    %v9801 = vunpack.c.l.b16 %v9389
    %v9802 = vunpack.c.h.b16 %v9389
    %v9803 = vunpack.c.l.b16 %v9390
    %v9804 = vunpack.c.h.b16 %v9390
    %v9805 = vunpack.c.l.b16 %v9391
    %v9806 = vunpack.c.h.b16 %v9391
    %v9807 = vunpack.c.l.b16 %v9392
    %v9808 = vunpack.c.h.b16 %v9392
    %v9809 = vunpack.c.l.b16 %v9393
    %v9810 = vunpack.c.h.b16 %v9393
    %v9811 = vunpack.c.l.b16 %v9394
    %v9812 = vunpack.c.h.b16 %v9394
    %v9813 = vunpack.c.l.b16 %v9395
    %v9814 = vunpack.c.h.b16 %v9395
    %v9815 = vunpack.c.l.b16 %v9396
    %v9816 = vunpack.c.h.b16 %v9396
    %v9817 = vunpack.c.l.b16 %v9397
    %v9818 = vunpack.c.h.b16 %v9397
    %v9819 = vunpack.c.l.b16 %v9398
    %v9820 = vunpack.c.h.b16 %v9398
    %v9821 = vunpack.c.l.b16 %v9399
    %v9822 = vunpack.c.h.b16 %v9399
    %v9823 = vunpack.c.l.b16 %v9400
    %v9824 = vunpack.c.h.b16 %v9400
    %v9825 = vpack.c.b16 %v9577, %v9569
    %v9826 = vpack.c.b16 %v9578, %v9570
    %v9827 = vpack.c.b16 %v9579, %v9571
    %v9828 = vpack.c.b16 %v9580, %v9572
    %v9829 = vpack.c.b16 %v9581, %v9573
    %v9830 = vpack.c.b16 %v9582, %v9574
    %v9831 = vpack.c.b16 %v9583, %v9575
    %v9832 = vpack.c.b16 %v9584, %v9576
    %v9833 = vpack.c.b16 %v9593, %v9585
    %v9834 = vpack.c.b16 %v9594, %v9586
    %v9835 = vpack.c.b16 %v9595, %v9587
    %v9836 = vpack.c.b16 %v9596, %v9588
    %v9837 = vpack.c.b16 %v9597, %v9589
    %v9838 = vpack.c.b16 %v9598, %v9590
    %v9839 = vpack.c.b16 %v9599, %v9591
    %v9840 = vpack.c.b16 %v9600, %v9592
    %v9841 = vpack.c.b16 %v9609, %v9601
    %v9842 = vpack.c.b16 %v9610, %v9602
    %v9843 = vpack.c.b16 %v9611, %v9603
    %v9844 = vpack.c.b16 %v9612, %v9604
    %v9845 = vpack.c.b16 %v9613, %v9605
    %v9846 = vpack.c.b16 %v9614, %v9606
    %v9847 = vpack.c.b16 %v9615, %v9607
    %v9848 = vpack.c.b16 %v9616, %v9608
    %v9849 = vpack.c.b16 %v9625, %v9617
    %v9850 = vpack.c.b16 %v9626, %v9618
    %v9851 = vpack.c.b16 %v9627, %v9619
    %v9852 = vpack.c.b16 %v9628, %v9620
    %v9853 = vpack.c.b16 %v9629, %v9621
    %v9854 = vpack.c.b16 %v9630, %v9622
    %v9855 = vpack.c.b16 %v9631, %v9623
    %v9856 = vpack.c.b16 %v9632, %v9624
    %v9857 = vpack.c.b16 %v9641, %v9633
    %v9858 = vpack.c.b16 %v9642, %v9634
    %v9859 = vpack.c.b16 %v9643, %v9635
    %v9860 = vpack.c.b16 %v9644, %v9636
    %v9861 = vpack.c.b16 %v9645, %v9637
    %v9862 = vpack.c.b16 %v9646, %v9638
    %v9863 = vpack.c.b16 %v9647, %v9639
    %v9864 = vpack.c.b16 %v9648, %v9640
    %v9865 = vpack.c.b16 %v9657, %v9649
    %v9866 = vpack.c.b16 %v9658, %v9650
    %v9867 = vpack.c.b16 %v9659, %v9651
    %v9868 = vpack.c.b16 %v9660, %v9652
    %v9869 = vpack.c.b16 %v9661, %v9653
    %v9870 = vpack.c.b16 %v9662, %v9654
    %v9871 = vpack.c.b16 %v9663, %v9655
    %v9872 = vpack.c.b16 %v9664, %v9656
    %v9873 = vpack.c.b16 %v9673, %v9665
    %v9874 = vpack.c.b16 %v9674, %v9666
    %v9875 = vpack.c.b16 %v9675, %v9667
    %v9876 = vpack.c.b16 %v9676, %v9668
    %v9877 = vpack.c.b16 %v9677, %v9669
    %v9878 = vpack.c.b16 %v9678, %v9670
    %v9879 = vpack.c.b16 %v9679, %v9671
    %v9880 = vpack.c.b16 %v9680, %v9672
    %v9881 = vpack.c.b16 %v9689, %v9681
    %v9882 = vpack.c.b16 %v9690, %v9682
    %v9883 = vpack.c.b16 %v9691, %v9683
    %v9884 = vpack.c.b16 %v9692, %v9684
    %v9885 = vpack.c.b16 %v9693, %v9685
    %v9886 = vpack.c.b16 %v9694, %v9686
    %v9887 = vpack.c.b16 %v9695, %v9687
    %v9888 = vpack.c.b16 %v9696, %v9688
    %v9889 = vpack.c.b16 %v9705, %v9697
    %v9890 = vpack.c.b16 %v9706, %v9698
    %v9891 = vpack.c.b16 %v9707, %v9699
    %v9892 = vpack.c.b16 %v9708, %v9700
    %v9893 = vpack.c.b16 %v9709, %v9701
    %v9894 = vpack.c.b16 %v9710, %v9702
    %v9895 = vpack.c.b16 %v9711, %v9703
    %v9896 = vpack.c.b16 %v9712, %v9704
    %v9897 = vpack.c.b16 %v9721, %v9713
    %v9898 = vpack.c.b16 %v9722, %v9714
    %v9899 = vpack.c.b16 %v9723, %v9715
    %v9900 = vpack.c.b16 %v9724, %v9716
    %v9901 = vpack.c.b16 %v9725, %v9717
    %v9902 = vpack.c.b16 %v9726, %v9718
    %v9903 = vpack.c.b16 %v9727, %v9719
    %v9904 = vpack.c.b16 %v9728, %v9720
    %v9905 = vpack.c.b16 %v9737, %v9729
    %v9906 = vpack.c.b16 %v9738, %v9730
    %v9907 = vpack.c.b16 %v9739, %v9731
    %v9908 = vpack.c.b16 %v9740, %v9732
    %v9909 = vpack.c.b16 %v9741, %v9733
    %v9910 = vpack.c.b16 %v9742, %v9734
    %v9911 = vpack.c.b16 %v9743, %v9735
    %v9912 = vpack.c.b16 %v9744, %v9736
    %v9913 = vpack.c.b16 %v9753, %v9745
    %v9914 = vpack.c.b16 %v9754, %v9746
    %v9915 = vpack.c.b16 %v9755, %v9747
    %v9916 = vpack.c.b16 %v9756, %v9748
    %v9917 = vpack.c.b16 %v9757, %v9749
    %v9918 = vpack.c.b16 %v9758, %v9750
    %v9919 = vpack.c.b16 %v9759, %v9751
    %v9920 = vpack.c.b16 %v9760, %v9752
    %v9921 = vpack.c.b16 %v9769, %v9761
    %v9922 = vpack.c.b16 %v9770, %v9762
    %v9923 = vpack.c.b16 %v9771, %v9763
    %v9924 = vpack.c.b16 %v9772, %v9764
    %v9925 = vpack.c.b16 %v9773, %v9765
    %v9926 = vpack.c.b16 %v9774, %v9766
    %v9927 = vpack.c.b16 %v9775, %v9767
    %v9928 = vpack.c.b16 %v9776, %v9768
    %v9929 = vpack.c.b16 %v9785, %v9777
    %v9930 = vpack.c.b16 %v9786, %v9778
    %v9931 = vpack.c.b16 %v9787, %v9779
    %v9932 = vpack.c.b16 %v9788, %v9780
    %v9933 = vpack.c.b16 %v9789, %v9781
    %v9934 = vpack.c.b16 %v9790, %v9782
    %v9935 = vpack.c.b16 %v9791, %v9783
    %v9936 = vpack.c.b16 %v9792, %v9784
    %v9937 = vpack.c.b16 %v9801, %v9793
    %v9938 = vpack.c.b16 %v9802, %v9794
    %v9939 = vpack.c.b16 %v9803, %v9795
    %v9940 = vpack.c.b16 %v9804, %v9796
    %v9941 = vpack.c.b16 %v9805, %v9797
    %v9942 = vpack.c.b16 %v9806, %v9798
    %v9943 = vpack.c.b16 %v9807, %v9799
    %v9944 = vpack.c.b16 %v9808, %v9800
    %v9945 = vpack.c.b16 %v9817, %v9809
    %v9946 = vpack.c.b16 %v9818, %v9810
    %v9947 = vpack.c.b16 %v9819, %v9811
    %v9948 = vpack.c.b16 %v9820, %v9812
    %v9949 = vpack.c.b16 %v9821, %v9813
    %v9950 = vpack.c.b16 %v9822, %v9814
    %v9951 = vpack.c.b16 %v9823, %v9815
    %v9952 = vpack.c.b16 %v9824, %v9816
    %10081 = vmatpush.bf16.msra.mxu0 %v9881
    %10082 = vmatpush.bf16.msra.mxu0 %v9873
    %10083 = vmatpush.bf16.msra.mxu0 %v9865
    %10084 = vmatpush.bf16.msra.mxu0 %v9857
    %10085 = vmatpush.bf16.msra.mxu0 %v9849
    %10086 = vmatpush.bf16.msra.mxu0 %v9841
    %10087 = vmatpush.bf16.msra.mxu0 %v9833
    %10088 = vmatpush.bf16.msra.mxu0 %v9825
    %10089 = vmatmul.bf16.gmra.mxu0 %v9425
    %v10090 = vpop.f32.mrf.mxu0
    %v10091 = vadd.f32 0.0, %v10090
    %v10092 = vpop.f32.mrf.mxu0
    %v10093 = vadd.f32 0.0, %v10092
    %10094 = vmatmul.bf16.gmra.mxu0 %v9427
    %v10095 = vpop.f32.mrf.mxu0
    %v10096 = vadd.f32 0.0, %v10095
    %v10097 = vpop.f32.mrf.mxu0
    %v10098 = vadd.f32 0.0, %v10097
    %10099 = vmatmul.bf16.gmra.mxu0 %v9429
    %v10100 = vpop.f32.mrf.mxu0
    %v10101 = vadd.f32 0.0, %v10100
    %v10102 = vpop.f32.mrf.mxu0
    %v10103 = vadd.f32 0.0, %v10102
    %10104 = vmatmul.bf16.gmra.mxu0 %v9431
    %v10105 = vpop.f32.mrf.mxu0
    %v10106 = vadd.f32 0.0, %v10105
    %v10107 = vpop.f32.mrf.mxu0
    %v10108 = vadd.f32 0.0, %v10107
    %10109 = vdwg.mxu0
    %10110 = vmatpush.bf16.msra.mxu0 %v9945
    %10111 = vmatpush.bf16.msra.mxu0 %v9937
    %10112 = vmatpush.bf16.msra.mxu0 %v9929
    %10113 = vmatpush.bf16.msra.mxu0 %v9921
    %10114 = vmatpush.bf16.msra.mxu0 %v9913
    %10115 = vmatpush.bf16.msra.mxu0 %v9905
    %10116 = vmatpush.bf16.msra.mxu0 %v9897
    %10117 = vmatpush.bf16.msra.mxu0 %v9889
    %10118 = vmatmul.bf16.gmra.mxu0 %v9426
    %v10119 = vpop.f32.mrf.mxu0
    %v10120 = vadd.f32 %v10091, %v10119
    %v10121 = vpop.f32.mrf.mxu0
    %v10122 = vadd.f32 %v10093, %v10121
    %10123 = vmatmul.bf16.gmra.mxu0 %v9428
    %v10124 = vpop.f32.mrf.mxu0
    %v10125 = vadd.f32 %v10096, %v10124
    %v10126 = vpop.f32.mrf.mxu0
    %v10127 = vadd.f32 %v10098, %v10126
    %10128 = vmatmul.bf16.gmra.mxu0 %v9430
    %v10129 = vpop.f32.mrf.mxu0
    %v10130 = vadd.f32 %v10101, %v10129
    %v10131 = vpop.f32.mrf.mxu0
    %v10132 = vadd.f32 %v10103, %v10131
    %10133 = vmatmul.bf16.gmra.mxu0 %v9432
    %v10134 = vpop.f32.mrf.mxu0
    %v10135 = vadd.f32 %v10106, %v10134
    %v10136 = vpop.f32.mrf.mxu0
    %v10137 = vadd.f32 %v10108, %v10136
    %10138 = vdwg.mxu0
    %10139 = vmatpush.bf16.msra.mxu0 %v9882
    %10140 = vmatpush.bf16.msra.mxu0 %v9874
    %10141 = vmatpush.bf16.msra.mxu0 %v9866
    %10142 = vmatpush.bf16.msra.mxu0 %v9858
    %10143 = vmatpush.bf16.msra.mxu0 %v9850
    %10144 = vmatpush.bf16.msra.mxu0 %v9842
    %10145 = vmatpush.bf16.msra.mxu0 %v9834
    %10146 = vmatpush.bf16.msra.mxu0 %v9826
    %10147 = vmatmul.bf16.gmra.mxu0 %v9425
    %v10148 = vpop.f32.mrf.mxu0
    %v10149 = vadd.f32 0.0, %v10148
    %v10150 = vpop.f32.mrf.mxu0
    %v10151 = vadd.f32 0.0, %v10150
    %10152 = vmatmul.bf16.gmra.mxu0 %v9427
    %v10153 = vpop.f32.mrf.mxu0
    %v10154 = vadd.f32 0.0, %v10153
    %v10155 = vpop.f32.mrf.mxu0
    %v10156 = vadd.f32 0.0, %v10155
    %10157 = vmatmul.bf16.gmra.mxu0 %v9429
    %v10158 = vpop.f32.mrf.mxu0
    %v10159 = vadd.f32 0.0, %v10158
    %v10160 = vpop.f32.mrf.mxu0
    %v10161 = vadd.f32 0.0, %v10160
    %10162 = vmatmul.bf16.gmra.mxu0 %v9431
    %v10163 = vpop.f32.mrf.mxu0
    %v10164 = vadd.f32 0.0, %v10163
    %v10165 = vpop.f32.mrf.mxu0
    %v10166 = vadd.f32 0.0, %v10165
    %10167 = vdwg.mxu0
    %10168 = vmatpush.bf16.msra.mxu0 %v9946
    %10169 = vmatpush.bf16.msra.mxu0 %v9938
    %10170 = vmatpush.bf16.msra.mxu0 %v9930
    %10171 = vmatpush.bf16.msra.mxu0 %v9922
    %10172 = vmatpush.bf16.msra.mxu0 %v9914
    %10173 = vmatpush.bf16.msra.mxu0 %v9906
    %10174 = vmatpush.bf16.msra.mxu0 %v9898
    %10175 = vmatpush.bf16.msra.mxu0 %v9890
    %10176 = vmatmul.bf16.gmra.mxu0 %v9426
    %v10177 = vpop.f32.mrf.mxu0
    %v10178 = vadd.f32 %v10149, %v10177
    %v10179 = vpop.f32.mrf.mxu0
    %v10180 = vadd.f32 %v10151, %v10179
    %10181 = vmatmul.bf16.gmra.mxu0 %v9428
    %v10182 = vpop.f32.mrf.mxu0
    %v10183 = vadd.f32 %v10154, %v10182
    %v10184 = vpop.f32.mrf.mxu0
    %v10185 = vadd.f32 %v10156, %v10184
    %10186 = vmatmul.bf16.gmra.mxu0 %v9430
    %v10187 = vpop.f32.mrf.mxu0
    %v10188 = vadd.f32 %v10159, %v10187
    %v10189 = vpop.f32.mrf.mxu0
    %v10190 = vadd.f32 %v10161, %v10189
    %10191 = vmatmul.bf16.gmra.mxu0 %v9432
    %v10192 = vpop.f32.mrf.mxu0
    %v10193 = vadd.f32 %v10164, %v10192
    %v10194 = vpop.f32.mrf.mxu0
    %v10195 = vadd.f32 %v10166, %v10194
    %10196 = vdwg.mxu0
    %10197 = vmatpush.bf16.msra.mxu0 %v9883
    %10198 = vmatpush.bf16.msra.mxu0 %v9875
    %10199 = vmatpush.bf16.msra.mxu0 %v9867
    %10200 = vmatpush.bf16.msra.mxu0 %v9859
    %10201 = vmatpush.bf16.msra.mxu0 %v9851
    %10202 = vmatpush.bf16.msra.mxu0 %v9843
    %10203 = vmatpush.bf16.msra.mxu0 %v9835
    %10204 = vmatpush.bf16.msra.mxu0 %v9827
    %10205 = vmatmul.bf16.gmra.mxu0 %v9425
    %v10206 = vpop.f32.mrf.mxu0
    %v10207 = vadd.f32 0.0, %v10206
    %v10208 = vpop.f32.mrf.mxu0
    %v10209 = vadd.f32 0.0, %v10208
    %10210 = vmatmul.bf16.gmra.mxu0 %v9427
    %v10211 = vpop.f32.mrf.mxu0
    %v10212 = vadd.f32 0.0, %v10211
    %v10213 = vpop.f32.mrf.mxu0
    %v10214 = vadd.f32 0.0, %v10213
    %10215 = vmatmul.bf16.gmra.mxu0 %v9429
    %v10216 = vpop.f32.mrf.mxu0
    %v10217 = vadd.f32 0.0, %v10216
    %v10218 = vpop.f32.mrf.mxu0
    %v10219 = vadd.f32 0.0, %v10218
    %10220 = vmatmul.bf16.gmra.mxu0 %v9431
    %v10221 = vpop.f32.mrf.mxu0
    %v10222 = vadd.f32 0.0, %v10221
    %v10223 = vpop.f32.mrf.mxu0
    %v10224 = vadd.f32 0.0, %v10223
    %10225 = vdwg.mxu0
    %10226 = vmatpush.bf16.msra.mxu0 %v9947
    %10227 = vmatpush.bf16.msra.mxu0 %v9939
    %10228 = vmatpush.bf16.msra.mxu0 %v9931
    %10229 = vmatpush.bf16.msra.mxu0 %v9923
    %10230 = vmatpush.bf16.msra.mxu0 %v9915
    %10231 = vmatpush.bf16.msra.mxu0 %v9907
    %10232 = vmatpush.bf16.msra.mxu0 %v9899
    %10233 = vmatpush.bf16.msra.mxu0 %v9891
    %10234 = vmatmul.bf16.gmra.mxu0 %v9426
    %v10235 = vpop.f32.mrf.mxu0
    %v10236 = vadd.f32 %v10207, %v10235
    %v10237 = vpop.f32.mrf.mxu0
    %v10238 = vadd.f32 %v10209, %v10237
    %10239 = vmatmul.bf16.gmra.mxu0 %v9428
    %v10240 = vpop.f32.mrf.mxu0
    %v10241 = vadd.f32 %v10212, %v10240
    %v10242 = vpop.f32.mrf.mxu0
    %v10243 = vadd.f32 %v10214, %v10242
    %10244 = vmatmul.bf16.gmra.mxu0 %v9430
    %v10245 = vpop.f32.mrf.mxu0
    %v10246 = vadd.f32 %v10217, %v10245
    %v10247 = vpop.f32.mrf.mxu0
    %v10248 = vadd.f32 %v10219, %v10247
    %10249 = vmatmul.bf16.gmra.mxu0 %v9432
    %v10250 = vpop.f32.mrf.mxu0
    %v10251 = vadd.f32 %v10222, %v10250
    %v10252 = vpop.f32.mrf.mxu0
    %v10253 = vadd.f32 %v10224, %v10252
    %10254 = vdwg.mxu0
    %10255 = vmatpush.bf16.msra.mxu0 %v9884
    %10256 = vmatpush.bf16.msra.mxu0 %v9876
    %10257 = vmatpush.bf16.msra.mxu0 %v9868
    %10258 = vmatpush.bf16.msra.mxu0 %v9860
    %10259 = vmatpush.bf16.msra.mxu0 %v9852
    %10260 = vmatpush.bf16.msra.mxu0 %v9844
    %10261 = vmatpush.bf16.msra.mxu0 %v9836
    %10262 = vmatpush.bf16.msra.mxu0 %v9828
    %10263 = vmatmul.bf16.gmra.mxu0 %v9425
    %v10264 = vpop.f32.mrf.mxu0
    %v10265 = vadd.f32 0.0, %v10264
    %v10266 = vpop.f32.mrf.mxu0
    %v10267 = vadd.f32 0.0, %v10266
    %10268 = vmatmul.bf16.gmra.mxu0 %v9427
    %v10269 = vpop.f32.mrf.mxu0
    %v10270 = vadd.f32 0.0, %v10269
    %v10271 = vpop.f32.mrf.mxu0
    %v10272 = vadd.f32 0.0, %v10271
    %10273 = vmatmul.bf16.gmra.mxu0 %v9429
    %v10274 = vpop.f32.mrf.mxu0
    %v10275 = vadd.f32 0.0, %v10274
    %v10276 = vpop.f32.mrf.mxu0
    %v10277 = vadd.f32 0.0, %v10276
    %10278 = vmatmul.bf16.gmra.mxu0 %v9431
    %v10279 = vpop.f32.mrf.mxu0
    %v10280 = vadd.f32 0.0, %v10279
    %v10281 = vpop.f32.mrf.mxu0
    %v10282 = vadd.f32 0.0, %v10281
    %10283 = vdwg.mxu0
    %10284 = vmatpush.bf16.msra.mxu0 %v9948
    %10285 = vmatpush.bf16.msra.mxu0 %v9940
    %10286 = vmatpush.bf16.msra.mxu0 %v9932
    %10287 = vmatpush.bf16.msra.mxu0 %v9924
    %10288 = vmatpush.bf16.msra.mxu0 %v9916
    %10289 = vmatpush.bf16.msra.mxu0 %v9908
    %10290 = vmatpush.bf16.msra.mxu0 %v9900
    %10291 = vmatpush.bf16.msra.mxu0 %v9892
    %10292 = vmatmul.bf16.gmra.mxu0 %v9426
    %v10293 = vpop.f32.mrf.mxu0
    %v10294 = vadd.f32 %v10265, %v10293
    %v10295 = vpop.f32.mrf.mxu0
    %v10296 = vadd.f32 %v10267, %v10295
    %10297 = vmatmul.bf16.gmra.mxu0 %v9428
    %v10298 = vpop.f32.mrf.mxu0
    %v10299 = vadd.f32 %v10270, %v10298
    %v10300 = vpop.f32.mrf.mxu0
    %v10301 = vadd.f32 %v10272, %v10300
    %10302 = vmatmul.bf16.gmra.mxu0 %v9430
    %v10303 = vpop.f32.mrf.mxu0
    %v10304 = vadd.f32 %v10275, %v10303
    %v10305 = vpop.f32.mrf.mxu0
    %v10306 = vadd.f32 %v10277, %v10305
    %10307 = vmatmul.bf16.gmra.mxu0 %v9432
    %v10308 = vpop.f32.mrf.mxu0
    %v10309 = vadd.f32 %v10280, %v10308
    %v10310 = vpop.f32.mrf.mxu0
    %v10311 = vadd.f32 %v10282, %v10310
    %10312 = vdwg.mxu0
    %10313 = vmatpush.bf16.msra.mxu0 %v9885
    %10314 = vmatpush.bf16.msra.mxu0 %v9877
    %10315 = vmatpush.bf16.msra.mxu0 %v9869
    %10316 = vmatpush.bf16.msra.mxu0 %v9861
    %10317 = vmatpush.bf16.msra.mxu0 %v9853
    %10318 = vmatpush.bf16.msra.mxu0 %v9845
    %10319 = vmatpush.bf16.msra.mxu0 %v9837
    %10320 = vmatpush.bf16.msra.mxu0 %v9829
    %10321 = vmatmul.bf16.gmra.mxu0 %v9425
    %v10322 = vpop.f32.mrf.mxu0
    %v10323 = vadd.f32 0.0, %v10322
    %v10324 = vpop.f32.mrf.mxu0
    %v10325 = vadd.f32 0.0, %v10324
    %10326 = vmatmul.bf16.gmra.mxu0 %v9427
    %v10327 = vpop.f32.mrf.mxu0
    %v10328 = vadd.f32 0.0, %v10327
    %v10329 = vpop.f32.mrf.mxu0
    %v10330 = vadd.f32 0.0, %v10329
    %10331 = vmatmul.bf16.gmra.mxu0 %v9429
    %v10332 = vpop.f32.mrf.mxu0
    %v10333 = vadd.f32 0.0, %v10332
    %v10334 = vpop.f32.mrf.mxu0
    %v10335 = vadd.f32 0.0, %v10334
    %10336 = vmatmul.bf16.gmra.mxu0 %v9431
    %v10337 = vpop.f32.mrf.mxu0
    %v10338 = vadd.f32 0.0, %v10337
    %v10339 = vpop.f32.mrf.mxu0
    %v10340 = vadd.f32 0.0, %v10339
    %10341 = vdwg.mxu0
    %10342 = vmatpush.bf16.msra.mxu0 %v9949
    %10343 = vmatpush.bf16.msra.mxu0 %v9941
    %10344 = vmatpush.bf16.msra.mxu0 %v9933
    %10345 = vmatpush.bf16.msra.mxu0 %v9925
    %10346 = vmatpush.bf16.msra.mxu0 %v9917
    %10347 = vmatpush.bf16.msra.mxu0 %v9909
    %10348 = vmatpush.bf16.msra.mxu0 %v9901
    %10349 = vmatpush.bf16.msra.mxu0 %v9893
    %10350 = vmatmul.bf16.gmra.mxu0 %v9426
    %v10351 = vpop.f32.mrf.mxu0
    %v10352 = vadd.f32 %v10323, %v10351
    %v10353 = vpop.f32.mrf.mxu0
    %v10354 = vadd.f32 %v10325, %v10353
    %10355 = vmatmul.bf16.gmra.mxu0 %v9428
    %v10356 = vpop.f32.mrf.mxu0
    %v10357 = vadd.f32 %v10328, %v10356
    %v10358 = vpop.f32.mrf.mxu0
    %v10359 = vadd.f32 %v10330, %v10358
    %10360 = vmatmul.bf16.gmra.mxu0 %v9430
    %v10361 = vpop.f32.mrf.mxu0
    %v10362 = vadd.f32 %v10333, %v10361
    %v10363 = vpop.f32.mrf.mxu0
    %v10364 = vadd.f32 %v10335, %v10363
    %10365 = vmatmul.bf16.gmra.mxu0 %v9432
    %v10366 = vpop.f32.mrf.mxu0
    %v10367 = vadd.f32 %v10338, %v10366
    %v10368 = vpop.f32.mrf.mxu0
    %v10369 = vadd.f32 %v10340, %v10368
    %10370 = vdwg.mxu0
    %10371 = vmatpush.bf16.msra.mxu0 %v9886
    %10372 = vmatpush.bf16.msra.mxu0 %v9878
    %10373 = vmatpush.bf16.msra.mxu0 %v9870
    %10374 = vmatpush.bf16.msra.mxu0 %v9862
    %10375 = vmatpush.bf16.msra.mxu0 %v9854
    %10376 = vmatpush.bf16.msra.mxu0 %v9846
    %10377 = vmatpush.bf16.msra.mxu0 %v9838
    %10378 = vmatpush.bf16.msra.mxu0 %v9830
    %10379 = vmatmul.bf16.gmra.mxu0 %v9425
    %v10380 = vpop.f32.mrf.mxu0
    %v10381 = vadd.f32 0.0, %v10380
    %v10382 = vpop.f32.mrf.mxu0
    %v10383 = vadd.f32 0.0, %v10382
    %10384 = vmatmul.bf16.gmra.mxu0 %v9427
    %v10385 = vpop.f32.mrf.mxu0
    %v10386 = vadd.f32 0.0, %v10385
    %v10387 = vpop.f32.mrf.mxu0
    %v10388 = vadd.f32 0.0, %v10387
    %10389 = vmatmul.bf16.gmra.mxu0 %v9429
    %v10390 = vpop.f32.mrf.mxu0
    %v10391 = vadd.f32 0.0, %v10390
    %v10392 = vpop.f32.mrf.mxu0
    %v10393 = vadd.f32 0.0, %v10392
    %10394 = vmatmul.bf16.gmra.mxu0 %v9431
    %v10395 = vpop.f32.mrf.mxu0
    %v10396 = vadd.f32 0.0, %v10395
    %v10397 = vpop.f32.mrf.mxu0
    %v10398 = vadd.f32 0.0, %v10397
    %10399 = vdwg.mxu0
    %10400 = vmatpush.bf16.msra.mxu0 %v9950
    %10401 = vmatpush.bf16.msra.mxu0 %v9942
    %10402 = vmatpush.bf16.msra.mxu0 %v9934
    %10403 = vmatpush.bf16.msra.mxu0 %v9926
    %10404 = vmatpush.bf16.msra.mxu0 %v9918
    %10405 = vmatpush.bf16.msra.mxu0 %v9910
    %10406 = vmatpush.bf16.msra.mxu0 %v9902
    %10407 = vmatpush.bf16.msra.mxu0 %v9894
    %10408 = vmatmul.bf16.gmra.mxu0 %v9426
    %v10409 = vpop.f32.mrf.mxu0
    %v10410 = vadd.f32 %v10381, %v10409
    %v10411 = vpop.f32.mrf.mxu0
    %v10412 = vadd.f32 %v10383, %v10411
    %10413 = vmatmul.bf16.gmra.mxu0 %v9428
    %v10414 = vpop.f32.mrf.mxu0
    %v10415 = vadd.f32 %v10386, %v10414
    %v10416 = vpop.f32.mrf.mxu0
    %v10417 = vadd.f32 %v10388, %v10416
    %10418 = vmatmul.bf16.gmra.mxu0 %v9430
    %v10419 = vpop.f32.mrf.mxu0
    %v10420 = vadd.f32 %v10391, %v10419
    %v10421 = vpop.f32.mrf.mxu0
    %v10422 = vadd.f32 %v10393, %v10421
    %10423 = vmatmul.bf16.gmra.mxu0 %v9432
    %v10424 = vpop.f32.mrf.mxu0
    %v10425 = vadd.f32 %v10396, %v10424
    %v10426 = vpop.f32.mrf.mxu0
    %v10427 = vadd.f32 %v10398, %v10426
    %10428 = vdwg.mxu0
    %10429 = vmatpush.bf16.msra.mxu0 %v9887
    %10430 = vmatpush.bf16.msra.mxu0 %v9879
    %10431 = vmatpush.bf16.msra.mxu0 %v9871
    %10432 = vmatpush.bf16.msra.mxu0 %v9863
    %10433 = vmatpush.bf16.msra.mxu0 %v9855
    %10434 = vmatpush.bf16.msra.mxu0 %v9847
    %10435 = vmatpush.bf16.msra.mxu0 %v9839
    %10436 = vmatpush.bf16.msra.mxu0 %v9831
    %10437 = vmatmul.bf16.gmra.mxu0 %v9425
    %v10438 = vpop.f32.mrf.mxu0
    %v10439 = vadd.f32 0.0, %v10438
    %v10440 = vpop.f32.mrf.mxu0
    %v10441 = vadd.f32 0.0, %v10440
    %10442 = vmatmul.bf16.gmra.mxu0 %v9427
    %v10443 = vpop.f32.mrf.mxu0
    %v10444 = vadd.f32 0.0, %v10443
    %v10445 = vpop.f32.mrf.mxu0
    %v10446 = vadd.f32 0.0, %v10445
    %10447 = vmatmul.bf16.gmra.mxu0 %v9429
    %v10448 = vpop.f32.mrf.mxu0
    %v10449 = vadd.f32 0.0, %v10448
    %v10450 = vpop.f32.mrf.mxu0
    %v10451 = vadd.f32 0.0, %v10450
    %10452 = vmatmul.bf16.gmra.mxu0 %v9431
    %v10453 = vpop.f32.mrf.mxu0
    %v10454 = vadd.f32 0.0, %v10453
    %v10455 = vpop.f32.mrf.mxu0
    %v10456 = vadd.f32 0.0, %v10455
    %10457 = vdwg.mxu0
    %10458 = vmatpush.bf16.msra.mxu0 %v9951
    %10459 = vmatpush.bf16.msra.mxu0 %v9943
    %10460 = vmatpush.bf16.msra.mxu0 %v9935
    %10461 = vmatpush.bf16.msra.mxu0 %v9927
    %10462 = vmatpush.bf16.msra.mxu0 %v9919
    %10463 = vmatpush.bf16.msra.mxu0 %v9911
    %10464 = vmatpush.bf16.msra.mxu0 %v9903
    %10465 = vmatpush.bf16.msra.mxu0 %v9895
    %10466 = vmatmul.bf16.gmra.mxu0 %v9426
    %v10467 = vpop.f32.mrf.mxu0
    %v10468 = vadd.f32 %v10439, %v10467
    %v10469 = vpop.f32.mrf.mxu0
    %v10470 = vadd.f32 %v10441, %v10469
    %10471 = vmatmul.bf16.gmra.mxu0 %v9428
    %v10472 = vpop.f32.mrf.mxu0
    %v10473 = vadd.f32 %v10444, %v10472
    %v10474 = vpop.f32.mrf.mxu0
    %v10475 = vadd.f32 %v10446, %v10474
    %10476 = vmatmul.bf16.gmra.mxu0 %v9430
    %v10477 = vpop.f32.mrf.mxu0
    %v10478 = vadd.f32 %v10449, %v10477
    %v10479 = vpop.f32.mrf.mxu0
    %v10480 = vadd.f32 %v10451, %v10479
    %10481 = vmatmul.bf16.gmra.mxu0 %v9432
    %v10482 = vpop.f32.mrf.mxu0
    %v10483 = vadd.f32 %v10454, %v10482
    %v10484 = vpop.f32.mrf.mxu0
    %v10485 = vadd.f32 %v10456, %v10484
    %10486 = vdwg.mxu0
    %10487 = vmatpush.bf16.msra.mxu0 %v9888
    %10488 = vmatpush.bf16.msra.mxu0 %v9880
    %10489 = vmatpush.bf16.msra.mxu0 %v9872
    %10490 = vmatpush.bf16.msra.mxu0 %v9864
    %10491 = vmatpush.bf16.msra.mxu0 %v9856
    %10492 = vmatpush.bf16.msra.mxu0 %v9848
    %10493 = vmatpush.bf16.msra.mxu0 %v9840
    %10494 = vmatpush.bf16.msra.mxu0 %v9832
    %10495 = vmatmul.bf16.gmra.mxu0 %v9425
    %v10496 = vpop.f32.mrf.mxu0
    %v10497 = vadd.f32 0.0, %v10496
    %v10498 = vpop.f32.mrf.mxu0
    %v10499 = vadd.f32 0.0, %v10498
    %10500 = vmatmul.bf16.gmra.mxu0 %v9427
    %v10501 = vpop.f32.mrf.mxu0
    %v10502 = vadd.f32 0.0, %v10501
    %v10503 = vpop.f32.mrf.mxu0
    %v10504 = vadd.f32 0.0, %v10503
    %10505 = vmatmul.bf16.gmra.mxu0 %v9429
    %v10506 = vpop.f32.mrf.mxu0
    %v10507 = vadd.f32 0.0, %v10506
    %v10508 = vpop.f32.mrf.mxu0
    %v10509 = vadd.f32 0.0, %v10508
    %10510 = vmatmul.bf16.gmra.mxu0 %v9431
    %v10511 = vpop.f32.mrf.mxu0
    %v10512 = vadd.f32 0.0, %v10511
    %v10513 = vpop.f32.mrf.mxu0
    %v10514 = vadd.f32 0.0, %v10513
    %10515 = vdwg.mxu0
    %10516 = vmatpush.bf16.msra.mxu0 %v9952
    %10517 = vmatpush.bf16.msra.mxu0 %v9944
    %10518 = vmatpush.bf16.msra.mxu0 %v9936
    %10519 = vmatpush.bf16.msra.mxu0 %v9928
    %10520 = vmatpush.bf16.msra.mxu0 %v9920
    %10521 = vmatpush.bf16.msra.mxu0 %v9912
    %10522 = vmatpush.bf16.msra.mxu0 %v9904
    %10523 = vmatpush.bf16.msra.mxu0 %v9896
    %10524 = vmatmul.bf16.gmra.mxu0 %v9426
    %v10525 = vpop.f32.mrf.mxu0
    %v10526 = vadd.f32 %v10497, %v10525
    %v10527 = vpop.f32.mrf.mxu0
    %v10528 = vadd.f32 %v10499, %v10527
    %10529 = vmatmul.bf16.gmra.mxu0 %v9428
    %v10530 = vpop.f32.mrf.mxu0
    %v10531 = vadd.f32 %v10502, %v10530
    %v10532 = vpop.f32.mrf.mxu0
    %v10533 = vadd.f32 %v10504, %v10532
    %10534 = vmatmul.bf16.gmra.mxu0 %v9430
    %v10535 = vpop.f32.mrf.mxu0
    %v10536 = vadd.f32 %v10507, %v10535
    %v10537 = vpop.f32.mrf.mxu0
    %v10538 = vadd.f32 %v10509, %v10537
    %10539 = vmatmul.bf16.gmra.mxu0 %v9432
    %v10540 = vpop.f32.mrf.mxu0
    %v10541 = vadd.f32 %v10512, %v10540
    %v10542 = vpop.f32.mrf.mxu0
    %v10543 = vadd.f32 %v10514, %v10542
    %10544 = vdwg.mxu0
    %v10545 = vadd.f32 %v8846, %v10120
    %v10546 = vadd.f32 %v8904, %v10178
    %v10547 = vadd.f32 %v8962, %v10236
    %v10548 = vadd.f32 %v9020, %v10294
    %v10549 = vadd.f32 %v9078, %v10352
    %v10550 = vadd.f32 %v9136, %v10410
    %v10551 = vadd.f32 %v9194, %v10468
    %v10552 = vadd.f32 %v9252, %v10526
    %v10553 = vadd.f32 %v8848, %v10122
    %v10554 = vadd.f32 %v8906, %v10180
    %v10555 = vadd.f32 %v8964, %v10238
    %v10556 = vadd.f32 %v9022, %v10296
    %v10557 = vadd.f32 %v9080, %v10354
    %v10558 = vadd.f32 %v9138, %v10412
    %v10559 = vadd.f32 %v9196, %v10470
    %v10560 = vadd.f32 %v9254, %v10528
    %v10561 = vadd.f32 %v8851, %v10125
    %v10562 = vadd.f32 %v8909, %v10183
    %v10563 = vadd.f32 %v8967, %v10241
    %v10564 = vadd.f32 %v9025, %v10299
    %v10565 = vadd.f32 %v9083, %v10357
    %v10566 = vadd.f32 %v9141, %v10415
    %v10567 = vadd.f32 %v9199, %v10473
    %v10568 = vadd.f32 %v9257, %v10531
    %v10569 = vadd.f32 %v8853, %v10127
    %v10570 = vadd.f32 %v8911, %v10185
    %v10571 = vadd.f32 %v8969, %v10243
    %v10572 = vadd.f32 %v9027, %v10301
    %v10573 = vadd.f32 %v9085, %v10359
    %v10574 = vadd.f32 %v9143, %v10417
    %v10575 = vadd.f32 %v9201, %v10475
    %v10576 = vadd.f32 %v9259, %v10533
    %v10577 = vadd.f32 %v8856, %v10130
    %v10578 = vadd.f32 %v8914, %v10188
    %v10579 = vadd.f32 %v8972, %v10246
    %v10580 = vadd.f32 %v9030, %v10304
    %v10581 = vadd.f32 %v9088, %v10362
    %v10582 = vadd.f32 %v9146, %v10420
    %v10583 = vadd.f32 %v9204, %v10478
    %v10584 = vadd.f32 %v9262, %v10536
    %v10585 = vadd.f32 %v8858, %v10132
    %v10586 = vadd.f32 %v8916, %v10190
    %v10587 = vadd.f32 %v8974, %v10248
    %v10588 = vadd.f32 %v9032, %v10306
    %v10589 = vadd.f32 %v9090, %v10364
    %v10590 = vadd.f32 %v9148, %v10422
    %v10591 = vadd.f32 %v9206, %v10480
    %v10592 = vadd.f32 %v9264, %v10538
    %v10593 = vadd.f32 %v8861, %v10135
    %v10594 = vadd.f32 %v8919, %v10193
    %v10595 = vadd.f32 %v8977, %v10251
    %v10596 = vadd.f32 %v9035, %v10309
    %v10597 = vadd.f32 %v9093, %v10367
    %v10598 = vadd.f32 %v9151, %v10425
    %v10599 = vadd.f32 %v9209, %v10483
    %v10600 = vadd.f32 %v9267, %v10541
    %v10601 = vadd.f32 %v8863, %v10137
    %v10602 = vadd.f32 %v8921, %v10195
    %v10603 = vadd.f32 %v8979, %v10253
    %v10604 = vadd.f32 %v9037, %v10311
    %v10605 = vadd.f32 %v9095, %v10369
    %v10606 = vadd.f32 %v9153, %v10427
    %v10607 = vadd.f32 %v9211, %v10485
    %v10608 = vadd.f32 %v9269, %v10543
    %s10609 = sshll.u32 %s987, 4
    %10610 = dma.done %s168, %s10609
    %v10611 = vld [vmem:[%s167] sm:$0xff]
    %v10612 = vld [vmem:[%s167 + $0x8] sm:$0xff]
    %v10613 = vld [vmem:[%s167 + $0x10] sm:$0xff]
    %v10614 = vld [vmem:[%s167 + $0x18] sm:$0xff]
    %v10615 = vld [vmem:[%s167 + $0x20] sm:$0xff]
    %v10616 = vld [vmem:[%s167 + $0x28] sm:$0xff]
    %v10617 = vld [vmem:[%s167 + $0x30] sm:$0xff]
    %v10618 = vld [vmem:[%s167 + $0x38] sm:$0xff]
    %v10619 = vld [vmem:[%s167 + $0x40] sm:$0xff]
    %v10620 = vld [vmem:[%s167 + $0x48] sm:$0xff]
    %v10621 = vld [vmem:[%s167 + $0x50] sm:$0xff]
    %v10622 = vld [vmem:[%s167 + $0x58] sm:$0xff]
    %v10623 = vld [vmem:[%s167 + $0x60] sm:$0xff]
    %v10624 = vld [vmem:[%s167 + $0x68] sm:$0xff]
    %v10625 = vld [vmem:[%s167 + $0x70] sm:$0xff]
    %v10626 = vld [vmem:[%s167 + $0x78] sm:$0xff]
    %v10627 = vld [vmem:[%s167 + $0x80] sm:$0xff]
    %v10628 = vld [vmem:[%s167 + $0x88] sm:$0xff]
    %v10629 = vld [vmem:[%s167 + $0x90] sm:$0xff]
    %v10630 = vld [vmem:[%s167 + $0x98] sm:$0xff]
    %v10631 = vld [vmem:[%s167 + $0xa0] sm:$0xff]
    %v10632 = vld [vmem:[%s167 + $0xa8] sm:$0xff]
    %v10633 = vld [vmem:[%s167 + $0xb0] sm:$0xff]
    %v10634 = vld [vmem:[%s167 + $0xb8] sm:$0xff]
    %v10635 = vld [vmem:[%s167 + $0xc0] sm:$0xff]
    %v10636 = vld [vmem:[%s167 + $0xc8] sm:$0xff]
    %v10637 = vld [vmem:[%s167 + $0xd0] sm:$0xff]
    %v10638 = vld [vmem:[%s167 + $0xd8] sm:$0xff]
    %v10639 = vld [vmem:[%s167 + $0xe0] sm:$0xff]
    %v10640 = vld [vmem:[%s167 + $0xe8] sm:$0xff]
    %v10641 = vld [vmem:[%s167 + $0xf0] sm:$0xff]
    %v10642 = vld [vmem:[%s167 + $0xf8] sm:$0xff]
    %v10643 = vld [vmem:[%s167 + $0x100] sm:$0xff]
    %v10644 = vld [vmem:[%s167 + $0x108] sm:$0xff]
    %v10645 = vld [vmem:[%s167 + $0x110] sm:$0xff]
    %v10646 = vld [vmem:[%s167 + $0x118] sm:$0xff]
    %v10647 = vld [vmem:[%s167 + $0x120] sm:$0xff]
    %v10648 = vld [vmem:[%s167 + $0x128] sm:$0xff]
    %v10649 = vld [vmem:[%s167 + $0x130] sm:$0xff]
    %v10650 = vld [vmem:[%s167 + $0x138] sm:$0xff]
    %v10651 = vld [vmem:[%s167 + $0x140] sm:$0xff]
    %v10652 = vld [vmem:[%s167 + $0x148] sm:$0xff]
    %v10653 = vld [vmem:[%s167 + $0x150] sm:$0xff]
    %v10654 = vld [vmem:[%s167 + $0x158] sm:$0xff]
    %v10655 = vld [vmem:[%s167 + $0x160] sm:$0xff]
    %v10656 = vld [vmem:[%s167 + $0x168] sm:$0xff]
    %v10657 = vld [vmem:[%s167 + $0x170] sm:$0xff]
    %v10658 = vld [vmem:[%s167 + $0x178] sm:$0xff]
    %v10659 = vld [vmem:[%s167 + $0x180] sm:$0xff]
    %v10660 = vld [vmem:[%s167 + $0x188] sm:$0xff]
    %v10661 = vld [vmem:[%s167 + $0x190] sm:$0xff]
    %v10662 = vld [vmem:[%s167 + $0x198] sm:$0xff]
    %v10663 = vld [vmem:[%s167 + $0x1a0] sm:$0xff]
    %v10664 = vld [vmem:[%s167 + $0x1a8] sm:$0xff]
    %v10665 = vld [vmem:[%s167 + $0x1b0] sm:$0xff]
    %v10666 = vld [vmem:[%s167 + $0x1b8] sm:$0xff]
    %v10667 = vld [vmem:[%s167 + $0x1c0] sm:$0xff]
    %v10668 = vld [vmem:[%s167 + $0x1c8] sm:$0xff]
    %v10669 = vld [vmem:[%s167 + $0x1d0] sm:$0xff]
    %v10670 = vld [vmem:[%s167 + $0x1d8] sm:$0xff]
    %v10671 = vld [vmem:[%s167 + $0x1e0] sm:$0xff]
    %v10672 = vld [vmem:[%s167 + $0x1e8] sm:$0xff]
    %v10673 = vld [vmem:[%s167 + $0x1f0] sm:$0xff]
    %v10674 = vld [vmem:[%s167 + $0x1f8] sm:$0xff]
    %v10675 = vld [vmem:[%s167 + $0x200] sm:$0xff]
    %v10676 = vld [vmem:[%s167 + $0x208] sm:$0xff]
    %v10677 = vld [vmem:[%s167 + $0x210] sm:$0xff]
    %v10678 = vld [vmem:[%s167 + $0x218] sm:$0xff]
    %v10679 = vld [vmem:[%s167 + $0x220] sm:$0xff]
    %v10680 = vld [vmem:[%s167 + $0x228] sm:$0xff]
    %v10681 = vld [vmem:[%s167 + $0x230] sm:$0xff]
    %v10682 = vld [vmem:[%s167 + $0x238] sm:$0xff]
    %v10683 = vld [vmem:[%s167 + $0x240] sm:$0xff]
    %v10684 = vld [vmem:[%s167 + $0x248] sm:$0xff]
    %v10685 = vld [vmem:[%s167 + $0x250] sm:$0xff]
    %v10686 = vld [vmem:[%s167 + $0x258] sm:$0xff]
    %v10687 = vld [vmem:[%s167 + $0x260] sm:$0xff]
    %v10688 = vld [vmem:[%s167 + $0x268] sm:$0xff]
    %v10689 = vld [vmem:[%s167 + $0x270] sm:$0xff]
    %v10690 = vld [vmem:[%s167 + $0x278] sm:$0xff]
    %v10691 = vld [vmem:[%s167 + $0x280] sm:$0xff]
    %v10692 = vld [vmem:[%s167 + $0x288] sm:$0xff]
    %v10693 = vld [vmem:[%s167 + $0x290] sm:$0xff]
    %v10694 = vld [vmem:[%s167 + $0x298] sm:$0xff]
    %v10695 = vld [vmem:[%s167 + $0x2a0] sm:$0xff]
    %v10696 = vld [vmem:[%s167 + $0x2a8] sm:$0xff]
    %v10697 = vld [vmem:[%s167 + $0x2b0] sm:$0xff]
    %v10698 = vld [vmem:[%s167 + $0x2b8] sm:$0xff]
    %v10699 = vld [vmem:[%s167 + $0x2c0] sm:$0xff]
    %v10700 = vld [vmem:[%s167 + $0x2c8] sm:$0xff]
    %v10701 = vld [vmem:[%s167 + $0x2d0] sm:$0xff]
    %v10702 = vld [vmem:[%s167 + $0x2d8] sm:$0xff]
    %v10703 = vld [vmem:[%s167 + $0x2e0] sm:$0xff]
    %v10704 = vld [vmem:[%s167 + $0x2e8] sm:$0xff]
    %v10705 = vld [vmem:[%s167 + $0x2f0] sm:$0xff]
    %v10706 = vld [vmem:[%s167 + $0x2f8] sm:$0xff]
    %v10707 = vld [vmem:[%s167 + $0x300] sm:$0xff]
    %v10708 = vld [vmem:[%s167 + $0x308] sm:$0xff]
    %v10709 = vld [vmem:[%s167 + $0x310] sm:$0xff]
    %v10710 = vld [vmem:[%s167 + $0x318] sm:$0xff]
    %v10711 = vld [vmem:[%s167 + $0x320] sm:$0xff]
    %v10712 = vld [vmem:[%s167 + $0x328] sm:$0xff]
    %v10713 = vld [vmem:[%s167 + $0x330] sm:$0xff]
    %v10714 = vld [vmem:[%s167 + $0x338] sm:$0xff]
    %v10715 = vld [vmem:[%s167 + $0x340] sm:$0xff]
    %v10716 = vld [vmem:[%s167 + $0x348] sm:$0xff]
    %v10717 = vld [vmem:[%s167 + $0x350] sm:$0xff]
    %v10718 = vld [vmem:[%s167 + $0x358] sm:$0xff]
    %v10719 = vld [vmem:[%s167 + $0x360] sm:$0xff]
    %v10720 = vld [vmem:[%s167 + $0x368] sm:$0xff]
    %v10721 = vld [vmem:[%s167 + $0x370] sm:$0xff]
    %v10722 = vld [vmem:[%s167 + $0x378] sm:$0xff]
    %v10723 = vld [vmem:[%s167 + $0x380] sm:$0xff]
    %v10724 = vld [vmem:[%s167 + $0x388] sm:$0xff]
    %v10725 = vld [vmem:[%s167 + $0x390] sm:$0xff]
    %v10726 = vld [vmem:[%s167 + $0x398] sm:$0xff]
    %v10727 = vld [vmem:[%s167 + $0x3a0] sm:$0xff]
    %v10728 = vld [vmem:[%s167 + $0x3a8] sm:$0xff]
    %v10729 = vld [vmem:[%s167 + $0x3b0] sm:$0xff]
    %v10730 = vld [vmem:[%s167 + $0x3b8] sm:$0xff]
    %v10731 = vld [vmem:[%s167 + $0x3c0] sm:$0xff]
    %v10732 = vld [vmem:[%s167 + $0x3c8] sm:$0xff]
    %v10733 = vld [vmem:[%s167 + $0x3d0] sm:$0xff]
    %v10734 = vld [vmem:[%s167 + $0x3d8] sm:$0xff]
    %v10735 = vld [vmem:[%s167 + $0x3e0] sm:$0xff]
    %v10736 = vld [vmem:[%s167 + $0x3e8] sm:$0xff]
    %v10737 = vld [vmem:[%s167 + $0x3f0] sm:$0xff]
    %v10738 = vld [vmem:[%s167 + $0x3f8] sm:$0xff]
    %v10747 = vunpack.c.l.b16 %v6666
    %v10748 = vunpack.c.h.b16 %v6666
    %v10749 = vunpack.c.l.b16 %v6670
    %v10750 = vunpack.c.h.b16 %v6670
    %v10751 = vunpack.c.l.b16 %v6674
    %v10752 = vunpack.c.h.b16 %v6674
    %v10753 = vunpack.c.l.b16 %v6678
    %v10754 = vunpack.c.h.b16 %v6678
    %v10755 = vunpack.c.l.b16 %v6682
    %v10756 = vunpack.c.h.b16 %v6682
    %v10757 = vunpack.c.l.b16 %v6686
    %v10758 = vunpack.c.h.b16 %v6686
    %v10759 = vunpack.c.l.b16 %v6690
    %v10760 = vunpack.c.h.b16 %v6690
    %v10761 = vunpack.c.l.b16 %v6694
    %v10762 = vunpack.c.h.b16 %v6694
    %v10763 = vpack.c.b16 %v10749, %v10747
    %v10764 = vpack.c.b16 %v10750, %v10748
    %v10765 = vpack.c.b16 %v10753, %v10751
    %v10766 = vpack.c.b16 %v10754, %v10752
    %v10767 = vpack.c.b16 %v10757, %v10755
    %v10768 = vpack.c.b16 %v10758, %v10756
    %v10769 = vpack.c.b16 %v10761, %v10759
    %v10770 = vpack.c.b16 %v10762, %v10760
    %v10907 = vunpack.c.l.b16 %v10611
    %v10908 = vunpack.c.h.b16 %v10611
    %v10909 = vunpack.c.l.b16 %v10612
    %v10910 = vunpack.c.h.b16 %v10612
    %v10911 = vunpack.c.l.b16 %v10613
    %v10912 = vunpack.c.h.b16 %v10613
    %v10913 = vunpack.c.l.b16 %v10614
    %v10914 = vunpack.c.h.b16 %v10614
    %v10915 = vunpack.c.l.b16 %v10615
    %v10916 = vunpack.c.h.b16 %v10615
    %v10917 = vunpack.c.l.b16 %v10616
    %v10918 = vunpack.c.h.b16 %v10616
    %v10919 = vunpack.c.l.b16 %v10617
    %v10920 = vunpack.c.h.b16 %v10617
    %v10921 = vunpack.c.l.b16 %v10618
    %v10922 = vunpack.c.h.b16 %v10618
    %v10923 = vunpack.c.l.b16 %v10619
    %v10924 = vunpack.c.h.b16 %v10619
    %v10925 = vunpack.c.l.b16 %v10620
    %v10926 = vunpack.c.h.b16 %v10620
    %v10927 = vunpack.c.l.b16 %v10621
    %v10928 = vunpack.c.h.b16 %v10621
    %v10929 = vunpack.c.l.b16 %v10622
    %v10930 = vunpack.c.h.b16 %v10622
    %v10931 = vunpack.c.l.b16 %v10623
    %v10932 = vunpack.c.h.b16 %v10623
    %v10933 = vunpack.c.l.b16 %v10624
    %v10934 = vunpack.c.h.b16 %v10624
    %v10935 = vunpack.c.l.b16 %v10625
    %v10936 = vunpack.c.h.b16 %v10625
    %v10937 = vunpack.c.l.b16 %v10626
    %v10938 = vunpack.c.h.b16 %v10626
    %v10939 = vunpack.c.l.b16 %v10627
    %v10940 = vunpack.c.h.b16 %v10627
    %v10941 = vunpack.c.l.b16 %v10628
    %v10942 = vunpack.c.h.b16 %v10628
    %v10943 = vunpack.c.l.b16 %v10629
    %v10944 = vunpack.c.h.b16 %v10629
    %v10945 = vunpack.c.l.b16 %v10630
    %v10946 = vunpack.c.h.b16 %v10630
    %v10947 = vunpack.c.l.b16 %v10631
    %v10948 = vunpack.c.h.b16 %v10631
    %v10949 = vunpack.c.l.b16 %v10632
    %v10950 = vunpack.c.h.b16 %v10632
    %v10951 = vunpack.c.l.b16 %v10633
    %v10952 = vunpack.c.h.b16 %v10633
    %v10953 = vunpack.c.l.b16 %v10634
    %v10954 = vunpack.c.h.b16 %v10634
    %v10955 = vunpack.c.l.b16 %v10635
    %v10956 = vunpack.c.h.b16 %v10635
    %v10957 = vunpack.c.l.b16 %v10636
    %v10958 = vunpack.c.h.b16 %v10636
    %v10959 = vunpack.c.l.b16 %v10637
    %v10960 = vunpack.c.h.b16 %v10637
    %v10961 = vunpack.c.l.b16 %v10638
    %v10962 = vunpack.c.h.b16 %v10638
    %v10963 = vunpack.c.l.b16 %v10639
    %v10964 = vunpack.c.h.b16 %v10639
    %v10965 = vunpack.c.l.b16 %v10640
    %v10966 = vunpack.c.h.b16 %v10640
    %v10967 = vunpack.c.l.b16 %v10641
    %v10968 = vunpack.c.h.b16 %v10641
    %v10969 = vunpack.c.l.b16 %v10642
    %v10970 = vunpack.c.h.b16 %v10642
    %v10971 = vunpack.c.l.b16 %v10643
    %v10972 = vunpack.c.h.b16 %v10643
    %v10973 = vunpack.c.l.b16 %v10644
    %v10974 = vunpack.c.h.b16 %v10644
    %v10975 = vunpack.c.l.b16 %v10645
    %v10976 = vunpack.c.h.b16 %v10645
    %v10977 = vunpack.c.l.b16 %v10646
    %v10978 = vunpack.c.h.b16 %v10646
    %v10979 = vunpack.c.l.b16 %v10647
    %v10980 = vunpack.c.h.b16 %v10647
    %v10981 = vunpack.c.l.b16 %v10648
    %v10982 = vunpack.c.h.b16 %v10648
    %v10983 = vunpack.c.l.b16 %v10649
    %v10984 = vunpack.c.h.b16 %v10649
    %v10985 = vunpack.c.l.b16 %v10650
    %v10986 = vunpack.c.h.b16 %v10650
    %v10987 = vunpack.c.l.b16 %v10651
    %v10988 = vunpack.c.h.b16 %v10651
    %v10989 = vunpack.c.l.b16 %v10652
    %v10990 = vunpack.c.h.b16 %v10652
    %v10991 = vunpack.c.l.b16 %v10653
    %v10992 = vunpack.c.h.b16 %v10653
    %v10993 = vunpack.c.l.b16 %v10654
    %v10994 = vunpack.c.h.b16 %v10654
    %v10995 = vunpack.c.l.b16 %v10655
    %v10996 = vunpack.c.h.b16 %v10655
    %v10997 = vunpack.c.l.b16 %v10656
    %v10998 = vunpack.c.h.b16 %v10656
    %v10999 = vunpack.c.l.b16 %v10657
    %v11000 = vunpack.c.h.b16 %v10657
    %v11001 = vunpack.c.l.b16 %v10658
    %v11002 = vunpack.c.h.b16 %v10658
    %v11003 = vunpack.c.l.b16 %v10659
    %v11004 = vunpack.c.h.b16 %v10659
    %v11005 = vunpack.c.l.b16 %v10660
    %v11006 = vunpack.c.h.b16 %v10660
    %v11007 = vunpack.c.l.b16 %v10661
    %v11008 = vunpack.c.h.b16 %v10661
    %v11009 = vunpack.c.l.b16 %v10662
    %v11010 = vunpack.c.h.b16 %v10662
    %v11011 = vunpack.c.l.b16 %v10663
    %v11012 = vunpack.c.h.b16 %v10663
    %v11013 = vunpack.c.l.b16 %v10664
    %v11014 = vunpack.c.h.b16 %v10664
    %v11015 = vunpack.c.l.b16 %v10665
    %v11016 = vunpack.c.h.b16 %v10665
    %v11017 = vunpack.c.l.b16 %v10666
    %v11018 = vunpack.c.h.b16 %v10666
    %v11019 = vunpack.c.l.b16 %v10667
    %v11020 = vunpack.c.h.b16 %v10667
    %v11021 = vunpack.c.l.b16 %v10668
    %v11022 = vunpack.c.h.b16 %v10668
    %v11023 = vunpack.c.l.b16 %v10669
    %v11024 = vunpack.c.h.b16 %v10669
    %v11025 = vunpack.c.l.b16 %v10670
    %v11026 = vunpack.c.h.b16 %v10670
    %v11027 = vunpack.c.l.b16 %v10671
    %v11028 = vunpack.c.h.b16 %v10671
    %v11029 = vunpack.c.l.b16 %v10672
    %v11030 = vunpack.c.h.b16 %v10672
    %v11031 = vunpack.c.l.b16 %v10673
    %v11032 = vunpack.c.h.b16 %v10673
    %v11033 = vunpack.c.l.b16 %v10674
    %v11034 = vunpack.c.h.b16 %v10674
    %v11035 = vunpack.c.l.b16 %v10675
    %v11036 = vunpack.c.h.b16 %v10675
    %v11037 = vunpack.c.l.b16 %v10676
    %v11038 = vunpack.c.h.b16 %v10676
    %v11039 = vunpack.c.l.b16 %v10677
    %v11040 = vunpack.c.h.b16 %v10677
    %v11041 = vunpack.c.l.b16 %v10678
    %v11042 = vunpack.c.h.b16 %v10678
    %v11043 = vunpack.c.l.b16 %v10679
    %v11044 = vunpack.c.h.b16 %v10679
    %v11045 = vunpack.c.l.b16 %v10680
    %v11046 = vunpack.c.h.b16 %v10680
    %v11047 = vunpack.c.l.b16 %v10681
    %v11048 = vunpack.c.h.b16 %v10681
    %v11049 = vunpack.c.l.b16 %v10682
    %v11050 = vunpack.c.h.b16 %v10682
    %v11051 = vunpack.c.l.b16 %v10683
    %v11052 = vunpack.c.h.b16 %v10683
    %v11053 = vunpack.c.l.b16 %v10684
    %v11054 = vunpack.c.h.b16 %v10684
    %v11055 = vunpack.c.l.b16 %v10685
    %v11056 = vunpack.c.h.b16 %v10685
    %v11057 = vunpack.c.l.b16 %v10686
    %v11058 = vunpack.c.h.b16 %v10686
    %v11059 = vunpack.c.l.b16 %v10687
    %v11060 = vunpack.c.h.b16 %v10687
    %v11061 = vunpack.c.l.b16 %v10688
    %v11062 = vunpack.c.h.b16 %v10688
    %v11063 = vunpack.c.l.b16 %v10689
    %v11064 = vunpack.c.h.b16 %v10689
    %v11065 = vunpack.c.l.b16 %v10690
    %v11066 = vunpack.c.h.b16 %v10690
    %v11067 = vunpack.c.l.b16 %v10691
    %v11068 = vunpack.c.h.b16 %v10691
    %v11069 = vunpack.c.l.b16 %v10692
    %v11070 = vunpack.c.h.b16 %v10692
    %v11071 = vunpack.c.l.b16 %v10693
    %v11072 = vunpack.c.h.b16 %v10693
    %v11073 = vunpack.c.l.b16 %v10694
    %v11074 = vunpack.c.h.b16 %v10694
    %v11075 = vunpack.c.l.b16 %v10695
    %v11076 = vunpack.c.h.b16 %v10695
    %v11077 = vunpack.c.l.b16 %v10696
    %v11078 = vunpack.c.h.b16 %v10696
    %v11079 = vunpack.c.l.b16 %v10697
    %v11080 = vunpack.c.h.b16 %v10697
    %v11081 = vunpack.c.l.b16 %v10698
    %v11082 = vunpack.c.h.b16 %v10698
    %v11083 = vunpack.c.l.b16 %v10699
    %v11084 = vunpack.c.h.b16 %v10699
    %v11085 = vunpack.c.l.b16 %v10700
    %v11086 = vunpack.c.h.b16 %v10700
    %v11087 = vunpack.c.l.b16 %v10701
    %v11088 = vunpack.c.h.b16 %v10701
    %v11089 = vunpack.c.l.b16 %v10702
    %v11090 = vunpack.c.h.b16 %v10702
    %v11091 = vunpack.c.l.b16 %v10703
    %v11092 = vunpack.c.h.b16 %v10703
    %v11093 = vunpack.c.l.b16 %v10704
    %v11094 = vunpack.c.h.b16 %v10704
    %v11095 = vunpack.c.l.b16 %v10705
    %v11096 = vunpack.c.h.b16 %v10705
    %v11097 = vunpack.c.l.b16 %v10706
    %v11098 = vunpack.c.h.b16 %v10706
    %v11099 = vunpack.c.l.b16 %v10707
    %v11100 = vunpack.c.h.b16 %v10707
    %v11101 = vunpack.c.l.b16 %v10708
    %v11102 = vunpack.c.h.b16 %v10708
    %v11103 = vunpack.c.l.b16 %v10709
    %v11104 = vunpack.c.h.b16 %v10709
    %v11105 = vunpack.c.l.b16 %v10710
    %v11106 = vunpack.c.h.b16 %v10710
    %v11107 = vunpack.c.l.b16 %v10711
    %v11108 = vunpack.c.h.b16 %v10711
    %v11109 = vunpack.c.l.b16 %v10712
    %v11110 = vunpack.c.h.b16 %v10712
    %v11111 = vunpack.c.l.b16 %v10713
    %v11112 = vunpack.c.h.b16 %v10713
    %v11113 = vunpack.c.l.b16 %v10714
    %v11114 = vunpack.c.h.b16 %v10714
    %v11115 = vunpack.c.l.b16 %v10715
    %v11116 = vunpack.c.h.b16 %v10715
    %v11117 = vunpack.c.l.b16 %v10716
    %v11118 = vunpack.c.h.b16 %v10716
    %v11119 = vunpack.c.l.b16 %v10717
    %v11120 = vunpack.c.h.b16 %v10717
    %v11121 = vunpack.c.l.b16 %v10718
    %v11122 = vunpack.c.h.b16 %v10718
    %v11123 = vunpack.c.l.b16 %v10719
    %v11124 = vunpack.c.h.b16 %v10719
    %v11125 = vunpack.c.l.b16 %v10720
    %v11126 = vunpack.c.h.b16 %v10720
    %v11127 = vunpack.c.l.b16 %v10721
    %v11128 = vunpack.c.h.b16 %v10721
    %v11129 = vunpack.c.l.b16 %v10722
    %v11130 = vunpack.c.h.b16 %v10722
    %v11131 = vunpack.c.l.b16 %v10723
    %v11132 = vunpack.c.h.b16 %v10723
    %v11133 = vunpack.c.l.b16 %v10724
    %v11134 = vunpack.c.h.b16 %v10724
    %v11135 = vunpack.c.l.b16 %v10725
    %v11136 = vunpack.c.h.b16 %v10725
    %v11137 = vunpack.c.l.b16 %v10726
    %v11138 = vunpack.c.h.b16 %v10726
    %v11139 = vunpack.c.l.b16 %v10727
    %v11140 = vunpack.c.h.b16 %v10727
    %v11141 = vunpack.c.l.b16 %v10728
    %v11142 = vunpack.c.h.b16 %v10728
    %v11143 = vunpack.c.l.b16 %v10729
    %v11144 = vunpack.c.h.b16 %v10729
    %v11145 = vunpack.c.l.b16 %v10730
    %v11146 = vunpack.c.h.b16 %v10730
    %v11147 = vunpack.c.l.b16 %v10731
    %v11148 = vunpack.c.h.b16 %v10731
    %v11149 = vunpack.c.l.b16 %v10732
    %v11150 = vunpack.c.h.b16 %v10732
    %v11151 = vunpack.c.l.b16 %v10733
    %v11152 = vunpack.c.h.b16 %v10733
    %v11153 = vunpack.c.l.b16 %v10734
    %v11154 = vunpack.c.h.b16 %v10734
    %v11155 = vunpack.c.l.b16 %v10735
    %v11156 = vunpack.c.h.b16 %v10735
    %v11157 = vunpack.c.l.b16 %v10736
    %v11158 = vunpack.c.h.b16 %v10736
    %v11159 = vunpack.c.l.b16 %v10737
    %v11160 = vunpack.c.h.b16 %v10737
    %v11161 = vunpack.c.l.b16 %v10738
    %v11162 = vunpack.c.h.b16 %v10738
    %v11163 = vpack.c.b16 %v10915, %v10907
    %v11164 = vpack.c.b16 %v10916, %v10908
    %v11165 = vpack.c.b16 %v10917, %v10909
    %v11166 = vpack.c.b16 %v10918, %v10910
    %v11167 = vpack.c.b16 %v10919, %v10911
    %v11168 = vpack.c.b16 %v10920, %v10912
    %v11169 = vpack.c.b16 %v10921, %v10913
    %v11170 = vpack.c.b16 %v10922, %v10914
    %v11171 = vpack.c.b16 %v10931, %v10923
    %v11172 = vpack.c.b16 %v10932, %v10924
    %v11173 = vpack.c.b16 %v10933, %v10925
    %v11174 = vpack.c.b16 %v10934, %v10926
    %v11175 = vpack.c.b16 %v10935, %v10927
    %v11176 = vpack.c.b16 %v10936, %v10928
    %v11177 = vpack.c.b16 %v10937, %v10929
    %v11178 = vpack.c.b16 %v10938, %v10930
    %v11179 = vpack.c.b16 %v10947, %v10939
    %v11180 = vpack.c.b16 %v10948, %v10940
    %v11181 = vpack.c.b16 %v10949, %v10941
    %v11182 = vpack.c.b16 %v10950, %v10942
    %v11183 = vpack.c.b16 %v10951, %v10943
    %v11184 = vpack.c.b16 %v10952, %v10944
    %v11185 = vpack.c.b16 %v10953, %v10945
    %v11186 = vpack.c.b16 %v10954, %v10946
    %v11187 = vpack.c.b16 %v10963, %v10955
    %v11188 = vpack.c.b16 %v10964, %v10956
    %v11189 = vpack.c.b16 %v10965, %v10957
    %v11190 = vpack.c.b16 %v10966, %v10958
    %v11191 = vpack.c.b16 %v10967, %v10959
    %v11192 = vpack.c.b16 %v10968, %v10960
    %v11193 = vpack.c.b16 %v10969, %v10961
    %v11194 = vpack.c.b16 %v10970, %v10962
    %v11195 = vpack.c.b16 %v10979, %v10971
    %v11196 = vpack.c.b16 %v10980, %v10972
    %v11197 = vpack.c.b16 %v10981, %v10973
    %v11198 = vpack.c.b16 %v10982, %v10974
    %v11199 = vpack.c.b16 %v10983, %v10975
    %v11200 = vpack.c.b16 %v10984, %v10976
    %v11201 = vpack.c.b16 %v10985, %v10977
    %v11202 = vpack.c.b16 %v10986, %v10978
    %v11203 = vpack.c.b16 %v10995, %v10987
    %v11204 = vpack.c.b16 %v10996, %v10988
    %v11205 = vpack.c.b16 %v10997, %v10989
    %v11206 = vpack.c.b16 %v10998, %v10990
    %v11207 = vpack.c.b16 %v10999, %v10991
    %v11208 = vpack.c.b16 %v11000, %v10992
    %v11209 = vpack.c.b16 %v11001, %v10993
    %v11210 = vpack.c.b16 %v11002, %v10994
    %v11211 = vpack.c.b16 %v11011, %v11003
    %v11212 = vpack.c.b16 %v11012, %v11004
    %v11213 = vpack.c.b16 %v11013, %v11005
    %v11214 = vpack.c.b16 %v11014, %v11006
    %v11215 = vpack.c.b16 %v11015, %v11007
    %v11216 = vpack.c.b16 %v11016, %v11008
    %v11217 = vpack.c.b16 %v11017, %v11009
    %v11218 = vpack.c.b16 %v11018, %v11010
    %v11219 = vpack.c.b16 %v11027, %v11019
    %v11220 = vpack.c.b16 %v11028, %v11020
    %v11221 = vpack.c.b16 %v11029, %v11021
    %v11222 = vpack.c.b16 %v11030, %v11022
    %v11223 = vpack.c.b16 %v11031, %v11023
    %v11224 = vpack.c.b16 %v11032, %v11024
    %v11225 = vpack.c.b16 %v11033, %v11025
    %v11226 = vpack.c.b16 %v11034, %v11026
    %v11227 = vpack.c.b16 %v11043, %v11035
    %v11228 = vpack.c.b16 %v11044, %v11036
    %v11229 = vpack.c.b16 %v11045, %v11037
    %v11230 = vpack.c.b16 %v11046, %v11038
    %v11231 = vpack.c.b16 %v11047, %v11039
    %v11232 = vpack.c.b16 %v11048, %v11040
    %v11233 = vpack.c.b16 %v11049, %v11041
    %v11234 = vpack.c.b16 %v11050, %v11042
    %v11235 = vpack.c.b16 %v11059, %v11051
    %v11236 = vpack.c.b16 %v11060, %v11052
    %v11237 = vpack.c.b16 %v11061, %v11053
    %v11238 = vpack.c.b16 %v11062, %v11054
    %v11239 = vpack.c.b16 %v11063, %v11055
    %v11240 = vpack.c.b16 %v11064, %v11056
    %v11241 = vpack.c.b16 %v11065, %v11057
    %v11242 = vpack.c.b16 %v11066, %v11058
    %v11243 = vpack.c.b16 %v11075, %v11067
    %v11244 = vpack.c.b16 %v11076, %v11068
    %v11245 = vpack.c.b16 %v11077, %v11069
    %v11246 = vpack.c.b16 %v11078, %v11070
    %v11247 = vpack.c.b16 %v11079, %v11071
    %v11248 = vpack.c.b16 %v11080, %v11072
    %v11249 = vpack.c.b16 %v11081, %v11073
    %v11250 = vpack.c.b16 %v11082, %v11074
    %v11251 = vpack.c.b16 %v11091, %v11083
    %v11252 = vpack.c.b16 %v11092, %v11084
    %v11253 = vpack.c.b16 %v11093, %v11085
    %v11254 = vpack.c.b16 %v11094, %v11086
    %v11255 = vpack.c.b16 %v11095, %v11087
    %v11256 = vpack.c.b16 %v11096, %v11088
    %v11257 = vpack.c.b16 %v11097, %v11089
    %v11258 = vpack.c.b16 %v11098, %v11090
    %v11259 = vpack.c.b16 %v11107, %v11099
    %v11260 = vpack.c.b16 %v11108, %v11100
    %v11261 = vpack.c.b16 %v11109, %v11101
    %v11262 = vpack.c.b16 %v11110, %v11102
    %v11263 = vpack.c.b16 %v11111, %v11103
    %v11264 = vpack.c.b16 %v11112, %v11104
    %v11265 = vpack.c.b16 %v11113, %v11105
    %v11266 = vpack.c.b16 %v11114, %v11106
    %v11267 = vpack.c.b16 %v11123, %v11115
    %v11268 = vpack.c.b16 %v11124, %v11116
    %v11269 = vpack.c.b16 %v11125, %v11117
    %v11270 = vpack.c.b16 %v11126, %v11118
    %v11271 = vpack.c.b16 %v11127, %v11119
    %v11272 = vpack.c.b16 %v11128, %v11120
    %v11273 = vpack.c.b16 %v11129, %v11121
    %v11274 = vpack.c.b16 %v11130, %v11122
    %v11275 = vpack.c.b16 %v11139, %v11131
    %v11276 = vpack.c.b16 %v11140, %v11132
    %v11277 = vpack.c.b16 %v11141, %v11133
    %v11278 = vpack.c.b16 %v11142, %v11134
    %v11279 = vpack.c.b16 %v11143, %v11135
    %v11280 = vpack.c.b16 %v11144, %v11136
    %v11281 = vpack.c.b16 %v11145, %v11137
    %v11282 = vpack.c.b16 %v11146, %v11138
    %v11283 = vpack.c.b16 %v11155, %v11147
    %v11284 = vpack.c.b16 %v11156, %v11148
    %v11285 = vpack.c.b16 %v11157, %v11149
    %v11286 = vpack.c.b16 %v11158, %v11150
    %v11287 = vpack.c.b16 %v11159, %v11151
    %v11288 = vpack.c.b16 %v11160, %v11152
    %v11289 = vpack.c.b16 %v11161, %v11153
    %v11290 = vpack.c.b16 %v11162, %v11154
    %11419 = vmatpush.bf16.msra.mxu0 %v11219
    %11420 = vmatpush.bf16.msra.mxu0 %v11211
    %11421 = vmatpush.bf16.msra.mxu0 %v11203
    %11422 = vmatpush.bf16.msra.mxu0 %v11195
    %11423 = vmatpush.bf16.msra.mxu0 %v11187
    %11424 = vmatpush.bf16.msra.mxu0 %v11179
    %11425 = vmatpush.bf16.msra.mxu0 %v11171
    %11426 = vmatpush.bf16.msra.mxu0 %v11163
    %11427 = vmatmul.bf16.gmra.mxu0 %v10763
    %v11428 = vpop.f32.mrf.mxu0
    %v11429 = vadd.f32 0.0, %v11428
    %v11430 = vpop.f32.mrf.mxu0
    %v11431 = vadd.f32 0.0, %v11430
    %11432 = vmatmul.bf16.gmra.mxu0 %v10765
    %v11433 = vpop.f32.mrf.mxu0
    %v11434 = vadd.f32 0.0, %v11433
    %v11435 = vpop.f32.mrf.mxu0
    %v11436 = vadd.f32 0.0, %v11435
    %11437 = vmatmul.bf16.gmra.mxu0 %v10767
    %v11438 = vpop.f32.mrf.mxu0
    %v11439 = vadd.f32 0.0, %v11438
    %v11440 = vpop.f32.mrf.mxu0
    %v11441 = vadd.f32 0.0, %v11440
    %11442 = vmatmul.bf16.gmra.mxu0 %v10769
    %v11443 = vpop.f32.mrf.mxu0
    %v11444 = vadd.f32 0.0, %v11443
    %v11445 = vpop.f32.mrf.mxu0
    %v11446 = vadd.f32 0.0, %v11445
    %11447 = vdwg.mxu0
    %11448 = vmatpush.bf16.msra.mxu0 %v11283
    %11449 = vmatpush.bf16.msra.mxu0 %v11275
    %11450 = vmatpush.bf16.msra.mxu0 %v11267
    %11451 = vmatpush.bf16.msra.mxu0 %v11259
    %11452 = vmatpush.bf16.msra.mxu0 %v11251
    %11453 = vmatpush.bf16.msra.mxu0 %v11243
    %11454 = vmatpush.bf16.msra.mxu0 %v11235
    %11455 = vmatpush.bf16.msra.mxu0 %v11227
    %11456 = vmatmul.bf16.gmra.mxu0 %v10764
    %v11457 = vpop.f32.mrf.mxu0
    %v11458 = vadd.f32 %v11429, %v11457
    %v11459 = vpop.f32.mrf.mxu0
    %v11460 = vadd.f32 %v11431, %v11459
    %11461 = vmatmul.bf16.gmra.mxu0 %v10766
    %v11462 = vpop.f32.mrf.mxu0
    %v11463 = vadd.f32 %v11434, %v11462
    %v11464 = vpop.f32.mrf.mxu0
    %v11465 = vadd.f32 %v11436, %v11464
    %11466 = vmatmul.bf16.gmra.mxu0 %v10768
    %v11467 = vpop.f32.mrf.mxu0
    %v11468 = vadd.f32 %v11439, %v11467
    %v11469 = vpop.f32.mrf.mxu0
    %v11470 = vadd.f32 %v11441, %v11469
    %11471 = vmatmul.bf16.gmra.mxu0 %v10770
    %v11472 = vpop.f32.mrf.mxu0
    %v11473 = vadd.f32 %v11444, %v11472
    %v11474 = vpop.f32.mrf.mxu0
    %v11475 = vadd.f32 %v11446, %v11474
    %11476 = vdwg.mxu0
    %11477 = vmatpush.bf16.msra.mxu0 %v11220
    %11478 = vmatpush.bf16.msra.mxu0 %v11212
    %11479 = vmatpush.bf16.msra.mxu0 %v11204
    %11480 = vmatpush.bf16.msra.mxu0 %v11196
    %11481 = vmatpush.bf16.msra.mxu0 %v11188
    %11482 = vmatpush.bf16.msra.mxu0 %v11180
    %11483 = vmatpush.bf16.msra.mxu0 %v11172
    %11484 = vmatpush.bf16.msra.mxu0 %v11164
    %11485 = vmatmul.bf16.gmra.mxu0 %v10763
    %v11486 = vpop.f32.mrf.mxu0
    %v11487 = vadd.f32 0.0, %v11486
    %v11488 = vpop.f32.mrf.mxu0
    %v11489 = vadd.f32 0.0, %v11488
    %11490 = vmatmul.bf16.gmra.mxu0 %v10765
    %v11491 = vpop.f32.mrf.mxu0
    %v11492 = vadd.f32 0.0, %v11491
    %v11493 = vpop.f32.mrf.mxu0
    %v11494 = vadd.f32 0.0, %v11493
    %11495 = vmatmul.bf16.gmra.mxu0 %v10767
    %v11496 = vpop.f32.mrf.mxu0
    %v11497 = vadd.f32 0.0, %v11496
    %v11498 = vpop.f32.mrf.mxu0
    %v11499 = vadd.f32 0.0, %v11498
    %11500 = vmatmul.bf16.gmra.mxu0 %v10769
    %v11501 = vpop.f32.mrf.mxu0
    %v11502 = vadd.f32 0.0, %v11501
    %v11503 = vpop.f32.mrf.mxu0
    %v11504 = vadd.f32 0.0, %v11503
    %11505 = vdwg.mxu0
    %11506 = vmatpush.bf16.msra.mxu0 %v11284
    %11507 = vmatpush.bf16.msra.mxu0 %v11276
    %11508 = vmatpush.bf16.msra.mxu0 %v11268
    %11509 = vmatpush.bf16.msra.mxu0 %v11260
    %11510 = vmatpush.bf16.msra.mxu0 %v11252
    %11511 = vmatpush.bf16.msra.mxu0 %v11244
    %11512 = vmatpush.bf16.msra.mxu0 %v11236
    %11513 = vmatpush.bf16.msra.mxu0 %v11228
    %11514 = vmatmul.bf16.gmra.mxu0 %v10764
    %v11515 = vpop.f32.mrf.mxu0
    %v11516 = vadd.f32 %v11487, %v11515
    %v11517 = vpop.f32.mrf.mxu0
    %v11518 = vadd.f32 %v11489, %v11517
    %11519 = vmatmul.bf16.gmra.mxu0 %v10766
    %v11520 = vpop.f32.mrf.mxu0
    %v11521 = vadd.f32 %v11492, %v11520
    %v11522 = vpop.f32.mrf.mxu0
    %v11523 = vadd.f32 %v11494, %v11522
    %11524 = vmatmul.bf16.gmra.mxu0 %v10768
    %v11525 = vpop.f32.mrf.mxu0
    %v11526 = vadd.f32 %v11497, %v11525
    %v11527 = vpop.f32.mrf.mxu0
    %v11528 = vadd.f32 %v11499, %v11527
    %11529 = vmatmul.bf16.gmra.mxu0 %v10770
    %v11530 = vpop.f32.mrf.mxu0
    %v11531 = vadd.f32 %v11502, %v11530
    %v11532 = vpop.f32.mrf.mxu0
    %v11533 = vadd.f32 %v11504, %v11532
    %11534 = vdwg.mxu0
    %11535 = vmatpush.bf16.msra.mxu0 %v11221
    %11536 = vmatpush.bf16.msra.mxu0 %v11213
    %11537 = vmatpush.bf16.msra.mxu0 %v11205
    %11538 = vmatpush.bf16.msra.mxu0 %v11197
    %11539 = vmatpush.bf16.msra.mxu0 %v11189
    %11540 = vmatpush.bf16.msra.mxu0 %v11181
    %11541 = vmatpush.bf16.msra.mxu0 %v11173
    %11542 = vmatpush.bf16.msra.mxu0 %v11165
    %11543 = vmatmul.bf16.gmra.mxu0 %v10763
    %v11544 = vpop.f32.mrf.mxu0
    %v11545 = vadd.f32 0.0, %v11544
    %v11546 = vpop.f32.mrf.mxu0
    %v11547 = vadd.f32 0.0, %v11546
    %11548 = vmatmul.bf16.gmra.mxu0 %v10765
    %v11549 = vpop.f32.mrf.mxu0
    %v11550 = vadd.f32 0.0, %v11549
    %v11551 = vpop.f32.mrf.mxu0
    %v11552 = vadd.f32 0.0, %v11551
    %11553 = vmatmul.bf16.gmra.mxu0 %v10767
    %v11554 = vpop.f32.mrf.mxu0
    %v11555 = vadd.f32 0.0, %v11554
    %v11556 = vpop.f32.mrf.mxu0
    %v11557 = vadd.f32 0.0, %v11556
    %11558 = vmatmul.bf16.gmra.mxu0 %v10769
    %v11559 = vpop.f32.mrf.mxu0
    %v11560 = vadd.f32 0.0, %v11559
    %v11561 = vpop.f32.mrf.mxu0
    %v11562 = vadd.f32 0.0, %v11561
    %11563 = vdwg.mxu0
    %11564 = vmatpush.bf16.msra.mxu0 %v11285
    %11565 = vmatpush.bf16.msra.mxu0 %v11277
    %11566 = vmatpush.bf16.msra.mxu0 %v11269
    %11567 = vmatpush.bf16.msra.mxu0 %v11261
    %11568 = vmatpush.bf16.msra.mxu0 %v11253
    %11569 = vmatpush.bf16.msra.mxu0 %v11245
    %11570 = vmatpush.bf16.msra.mxu0 %v11237
    %11571 = vmatpush.bf16.msra.mxu0 %v11229
    %11572 = vmatmul.bf16.gmra.mxu0 %v10764
    %v11573 = vpop.f32.mrf.mxu0
    %v11574 = vadd.f32 %v11545, %v11573
    %v11575 = vpop.f32.mrf.mxu0
    %v11576 = vadd.f32 %v11547, %v11575
    %11577 = vmatmul.bf16.gmra.mxu0 %v10766
    %v11578 = vpop.f32.mrf.mxu0
    %v11579 = vadd.f32 %v11550, %v11578
    %v11580 = vpop.f32.mrf.mxu0
    %v11581 = vadd.f32 %v11552, %v11580
    %11582 = vmatmul.bf16.gmra.mxu0 %v10768
    %v11583 = vpop.f32.mrf.mxu0
    %v11584 = vadd.f32 %v11555, %v11583
    %v11585 = vpop.f32.mrf.mxu0
    %v11586 = vadd.f32 %v11557, %v11585
    %11587 = vmatmul.bf16.gmra.mxu0 %v10770
    %v11588 = vpop.f32.mrf.mxu0
    %v11589 = vadd.f32 %v11560, %v11588
    %v11590 = vpop.f32.mrf.mxu0
    %v11591 = vadd.f32 %v11562, %v11590
    %11592 = vdwg.mxu0
    %11593 = vmatpush.bf16.msra.mxu0 %v11222
    %11594 = vmatpush.bf16.msra.mxu0 %v11214
    %11595 = vmatpush.bf16.msra.mxu0 %v11206
    %11596 = vmatpush.bf16.msra.mxu0 %v11198
    %11597 = vmatpush.bf16.msra.mxu0 %v11190
    %11598 = vmatpush.bf16.msra.mxu0 %v11182
    %11599 = vmatpush.bf16.msra.mxu0 %v11174
    %11600 = vmatpush.bf16.msra.mxu0 %v11166
    %11601 = vmatmul.bf16.gmra.mxu0 %v10763
    %v11602 = vpop.f32.mrf.mxu0
    %v11603 = vadd.f32 0.0, %v11602
    %v11604 = vpop.f32.mrf.mxu0
    %v11605 = vadd.f32 0.0, %v11604
    %11606 = vmatmul.bf16.gmra.mxu0 %v10765
    %v11607 = vpop.f32.mrf.mxu0
    %v11608 = vadd.f32 0.0, %v11607
    %v11609 = vpop.f32.mrf.mxu0
    %v11610 = vadd.f32 0.0, %v11609
    %11611 = vmatmul.bf16.gmra.mxu0 %v10767
    %v11612 = vpop.f32.mrf.mxu0
    %v11613 = vadd.f32 0.0, %v11612
    %v11614 = vpop.f32.mrf.mxu0
    %v11615 = vadd.f32 0.0, %v11614
    %11616 = vmatmul.bf16.gmra.mxu0 %v10769
    %v11617 = vpop.f32.mrf.mxu0
    %v11618 = vadd.f32 0.0, %v11617
    %v11619 = vpop.f32.mrf.mxu0
    %v11620 = vadd.f32 0.0, %v11619
    %11621 = vdwg.mxu0
    %11622 = vmatpush.bf16.msra.mxu0 %v11286
    %11623 = vmatpush.bf16.msra.mxu0 %v11278
    %11624 = vmatpush.bf16.msra.mxu0 %v11270
    %11625 = vmatpush.bf16.msra.mxu0 %v11262
    %11626 = vmatpush.bf16.msra.mxu0 %v11254
    %11627 = vmatpush.bf16.msra.mxu0 %v11246
    %11628 = vmatpush.bf16.msra.mxu0 %v11238
    %11629 = vmatpush.bf16.msra.mxu0 %v11230
    %11630 = vmatmul.bf16.gmra.mxu0 %v10764
    %v11631 = vpop.f32.mrf.mxu0
    %v11632 = vadd.f32 %v11603, %v11631
    %v11633 = vpop.f32.mrf.mxu0
    %v11634 = vadd.f32 %v11605, %v11633
    %11635 = vmatmul.bf16.gmra.mxu0 %v10766
    %v11636 = vpop.f32.mrf.mxu0
    %v11637 = vadd.f32 %v11608, %v11636
    %v11638 = vpop.f32.mrf.mxu0
    %v11639 = vadd.f32 %v11610, %v11638
    %11640 = vmatmul.bf16.gmra.mxu0 %v10768
    %v11641 = vpop.f32.mrf.mxu0
    %v11642 = vadd.f32 %v11613, %v11641
    %v11643 = vpop.f32.mrf.mxu0
    %v11644 = vadd.f32 %v11615, %v11643
    %11645 = vmatmul.bf16.gmra.mxu0 %v10770
    %v11646 = vpop.f32.mrf.mxu0
    %v11647 = vadd.f32 %v11618, %v11646
    %v11648 = vpop.f32.mrf.mxu0
    %v11649 = vadd.f32 %v11620, %v11648
    %11650 = vdwg.mxu0
    %11651 = vmatpush.bf16.msra.mxu0 %v11223
    %11652 = vmatpush.bf16.msra.mxu0 %v11215
    %11653 = vmatpush.bf16.msra.mxu0 %v11207
    %11654 = vmatpush.bf16.msra.mxu0 %v11199
    %11655 = vmatpush.bf16.msra.mxu0 %v11191
    %11656 = vmatpush.bf16.msra.mxu0 %v11183
    %11657 = vmatpush.bf16.msra.mxu0 %v11175
    %11658 = vmatpush.bf16.msra.mxu0 %v11167
    %11659 = vmatmul.bf16.gmra.mxu0 %v10763
    %v11660 = vpop.f32.mrf.mxu0
    %v11661 = vadd.f32 0.0, %v11660
    %v11662 = vpop.f32.mrf.mxu0
    %v11663 = vadd.f32 0.0, %v11662
    %11664 = vmatmul.bf16.gmra.mxu0 %v10765
    %v11665 = vpop.f32.mrf.mxu0
    %v11666 = vadd.f32 0.0, %v11665
    %v11667 = vpop.f32.mrf.mxu0
    %v11668 = vadd.f32 0.0, %v11667
    %11669 = vmatmul.bf16.gmra.mxu0 %v10767
    %v11670 = vpop.f32.mrf.mxu0
    %v11671 = vadd.f32 0.0, %v11670
    %v11672 = vpop.f32.mrf.mxu0
    %v11673 = vadd.f32 0.0, %v11672
    %11674 = vmatmul.bf16.gmra.mxu0 %v10769
    %v11675 = vpop.f32.mrf.mxu0
    %v11676 = vadd.f32 0.0, %v11675
    %v11677 = vpop.f32.mrf.mxu0
    %v11678 = vadd.f32 0.0, %v11677
    %11679 = vdwg.mxu0
    %11680 = vmatpush.bf16.msra.mxu0 %v11287
    %11681 = vmatpush.bf16.msra.mxu0 %v11279
    %11682 = vmatpush.bf16.msra.mxu0 %v11271
    %11683 = vmatpush.bf16.msra.mxu0 %v11263
    %11684 = vmatpush.bf16.msra.mxu0 %v11255
    %11685 = vmatpush.bf16.msra.mxu0 %v11247
    %11686 = vmatpush.bf16.msra.mxu0 %v11239
    %11687 = vmatpush.bf16.msra.mxu0 %v11231
    %11688 = vmatmul.bf16.gmra.mxu0 %v10764
    %v11689 = vpop.f32.mrf.mxu0
    %v11690 = vadd.f32 %v11661, %v11689
    %v11691 = vpop.f32.mrf.mxu0
    %v11692 = vadd.f32 %v11663, %v11691
    %11693 = vmatmul.bf16.gmra.mxu0 %v10766
    %v11694 = vpop.f32.mrf.mxu0
    %v11695 = vadd.f32 %v11666, %v11694
    %v11696 = vpop.f32.mrf.mxu0
    %v11697 = vadd.f32 %v11668, %v11696
    %11698 = vmatmul.bf16.gmra.mxu0 %v10768
    %v11699 = vpop.f32.mrf.mxu0
    %v11700 = vadd.f32 %v11671, %v11699
    %v11701 = vpop.f32.mrf.mxu0
    %v11702 = vadd.f32 %v11673, %v11701
    %11703 = vmatmul.bf16.gmra.mxu0 %v10770
    %v11704 = vpop.f32.mrf.mxu0
    %v11705 = vadd.f32 %v11676, %v11704
    %v11706 = vpop.f32.mrf.mxu0
    %v11707 = vadd.f32 %v11678, %v11706
    %11708 = vdwg.mxu0
    %11709 = vmatpush.bf16.msra.mxu0 %v11224
    %11710 = vmatpush.bf16.msra.mxu0 %v11216
    %11711 = vmatpush.bf16.msra.mxu0 %v11208
    %11712 = vmatpush.bf16.msra.mxu0 %v11200
    %11713 = vmatpush.bf16.msra.mxu0 %v11192
    %11714 = vmatpush.bf16.msra.mxu0 %v11184
    %11715 = vmatpush.bf16.msra.mxu0 %v11176
    %11716 = vmatpush.bf16.msra.mxu0 %v11168
    %11717 = vmatmul.bf16.gmra.mxu0 %v10763
    %v11718 = vpop.f32.mrf.mxu0
    %v11719 = vadd.f32 0.0, %v11718
    %v11720 = vpop.f32.mrf.mxu0
    %v11721 = vadd.f32 0.0, %v11720
    %11722 = vmatmul.bf16.gmra.mxu0 %v10765
    %v11723 = vpop.f32.mrf.mxu0
    %v11724 = vadd.f32 0.0, %v11723
    %v11725 = vpop.f32.mrf.mxu0
    %v11726 = vadd.f32 0.0, %v11725
    %11727 = vmatmul.bf16.gmra.mxu0 %v10767
    %v11728 = vpop.f32.mrf.mxu0
    %v11729 = vadd.f32 0.0, %v11728
    %v11730 = vpop.f32.mrf.mxu0
    %v11731 = vadd.f32 0.0, %v11730
    %11732 = vmatmul.bf16.gmra.mxu0 %v10769
    %v11733 = vpop.f32.mrf.mxu0
    %v11734 = vadd.f32 0.0, %v11733
    %v11735 = vpop.f32.mrf.mxu0
    %v11736 = vadd.f32 0.0, %v11735
    %11737 = vdwg.mxu0
    %11738 = vmatpush.bf16.msra.mxu0 %v11288
    %11739 = vmatpush.bf16.msra.mxu0 %v11280
    %11740 = vmatpush.bf16.msra.mxu0 %v11272
    %11741 = vmatpush.bf16.msra.mxu0 %v11264
    %11742 = vmatpush.bf16.msra.mxu0 %v11256
    %11743 = vmatpush.bf16.msra.mxu0 %v11248
    %11744 = vmatpush.bf16.msra.mxu0 %v11240
    %11745 = vmatpush.bf16.msra.mxu0 %v11232
    %11746 = vmatmul.bf16.gmra.mxu0 %v10764
    %v11747 = vpop.f32.mrf.mxu0
    %v11748 = vadd.f32 %v11719, %v11747
    %v11749 = vpop.f32.mrf.mxu0
    %v11750 = vadd.f32 %v11721, %v11749
    %11751 = vmatmul.bf16.gmra.mxu0 %v10766
    %v11752 = vpop.f32.mrf.mxu0
    %v11753 = vadd.f32 %v11724, %v11752
    %v11754 = vpop.f32.mrf.mxu0
    %v11755 = vadd.f32 %v11726, %v11754
    %11756 = vmatmul.bf16.gmra.mxu0 %v10768
    %v11757 = vpop.f32.mrf.mxu0
    %v11758 = vadd.f32 %v11729, %v11757
    %v11759 = vpop.f32.mrf.mxu0
    %v11760 = vadd.f32 %v11731, %v11759
    %11761 = vmatmul.bf16.gmra.mxu0 %v10770
    %v11762 = vpop.f32.mrf.mxu0
    %v11763 = vadd.f32 %v11734, %v11762
    %v11764 = vpop.f32.mrf.mxu0
    %v11765 = vadd.f32 %v11736, %v11764
    %11766 = vdwg.mxu0
    %11767 = vmatpush.bf16.msra.mxu0 %v11225
    %11768 = vmatpush.bf16.msra.mxu0 %v11217
    %11769 = vmatpush.bf16.msra.mxu0 %v11209
    %11770 = vmatpush.bf16.msra.mxu0 %v11201
    %11771 = vmatpush.bf16.msra.mxu0 %v11193
    %11772 = vmatpush.bf16.msra.mxu0 %v11185
    %11773 = vmatpush.bf16.msra.mxu0 %v11177
    %11774 = vmatpush.bf16.msra.mxu0 %v11169
    %11775 = vmatmul.bf16.gmra.mxu0 %v10763
    %v11776 = vpop.f32.mrf.mxu0
    %v11777 = vadd.f32 0.0, %v11776
    %v11778 = vpop.f32.mrf.mxu0
    %v11779 = vadd.f32 0.0, %v11778
    %11780 = vmatmul.bf16.gmra.mxu0 %v10765
    %v11781 = vpop.f32.mrf.mxu0
    %v11782 = vadd.f32 0.0, %v11781
    %v11783 = vpop.f32.mrf.mxu0
    %v11784 = vadd.f32 0.0, %v11783
    %11785 = vmatmul.bf16.gmra.mxu0 %v10767
    %v11786 = vpop.f32.mrf.mxu0
    %v11787 = vadd.f32 0.0, %v11786
    %v11788 = vpop.f32.mrf.mxu0
    %v11789 = vadd.f32 0.0, %v11788
    %11790 = vmatmul.bf16.gmra.mxu0 %v10769
    %v11791 = vpop.f32.mrf.mxu0
    %v11792 = vadd.f32 0.0, %v11791
    %v11793 = vpop.f32.mrf.mxu0
    %v11794 = vadd.f32 0.0, %v11793
    %11795 = vdwg.mxu0
    %11796 = vmatpush.bf16.msra.mxu0 %v11289
    %11797 = vmatpush.bf16.msra.mxu0 %v11281
    %11798 = vmatpush.bf16.msra.mxu0 %v11273
    %11799 = vmatpush.bf16.msra.mxu0 %v11265
    %11800 = vmatpush.bf16.msra.mxu0 %v11257
    %11801 = vmatpush.bf16.msra.mxu0 %v11249
    %11802 = vmatpush.bf16.msra.mxu0 %v11241
    %11803 = vmatpush.bf16.msra.mxu0 %v11233
    %11804 = vmatmul.bf16.gmra.mxu0 %v10764
    %v11805 = vpop.f32.mrf.mxu0
    %v11806 = vadd.f32 %v11777, %v11805
    %v11807 = vpop.f32.mrf.mxu0
    %v11808 = vadd.f32 %v11779, %v11807
    %11809 = vmatmul.bf16.gmra.mxu0 %v10766
    %v11810 = vpop.f32.mrf.mxu0
    %v11811 = vadd.f32 %v11782, %v11810
    %v11812 = vpop.f32.mrf.mxu0
    %v11813 = vadd.f32 %v11784, %v11812
    %11814 = vmatmul.bf16.gmra.mxu0 %v10768
    %v11815 = vpop.f32.mrf.mxu0
    %v11816 = vadd.f32 %v11787, %v11815
    %v11817 = vpop.f32.mrf.mxu0
    %v11818 = vadd.f32 %v11789, %v11817
    %11819 = vmatmul.bf16.gmra.mxu0 %v10770
    %v11820 = vpop.f32.mrf.mxu0
    %v11821 = vadd.f32 %v11792, %v11820
    %v11822 = vpop.f32.mrf.mxu0
    %v11823 = vadd.f32 %v11794, %v11822
    %11824 = vdwg.mxu0
    %11825 = vmatpush.bf16.msra.mxu0 %v11226
    %11826 = vmatpush.bf16.msra.mxu0 %v11218
    %11827 = vmatpush.bf16.msra.mxu0 %v11210
    %11828 = vmatpush.bf16.msra.mxu0 %v11202
    %11829 = vmatpush.bf16.msra.mxu0 %v11194
    %11830 = vmatpush.bf16.msra.mxu0 %v11186
    %11831 = vmatpush.bf16.msra.mxu0 %v11178
    %11832 = vmatpush.bf16.msra.mxu0 %v11170
    %11833 = vmatmul.bf16.gmra.mxu0 %v10763
    %v11834 = vpop.f32.mrf.mxu0
    %v11835 = vadd.f32 0.0, %v11834
    %v11836 = vpop.f32.mrf.mxu0
    %v11837 = vadd.f32 0.0, %v11836
    %11838 = vmatmul.bf16.gmra.mxu0 %v10765
    %v11839 = vpop.f32.mrf.mxu0
    %v11840 = vadd.f32 0.0, %v11839
    %v11841 = vpop.f32.mrf.mxu0
    %v11842 = vadd.f32 0.0, %v11841
    %11843 = vmatmul.bf16.gmra.mxu0 %v10767
    %v11844 = vpop.f32.mrf.mxu0
    %v11845 = vadd.f32 0.0, %v11844
    %v11846 = vpop.f32.mrf.mxu0
    %v11847 = vadd.f32 0.0, %v11846
    %11848 = vmatmul.bf16.gmra.mxu0 %v10769
    %v11849 = vpop.f32.mrf.mxu0
    %v11850 = vadd.f32 0.0, %v11849
    %v11851 = vpop.f32.mrf.mxu0
    %v11852 = vadd.f32 0.0, %v11851
    %11853 = vdwg.mxu0
    %11854 = vmatpush.bf16.msra.mxu0 %v11290
    %11855 = vmatpush.bf16.msra.mxu0 %v11282
    %11856 = vmatpush.bf16.msra.mxu0 %v11274
    %11857 = vmatpush.bf16.msra.mxu0 %v11266
    %11858 = vmatpush.bf16.msra.mxu0 %v11258
    %11859 = vmatpush.bf16.msra.mxu0 %v11250
    %11860 = vmatpush.bf16.msra.mxu0 %v11242
    %11861 = vmatpush.bf16.msra.mxu0 %v11234
    %11862 = vmatmul.bf16.gmra.mxu0 %v10764
    %v11863 = vpop.f32.mrf.mxu0
    %v11864 = vadd.f32 %v11835, %v11863
    %v11865 = vpop.f32.mrf.mxu0
    %v11866 = vadd.f32 %v11837, %v11865
    %11867 = vmatmul.bf16.gmra.mxu0 %v10766
    %v11868 = vpop.f32.mrf.mxu0
    %v11869 = vadd.f32 %v11840, %v11868
    %v11870 = vpop.f32.mrf.mxu0
    %v11871 = vadd.f32 %v11842, %v11870
    %11872 = vmatmul.bf16.gmra.mxu0 %v10768
    %v11873 = vpop.f32.mrf.mxu0
    %v11874 = vadd.f32 %v11845, %v11873
    %v11875 = vpop.f32.mrf.mxu0
    %v11876 = vadd.f32 %v11847, %v11875
    %11877 = vmatmul.bf16.gmra.mxu0 %v10770
    %v11878 = vpop.f32.mrf.mxu0
    %v11879 = vadd.f32 %v11850, %v11878
    %v11880 = vpop.f32.mrf.mxu0
    %v11881 = vadd.f32 %v11852, %v11880
    %11882 = vdwg.mxu0
    %v11883 = vadd.f32 %v10545, %v11458
    %v11884 = vadd.f32 %v10546, %v11516
    %v11885 = vadd.f32 %v10547, %v11574
    %v11886 = vadd.f32 %v10548, %v11632
    %v11887 = vadd.f32 %v10549, %v11690
    %v11888 = vadd.f32 %v10550, %v11748
    %v11889 = vadd.f32 %v10551, %v11806
    %v11890 = vadd.f32 %v10552, %v11864
    %v11891 = vadd.f32 %v10553, %v11460
    %v11892 = vadd.f32 %v10554, %v11518
    %v11893 = vadd.f32 %v10555, %v11576
    %v11894 = vadd.f32 %v10556, %v11634
    %v11895 = vadd.f32 %v10557, %v11692
    %v11896 = vadd.f32 %v10558, %v11750
    %v11897 = vadd.f32 %v10559, %v11808
    %v11898 = vadd.f32 %v10560, %v11866
    %v11899 = vadd.f32 %v10561, %v11463
    %v11900 = vadd.f32 %v10562, %v11521
    %v11901 = vadd.f32 %v10563, %v11579
    %v11902 = vadd.f32 %v10564, %v11637
    %v11903 = vadd.f32 %v10565, %v11695
    %v11904 = vadd.f32 %v10566, %v11753
    %v11905 = vadd.f32 %v10567, %v11811
    %v11906 = vadd.f32 %v10568, %v11869
    %v11907 = vadd.f32 %v10569, %v11465
    %v11908 = vadd.f32 %v10570, %v11523
    %v11909 = vadd.f32 %v10571, %v11581
    %v11910 = vadd.f32 %v10572, %v11639
    %v11911 = vadd.f32 %v10573, %v11697
    %v11912 = vadd.f32 %v10574, %v11755
    %v11913 = vadd.f32 %v10575, %v11813
    %v11914 = vadd.f32 %v10576, %v11871
    %v11915 = vadd.f32 %v10577, %v11468
    %v11916 = vadd.f32 %v10578, %v11526
    %v11917 = vadd.f32 %v10579, %v11584
    %v11918 = vadd.f32 %v10580, %v11642
    %v11919 = vadd.f32 %v10581, %v11700
    %v11920 = vadd.f32 %v10582, %v11758
    %v11921 = vadd.f32 %v10583, %v11816
    %v11922 = vadd.f32 %v10584, %v11874
    %v11923 = vadd.f32 %v10585, %v11470
    %v11924 = vadd.f32 %v10586, %v11528
    %v11925 = vadd.f32 %v10587, %v11586
    %v11926 = vadd.f32 %v10588, %v11644
    %v11927 = vadd.f32 %v10589, %v11702
    %v11928 = vadd.f32 %v10590, %v11760
    %v11929 = vadd.f32 %v10591, %v11818
    %v11930 = vadd.f32 %v10592, %v11876
    %v11931 = vadd.f32 %v10593, %v11473
    %v11932 = vadd.f32 %v10594, %v11531
    %v11933 = vadd.f32 %v10595, %v11589
    %v11934 = vadd.f32 %v10596, %v11647
    %v11935 = vadd.f32 %v10597, %v11705
    %v11936 = vadd.f32 %v10598, %v11763
    %v11937 = vadd.f32 %v10599, %v11821
    %v11938 = vadd.f32 %v10600, %v11879
    %v11939 = vadd.f32 %v10601, %v11475
    %v11940 = vadd.f32 %v10602, %v11533
    %v11941 = vadd.f32 %v10603, %v11591
    %v11942 = vadd.f32 %v10604, %v11649
    %v11943 = vadd.f32 %v10605, %v11707
    %v11944 = vadd.f32 %v10606, %v11765
    %v11945 = vadd.f32 %v10607, %v11823
    %v11946 = vadd.f32 %v10608, %v11881
    %v11947 = vpack.c.bf16 %v11891, %v11883
    %v11948 = vpack.c.bf16 %v11892, %v11884
    %v11949 = vpack.c.bf16 %v11893, %v11885
    %v11950 = vpack.c.bf16 %v11894, %v11886
    %v11951 = vpack.c.bf16 %v11895, %v11887
    %v11952 = vpack.c.bf16 %v11896, %v11888
    %v11953 = vpack.c.bf16 %v11897, %v11889
    %v11954 = vpack.c.bf16 %v11898, %v11890
    %v11955 = vpack.c.bf16 %v11907, %v11899
    %v11956 = vpack.c.bf16 %v11908, %v11900
    %v11957 = vpack.c.bf16 %v11909, %v11901
    %v11958 = vpack.c.bf16 %v11910, %v11902
    %v11959 = vpack.c.bf16 %v11911, %v11903
    %v11960 = vpack.c.bf16 %v11912, %v11904
    %v11961 = vpack.c.bf16 %v11913, %v11905
    %v11962 = vpack.c.bf16 %v11914, %v11906
    %v11963 = vpack.c.bf16 %v11923, %v11915
    %v11964 = vpack.c.bf16 %v11924, %v11916
    %v11965 = vpack.c.bf16 %v11925, %v11917
    %v11966 = vpack.c.bf16 %v11926, %v11918
    %v11967 = vpack.c.bf16 %v11927, %v11919
    %v11968 = vpack.c.bf16 %v11928, %v11920
    %v11969 = vpack.c.bf16 %v11929, %v11921
    %v11970 = vpack.c.bf16 %v11930, %v11922
    %v11971 = vpack.c.bf16 %v11939, %v11931
    %v11972 = vpack.c.bf16 %v11940, %v11932
    %v11973 = vpack.c.bf16 %v11941, %v11933
    %v11974 = vpack.c.bf16 %v11942, %v11934
    %v11975 = vpack.c.bf16 %v11943, %v11935
    %v11976 = vpack.c.bf16 %v11944, %v11936
    %v11977 = vpack.c.bf16 %v11945, %v11937
    %v11978 = vpack.c.bf16 %v11946, %v11938
    %v11979 = vld [vmem:[#allocation9] sm:$0xff]
    %v11981 = vperm.slane %v11979, 0
    %v11982 = vperm.slane %v11979, 1
    %v11983 = vperm.slane %v11979, 2
    %v11984 = vperm.slane %v11979, 3
    %v11985 = vperm.slane %v11979, 4
    %v11986 = vperm.slane %v11979, 5
    %v11987 = vperm.slane %v11979, 6
    %v11988 = vperm.slane %v11979, 7
    %11997 = vmatpush.bf16.msra.mxu0 0
    %11998 = vmatpush.bf16.msra.mxu0 0
    %11999 = vmatpush.bf16.msra.mxu0 0
    %12000 = vmatpush.bf16.msra.mxu0 0
    %12001 = vmatpush.bf16.msra.mxu0 %v11971
    %12002 = vmatpush.bf16.msra.mxu0 %v11963
    %12003 = vmatpush.bf16.msra.mxu0 %v11955
    %12004 = vmatpush.bf16.msra.mxu0 %v11947
    %12005 = vmatmul.bf16.gmra.mxu0 %v631
    %v12006 = vpop.f32.mrf.mxu0
    %v12007 = vadd.f32 %v11981, %v12006
    %v12008 = vpop.f32.mrf.mxu0
    %v12009 = vadd.f32 %v11981, %v12008
    %12010 = vmatmul.bf16.gmra.mxu0 %v634
    %v12011 = vpop.f32.mrf.mxu0
    %v12012 = vadd.f32 %v11981, %v12011
    %v12013 = vpop.f32.mrf.mxu0
    %v12014 = vadd.f32 %v11981, %v12013
    %12015 = vmatmul.bf16.gmra.mxu0 %v637
    %v12016 = vpop.f32.mrf.mxu0
    %v12017 = vadd.f32 %v11981, %v12016
    %v12018 = vpop.f32.mrf.mxu0
    %v12019 = vadd.f32 %v11981, %v12018
    %12020 = vmatmul.bf16.gmra.mxu0 %v640
    %v12021 = vpop.f32.mrf.mxu0
    %v12022 = vadd.f32 %v11981, %v12021
    %v12023 = vpop.f32.mrf.mxu0
    %v12024 = vadd.f32 %v11981, %v12023
    %12025 = vdwg.mxu0
    %12026 = vmatpush.bf16.msra.mxu0 0
    %12027 = vmatpush.bf16.msra.mxu0 0
    %12028 = vmatpush.bf16.msra.mxu0 0
    %12029 = vmatpush.bf16.msra.mxu0 0
    %12030 = vmatpush.bf16.msra.mxu0 %v11972
    %12031 = vmatpush.bf16.msra.mxu0 %v11964
    %12032 = vmatpush.bf16.msra.mxu0 %v11956
    %12033 = vmatpush.bf16.msra.mxu0 %v11948
    %12034 = vmatmul.bf16.gmra.mxu0 %v631
    %v12035 = vpop.f32.mrf.mxu0
    %v12036 = vadd.f32 %v11982, %v12035
    %v12037 = vpop.f32.mrf.mxu0
    %v12038 = vadd.f32 %v11982, %v12037
    %12039 = vmatmul.bf16.gmra.mxu0 %v634
    %v12040 = vpop.f32.mrf.mxu0
    %v12041 = vadd.f32 %v11982, %v12040
    %v12042 = vpop.f32.mrf.mxu0
    %v12043 = vadd.f32 %v11982, %v12042
    %12044 = vmatmul.bf16.gmra.mxu0 %v637
    %v12045 = vpop.f32.mrf.mxu0
    %v12046 = vadd.f32 %v11982, %v12045
    %v12047 = vpop.f32.mrf.mxu0
    %v12048 = vadd.f32 %v11982, %v12047
    %12049 = vmatmul.bf16.gmra.mxu0 %v640
    %v12050 = vpop.f32.mrf.mxu0
    %v12051 = vadd.f32 %v11982, %v12050
    %v12052 = vpop.f32.mrf.mxu0
    %v12053 = vadd.f32 %v11982, %v12052
    %12054 = vdwg.mxu0
    %12055 = vmatpush.bf16.msra.mxu0 0
    %12056 = vmatpush.bf16.msra.mxu0 0
    %12057 = vmatpush.bf16.msra.mxu0 0
    %12058 = vmatpush.bf16.msra.mxu0 0
    %12059 = vmatpush.bf16.msra.mxu0 %v11973
    %12060 = vmatpush.bf16.msra.mxu0 %v11965
    %12061 = vmatpush.bf16.msra.mxu0 %v11957
    %12062 = vmatpush.bf16.msra.mxu0 %v11949
    %12063 = vmatmul.bf16.gmra.mxu0 %v631
    %v12064 = vpop.f32.mrf.mxu0
    %v12065 = vadd.f32 %v11983, %v12064
    %v12066 = vpop.f32.mrf.mxu0
    %v12067 = vadd.f32 %v11983, %v12066
    %12068 = vmatmul.bf16.gmra.mxu0 %v634
    %v12069 = vpop.f32.mrf.mxu0
    %v12070 = vadd.f32 %v11983, %v12069
    %v12071 = vpop.f32.mrf.mxu0
    %v12072 = vadd.f32 %v11983, %v12071
    %12073 = vmatmul.bf16.gmra.mxu0 %v637
    %v12074 = vpop.f32.mrf.mxu0
    %v12075 = vadd.f32 %v11983, %v12074
    %v12076 = vpop.f32.mrf.mxu0
    %v12077 = vadd.f32 %v11983, %v12076
    %12078 = vmatmul.bf16.gmra.mxu0 %v640
    %v12079 = vpop.f32.mrf.mxu0
    %v12080 = vadd.f32 %v11983, %v12079
    %v12081 = vpop.f32.mrf.mxu0
    %v12082 = vadd.f32 %v11983, %v12081
    %12083 = vdwg.mxu0
    %12084 = vmatpush.bf16.msra.mxu0 0
    %12085 = vmatpush.bf16.msra.mxu0 0
    %12086 = vmatpush.bf16.msra.mxu0 0
    %12087 = vmatpush.bf16.msra.mxu0 0
    %12088 = vmatpush.bf16.msra.mxu0 %v11974
    %12089 = vmatpush.bf16.msra.mxu0 %v11966
    %12090 = vmatpush.bf16.msra.mxu0 %v11958
    %12091 = vmatpush.bf16.msra.mxu0 %v11950
    %12092 = vmatmul.bf16.gmra.mxu0 %v631
    %v12093 = vpop.f32.mrf.mxu0
    %v12094 = vadd.f32 %v11984, %v12093
    %v12095 = vpop.f32.mrf.mxu0
    %v12096 = vadd.f32 %v11984, %v12095
    %12097 = vmatmul.bf16.gmra.mxu0 %v634
    %v12098 = vpop.f32.mrf.mxu0
    %v12099 = vadd.f32 %v11984, %v12098
    %v12100 = vpop.f32.mrf.mxu0
    %v12101 = vadd.f32 %v11984, %v12100
    %12102 = vmatmul.bf16.gmra.mxu0 %v637
    %v12103 = vpop.f32.mrf.mxu0
    %v12104 = vadd.f32 %v11984, %v12103
    %v12105 = vpop.f32.mrf.mxu0
    %v12106 = vadd.f32 %v11984, %v12105
    %12107 = vmatmul.bf16.gmra.mxu0 %v640
    %v12108 = vpop.f32.mrf.mxu0
    %v12109 = vadd.f32 %v11984, %v12108
    %v12110 = vpop.f32.mrf.mxu0
    %v12111 = vadd.f32 %v11984, %v12110
    %12112 = vdwg.mxu0
    %12113 = vmatpush.bf16.msra.mxu0 0
    %12114 = vmatpush.bf16.msra.mxu0 0
    %12115 = vmatpush.bf16.msra.mxu0 0
    %12116 = vmatpush.bf16.msra.mxu0 0
    %12117 = vmatpush.bf16.msra.mxu0 %v11975
    %12118 = vmatpush.bf16.msra.mxu0 %v11967
    %12119 = vmatpush.bf16.msra.mxu0 %v11959
    %12120 = vmatpush.bf16.msra.mxu0 %v11951
    %12121 = vmatmul.bf16.gmra.mxu0 %v631
    %v12122 = vpop.f32.mrf.mxu0
    %v12123 = vadd.f32 %v11985, %v12122
    %v12124 = vpop.f32.mrf.mxu0
    %v12125 = vadd.f32 %v11985, %v12124
    %12126 = vmatmul.bf16.gmra.mxu0 %v634
    %v12127 = vpop.f32.mrf.mxu0
    %v12128 = vadd.f32 %v11985, %v12127
    %v12129 = vpop.f32.mrf.mxu0
    %v12130 = vadd.f32 %v11985, %v12129
    %12131 = vmatmul.bf16.gmra.mxu0 %v637
    %v12132 = vpop.f32.mrf.mxu0
    %v12133 = vadd.f32 %v11985, %v12132
    %v12134 = vpop.f32.mrf.mxu0
    %v12135 = vadd.f32 %v11985, %v12134
    %12136 = vmatmul.bf16.gmra.mxu0 %v640
    %v12137 = vpop.f32.mrf.mxu0
    %v12138 = vadd.f32 %v11985, %v12137
    %v12139 = vpop.f32.mrf.mxu0
    %v12140 = vadd.f32 %v11985, %v12139
    %12141 = vdwg.mxu0
    %12142 = vmatpush.bf16.msra.mxu0 0
    %12143 = vmatpush.bf16.msra.mxu0 0
    %12144 = vmatpush.bf16.msra.mxu0 0
    %12145 = vmatpush.bf16.msra.mxu0 0
    %12146 = vmatpush.bf16.msra.mxu0 %v11976
    %12147 = vmatpush.bf16.msra.mxu0 %v11968
    %12148 = vmatpush.bf16.msra.mxu0 %v11960
    %12149 = vmatpush.bf16.msra.mxu0 %v11952
    %12150 = vmatmul.bf16.gmra.mxu0 %v631
    %v12151 = vpop.f32.mrf.mxu0
    %v12152 = vadd.f32 %v11986, %v12151
    %v12153 = vpop.f32.mrf.mxu0
    %v12154 = vadd.f32 %v11986, %v12153
    %12155 = vmatmul.bf16.gmra.mxu0 %v634
    %v12156 = vpop.f32.mrf.mxu0
    %v12157 = vadd.f32 %v11986, %v12156
    %v12158 = vpop.f32.mrf.mxu0
    %v12159 = vadd.f32 %v11986, %v12158
    %12160 = vmatmul.bf16.gmra.mxu0 %v637
    %v12161 = vpop.f32.mrf.mxu0
    %v12162 = vadd.f32 %v11986, %v12161
    %v12163 = vpop.f32.mrf.mxu0
    %v12164 = vadd.f32 %v11986, %v12163
    %12165 = vmatmul.bf16.gmra.mxu0 %v640
    %v12166 = vpop.f32.mrf.mxu0
    %v12167 = vadd.f32 %v11986, %v12166
    %v12168 = vpop.f32.mrf.mxu0
    %v12169 = vadd.f32 %v11986, %v12168
    %12170 = vdwg.mxu0
    %12171 = vmatpush.bf16.msra.mxu0 0
    %12172 = vmatpush.bf16.msra.mxu0 0
    %12173 = vmatpush.bf16.msra.mxu0 0
    %12174 = vmatpush.bf16.msra.mxu0 0
    %12175 = vmatpush.bf16.msra.mxu0 %v11977
    %12176 = vmatpush.bf16.msra.mxu0 %v11969
    %12177 = vmatpush.bf16.msra.mxu0 %v11961
    %12178 = vmatpush.bf16.msra.mxu0 %v11953
    %12179 = vmatmul.bf16.gmra.mxu0 %v631
    %v12180 = vpop.f32.mrf.mxu0
    %v12181 = vadd.f32 %v11987, %v12180
    %v12182 = vpop.f32.mrf.mxu0
    %v12183 = vadd.f32 %v11987, %v12182
    %12184 = vmatmul.bf16.gmra.mxu0 %v634
    %v12185 = vpop.f32.mrf.mxu0
    %v12186 = vadd.f32 %v11987, %v12185
    %v12187 = vpop.f32.mrf.mxu0
    %v12188 = vadd.f32 %v11987, %v12187
    %12189 = vmatmul.bf16.gmra.mxu0 %v637
    %v12190 = vpop.f32.mrf.mxu0
    %v12191 = vadd.f32 %v11987, %v12190
    %v12192 = vpop.f32.mrf.mxu0
    %v12193 = vadd.f32 %v11987, %v12192
    %12194 = vmatmul.bf16.gmra.mxu0 %v640
    %v12195 = vpop.f32.mrf.mxu0
    %v12196 = vadd.f32 %v11987, %v12195
    %v12197 = vpop.f32.mrf.mxu0
    %v12198 = vadd.f32 %v11987, %v12197
    %12199 = vdwg.mxu0
    %12200 = vmatpush.bf16.msra.mxu0 0
    %12201 = vmatpush.bf16.msra.mxu0 0
    %12202 = vmatpush.bf16.msra.mxu0 0
    %12203 = vmatpush.bf16.msra.mxu0 0
    %12204 = vmatpush.bf16.msra.mxu0 %v11978
    %12205 = vmatpush.bf16.msra.mxu0 %v11970
    %12206 = vmatpush.bf16.msra.mxu0 %v11962
    %12207 = vmatpush.bf16.msra.mxu0 %v11954
    %12208 = vmatmul.bf16.gmra.mxu0 %v631
    %v12209 = vpop.f32.mrf.mxu0
    %v12210 = vadd.f32 %v11988, %v12209
    %v12211 = vpop.f32.mrf.mxu0
    %v12212 = vadd.f32 %v11988, %v12211
    %12213 = vmatmul.bf16.gmra.mxu0 %v634
    %v12214 = vpop.f32.mrf.mxu0
    %v12215 = vadd.f32 %v11988, %v12214
    %v12216 = vpop.f32.mrf.mxu0
    %v12217 = vadd.f32 %v11988, %v12216
    %12218 = vmatmul.bf16.gmra.mxu0 %v637
    %v12219 = vpop.f32.mrf.mxu0
    %v12220 = vadd.f32 %v11988, %v12219
    %v12221 = vpop.f32.mrf.mxu0
    %v12222 = vadd.f32 %v11988, %v12221
    %12223 = vmatmul.bf16.gmra.mxu0 %v640
    %v12224 = vpop.f32.mrf.mxu0
    %v12225 = vadd.f32 %v11988, %v12224
    %v12226 = vpop.f32.mrf.mxu0
    %v12227 = vadd.f32 %v11988, %v12226
    %12228 = vdwg.mxu0
    %v12229 = vmax.f32 %v12007, 0.0
    %v12230 = vmax.f32 %v12036, 0.0
    %v12231 = vmax.f32 %v12065, 0.0
    %v12232 = vmax.f32 %v12094, 0.0
    %v12233 = vmax.f32 %v12123, 0.0
    %v12234 = vmax.f32 %v12152, 0.0
    %v12235 = vmax.f32 %v12181, 0.0
    %v12236 = vmax.f32 %v12210, 0.0
    %v12237 = vmax.f32 %v12009, 0.0
    %v12238 = vmax.f32 %v12038, 0.0
    %v12239 = vmax.f32 %v12067, 0.0
    %v12240 = vmax.f32 %v12096, 0.0
    %v12241 = vmax.f32 %v12125, 0.0
    %v12242 = vmax.f32 %v12154, 0.0
    %v12243 = vmax.f32 %v12183, 0.0
    %v12244 = vmax.f32 %v12212, 0.0
    %v12245 = vmax.f32 %v12012, 0.0
    %v12246 = vmax.f32 %v12041, 0.0
    %v12247 = vmax.f32 %v12070, 0.0
    %v12248 = vmax.f32 %v12099, 0.0
    %v12249 = vmax.f32 %v12128, 0.0
    %v12250 = vmax.f32 %v12157, 0.0
    %v12251 = vmax.f32 %v12186, 0.0
    %v12252 = vmax.f32 %v12215, 0.0
    %v12253 = vmax.f32 %v12014, 0.0
    %v12254 = vmax.f32 %v12043, 0.0
    %v12255 = vmax.f32 %v12072, 0.0
    %v12256 = vmax.f32 %v12101, 0.0
    %v12257 = vmax.f32 %v12130, 0.0
    %v12258 = vmax.f32 %v12159, 0.0
    %v12259 = vmax.f32 %v12188, 0.0
    %v12260 = vmax.f32 %v12217, 0.0
    %v12261 = vmax.f32 %v12017, 0.0
    %v12262 = vmax.f32 %v12046, 0.0
    %v12263 = vmax.f32 %v12075, 0.0
    %v12264 = vmax.f32 %v12104, 0.0
    %v12265 = vmax.f32 %v12133, 0.0
    %v12266 = vmax.f32 %v12162, 0.0
    %v12267 = vmax.f32 %v12191, 0.0
    %v12268 = vmax.f32 %v12220, 0.0
    %v12269 = vmax.f32 %v12019, 0.0
    %v12270 = vmax.f32 %v12048, 0.0
    %v12271 = vmax.f32 %v12077, 0.0
    %v12272 = vmax.f32 %v12106, 0.0
    %v12273 = vmax.f32 %v12135, 0.0
    %v12274 = vmax.f32 %v12164, 0.0
    %v12275 = vmax.f32 %v12193, 0.0
    %v12276 = vmax.f32 %v12222, 0.0
    %v12277 = vmax.f32 %v12022, 0.0
    %v12278 = vmax.f32 %v12051, 0.0
    %v12279 = vmax.f32 %v12080, 0.0
    %v12280 = vmax.f32 %v12109, 0.0
    %v12281 = vmax.f32 %v12138, 0.0
    %v12282 = vmax.f32 %v12167, 0.0
    %v12283 = vmax.f32 %v12196, 0.0
    %v12284 = vmax.f32 %v12225, 0.0
    %v12285 = vmax.f32 %v12024, 0.0
    %v12286 = vmax.f32 %v12053, 0.0
    %v12287 = vmax.f32 %v12082, 0.0
    %v12288 = vmax.f32 %v12111, 0.0
    %v12289 = vmax.f32 %v12140, 0.0
    %v12290 = vmax.f32 %v12169, 0.0
    %v12291 = vmax.f32 %v12198, 0.0
    %v12292 = vmax.f32 %v12227, 0.0
    %v12293 = vadd.f32 %v12229, %v6535
    %v12294 = vadd.f32 %v12230, %v6536
    %v12295 = vadd.f32 %v12231, %v6537
    %v12296 = vadd.f32 %v12232, %v6538
    %v12297 = vadd.f32 %v12233, %v6539
    %v12298 = vadd.f32 %v12234, %v6540
    %v12299 = vadd.f32 %v12235, %v6541
    %v12300 = vadd.f32 %v12236, %v6542
    %v12301 = vadd.f32 %v12237, %v6543
    %v12302 = vadd.f32 %v12238, %v6544
    %v12303 = vadd.f32 %v12239, %v6545
    %v12304 = vadd.f32 %v12240, %v6546
    %v12305 = vadd.f32 %v12241, %v6547
    %v12306 = vadd.f32 %v12242, %v6548
    %v12307 = vadd.f32 %v12243, %v6549
    %v12308 = vadd.f32 %v12244, %v6550
    %v12309 = vadd.f32 %v12245, %v6551
    %v12310 = vadd.f32 %v12246, %v6552
    %v12311 = vadd.f32 %v12247, %v6553
    %v12312 = vadd.f32 %v12248, %v6554
    %v12313 = vadd.f32 %v12249, %v6555
    %v12314 = vadd.f32 %v12250, %v6556
    %v12315 = vadd.f32 %v12251, %v6557
    %v12316 = vadd.f32 %v12252, %v6558
    %v12317 = vadd.f32 %v12253, %v6559
    %v12318 = vadd.f32 %v12254, %v6560
    %v12319 = vadd.f32 %v12255, %v6561
    %v12320 = vadd.f32 %v12256, %v6562
    %v12321 = vadd.f32 %v12257, %v6563
    %v12322 = vadd.f32 %v12258, %v6564
    %v12323 = vadd.f32 %v12259, %v6565
    %v12324 = vadd.f32 %v12260, %v6566
    %v12325 = vadd.f32 %v12261, %v6567
    %v12326 = vadd.f32 %v12262, %v6568
    %v12327 = vadd.f32 %v12263, %v6569
    %v12328 = vadd.f32 %v12264, %v6570
    %v12329 = vadd.f32 %v12265, %v6571
    %v12330 = vadd.f32 %v12266, %v6572
    %v12331 = vadd.f32 %v12267, %v6573
    %v12332 = vadd.f32 %v12268, %v6574
    %v12333 = vadd.f32 %v12269, %v6575
    %v12334 = vadd.f32 %v12270, %v6576
    %v12335 = vadd.f32 %v12271, %v6577
    %v12336 = vadd.f32 %v12272, %v6578
    %v12337 = vadd.f32 %v12273, %v6579
    %v12338 = vadd.f32 %v12274, %v6580
    %v12339 = vadd.f32 %v12275, %v6581
    %v12340 = vadd.f32 %v12276, %v6582
    %v12341 = vadd.f32 %v12277, %v6583
    %v12342 = vadd.f32 %v12278, %v6584
    %v12343 = vadd.f32 %v12279, %v6585
    %v12344 = vadd.f32 %v12280, %v6586
    %v12345 = vadd.f32 %v12281, %v6587
    %v12346 = vadd.f32 %v12282, %v6588
    %v12347 = vadd.f32 %v12283, %v6589
    %v12348 = vadd.f32 %v12284, %v6590
    %v12349 = vadd.f32 %v12285, %v6591
    %v12350 = vadd.f32 %v12286, %v6592
    %v12351 = vadd.f32 %v12287, %v6593
    %v12352 = vadd.f32 %v12288, %v6594
    %v12353 = vadd.f32 %v12289, %v6595
    %v12354 = vadd.f32 %v12290, %v6596
    %v12355 = vadd.f32 %v12291, %v6597
    %v12356 = vadd.f32 %v12292, %v6598
    %v12357 = vpack.c.bf16 %v12301, %v12293
    %v12358 = vpack.c.bf16 %v12302, %v12294
    %v12359 = vpack.c.bf16 %v12303, %v12295
    %v12360 = vpack.c.bf16 %v12304, %v12296
    %v12361 = vpack.c.bf16 %v12305, %v12297
    %v12362 = vpack.c.bf16 %v12306, %v12298
    %v12363 = vpack.c.bf16 %v12307, %v12299
    %v12364 = vpack.c.bf16 %v12308, %v12300
    %v12365 = vpack.c.bf16 %v12317, %v12309
    %v12366 = vpack.c.bf16 %v12318, %v12310
    %v12367 = vpack.c.bf16 %v12319, %v12311
    %v12368 = vpack.c.bf16 %v12320, %v12312
    %v12369 = vpack.c.bf16 %v12321, %v12313
    %v12370 = vpack.c.bf16 %v12322, %v12314
    %v12371 = vpack.c.bf16 %v12323, %v12315
    %v12372 = vpack.c.bf16 %v12324, %v12316
    %v12373 = vpack.c.bf16 %v12333, %v12325
    %v12374 = vpack.c.bf16 %v12334, %v12326
    %v12375 = vpack.c.bf16 %v12335, %v12327
    %v12376 = vpack.c.bf16 %v12336, %v12328
    %v12377 = vpack.c.bf16 %v12337, %v12329
    %v12378 = vpack.c.bf16 %v12338, %v12330
    %v12379 = vpack.c.bf16 %v12339, %v12331
    %v12380 = vpack.c.bf16 %v12340, %v12332
    %v12381 = vpack.c.bf16 %v12349, %v12341
    %v12382 = vpack.c.bf16 %v12350, %v12342
    %v12383 = vpack.c.bf16 %v12351, %v12343
    %v12384 = vpack.c.bf16 %v12352, %v12344
    %v12385 = vpack.c.bf16 %v12353, %v12345
    %v12386 = vpack.c.bf16 %v12354, %v12346
    %v12387 = vpack.c.bf16 %v12355, %v12347
    %v12388 = vpack.c.bf16 %v12356, %v12348
    %v12389 = vld [vmem:[#allocation11] sm:$0xf]
    %v12390 = vld [vmem:[#allocation11 + $0x4] sm:$0xf]
    %v12391 = vld [vmem:[#allocation11 + $0x8] sm:$0xf]
    %v12392 = vld [vmem:[#allocation11 + $0xc] sm:$0xf]
    %v12393 = vld [vmem:[#allocation11 + $0x10] sm:$0xf]
    %v12394 = vld [vmem:[#allocation11 + $0x14] sm:$0xf]
    %v12395 = vld [vmem:[#allocation11 + $0x18] sm:$0xf]
    %v12396 = vld [vmem:[#allocation11 + $0x1c] sm:$0xf]
    %v12397 = vld [vmem:[#allocation11 + $0x20] sm:$0xf]
    %v12398 = vld [vmem:[#allocation11 + $0x24] sm:$0xf]
    %v12399 = vld [vmem:[#allocation11 + $0x28] sm:$0xf]
    %v12400 = vld [vmem:[#allocation11 + $0x2c] sm:$0xf]
    %v12401 = vld [vmem:[#allocation11 + $0x30] sm:$0xf]
    %v12402 = vld [vmem:[#allocation11 + $0x34] sm:$0xf]
    %v12403 = vld [vmem:[#allocation11 + $0x38] sm:$0xf]
    %v12404 = vld [vmem:[#allocation11 + $0x3c] sm:$0xf]
    %v12405 = vld [vmem:[#allocation11 + $0x40] sm:$0xf]
    %v12406 = vld [vmem:[#allocation11 + $0x44] sm:$0xf]
    %v12407 = vld [vmem:[#allocation11 + $0x48] sm:$0xf]
    %v12408 = vld [vmem:[#allocation11 + $0x4c] sm:$0xf]
    %v12409 = vld [vmem:[#allocation11 + $0x50] sm:$0xf]
    %v12410 = vld [vmem:[#allocation11 + $0x54] sm:$0xf]
    %v12411 = vld [vmem:[#allocation11 + $0x58] sm:$0xf]
    %v12412 = vld [vmem:[#allocation11 + $0x5c] sm:$0xf]
    %v12413 = vld [vmem:[#allocation11 + $0x60] sm:$0xf]
    %v12414 = vld [vmem:[#allocation11 + $0x64] sm:$0xf]
    %v12415 = vld [vmem:[#allocation11 + $0x68] sm:$0xf]
    %v12416 = vld [vmem:[#allocation11 + $0x6c] sm:$0xf]
    %v12417 = vld [vmem:[#allocation11 + $0x70] sm:$0xf]
    %v12418 = vld [vmem:[#allocation11 + $0x74] sm:$0xf]
    %v12419 = vld [vmem:[#allocation11 + $0x78] sm:$0xf]
    %v12420 = vld [vmem:[#allocation11 + $0x7c] sm:$0xf]
    %v12421 = vld [vmem:[#allocation11 + $0x80] sm:$0xf]
    %v12422 = vld [vmem:[#allocation11 + $0x84] sm:$0xf]
    %v12423 = vld [vmem:[#allocation11 + $0x88] sm:$0xf]
    %v12424 = vld [vmem:[#allocation11 + $0x8c] sm:$0xf]
    %v12425 = vld [vmem:[#allocation11 + $0x90] sm:$0xf]
    %v12426 = vld [vmem:[#allocation11 + $0x94] sm:$0xf]
    %v12427 = vld [vmem:[#allocation11 + $0x98] sm:$0xf]
    %v12428 = vld [vmem:[#allocation11 + $0x9c] sm:$0xf]
    %v12429 = vld [vmem:[#allocation11 + $0xa0] sm:$0xf]
    %v12430 = vld [vmem:[#allocation11 + $0xa4] sm:$0xf]
    %v12431 = vld [vmem:[#allocation11 + $0xa8] sm:$0xf]
    %v12432 = vld [vmem:[#allocation11 + $0xac] sm:$0xf]
    %v12433 = vld [vmem:[#allocation11 + $0xb0] sm:$0xf]
    %v12434 = vld [vmem:[#allocation11 + $0xb4] sm:$0xf]
    %v12435 = vld [vmem:[#allocation11 + $0xb8] sm:$0xf]
    %v12436 = vld [vmem:[#allocation11 + $0xbc] sm:$0xf]
    %v12437 = vld [vmem:[#allocation11 + $0xc0] sm:$0xf]
    %v12438 = vld [vmem:[#allocation11 + $0xc4] sm:$0xf]
    %v12439 = vld [vmem:[#allocation11 + $0xc8] sm:$0xf]
    %v12440 = vld [vmem:[#allocation11 + $0xcc] sm:$0xf]
    %v12441 = vld [vmem:[#allocation11 + $0xd0] sm:$0xf]
    %v12442 = vld [vmem:[#allocation11 + $0xd4] sm:$0xf]
    %v12443 = vld [vmem:[#allocation11 + $0xd8] sm:$0xf]
    %v12444 = vld [vmem:[#allocation11 + $0xdc] sm:$0xf]
    %v12445 = vld [vmem:[#allocation11 + $0xe0] sm:$0xf]
    %v12446 = vld [vmem:[#allocation11 + $0xe4] sm:$0xf]
    %v12447 = vld [vmem:[#allocation11 + $0xe8] sm:$0xf]
    %v12448 = vld [vmem:[#allocation11 + $0xec] sm:$0xf]
    %v12449 = vld [vmem:[#allocation11 + $0xf0] sm:$0xf]
    %v12450 = vld [vmem:[#allocation11 + $0xf4] sm:$0xf]
    %v12451 = vld [vmem:[#allocation11 + $0xf8] sm:$0xf]
    %v12452 = vld [vmem:[#allocation11 + $0xfc] sm:$0xf]
    %v12453 = vld [vmem:[#allocation11 + $0x100] sm:$0xf]
    %v12454 = vld [vmem:[#allocation11 + $0x104] sm:$0xf]
    %v12455 = vld [vmem:[#allocation11 + $0x108] sm:$0xf]
    %v12456 = vld [vmem:[#allocation11 + $0x10c] sm:$0xf]
    %v12457 = vld [vmem:[#allocation11 + $0x110] sm:$0xf]
    %v12458 = vld [vmem:[#allocation11 + $0x114] sm:$0xf]
    %v12459 = vld [vmem:[#allocation11 + $0x118] sm:$0xf]
    %v12460 = vld [vmem:[#allocation11 + $0x11c] sm:$0xf]
    %v12461 = vld [vmem:[#allocation11 + $0x120] sm:$0xf]
    %v12462 = vld [vmem:[#allocation11 + $0x124] sm:$0xf]
    %v12463 = vld [vmem:[#allocation11 + $0x128] sm:$0xf]
    %v12464 = vld [vmem:[#allocation11 + $0x12c] sm:$0xf]
    %v12465 = vld [vmem:[#allocation11 + $0x130] sm:$0xf]
    %v12466 = vld [vmem:[#allocation11 + $0x134] sm:$0xf]
    %v12467 = vld [vmem:[#allocation11 + $0x138] sm:$0xf]
    %v12468 = vld [vmem:[#allocation11 + $0x13c] sm:$0xf]
    %v12469 = vld [vmem:[#allocation11 + $0x140] sm:$0xf]
    %v12470 = vld [vmem:[#allocation11 + $0x144] sm:$0xf]
    %v12471 = vld [vmem:[#allocation11 + $0x148] sm:$0xf]
    %v12472 = vld [vmem:[#allocation11 + $0x14c] sm:$0xf]
    %v12473 = vld [vmem:[#allocation11 + $0x150] sm:$0xf]
    %v12474 = vld [vmem:[#allocation11 + $0x154] sm:$0xf]
    %v12475 = vld [vmem:[#allocation11 + $0x158] sm:$0xf]
    %v12476 = vld [vmem:[#allocation11 + $0x15c] sm:$0xf]
    %v12477 = vld [vmem:[#allocation11 + $0x160] sm:$0xf]
    %v12478 = vld [vmem:[#allocation11 + $0x164] sm:$0xf]
    %v12479 = vld [vmem:[#allocation11 + $0x168] sm:$0xf]
    %v12480 = vld [vmem:[#allocation11 + $0x16c] sm:$0xf]
    %v12481 = vld [vmem:[#allocation11 + $0x170] sm:$0xf]
    %v12482 = vld [vmem:[#allocation11 + $0x174] sm:$0xf]
    %v12483 = vld [vmem:[#allocation11 + $0x178] sm:$0xf]
    %v12484 = vld [vmem:[#allocation11 + $0x17c] sm:$0xf]
    %v12485 = vld [vmem:[#allocation11 + $0x180] sm:$0xf]
    %v12486 = vld [vmem:[#allocation11 + $0x184] sm:$0xf]
    %v12487 = vld [vmem:[#allocation11 + $0x188] sm:$0xf]
    %v12488 = vld [vmem:[#allocation11 + $0x18c] sm:$0xf]
    %v12489 = vld [vmem:[#allocation11 + $0x190] sm:$0xf]
    %v12490 = vld [vmem:[#allocation11 + $0x194] sm:$0xf]
    %v12491 = vld [vmem:[#allocation11 + $0x198] sm:$0xf]
    %v12492 = vld [vmem:[#allocation11 + $0x19c] sm:$0xf]
    %v12493 = vld [vmem:[#allocation11 + $0x1a0] sm:$0xf]
    %v12494 = vld [vmem:[#allocation11 + $0x1a4] sm:$0xf]
    %v12495 = vld [vmem:[#allocation11 + $0x1a8] sm:$0xf]
    %v12496 = vld [vmem:[#allocation11 + $0x1ac] sm:$0xf]
    %v12497 = vld [vmem:[#allocation11 + $0x1b0] sm:$0xf]
    %v12498 = vld [vmem:[#allocation11 + $0x1b4] sm:$0xf]
    %v12499 = vld [vmem:[#allocation11 + $0x1b8] sm:$0xf]
    %v12500 = vld [vmem:[#allocation11 + $0x1bc] sm:$0xf]
    %v12501 = vld [vmem:[#allocation11 + $0x1c0] sm:$0xf]
    %v12502 = vld [vmem:[#allocation11 + $0x1c4] sm:$0xf]
    %v12503 = vld [vmem:[#allocation11 + $0x1c8] sm:$0xf]
    %v12504 = vld [vmem:[#allocation11 + $0x1cc] sm:$0xf]
    %v12505 = vld [vmem:[#allocation11 + $0x1d0] sm:$0xf]
    %v12506 = vld [vmem:[#allocation11 + $0x1d4] sm:$0xf]
    %v12507 = vld [vmem:[#allocation11 + $0x1d8] sm:$0xf]
    %v12508 = vld [vmem:[#allocation11 + $0x1dc] sm:$0xf]
    %v12509 = vld [vmem:[#allocation11 + $0x1e0] sm:$0xf]
    %v12510 = vld [vmem:[#allocation11 + $0x1e4] sm:$0xf]
    %v12511 = vld [vmem:[#allocation11 + $0x1e8] sm:$0xf]
    %v12512 = vld [vmem:[#allocation11 + $0x1ec] sm:$0xf]
    %v12513 = vld [vmem:[#allocation11 + $0x1f0] sm:$0xf]
    %v12514 = vld [vmem:[#allocation11 + $0x1f4] sm:$0xf]
    %v12515 = vld [vmem:[#allocation11 + $0x1f8] sm:$0xf]
    %v12516 = vld [vmem:[#allocation11 + $0x1fc] sm:$0xf]
    %v12645 = vunpack.c.l.b16 %v12389
    %v12646 = vunpack.c.l.b16 %v12390
    %v12647 = vunpack.c.l.b16 %v12391
    %v12648 = vunpack.c.l.b16 %v12392
    %v12649 = vunpack.c.l.b16 %v12393
    %v12650 = vunpack.c.l.b16 %v12394
    %v12651 = vunpack.c.l.b16 %v12395
    %v12652 = vunpack.c.l.b16 %v12396
    %v12653 = vunpack.c.l.b16 %v12397
    %v12654 = vunpack.c.l.b16 %v12398
    %v12655 = vunpack.c.l.b16 %v12399
    %v12656 = vunpack.c.l.b16 %v12400
    %v12657 = vunpack.c.l.b16 %v12401
    %v12658 = vunpack.c.l.b16 %v12402
    %v12659 = vunpack.c.l.b16 %v12403
    %v12660 = vunpack.c.l.b16 %v12404
    %v12661 = vunpack.c.l.b16 %v12405
    %v12662 = vunpack.c.l.b16 %v12406
    %v12663 = vunpack.c.l.b16 %v12407
    %v12664 = vunpack.c.l.b16 %v12408
    %v12665 = vunpack.c.l.b16 %v12409
    %v12666 = vunpack.c.l.b16 %v12410
    %v12667 = vunpack.c.l.b16 %v12411
    %v12668 = vunpack.c.l.b16 %v12412
    %v12669 = vunpack.c.l.b16 %v12413
    %v12670 = vunpack.c.l.b16 %v12414
    %v12671 = vunpack.c.l.b16 %v12415
    %v12672 = vunpack.c.l.b16 %v12416
    %v12673 = vunpack.c.l.b16 %v12417
    %v12674 = vunpack.c.l.b16 %v12418
    %v12675 = vunpack.c.l.b16 %v12419
    %v12676 = vunpack.c.l.b16 %v12420
    %v12677 = vunpack.c.l.b16 %v12421
    %v12678 = vunpack.c.l.b16 %v12422
    %v12679 = vunpack.c.l.b16 %v12423
    %v12680 = vunpack.c.l.b16 %v12424
    %v12681 = vunpack.c.l.b16 %v12425
    %v12682 = vunpack.c.l.b16 %v12426
    %v12683 = vunpack.c.l.b16 %v12427
    %v12684 = vunpack.c.l.b16 %v12428
    %v12685 = vunpack.c.l.b16 %v12429
    %v12686 = vunpack.c.l.b16 %v12430
    %v12687 = vunpack.c.l.b16 %v12431
    %v12688 = vunpack.c.l.b16 %v12432
    %v12689 = vunpack.c.l.b16 %v12433
    %v12690 = vunpack.c.l.b16 %v12434
    %v12691 = vunpack.c.l.b16 %v12435
    %v12692 = vunpack.c.l.b16 %v12436
    %v12693 = vunpack.c.l.b16 %v12437
    %v12694 = vunpack.c.l.b16 %v12438
    %v12695 = vunpack.c.l.b16 %v12439
    %v12696 = vunpack.c.l.b16 %v12440
    %v12697 = vunpack.c.l.b16 %v12441
    %v12698 = vunpack.c.l.b16 %v12442
    %v12699 = vunpack.c.l.b16 %v12443
    %v12700 = vunpack.c.l.b16 %v12444
    %v12701 = vunpack.c.l.b16 %v12445
    %v12702 = vunpack.c.l.b16 %v12446
    %v12703 = vunpack.c.l.b16 %v12447
    %v12704 = vunpack.c.l.b16 %v12448
    %v12705 = vunpack.c.l.b16 %v12449
    %v12706 = vunpack.c.l.b16 %v12450
    %v12707 = vunpack.c.l.b16 %v12451
    %v12708 = vunpack.c.l.b16 %v12452
    %v12709 = vunpack.c.l.b16 %v12453
    %v12710 = vunpack.c.l.b16 %v12454
    %v12711 = vunpack.c.l.b16 %v12455
    %v12712 = vunpack.c.l.b16 %v12456
    %v12713 = vunpack.c.l.b16 %v12457
    %v12714 = vunpack.c.l.b16 %v12458
    %v12715 = vunpack.c.l.b16 %v12459
    %v12716 = vunpack.c.l.b16 %v12460
    %v12717 = vunpack.c.l.b16 %v12461
    %v12718 = vunpack.c.l.b16 %v12462
    %v12719 = vunpack.c.l.b16 %v12463
    %v12720 = vunpack.c.l.b16 %v12464
    %v12721 = vunpack.c.l.b16 %v12465
    %v12722 = vunpack.c.l.b16 %v12466
    %v12723 = vunpack.c.l.b16 %v12467
    %v12724 = vunpack.c.l.b16 %v12468
    %v12725 = vunpack.c.l.b16 %v12469
    %v12726 = vunpack.c.l.b16 %v12470
    %v12727 = vunpack.c.l.b16 %v12471
    %v12728 = vunpack.c.l.b16 %v12472
    %v12729 = vunpack.c.l.b16 %v12473
    %v12730 = vunpack.c.l.b16 %v12474
    %v12731 = vunpack.c.l.b16 %v12475
    %v12732 = vunpack.c.l.b16 %v12476
    %v12733 = vunpack.c.l.b16 %v12477
    %v12734 = vunpack.c.l.b16 %v12478
    %v12735 = vunpack.c.l.b16 %v12479
    %v12736 = vunpack.c.l.b16 %v12480
    %v12737 = vunpack.c.l.b16 %v12481
    %v12738 = vunpack.c.l.b16 %v12482
    %v12739 = vunpack.c.l.b16 %v12483
    %v12740 = vunpack.c.l.b16 %v12484
    %v12741 = vunpack.c.l.b16 %v12485
    %v12742 = vunpack.c.l.b16 %v12486
    %v12743 = vunpack.c.l.b16 %v12487
    %v12744 = vunpack.c.l.b16 %v12488
    %v12745 = vunpack.c.l.b16 %v12489
    %v12746 = vunpack.c.l.b16 %v12490
    %v12747 = vunpack.c.l.b16 %v12491
    %v12748 = vunpack.c.l.b16 %v12492
    %v12749 = vunpack.c.l.b16 %v12493
    %v12750 = vunpack.c.l.b16 %v12494
    %v12751 = vunpack.c.l.b16 %v12495
    %v12752 = vunpack.c.l.b16 %v12496
    %v12753 = vunpack.c.l.b16 %v12497
    %v12754 = vunpack.c.l.b16 %v12498
    %v12755 = vunpack.c.l.b16 %v12499
    %v12756 = vunpack.c.l.b16 %v12500
    %v12757 = vunpack.c.l.b16 %v12501
    %v12758 = vunpack.c.l.b16 %v12502
    %v12759 = vunpack.c.l.b16 %v12503
    %v12760 = vunpack.c.l.b16 %v12504
    %v12761 = vunpack.c.l.b16 %v12505
    %v12762 = vunpack.c.l.b16 %v12506
    %v12763 = vunpack.c.l.b16 %v12507
    %v12764 = vunpack.c.l.b16 %v12508
    %v12765 = vunpack.c.l.b16 %v12509
    %v12766 = vunpack.c.l.b16 %v12510
    %v12767 = vunpack.c.l.b16 %v12511
    %v12768 = vunpack.c.l.b16 %v12512
    %v12769 = vunpack.c.l.b16 %v12513
    %v12770 = vunpack.c.l.b16 %v12514
    %v12771 = vunpack.c.l.b16 %v12515
    %v12772 = vunpack.c.l.b16 %v12516
    %v12773 = vpack.c.b16 %v12646, %v12645
    %v12774 = vpack.c.b16 %v12648, %v12647
    %v12775 = vpack.c.b16 %v12650, %v12649
    %v12776 = vpack.c.b16 %v12652, %v12651
    %v12777 = vpack.c.b16 %v12654, %v12653
    %v12778 = vpack.c.b16 %v12656, %v12655
    %v12779 = vpack.c.b16 %v12658, %v12657
    %v12780 = vpack.c.b16 %v12660, %v12659
    %v12781 = vpack.c.b16 %v12662, %v12661
    %v12782 = vpack.c.b16 %v12664, %v12663
    %v12783 = vpack.c.b16 %v12666, %v12665
    %v12784 = vpack.c.b16 %v12668, %v12667
    %v12785 = vpack.c.b16 %v12670, %v12669
    %v12786 = vpack.c.b16 %v12672, %v12671
    %v12787 = vpack.c.b16 %v12674, %v12673
    %v12788 = vpack.c.b16 %v12676, %v12675
    %v12789 = vpack.c.b16 %v12678, %v12677
    %v12790 = vpack.c.b16 %v12680, %v12679
    %v12791 = vpack.c.b16 %v12682, %v12681
    %v12792 = vpack.c.b16 %v12684, %v12683
    %v12793 = vpack.c.b16 %v12686, %v12685
    %v12794 = vpack.c.b16 %v12688, %v12687
    %v12795 = vpack.c.b16 %v12690, %v12689
    %v12796 = vpack.c.b16 %v12692, %v12691
    %v12797 = vpack.c.b16 %v12694, %v12693
    %v12798 = vpack.c.b16 %v12696, %v12695
    %v12799 = vpack.c.b16 %v12698, %v12697
    %v12800 = vpack.c.b16 %v12700, %v12699
    %v12801 = vpack.c.b16 %v12702, %v12701
    %v12802 = vpack.c.b16 %v12704, %v12703
    %v12803 = vpack.c.b16 %v12706, %v12705
    %v12804 = vpack.c.b16 %v12708, %v12707
    %v12805 = vpack.c.b16 %v12710, %v12709
    %v12806 = vpack.c.b16 %v12712, %v12711
    %v12807 = vpack.c.b16 %v12714, %v12713
    %v12808 = vpack.c.b16 %v12716, %v12715
    %v12809 = vpack.c.b16 %v12718, %v12717
    %v12810 = vpack.c.b16 %v12720, %v12719
    %v12811 = vpack.c.b16 %v12722, %v12721
    %v12812 = vpack.c.b16 %v12724, %v12723
    %v12813 = vpack.c.b16 %v12726, %v12725
    %v12814 = vpack.c.b16 %v12728, %v12727
    %v12815 = vpack.c.b16 %v12730, %v12729
    %v12816 = vpack.c.b16 %v12732, %v12731
    %v12817 = vpack.c.b16 %v12734, %v12733
    %v12818 = vpack.c.b16 %v12736, %v12735
    %v12819 = vpack.c.b16 %v12738, %v12737
    %v12820 = vpack.c.b16 %v12740, %v12739
    %v12821 = vpack.c.b16 %v12742, %v12741
    %v12822 = vpack.c.b16 %v12744, %v12743
    %v12823 = vpack.c.b16 %v12746, %v12745
    %v12824 = vpack.c.b16 %v12748, %v12747
    %v12825 = vpack.c.b16 %v12750, %v12749
    %v12826 = vpack.c.b16 %v12752, %v12751
    %v12827 = vpack.c.b16 %v12754, %v12753
    %v12828 = vpack.c.b16 %v12756, %v12755
    %v12829 = vpack.c.b16 %v12758, %v12757
    %v12830 = vpack.c.b16 %v12760, %v12759
    %v12831 = vpack.c.b16 %v12762, %v12761
    %v12832 = vpack.c.b16 %v12764, %v12763
    %v12833 = vpack.c.b16 %v12766, %v12765
    %v12834 = vpack.c.b16 %v12768, %v12767
    %v12835 = vpack.c.b16 %v12770, %v12769
    %v12836 = vpack.c.b16 %v12772, %v12771
    %12901 = vmatpush.bf16.msra.mxu0 %v12780
    %12902 = vmatpush.bf16.msra.mxu0 %v12779
    %12903 = vmatpush.bf16.msra.mxu0 %v12778
    %12904 = vmatpush.bf16.msra.mxu0 %v12777
    %12905 = vmatpush.bf16.msra.mxu0 %v12776
    %12906 = vmatpush.bf16.msra.mxu0 %v12775
    %12907 = vmatpush.bf16.msra.mxu0 %v12774
    %12908 = vmatpush.bf16.msra.mxu0 %v12773
    %12909 = vmatmul.bf16.gmra.mxu0 %v12357
    %v12910 = vpop.f32.mrf.mxu0
    %v12911 = vadd.f32 0.0, %v12910
    %v12912 = vpop.f32.mrf.mxu0
    %v12913 = vadd.f32 0.0, %v12912
    %12914 = vmatmul.bf16.gmra.mxu0 %v12365
    %v12915 = vpop.f32.mrf.mxu0
    %v12916 = vadd.f32 0.0, %v12915
    %v12917 = vpop.f32.mrf.mxu0
    %v12918 = vadd.f32 0.0, %v12917
    %12919 = vmatmul.bf16.gmra.mxu0 %v12373
    %v12920 = vpop.f32.mrf.mxu0
    %v12921 = vadd.f32 0.0, %v12920
    %v12922 = vpop.f32.mrf.mxu0
    %v12923 = vadd.f32 0.0, %v12922
    %12924 = vmatmul.bf16.gmra.mxu0 %v12381
    %v12925 = vpop.f32.mrf.mxu0
    %v12926 = vadd.f32 0.0, %v12925
    %v12927 = vpop.f32.mrf.mxu0
    %v12928 = vadd.f32 0.0, %v12927
    %12929 = vdwg.mxu0
    %12930 = vmatpush.bf16.msra.mxu0 %v12788
    %12931 = vmatpush.bf16.msra.mxu0 %v12787
    %12932 = vmatpush.bf16.msra.mxu0 %v12786
    %12933 = vmatpush.bf16.msra.mxu0 %v12785
    %12934 = vmatpush.bf16.msra.mxu0 %v12784
    %12935 = vmatpush.bf16.msra.mxu0 %v12783
    %12936 = vmatpush.bf16.msra.mxu0 %v12782
    %12937 = vmatpush.bf16.msra.mxu0 %v12781
    %12938 = vmatmul.bf16.gmra.mxu0 %v12358
    %v12939 = vpop.f32.mrf.mxu0
    %v12940 = vadd.f32 %v12911, %v12939
    %v12941 = vpop.f32.mrf.mxu0
    %v12942 = vadd.f32 %v12913, %v12941
    %12943 = vmatmul.bf16.gmra.mxu0 %v12366
    %v12944 = vpop.f32.mrf.mxu0
    %v12945 = vadd.f32 %v12916, %v12944
    %v12946 = vpop.f32.mrf.mxu0
    %v12947 = vadd.f32 %v12918, %v12946
    %12948 = vmatmul.bf16.gmra.mxu0 %v12374
    %v12949 = vpop.f32.mrf.mxu0
    %v12950 = vadd.f32 %v12921, %v12949
    %v12951 = vpop.f32.mrf.mxu0
    %v12952 = vadd.f32 %v12923, %v12951
    %12953 = vmatmul.bf16.gmra.mxu0 %v12382
    %v12954 = vpop.f32.mrf.mxu0
    %v12955 = vadd.f32 %v12926, %v12954
    %v12956 = vpop.f32.mrf.mxu0
    %v12957 = vadd.f32 %v12928, %v12956
    %12958 = vdwg.mxu0
    %12959 = vmatpush.bf16.msra.mxu0 %v12796
    %12960 = vmatpush.bf16.msra.mxu0 %v12795
    %12961 = vmatpush.bf16.msra.mxu0 %v12794
    %12962 = vmatpush.bf16.msra.mxu0 %v12793
    %12963 = vmatpush.bf16.msra.mxu0 %v12792
    %12964 = vmatpush.bf16.msra.mxu0 %v12791
    %12965 = vmatpush.bf16.msra.mxu0 %v12790
    %12966 = vmatpush.bf16.msra.mxu0 %v12789
    %12967 = vmatmul.bf16.gmra.mxu0 %v12359
    %v12968 = vpop.f32.mrf.mxu0
    %v12969 = vadd.f32 %v12940, %v12968
    %v12970 = vpop.f32.mrf.mxu0
    %v12971 = vadd.f32 %v12942, %v12970
    %12972 = vmatmul.bf16.gmra.mxu0 %v12367
    %v12973 = vpop.f32.mrf.mxu0
    %v12974 = vadd.f32 %v12945, %v12973
    %v12975 = vpop.f32.mrf.mxu0
    %v12976 = vadd.f32 %v12947, %v12975
    %12977 = vmatmul.bf16.gmra.mxu0 %v12375
    %v12978 = vpop.f32.mrf.mxu0
    %v12979 = vadd.f32 %v12950, %v12978
    %v12980 = vpop.f32.mrf.mxu0
    %v12981 = vadd.f32 %v12952, %v12980
    %12982 = vmatmul.bf16.gmra.mxu0 %v12383
    %v12983 = vpop.f32.mrf.mxu0
    %v12984 = vadd.f32 %v12955, %v12983
    %v12985 = vpop.f32.mrf.mxu0
    %v12986 = vadd.f32 %v12957, %v12985
    %12987 = vdwg.mxu0
    %12988 = vmatpush.bf16.msra.mxu0 %v12804
    %12989 = vmatpush.bf16.msra.mxu0 %v12803
    %12990 = vmatpush.bf16.msra.mxu0 %v12802
    %12991 = vmatpush.bf16.msra.mxu0 %v12801
    %12992 = vmatpush.bf16.msra.mxu0 %v12800
    %12993 = vmatpush.bf16.msra.mxu0 %v12799
    %12994 = vmatpush.bf16.msra.mxu0 %v12798
    %12995 = vmatpush.bf16.msra.mxu0 %v12797
    %12996 = vmatmul.bf16.gmra.mxu0 %v12360
    %v12997 = vpop.f32.mrf.mxu0
    %v12998 = vadd.f32 %v12969, %v12997
    %v12999 = vpop.f32.mrf.mxu0
    %v13000 = vadd.f32 %v12971, %v12999
    %13001 = vmatmul.bf16.gmra.mxu0 %v12368
    %v13002 = vpop.f32.mrf.mxu0
    %v13003 = vadd.f32 %v12974, %v13002
    %v13004 = vpop.f32.mrf.mxu0
    %v13005 = vadd.f32 %v12976, %v13004
    %13006 = vmatmul.bf16.gmra.mxu0 %v12376
    %v13007 = vpop.f32.mrf.mxu0
    %v13008 = vadd.f32 %v12979, %v13007
    %v13009 = vpop.f32.mrf.mxu0
    %v13010 = vadd.f32 %v12981, %v13009
    %13011 = vmatmul.bf16.gmra.mxu0 %v12384
    %v13012 = vpop.f32.mrf.mxu0
    %v13013 = vadd.f32 %v12984, %v13012
    %v13014 = vpop.f32.mrf.mxu0
    %v13015 = vadd.f32 %v12986, %v13014
    %13016 = vdwg.mxu0
    %13017 = vmatpush.bf16.msra.mxu0 %v12812
    %13018 = vmatpush.bf16.msra.mxu0 %v12811
    %13019 = vmatpush.bf16.msra.mxu0 %v12810
    %13020 = vmatpush.bf16.msra.mxu0 %v12809
    %13021 = vmatpush.bf16.msra.mxu0 %v12808
    %13022 = vmatpush.bf16.msra.mxu0 %v12807
    %13023 = vmatpush.bf16.msra.mxu0 %v12806
    %13024 = vmatpush.bf16.msra.mxu0 %v12805
    %13025 = vmatmul.bf16.gmra.mxu0 %v12361
    %v13026 = vpop.f32.mrf.mxu0
    %v13027 = vadd.f32 %v12998, %v13026
    %v13028 = vpop.f32.mrf.mxu0
    %v13029 = vadd.f32 %v13000, %v13028
    %13030 = vmatmul.bf16.gmra.mxu0 %v12369
    %v13031 = vpop.f32.mrf.mxu0
    %v13032 = vadd.f32 %v13003, %v13031
    %v13033 = vpop.f32.mrf.mxu0
    %v13034 = vadd.f32 %v13005, %v13033
    %13035 = vmatmul.bf16.gmra.mxu0 %v12377
    %v13036 = vpop.f32.mrf.mxu0
    %v13037 = vadd.f32 %v13008, %v13036
    %v13038 = vpop.f32.mrf.mxu0
    %v13039 = vadd.f32 %v13010, %v13038
    %13040 = vmatmul.bf16.gmra.mxu0 %v12385
    %v13041 = vpop.f32.mrf.mxu0
    %v13042 = vadd.f32 %v13013, %v13041
    %v13043 = vpop.f32.mrf.mxu0
    %v13044 = vadd.f32 %v13015, %v13043
    %13045 = vdwg.mxu0
    %13046 = vmatpush.bf16.msra.mxu0 %v12820
    %13047 = vmatpush.bf16.msra.mxu0 %v12819
    %13048 = vmatpush.bf16.msra.mxu0 %v12818
    %13049 = vmatpush.bf16.msra.mxu0 %v12817
    %13050 = vmatpush.bf16.msra.mxu0 %v12816
    %13051 = vmatpush.bf16.msra.mxu0 %v12815
    %13052 = vmatpush.bf16.msra.mxu0 %v12814
    %13053 = vmatpush.bf16.msra.mxu0 %v12813
    %13054 = vmatmul.bf16.gmra.mxu0 %v12362
    %v13055 = vpop.f32.mrf.mxu0
    %v13056 = vadd.f32 %v13027, %v13055
    %v13057 = vpop.f32.mrf.mxu0
    %v13058 = vadd.f32 %v13029, %v13057
    %13059 = vmatmul.bf16.gmra.mxu0 %v12370
    %v13060 = vpop.f32.mrf.mxu0
    %v13061 = vadd.f32 %v13032, %v13060
    %v13062 = vpop.f32.mrf.mxu0
    %v13063 = vadd.f32 %v13034, %v13062
    %13064 = vmatmul.bf16.gmra.mxu0 %v12378
    %v13065 = vpop.f32.mrf.mxu0
    %v13066 = vadd.f32 %v13037, %v13065
    %v13067 = vpop.f32.mrf.mxu0
    %v13068 = vadd.f32 %v13039, %v13067
    %13069 = vmatmul.bf16.gmra.mxu0 %v12386
    %v13070 = vpop.f32.mrf.mxu0
    %v13071 = vadd.f32 %v13042, %v13070
    %v13072 = vpop.f32.mrf.mxu0
    %v13073 = vadd.f32 %v13044, %v13072
    %13074 = vdwg.mxu0
    %13075 = vmatpush.bf16.msra.mxu0 %v12828
    %13076 = vmatpush.bf16.msra.mxu0 %v12827
    %13077 = vmatpush.bf16.msra.mxu0 %v12826
    %13078 = vmatpush.bf16.msra.mxu0 %v12825
    %13079 = vmatpush.bf16.msra.mxu0 %v12824
    %13080 = vmatpush.bf16.msra.mxu0 %v12823
    %13081 = vmatpush.bf16.msra.mxu0 %v12822
    %13082 = vmatpush.bf16.msra.mxu0 %v12821
    %13083 = vmatmul.bf16.gmra.mxu0 %v12363
    %v13084 = vpop.f32.mrf.mxu0
    %v13085 = vadd.f32 %v13056, %v13084
    %v13086 = vpop.f32.mrf.mxu0
    %v13087 = vadd.f32 %v13058, %v13086
    %13088 = vmatmul.bf16.gmra.mxu0 %v12371
    %v13089 = vpop.f32.mrf.mxu0
    %v13090 = vadd.f32 %v13061, %v13089
    %v13091 = vpop.f32.mrf.mxu0
    %v13092 = vadd.f32 %v13063, %v13091
    %13093 = vmatmul.bf16.gmra.mxu0 %v12379
    %v13094 = vpop.f32.mrf.mxu0
    %v13095 = vadd.f32 %v13066, %v13094
    %v13096 = vpop.f32.mrf.mxu0
    %v13097 = vadd.f32 %v13068, %v13096
    %13098 = vmatmul.bf16.gmra.mxu0 %v12387
    %v13099 = vpop.f32.mrf.mxu0
    %v13100 = vadd.f32 %v13071, %v13099
    %v13101 = vpop.f32.mrf.mxu0
    %v13102 = vadd.f32 %v13073, %v13101
    %13103 = vdwg.mxu0
    %13104 = vmatpush.bf16.msra.mxu0 %v12836
    %13105 = vmatpush.bf16.msra.mxu0 %v12835
    %13106 = vmatpush.bf16.msra.mxu0 %v12834
    %13107 = vmatpush.bf16.msra.mxu0 %v12833
    %13108 = vmatpush.bf16.msra.mxu0 %v12832
    %13109 = vmatpush.bf16.msra.mxu0 %v12831
    %13110 = vmatpush.bf16.msra.mxu0 %v12830
    %13111 = vmatpush.bf16.msra.mxu0 %v12829
    %13112 = vmatmul.bf16.gmra.mxu0 %v12364
    %v13113 = vpop.f32.mrf.mxu0
    %v13114 = vadd.f32 %v13085, %v13113
    %v13115 = vpop.f32.mrf.mxu0
    %v13116 = vadd.f32 %v13087, %v13115
    %13117 = vmatmul.bf16.gmra.mxu0 %v12372
    %v13118 = vpop.f32.mrf.mxu0
    %v13119 = vadd.f32 %v13090, %v13118
    %v13120 = vpop.f32.mrf.mxu0
    %v13121 = vadd.f32 %v13092, %v13120
    %13122 = vmatmul.bf16.gmra.mxu0 %v12380
    %v13123 = vpop.f32.mrf.mxu0
    %v13124 = vadd.f32 %v13095, %v13123
    %v13125 = vpop.f32.mrf.mxu0
    %v13126 = vadd.f32 %v13097, %v13125
    %13127 = vmatmul.bf16.gmra.mxu0 %v12388
    %v13128 = vpop.f32.mrf.mxu0
    %v13129 = vadd.f32 %v13100, %v13128
    %v13130 = vpop.f32.mrf.mxu0
    %v13131 = vadd.f32 %v13102, %v13130
    %13132 = vdwg.mxu0
    %v13133 = vpack.c.bf16 %v13116, %v13114
    %v13134 = vpack.c.bf16 %v13121, %v13119
    %v13135 = vpack.c.bf16 %v13126, %v13124
    %v13136 = vpack.c.bf16 %v13131, %v13129
    %v13137 = vld [vmem:[#allocation12] sm:$0x1]
    %v13139 = vperm.slane %v13137, 0
    %13141 = vmatpush.bf16.msra.mxu0 0
    %13142 = vmatpush.bf16.msra.mxu0 0
    %13143 = vmatpush.bf16.msra.mxu0 0
    %13144 = vmatpush.bf16.msra.mxu0 0
    %13145 = vmatpush.bf16.msra.mxu0 %v13136
    %13146 = vmatpush.bf16.msra.mxu0 %v13135
    %13147 = vmatpush.bf16.msra.mxu0 %v13134
    %13148 = vmatpush.bf16.msra.mxu0 %v13133
    %13149 = vmatmul.bf16.gmra.mxu0 %v631
    %v13150 = vpop.f32.mrf.mxu0
    %v13151 = vadd.f32 %v13139, %v13150
    %v13152 = vpop.f32.mrf.mxu0
    %v13153 = vadd.f32 %v13139, %v13152
    %13154 = vmatmul.bf16.gmra.mxu0 %v634
    %v13155 = vpop.f32.mrf.mxu0
    %v13156 = vadd.f32 %v13139, %v13155
    %v13157 = vpop.f32.mrf.mxu0
    %v13158 = vadd.f32 %v13139, %v13157
    %13159 = vmatmul.bf16.gmra.mxu0 %v637
    %v13160 = vpop.f32.mrf.mxu0
    %v13161 = vadd.f32 %v13139, %v13160
    %v13162 = vpop.f32.mrf.mxu0
    %v13163 = vadd.f32 %v13139, %v13162
    %13164 = vmatmul.bf16.gmra.mxu0 %v640
    %v13165 = vpop.f32.mrf.mxu0
    %v13166 = vadd.f32 %v13139, %v13165
    %v13167 = vpop.f32.mrf.mxu0
    %v13168 = vadd.f32 %v13139, %v13167
    %13169 = vdwg.mxu0
    %v13170 = vmax.f32 %v13151, 0.0
    %v13171 = vmax.f32 %v13153, 0.0
    %v13172 = vmax.f32 %v13156, 0.0
    %v13173 = vmax.f32 %v13158, 0.0
    %v13174 = vmax.f32 %v13161, 0.0
    %v13175 = vmax.f32 %v13163, 0.0
    %v13176 = vmax.f32 %v13166, 0.0
    %v13177 = vmax.f32 %v13168, 0.0
    %v13178 = vpack.c.bf16 %v13171, %v13170
    %v13179 = vpack.c.bf16 %v13173, %v13172
    %v13180 = vpack.c.bf16 %v13175, %v13174
    %v13181 = vpack.c.bf16 %v13177, %v13176
    %v13182 = vld [vmem:[#allocation14] sm:$0xf]
    %v13183 = vld [vmem:[#allocation14 + $0x4] sm:$0xf]
    %v13184 = vld [vmem:[#allocation14 + $0x8] sm:$0xf]
    %v13185 = vld [vmem:[#allocation14 + $0xc] sm:$0xf]
    %v13186 = vld [vmem:[#allocation14 + $0x10] sm:$0xf]
    %v13187 = vld [vmem:[#allocation14 + $0x14] sm:$0xf]
    %v13188 = vld [vmem:[#allocation14 + $0x18] sm:$0xf]
    %v13189 = vld [vmem:[#allocation14 + $0x1c] sm:$0xf]
    %v13190 = vld [vmem:[#allocation14 + $0x20] sm:$0xf]
    %v13191 = vld [vmem:[#allocation14 + $0x24] sm:$0xf]
    %v13192 = vld [vmem:[#allocation14 + $0x28] sm:$0xf]
    %v13193 = vld [vmem:[#allocation14 + $0x2c] sm:$0xf]
    %v13194 = vld [vmem:[#allocation14 + $0x30] sm:$0xf]
    %v13195 = vld [vmem:[#allocation14 + $0x34] sm:$0xf]
    %v13196 = vld [vmem:[#allocation14 + $0x38] sm:$0xf]
    %v13197 = vld [vmem:[#allocation14 + $0x3c] sm:$0xf]
    %v13214 = vunpack.c.l.b16 %v13182
    %v13215 = vunpack.c.l.b16 %v13183
    %v13216 = vunpack.c.l.b16 %v13184
    %v13217 = vunpack.c.l.b16 %v13185
    %v13218 = vunpack.c.l.b16 %v13186
    %v13219 = vunpack.c.l.b16 %v13187
    %v13220 = vunpack.c.l.b16 %v13188
    %v13221 = vunpack.c.l.b16 %v13189
    %v13222 = vunpack.c.l.b16 %v13190
    %v13223 = vunpack.c.l.b16 %v13191
    %v13224 = vunpack.c.l.b16 %v13192
    %v13225 = vunpack.c.l.b16 %v13193
    %v13226 = vunpack.c.l.b16 %v13194
    %v13227 = vunpack.c.l.b16 %v13195
    %v13228 = vunpack.c.l.b16 %v13196
    %v13229 = vunpack.c.l.b16 %v13197
    %v13230 = vpack.c.b16 %v13215, %v13214
    %v13231 = vpack.c.b16 %v13217, %v13216
    %v13232 = vpack.c.b16 %v13219, %v13218
    %v13233 = vpack.c.b16 %v13221, %v13220
    %v13234 = vpack.c.b16 %v13223, %v13222
    %v13235 = vpack.c.b16 %v13225, %v13224
    %v13236 = vpack.c.b16 %v13227, %v13226
    %v13237 = vpack.c.b16 %v13229, %v13228
    %13246 = vmatpush.bf16.msra.mxu0 %v13237
    %13247 = vmatpush.bf16.msra.mxu0 %v13236
    %13248 = vmatpush.bf16.msra.mxu0 %v13235
    %13249 = vmatpush.bf16.msra.mxu0 %v13234
    %13250 = vmatpush.bf16.msra.mxu0 %v13233
    %13251 = vmatpush.bf16.msra.mxu0 %v13232
    %13252 = vmatpush.bf16.msra.mxu0 %v13231
    %13253 = vmatpush.bf16.msra.mxu0 %v13230
    %13254 = vmatmul.bf16.gmra.mxu0 %v13178
    %v13255 = vpop.f32.mrf.mxu0
    %v13256 = vadd.f32 0.0, %v13255
    %v13257 = vpop.f32.mrf.mxu0
    %v13258 = vadd.f32 0.0, %v13257
    %13259 = vmatmul.bf16.gmra.mxu0 %v13179
    %v13260 = vpop.f32.mrf.mxu0
    %v13261 = vadd.f32 0.0, %v13260
    %v13262 = vpop.f32.mrf.mxu0
    %v13263 = vadd.f32 0.0, %v13262
    %13264 = vmatmul.bf16.gmra.mxu0 %v13180
    %v13265 = vpop.f32.mrf.mxu0
    %v13266 = vadd.f32 0.0, %v13265
    %v13267 = vpop.f32.mrf.mxu0
    %v13268 = vadd.f32 0.0, %v13267
    %13269 = vmatmul.bf16.gmra.mxu0 %v13181
    %v13270 = vpop.f32.mrf.mxu0
    %v13271 = vadd.f32 0.0, %v13270
    %v13272 = vpop.f32.mrf.mxu0
    %v13273 = vadd.f32 0.0, %v13272
    %13274 = vdwg.mxu0
    %v13275 = vpack.c.bf16 %v13258, %v13256
    %v13276 = vpack.c.bf16 %v13263, %v13261
    %v13277 = vpack.c.bf16 %v13268, %v13266
    %v13278 = vpack.c.bf16 %v13273, %v13271
    %v13279 = vld [vmem:[#allocation15] sm:$0x1]
    %v13281 = vperm.slane %v13279, 0
    %13283 = vmatpush.bf16.msra.mxu0 0
    %13284 = vmatpush.bf16.msra.mxu0 0
    %13285 = vmatpush.bf16.msra.mxu0 0
    %13286 = vmatpush.bf16.msra.mxu0 0
    %13287 = vmatpush.bf16.msra.mxu0 %v13278
    %13288 = vmatpush.bf16.msra.mxu0 %v13277
    %13289 = vmatpush.bf16.msra.mxu0 %v13276
    %13290 = vmatpush.bf16.msra.mxu0 %v13275
    %13291 = vmatmul.bf16.gmra.mxu0 %v631
    %v13292 = vpop.f32.mrf.mxu0
    %v13293 = vadd.f32 %v13281, %v13292
    %v13294 = vpop.f32.mrf.mxu0
    %v13295 = vadd.f32 %v13281, %v13294
    %13296 = vmatmul.bf16.gmra.mxu0 %v634
    %v13297 = vpop.f32.mrf.mxu0
    %v13298 = vadd.f32 %v13281, %v13297
    %v13299 = vpop.f32.mrf.mxu0
    %v13300 = vadd.f32 %v13281, %v13299
    %13301 = vmatmul.bf16.gmra.mxu0 %v637
    %v13302 = vpop.f32.mrf.mxu0
    %v13303 = vadd.f32 %v13281, %v13302
    %v13304 = vpop.f32.mrf.mxu0
    %v13305 = vadd.f32 %v13281, %v13304
    %13306 = vmatmul.bf16.gmra.mxu0 %v640
    %v13307 = vpop.f32.mrf.mxu0
    %v13308 = vadd.f32 %v13281, %v13307
    %v13309 = vpop.f32.mrf.mxu0
    %v13310 = vadd.f32 %v13281, %v13309
    %13311 = vdwg.mxu0
    %v13312 = vmax.f32 %v13293, 0.0
    %v13313 = vmax.f32 %v13295, 0.0
    %v13314 = vmax.f32 %v13298, 0.0
    %v13315 = vmax.f32 %v13300, 0.0
    %v13316 = vmax.f32 %v13303, 0.0
    %v13317 = vmax.f32 %v13305, 0.0
    %v13318 = vmax.f32 %v13308, 0.0
    %v13319 = vmax.f32 %v13310, 0.0
    %v13320 = vlaneseq
    %v13321 = vand.u32 %v13320, 127
    %vm13322 = vcmp.lt.s32.totalorder %v13321, 8
    %v13323 = vsel %vm13322, %v13312, -1e+30
    %v13324 = vsel %vm13322, %v13313, -1e+30
    %v13325 = vsel %vm13322, %v13314, -1e+30
    %v13326 = vsel %vm13322, %v13315, -1e+30
    %v13327 = vsel %vm13322, %v13316, -1e+30
    %v13328 = vsel %vm13322, %v13317, -1e+30
    %v13329 = vsel %vm13322, %v13318, -1e+30
    %v13330 = vsel %vm13322, %v13319, -1e+30
    %13331 = vmax.xlane.f32.xlu0 %v13323
    %v13332 = vpop.xlane.xlu0 %13331
    %13333 = vmax.xlane.f32.xlu0 %v13324
    %v13334 = vpop.xlane.xlu0 %13333
    %13335 = vmax.xlane.f32.xlu0 %v13325
    %v13336 = vpop.xlane.xlu0 %13335
    %13337 = vmax.xlane.f32.xlu0 %v13326
    %v13338 = vpop.xlane.xlu0 %13337
    %13339 = vmax.xlane.f32.xlu0 %v13327
    %v13340 = vpop.xlane.xlu0 %13339
    %13341 = vmax.xlane.f32.xlu0 %v13328
    %v13342 = vpop.xlane.xlu0 %13341
    %13343 = vmax.xlane.f32.xlu0 %v13329
    %v13344 = vpop.xlane.xlu0 %13343
    %13345 = vmax.xlane.f32.xlu0 %v13330
    %v13346 = vpop.xlane.xlu0 %13345
    %v13347 = vsub.f32 %v13312, %v13332
    %v13348 = vsub.f32 %v13313, %v13334
    %v13349 = vsub.f32 %v13314, %v13336
    %v13350 = vsub.f32 %v13315, %v13338
    %v13351 = vsub.f32 %v13316, %v13340
    %v13352 = vsub.f32 %v13317, %v13342
    %v13353 = vsub.f32 %v13318, %v13344
    %v13354 = vsub.f32 %v13319, %v13346
    %v13355 = vmul.f32 %v13347, 1.442695
    %v13356 = vpow.pop %v13355
    %v13357 = vmul.f32 %v13348, 1.442695
    %v13358 = vpow.pop %v13357
    %v13359 = vmul.f32 %v13349, 1.442695
    %v13360 = vpow.pop %v13359
    %v13361 = vmul.f32 %v13350, 1.442695
    %v13362 = vpow.pop %v13361
    %v13363 = vmul.f32 %v13351, 1.442695
    %v13364 = vpow.pop %v13363
    %v13365 = vmul.f32 %v13352, 1.442695
    %v13366 = vpow.pop %v13365
    %v13367 = vmul.f32 %v13353, 1.442695
    %v13368 = vpow.pop %v13367
    %v13369 = vmul.f32 %v13354, 1.442695
    %v13370 = vpow.pop %v13369
    %v13371 = vsel %vm13322, %v13356, 0.0
    %v13372 = vsel %vm13322, %v13358, 0.0
    %v13373 = vsel %vm13322, %v13360, 0.0
    %v13374 = vsel %vm13322, %v13362, 0.0
    %v13375 = vsel %vm13322, %v13364, 0.0
    %v13376 = vsel %vm13322, %v13366, 0.0
    %v13377 = vsel %vm13322, %v13368, 0.0
    %v13378 = vsel %vm13322, %v13370, 0.0
    %13379 = vadd.xlane.f32.xlu0 %v13371
    %v13380 = vpop.xlane.xlu0 %13379
    %13381 = vadd.xlane.f32.xlu0 %v13372
    %v13382 = vpop.xlane.xlu0 %13381
    %13383 = vadd.xlane.f32.xlu0 %v13373
    %v13384 = vpop.xlane.xlu0 %13383
    %13385 = vadd.xlane.f32.xlu0 %v13374
    %v13386 = vpop.xlane.xlu0 %13385
    %13387 = vadd.xlane.f32.xlu0 %v13375
    %v13388 = vpop.xlane.xlu0 %13387
    %13389 = vadd.xlane.f32.xlu0 %v13376
    %v13390 = vpop.xlane.xlu0 %13389
    %13391 = vadd.xlane.f32.xlu0 %v13377
    %v13392 = vpop.xlane.xlu0 %13391
    %13393 = vadd.xlane.f32.xlu0 %v13378
    %v13394 = vpop.xlane.xlu0 %13393
    %v13395 = vlog2.pop %v13380
    %v13396 = vmul.f32 %v13395, 0.6931472
    %v13397 = vlog2.pop %v13382
    %v13398 = vmul.f32 %v13397, 0.6931472
    %v13399 = vlog2.pop %v13384
    %v13400 = vmul.f32 %v13399, 0.6931472
    %v13401 = vlog2.pop %v13386
    %v13402 = vmul.f32 %v13401, 0.6931472
    %v13403 = vlog2.pop %v13388
    %v13404 = vmul.f32 %v13403, 0.6931472
    %v13405 = vlog2.pop %v13390
    %v13406 = vmul.f32 %v13405, 0.6931472
    %v13407 = vlog2.pop %v13392
    %v13408 = vmul.f32 %v13407, 0.6931472
    %v13409 = vlog2.pop %v13394
    %v13410 = vmul.f32 %v13409, 0.6931472
    %v13411 = vadd.f32 %v13396, %v13332
    %v13412 = vadd.f32 %v13398, %v13334
    %v13413 = vadd.f32 %v13400, %v13336
    %v13414 = vadd.f32 %v13402, %v13338
    %v13415 = vadd.f32 %v13404, %v13340
    %v13416 = vadd.f32 %v13406, %v13342
    %v13417 = vadd.f32 %v13408, %v13344
    %v13418 = vadd.f32 %v13410, %v13346
    %v13419 = vsub.f32 %v13312, %v13411
    %v13420 = vsub.f32 %v13313, %v13412
    %v13421 = vsub.f32 %v13314, %v13413
    %v13422 = vsub.f32 %v13315, %v13414
    %v13423 = vsub.f32 %v13316, %v13415
    %v13424 = vsub.f32 %v13317, %v13416
    %v13425 = vsub.f32 %v13318, %v13417
    %v13426 = vsub.f32 %v13319, %v13418
    %v13427 = vsel %vm13322, %v13419, 0.0
    %v13428 = vsel %vm13322, %v13420, 0.0
    %v13429 = vsel %vm13322, %v13421, 0.0
    %v13430 = vsel %vm13322, %v13422, 0.0
    %v13431 = vsel %vm13322, %v13423, 0.0
    %v13432 = vsel %vm13322, %v13424, 0.0
    %v13433 = vsel %vm13322, %v13425, 0.0
    %v13434 = vsel %vm13322, %v13426, 0.0
    %13435 = vst [vmem:[%s12] sm:$0xff] %v13427
    %13436 = vst [vmem:[%s12 + $0x8] sm:$0xff] %v13428
    %13437 = vst [vmem:[%s12 + $0x10] sm:$0xff] %v13429
    %13438 = vst [vmem:[%s12 + $0x18] sm:$0xff] %v13430
    %13439 = vst [vmem:[%s12 + $0x20] sm:$0xff] %v13431
    %13440 = vst [vmem:[%s12 + $0x28] sm:$0xff] %v13432
    %13441 = vst [vmem:[%s12 + $0x30] sm:$0xff] %v13433
    %13442 = vst [vmem:[%s12 + $0x38] sm:$0xff] %v13434
    // Predicated region
    $region106: #{gcn_res_forward.1} parent=1 // pred_check
      _
    $region107: #{gcn_res_forward.1} parent=1 // pred_check_branch
      %13444 = sbr.rel (0) target = $region109
    $region108: #{gcn_res_forward.1} parent=1 // pred_region
      _
    $region109: #{gcn_res_forward.1} parent=1 // pred_fallthru
      _
    // Predicated region
    $region110: #{gcn_res_forward.1} parent=1 // pred_check
      _
    $region111: #{gcn_res_forward.1} parent=1 // pred_check_branch
      %13446 = sbr.rel (0) target = $region113
    $region112: #{gcn_res_forward.1} parent=1 // pred_region
      _
    $region113: #{gcn_res_forward.1} parent=1 // pred_fallthru
      _
    %13447 = vsyncpa [#allocation5], 1
    %13448 = vsyncpa [#allocation7], 1
    %13449 = vsyncpa [#allocation10], 1
    %13450 = vsyncpa [#allocation13], 1
    %13451 = vsyncpa [#allocation16], 1
  %13452 = vsyncmov [#allocation3]
  %s13453 = vpop.sfrf %13452
  %p13454 = scmp.eq.s32.totalorder %s13453, 0
  %p13455 = pneg %p13454
  %13457 = shalt.err (%p13455)
  %s13458 = scalar_lea.sflag [#allocation3], 1
  %13459 = vsyncmov %s13458
  %s13460 = vpop.sfrf %13459
  %p13461 = scmp.eq.s32.totalorder %s13460, 0
  %p13462 = pneg %p13461
  %13464 = shalt.err (%p13462)
  %s13465 = scalar_lea.sflag [#allocation3], 2
  %13466 = vsyncmov %s13465
  %s13467 = vpop.sfrf %13466
  %p13468 = scmp.eq.s32.totalorder %s13467, 0
  %p13469 = pneg %p13468
  %13471 = shalt.err (%p13469)

</llo_original>
